<compile_context>
chip_gen: v7x
topology: tpu7x:2x2x1
jax: 0.10.0
libtpu: 0.0.40
codegen_flags: <defaults>
</compile_context>

<pallas_src>
import math
import jax
import jax.numpy as jnp
from jax.experimental import pallas as pl
from jax.experimental.pallas import tpu as pltpu

VOCAB = 100
HIDDEN = 32
NUM_HEADS = 2
HEAD_DIM = HIDDEN // NUM_HEADS
INTERMEDIATE = 4 * HIDDEN
NUM_LAYERS = 2
MAX_POS = 64
PAD_ID = 1
LN_EPS = 1e-5


def _layer_norm(x, gamma, beta):
    mu = jnp.mean(x, axis=-1, keepdims=True)
    var = jnp.mean((x - mu) ** 2, axis=-1, keepdims=True)
    return (x - mu) * jax.lax.rsqrt(var + LN_EPS) * gamma + beta


# --------------------------- fused Pallas kernel ------------------------------

def aristo_fused_kernel(x_ref, mask_ref, emb_ln_ref,
                        wqkv_ref, bqkv_ref, wo_ref, bo_ref, ln1_ref,
                        wi_ref, bi_ref, wf_ref, bf_ref, ln2_ref,
                        cw1_ref, cb1_ref, cw2_ref, cb2_ref,
                        o_ref):
    BS, H = x_ref.shape               # (B*S, H), lane-dense activation slab
    S = mask_ref.shape[2]
    B = BS // S

    emb_ln = emb_ln_ref[...]          # (2, H): row 0 = gamma, row 1 = beta
    x = _layer_norm(x_ref[...], emb_ln[0:1, :], emb_ln[1:2, :])

    # HF-style additive extended attention mask, computed once for all layers.
    bias = (1.0 - mask_ref[...]) * -10000.0           # (B, 1, S)
    scale = 1.0 / math.sqrt(HEAD_DIM)

    for l in range(NUM_LAYERS):                       # static unroll over layers
        # ---- self-attention: fused QKV projection, one MXU push ----
        qkv = jnp.dot(x, wqkv_ref[l], preferred_element_type=jnp.float32) + bqkv_ref[l]
        q = qkv[:, 0 * H:1 * H].reshape(B, S, H)
        k = qkv[:, 1 * H:2 * H].reshape(B, S, H)
        v = qkv[:, 2 * H:3 * H].reshape(B, S, H)

        ctx_heads = []
        for h in range(NUM_HEADS):                    # static (2 heads), batched over B
            sl = slice(h * HEAD_DIM, (h + 1) * HEAD_DIM)
            qh, kh, vh = q[..., sl], k[..., sl], v[..., sl]
            scores = jnp.einsum('bqd,bkd->bqk', qh, kh,
                                preferred_element_type=jnp.float32) * scale
            scores = scores + bias                    # broadcast over query rows
            m = jnp.max(scores, axis=-1, keepdims=True)
            e = jnp.exp(scores - m)
            p = e * pl.reciprocal(jnp.sum(e, axis=-1, keepdims=True), approx=True)
            ctx_heads.append(jnp.einsum('bqk,bkd->bqd', p, vh,
                                        preferred_element_type=jnp.float32))
        ctx = jnp.concatenate(ctx_heads, axis=-1).reshape(BS, H)

        attn_out = jnp.dot(ctx, wo_ref[l], preferred_element_type=jnp.float32) + bo_ref[l]
        ln1 = ln1_ref[l]                              # (2, H)
        x = _layer_norm(x + attn_out, ln1[0:1, :], ln1[1:2, :])

        # ---- feed-forward ----
        # TODO(synk): HF RoBERTa uses exact erf-based GELU; tanh approximation used here.
        hmid = jax.nn.gelu(
            jnp.dot(x, wi_ref[l], preferred_element_type=jnp.float32) + bi_ref[l],
            approximate=True)
        ffn = jnp.dot(hmid, wf_ref[l], preferred_element_type=jnp.float32) + bf_ref[l]
        ln2 = ln2_ref[l]
        x = _layer_norm(x + ffn, ln2[0:1, :], ln2[1:2, :])

    # ---- classification head on the <s> token of every example ----
    cls = x.reshape(B, S, H)[:, 0, :]                 # (B, H)
    hcls = jnp.tanh(jnp.dot(cls, cw1_ref[...],
                            preferred_element_type=jnp.float32) + cb1_ref[...])
    o_ref[...] = jnp.dot(hcls, cw2_ref[...],
                         preferred_element_type=jnp.float32) + cb2_ref[...]


# --------------------------- wrapper ------------------------------------------

def _full_spec(shape):
    n = len(shape)
    return pl.BlockSpec(shape, lambda i, n=n: (0,) * n)


def aristo_forward(params, input_ids, attention_mask):
    """input_ids, attention_mask: (bs, nc, S) -> logits (bs, nc)."""
    bs, nc, S = input_ids.shape
    B = bs * nc
    ids = input_ids.reshape(B, S)
    mask = attention_mask.reshape(B, S).astype(jnp.float32)

    # RoBERTa embeddings: word + learned position (pad-aware) + token_type(0).
    # TODO(synk): embedding gather and dropout (eval no-op) kept in plain JAX glue.
    not_pad = (ids != PAD_ID).astype(jnp.int32)
    pos_ids = jnp.cumsum(not_pad, axis=1) * not_pad + PAD_ID
    emb = (jnp.take(params['word_emb'], ids, axis=0)
           + jnp.take(params['pos_emb'], pos_ids, axis=0)
           + params['type_emb'][0][None, None, :])
    x2d = emb.reshape(B * S, HIDDEN)                  # lane-dense activation slab
    mask3 = mask[:, None, :]                          # (B, 1, S)

    H, I, L = HIDDEN, INTERMEDIATE, NUM_LAYERS
    in_specs = [
        _full_spec((B * S, H)),                       # x
        _full_spec((B, 1, S)),                        # attention mask
        _full_spec((2, H)),                           # emb LN (gamma; beta)
        _full_spec((L, H, 3 * H)), _full_spec((L, 1, 3 * H)),   # fused QKV
        _full_spec((L, H, H)), _full_spec((L, 1, H)),           # attn output proj
        _full_spec((L, 2, H)),                                  # LN1 (gamma; beta)
        _full_spec((L, H, I)), _full_spec((L, 1, I)),           # FFN in
        _full_spec((L, I, H)), _full_spec((L, 1, H)),           # FFN out
        _full_spec((L, 2, H)),                                  # LN2 (gamma; beta)
        _full_spec((H, H)), _full_spec((1, H)),                 # classifier dense
        _full_spec((H, 1)), _full_spec((1, 1)),                 # classifier out_proj
    ]
    logits = pl.pallas_call(
        aristo_fused_kernel,
        out_shape=jax.ShapeDtypeStruct((B, 1), jnp.float32),
        grid=(1,),
        in_specs=in_specs,
        out_specs=_full_spec((B, 1)),
        compiler_params=pltpu.CompilerParams(dimension_semantics=("arbitrary",)),
    )(x2d, mask3, params['emb_ln'],
      params['wqkv'], params['bqkv'], params['wo'], params['bo'], params['ln1'],
      params['wi'], params['bi'], params['wf'], params['bf'], params['ln2'],
      params['cls_w1'], params['cls_b1'], params['cls_w2'], params['cls_b2'])
    return logits.reshape(bs, nc)


# --------------------------- parameters ---------------------------------------

def init_params(key):
    keys = iter(jax.random.split(key, 64))
    nx = lambda *s: 0.02 * jax.random.normal(next(keys), s, dtype=jnp.float32)
    L, H, I = NUM_LAYERS, HIDDEN, INTERMEDIATE
    ln_pack = jnp.stack([jnp.ones((L, H), jnp.float32),
                         jnp.zeros((L, H), jnp.float32)], axis=1)   # (L, 2, H)
    params = {
        'word_emb': nx(VOCAB, H),
        'pos_emb': nx(MAX_POS, H),
        'type_emb': nx(2, H),
        'emb_ln': jnp.concatenate([jnp.ones((1, H), jnp.float32),
                                   jnp.zeros((1, H), jnp.float32)], axis=0),  # (2, H)
        # layer weights stacked with a leading layer axis; QKV fused along output dim
        'wqkv': nx(L, H, 3 * H), 'bqkv': jnp.zeros((L, 1, 3 * H), jnp.float32),
        'wo': nx(L, H, H),       'bo': jnp.zeros((L, 1, H), jnp.float32),
        'ln1': ln_pack,
        'wi': nx(L, H, I),       'bi': jnp.zeros((L, 1, I), jnp.float32),
        'wf': nx(L, I, H),       'bf': jnp.zeros((L, 1, H), jnp.float32),
        'ln2': ln_pack,
        'cls_w1': nx(H, H), 'cls_b1': jnp.zeros((1, H), jnp.float32),
        'cls_w2': nx(H, 1), 'cls_b2': jnp.zeros((1, 1), jnp.float32),
    }
    return params


if __name__ == "__main__":
    key = jax.random.PRNGKey(0)
    kp, ki = jax.random.split(key)

    params = init_params(kp)

    bs, nc, S = 2, 4, 8
    input_ids = jax.random.randint(ki, (bs, nc, S), 2, VOCAB, dtype=jnp.int32)
    attention_mask = jnp.ones((bs, nc, S), dtype=jnp.int32)
    # make the last choice padded at the tail (pad token + masked)
    input_ids = input_ids.at[:, nc - 1, -2:].set(PAD_ID)
    attention_mask = attention_mask.at[:, nc - 1, -2:].set(0)

    logits = aristo_forward(params, input_ids, attention_mask)
    jax.block_until_ready(logits)
    assert logits.shape == (bs, nc)
    print("KERNEL_OK")
</pallas_src>

<mosaic_0001>
module attributes {stable_mosaic.version = 11 : i64} {
  func.func @aristo_fused_kernel(%arg0: i32, %arg1: memref<64x32xf32, #tpu.memory_space<vmem>>, %arg2: memref<8x1x8xf32, #tpu.memory_space<vmem>>, %arg3: memref<2x32xf32, #tpu.memory_space<vmem>>, %arg4: memref<2x32x96xf32, #tpu.memory_space<vmem>>, %arg5: memref<2x1x96xf32, #tpu.memory_space<vmem>>, %arg6: memref<2x32x32xf32, #tpu.memory_space<vmem>>, %arg7: memref<2x1x32xf32, #tpu.memory_space<vmem>>, %arg8: memref<2x2x32xf32, #tpu.memory_space<vmem>>, %arg9: memref<2x32x128xf32, #tpu.memory_space<vmem>>, %arg10: memref<2x1x128xf32, #tpu.memory_space<vmem>>, %arg11: memref<2x128x32xf32, #tpu.memory_space<vmem>>, %arg12: memref<2x1x32xf32, #tpu.memory_space<vmem>>, %arg13: memref<2x2x32xf32, #tpu.memory_space<vmem>>, %arg14: memref<32x32xf32, #tpu.memory_space<vmem>>, %arg15: memref<1x32xf32, #tpu.memory_space<vmem>>, %arg16: memref<32x1xf32, #tpu.memory_space<vmem>>, %arg17: memref<1x1xf32, #tpu.memory_space<vmem>>, %arg18: memref<8x1xf32, #tpu.memory_space<vmem>>) attributes {dimension_semantics = [#tpu.dimension_semantics<arbitrary>], iteration_bounds = array<i64: 1>, scalar_prefetch = 0 : i64, scratch_operands = 0 : i64, tpu.core_type = #tpu.core_type<tc>, window_params = [{pipeline_mode = #tpu.pipeline_mode<synchronous>, transform_indices = @transform_0, window_bounds = array<i64: 64, 32>}, {pipeline_mode = #tpu.pipeline_mode<synchronous>, transform_indices = @transform_1, window_bounds = array<i64: 8, 1, 8>}, {pipeline_mode = #tpu.pipeline_mode<synchronous>, transform_indices = @transform_2, window_bounds = array<i64: 2, 32>}, {pipeline_mode = #tpu.pipeline_mode<synchronous>, transform_indices = @transform_3, window_bounds = array<i64: 2, 32, 96>}, {pipeline_mode = #tpu.pipeline_mode<synchronous>, transform_indices = @transform_4, window_bounds = array<i64: 2, 1, 96>}, {pipeline_mode = #tpu.pipeline_mode<synchronous>, transform_indices = @transform_5, window_bounds = array<i64: 2, 32, 32>}, {pipeline_mode = #tpu.pipeline_mode<synchronous>, transform_indices = @transform_6, window_bounds = array<i64: 2, 1, 32>}, {pipeline_mode = #tpu.pipeline_mode<synchronous>, transform_indices = @transform_7, window_bounds = array<i64: 2, 2, 32>}, {pipeline_mode = #tpu.pipeline_mode<synchronous>, transform_indices = @transform_8, window_bounds = array<i64: 2, 32, 128>}, {pipeline_mode = #tpu.pipeline_mode<synchronous>, transform_indices = @transform_9, window_bounds = array<i64: 2, 1, 128>}, {pipeline_mode = #tpu.pipeline_mode<synchronous>, transform_indices = @transform_10, window_bounds = array<i64: 2, 128, 32>}, {pipeline_mode = #tpu.pipeline_mode<synchronous>, transform_indices = @transform_11, window_bounds = array<i64: 2, 1, 32>}, {pipeline_mode = #tpu.pipeline_mode<synchronous>, transform_indices = @transform_12, window_bounds = array<i64: 2, 2, 32>}, {pipeline_mode = #tpu.pipeline_mode<synchronous>, transform_indices = @transform_13, window_bounds = array<i64: 32, 32>}, {pipeline_mode = #tpu.pipeline_mode<synchronous>, transform_indices = @transform_14, window_bounds = array<i64: 1, 32>}, {pipeline_mode = #tpu.pipeline_mode<synchronous>, transform_indices = @transform_15, window_bounds = array<i64: 32, 1>}, {pipeline_mode = #tpu.pipeline_mode<synchronous>, transform_indices = @transform_16, window_bounds = array<i64: 1, 1>}, {pipeline_mode = #tpu.pipeline_mode<synchronous>, transform_indices = @transform_17, window_bounds = array<i64: 8, 1>}]} {
    %c0 = arith.constant 0 : index
    %c0_0 = arith.constant 0 : index
    %0 = vector.load %arg3[%c0, %c0_0] : memref<2x32xf32, #tpu.memory_space<vmem>>, vector<2x32xf32>
    %c0_1 = arith.constant 0 : index
    %c0_2 = arith.constant 0 : index
    %1 = vector.load %arg1[%c0_1, %c0_2] : memref<64x32xf32, #tpu.memory_space<vmem>>, vector<64x32xf32>
    %2 = vector.extract_strided_slice %0 {offsets = [0, 0], sizes = [1, 32], strides = [1, 1]} : vector<2x32xf32> to vector<1x32xf32>
    %3 = vector.extract_strided_slice %0 {offsets = [1, 0], sizes = [1, 32], strides = [1, 1]} : vector<2x32xf32> to vector<1x32xf32>
    %cst = arith.constant dense<0.000000e+00> : vector<64xf32>
    %4 = vector.multi_reduction <add>, %1, %cst [1] : vector<64x32xf32> to vector<64xf32>
    %5 = vector.shape_cast %4 : vector<64xf32> to vector<64x1xf32>
    %cst_3 = arith.constant 3.200000e+01 : f32
    %6 = vector.broadcast %cst_3 : f32 to vector<64x1xf32>
    %7 = arith.divf %5, %6 : vector<64x1xf32>
    %8 = vector.broadcast %7 : vector<64x1xf32> to vector<64x32xf32>
    %9 = arith.subf %1, %8 : vector<64x32xf32>
    %10 = arith.mulf %9, %9 : vector<64x32xf32>
    %cst_4 = arith.constant dense<0.000000e+00> : vector<64xf32>
    %11 = vector.multi_reduction <add>, %10, %cst_4 [1] : vector<64x32xf32> to vector<64xf32>
    %12 = vector.shape_cast %11 : vector<64xf32> to vector<64x1xf32>
    %cst_5 = arith.constant 3.200000e+01 : f32
    %13 = vector.broadcast %cst_5 : f32 to vector<64x1xf32>
    %14 = arith.divf %12, %13 : vector<64x1xf32>
    %15 = vector.broadcast %7 : vector<64x1xf32> to vector<64x32xf32>
    %16 = arith.subf %1, %15 : vector<64x32xf32>
    %cst_6 = arith.constant 9.99999974E-6 : f32
    %17 = vector.broadcast %cst_6 : f32 to vector<64x1xf32>
    %18 = arith.addf %14, %17 : vector<64x1xf32>
    %19 = math.rsqrt %18 : vector<64x1xf32>
    %20 = vector.broadcast %19 : vector<64x1xf32> to vector<64x32xf32>
    %21 = arith.mulf %16, %20 : vector<64x32xf32>
    %22 = vector.broadcast %2 : vector<1x32xf32> to vector<64x32xf32>
    %23 = arith.mulf %21, %22 : vector<64x32xf32>
    %24 = vector.broadcast %3 : vector<1x32xf32> to vector<64x32xf32>
    %25 = arith.addf %23, %24 : vector<64x32xf32>
    %c0_7 = arith.constant 0 : index
    %c0_8 = arith.constant 0 : index
    %c0_9 = arith.constant 0 : index
    %26 = vector.load %arg2[%c0_7, %c0_8, %c0_9] : memref<8x1x8xf32, #tpu.memory_space<vmem>>, vector<8x1x8xf32>
    %cst_10 = arith.constant 1.000000e+00 : f32
    %27 = vector.broadcast %cst_10 : f32 to vector<8x1x8xf32>
    %28 = arith.subf %27, %26 : vector<8x1x8xf32>
    %cst_11 = arith.constant -1.000000e+04 : f32
    %29 = vector.broadcast %cst_11 : f32 to vector<8x1x8xf32>
    %30 = arith.mulf %28, %29 : vector<8x1x8xf32>
    %c0_12 = arith.constant 0 : index
    %c0_13 = arith.constant 0 : index
    %c0_14 = arith.constant 0 : index
    %31 = vector.load %arg4[%c0_12, %c0_13, %c0_14] : memref<2x32x96xf32, #tpu.memory_space<vmem>>, vector<1x32x96xf32>
    %32 = vector.shape_cast %31 : vector<1x32x96xf32> to vector<32x96xf32>
    %cst_15 = arith.constant dense<0.000000e+00> : vector<64x96xf32>
    %33 = tpu.matmul %25, %32, %cst_15 {dimension_numbers = #tpu.dot_dimension_numbers<[1], [0], [0], [1], [0, 0, 1, 1], [], []>} : vector<64x32xf32>, vector<32x96xf32>, vector<64x96xf32> -> vector<64x96xf32>
    %c0_16 = arith.constant 0 : index
    %c0_17 = arith.constant 0 : index
    %c0_18 = arith.constant 0 : index
    %34 = vector.load %arg5[%c0_16, %c0_17, %c0_18] : memref<2x1x96xf32, #tpu.memory_space<vmem>>, vector<1x1x96xf32>
    %35 = vector.shape_cast %34 : vector<1x1x96xf32> to vector<1x96xf32>
    %36 = vector.broadcast %35 : vector<1x96xf32> to vector<64x96xf32>
    %37 = arith.addf %33, %36 : vector<64x96xf32>
    %38 = vector.extract_strided_slice %37 {offsets = [0, 0], sizes = [64, 32], strides = [1, 1]} : vector<64x96xf32> to vector<64x32xf32>
    %39 = vector.shape_cast %38 : vector<64x32xf32> to vector<8x8x32xf32>
    %40 = vector.extract_strided_slice %37 {offsets = [0, 32], sizes = [64, 32], strides = [1, 1]} : vector<64x96xf32> to vector<64x32xf32>
    %41 = vector.shape_cast %40 : vector<64x32xf32> to vector<8x8x32xf32>
    %42 = vector.extract_strided_slice %37 {offsets = [0, 64], sizes = [64, 32], strides = [1, 1]} : vector<64x96xf32> to vector<64x32xf32>
    %43 = vector.shape_cast %42 : vector<64x32xf32> to vector<8x8x32xf32>
    %44 = vector.extract_strided_slice %39 {offsets = [0, 0, 0], sizes = [8, 8, 16], strides = [1, 1, 1]} : vector<8x8x32xf32> to vector<8x8x16xf32>
    %45 = vector.extract_strided_slice %41 {offsets = [0, 0, 0], sizes = [8, 8, 16], strides = [1, 1, 1]} : vector<8x8x32xf32> to vector<8x8x16xf32>
    %46 = vector.extract_strided_slice %43 {offsets = [0, 0, 0], sizes = [8, 8, 16], strides = [1, 1, 1]} : vector<8x8x32xf32> to vector<8x8x16xf32>
    "tpu.trace_start"() <{level = 10 : i32, message = "bqd,bkd->bqk"}> : () -> ()
    %cst_19 = arith.constant dense<0.000000e+00> : vector<8x8x8xf32>
    %47 = tpu.matmul %44, %45, %cst_19 {dimension_numbers = #tpu.dot_dimension_numbers<[2], [2], [1], [1], [0, 0, 0, 1, 1, 1], [0], [0]>} : vector<8x8x16xf32>, vector<8x8x16xf32>, vector<8x8x8xf32> -> vector<8x8x8xf32>
    "tpu.trace_stop"() : () -> ()
    %cst_20 = arith.constant 2.500000e-01 : f32
    %48 = vector.broadcast %cst_20 : f32 to vector<8x8x8xf32>
    %49 = arith.mulf %47, %48 : vector<8x8x8xf32>
    %50 = vector.broadcast %30 : vector<8x1x8xf32> to vector<8x8x8xf32>
    %51 = arith.addf %49, %50 : vector<8x8x8xf32>
    %cst_21 = arith.constant dense<0xFF800000> : vector<8x8xf32>
    %52 = vector.multi_reduction <maximumf>, %51, %cst_21 [2] : vector<8x8x8xf32> to vector<8x8xf32>
    %53 = vector.shape_cast %52 : vector<8x8xf32> to vector<8x8x1xf32>
    %54 = vector.broadcast %53 : vector<8x8x1xf32> to vector<8x8x8xf32>
    %55 = arith.subf %51, %54 : vector<8x8x8xf32>
    %56 = math.exp %55 : vector<8x8x8xf32>
    %cst_22 = arith.constant dense<0.000000e+00> : vector<8x8xf32>
    %57 = vector.multi_reduction <add>, %56, %cst_22 [2] : vector<8x8x8xf32> to vector<8x8xf32>
    %58 = vector.shape_cast %57 : vector<8x8xf32> to vector<8x8x1xf32>
    %59 = tpu.reciprocal %58 {approx = true} : vector<8x8x1xf32> -> vector<8x8x1xf32>
    %60 = vector.broadcast %59 : vector<8x8x1xf32> to vector<8x8x8xf32>
    %61 = arith.mulf %56, %60 : vector<8x8x8xf32>
    "tpu.trace_start"() <{level = 10 : i32, message = "bqk,bkd->bqd"}> : () -> ()
    %cst_23 = arith.constant dense<0.000000e+00> : vector<8x8x16xf32>
    %62 = tpu.matmul %61, %46, %cst_23 {dimension_numbers = #tpu.dot_dimension_numbers<[2], [1], [1], [2], [0, 0, 0, 1, 1, 2], [0], [0]>} : vector<8x8x8xf32>, vector<8x8x16xf32>, vector<8x8x16xf32> -> vector<8x8x16xf32>
    "tpu.trace_stop"() : () -> ()
    %63 = vector.extract_strided_slice %39 {offsets = [0, 0, 16], sizes = [8, 8, 16], strides = [1, 1, 1]} : vector<8x8x32xf32> to vector<8x8x16xf32>
    %64 = vector.extract_strided_slice %41 {offsets = [0, 0, 16], sizes = [8, 8, 16], strides = [1, 1, 1]} : vector<8x8x32xf32> to vector<8x8x16xf32>
    %65 = vector.extract_strided_slice %43 {offsets = [0, 0, 16], sizes = [8, 8, 16], strides = [1, 1, 1]} : vector<8x8x32xf32> to vector<8x8x16xf32>
    "tpu.trace_start"() <{level = 10 : i32, message = "bqd,bkd->bqk"}> : () -> ()
    %cst_24 = arith.constant dense<0.000000e+00> : vector<8x8x8xf32>
    %66 = tpu.matmul %63, %64, %cst_24 {dimension_numbers = #tpu.dot_dimension_numbers<[2], [2], [1], [1], [0, 0, 0, 1, 1, 1], [0], [0]>} : vector<8x8x16xf32>, vector<8x8x16xf32>, vector<8x8x8xf32> -> vector<8x8x8xf32>
    "tpu.trace_stop"() : () -> ()
    %cst_25 = arith.constant 2.500000e-01 : f32
    %67 = vector.broadcast %cst_25 : f32 to vector<8x8x8xf32>
    %68 = arith.mulf %66, %67 : vector<8x8x8xf32>
    %69 = vector.broadcast %30 : vector<8x1x8xf32> to vector<8x8x8xf32>
    %70 = arith.addf %68, %69 : vector<8x8x8xf32>
    %cst_26 = arith.constant dense<0xFF800000> : vector<8x8xf32>
    %71 = vector.multi_reduction <maximumf>, %70, %cst_26 [2] : vector<8x8x8xf32> to vector<8x8xf32>
    %72 = vector.shape_cast %71 : vector<8x8xf32> to vector<8x8x1xf32>
    %73 = vector.broadcast %72 : vector<8x8x1xf32> to vector<8x8x8xf32>
    %74 = arith.subf %70, %73 : vector<8x8x8xf32>
    %75 = math.exp %74 : vector<8x8x8xf32>
    %cst_27 = arith.constant dense<0.000000e+00> : vector<8x8xf32>
    %76 = vector.multi_reduction <add>, %75, %cst_27 [2] : vector<8x8x8xf32> to vector<8x8xf32>
    %77 = vector.shape_cast %76 : vector<8x8xf32> to vector<8x8x1xf32>
    %78 = tpu.reciprocal %77 {approx = true} : vector<8x8x1xf32> -> vector<8x8x1xf32>
    %79 = vector.broadcast %78 : vector<8x8x1xf32> to vector<8x8x8xf32>
    %80 = arith.mulf %75, %79 : vector<8x8x8xf32>
    "tpu.trace_start"() <{level = 10 : i32, message = "bqk,bkd->bqd"}> : () -> ()
    %cst_28 = arith.constant dense<0.000000e+00> : vector<8x8x16xf32>
    %81 = tpu.matmul %80, %65, %cst_28 {dimension_numbers = #tpu.dot_dimension_numbers<[2], [1], [1], [2], [0, 0, 0, 1, 1, 2], [0], [0]>} : vector<8x8x8xf32>, vector<8x8x16xf32>, vector<8x8x16xf32> -> vector<8x8x16xf32>
    "tpu.trace_stop"() : () -> ()
    %82 = tpu.concatenate %62, %81 in 2 : vector<8x8x16xf32>, vector<8x8x16xf32> -> vector<8x8x32xf32>
    %83 = vector.shape_cast %82 : vector<8x8x32xf32> to vector<64x32xf32>
    %c0_29 = arith.constant 0 : index
    %c0_30 = arith.constant 0 : index
    %c0_31 = arith.constant 0 : index
    %84 = vector.load %arg6[%c0_29, %c0_30, %c0_31] : memref<2x32x32xf32, #tpu.memory_space<vmem>>, vector<1x32x32xf32>
    %85 = vector.shape_cast %84 : vector<1x32x32xf32> to vector<32x32xf32>
    %cst_32 = arith.constant dense<0.000000e+00> : vector<64x32xf32>
    %86 = tpu.matmul %83, %85, %cst_32 {dimension_numbers = #tpu.dot_dimension_numbers<[1], [0], [0], [1], [0, 0, 1, 1], [], []>} : vector<64x32xf32>, vector<32x32xf32>, vector<64x32xf32> -> vector<64x32xf32>
    %c0_33 = arith.constant 0 : index
    %c0_34 = arith.constant 0 : index
    %c0_35 = arith.constant 0 : index
    %87 = vector.load %arg7[%c0_33, %c0_34, %c0_35] : memref<2x1x32xf32, #tpu.memory_space<vmem>>, vector<1x1x32xf32>
    %88 = vector.shape_cast %87 : vector<1x1x32xf32> to vector<1x32xf32>
    %89 = vector.broadcast %88 : vector<1x32xf32> to vector<64x32xf32>
    %90 = arith.addf %86, %89 : vector<64x32xf32>
    %c0_36 = arith.constant 0 : index
    %c0_37 = arith.constant 0 : index
    %c0_38 = arith.constant 0 : index
    %91 = vector.load %arg8[%c0_36, %c0_37, %c0_38] : memref<2x2x32xf32, #tpu.memory_space<vmem>>, vector<1x2x32xf32>
    %92 = vector.shape_cast %91 : vector<1x2x32xf32> to vector<2x32xf32>
    %93 = arith.addf %25, %90 : vector<64x32xf32>
    %94 = vector.extract_strided_slice %92 {offsets = [0, 0], sizes = [1, 32], strides = [1, 1]} : vector<2x32xf32> to vector<1x32xf32>
    %95 = vector.extract_strided_slice %92 {offsets = [1, 0], sizes = [1, 32], strides = [1, 1]} : vector<2x32xf32> to vector<1x32xf32>
    %cst_39 = arith.constant dense<0.000000e+00> : vector<64xf32>
    %96 = vector.multi_reduction <add>, %93, %cst_39 [1] : vector<64x32xf32> to vector<64xf32>
    %97 = vector.shape_cast %96 : vector<64xf32> to vector<64x1xf32>
    %cst_40 = arith.constant 3.200000e+01 : f32
    %98 = vector.broadcast %cst_40 : f32 to vector<64x1xf32>
    %99 = arith.divf %97, %98 : vector<64x1xf32>
    %100 = vector.broadcast %99 : vector<64x1xf32> to vector<64x32xf32>
    %101 = arith.subf %93, %100 : vector<64x32xf32>
    %102 = arith.mulf %101, %101 : vector<64x32xf32>
    %cst_41 = arith.constant dense<0.000000e+00> : vector<64xf32>
    %103 = vector.multi_reduction <add>, %102, %cst_41 [1] : vector<64x32xf32> to vector<64xf32>
    %104 = vector.shape_cast %103 : vector<64xf32> to vector<64x1xf32>
    %cst_42 = arith.constant 3.200000e+01 : f32
    %105 = vector.broadcast %cst_42 : f32 to vector<64x1xf32>
    %106 = arith.divf %104, %105 : vector<64x1xf32>
    %107 = vector.broadcast %99 : vector<64x1xf32> to vector<64x32xf32>
    %108 = arith.subf %93, %107 : vector<64x32xf32>
    %cst_43 = arith.constant 9.99999974E-6 : f32
    %109 = vector.broadcast %cst_43 : f32 to vector<64x1xf32>
    %110 = arith.addf %106, %109 : vector<64x1xf32>
    %111 = math.rsqrt %110 : vector<64x1xf32>
    %112 = vector.broadcast %111 : vector<64x1xf32> to vector<64x32xf32>
    %113 = arith.mulf %108, %112 : vector<64x32xf32>
    %114 = vector.broadcast %94 : vector<1x32xf32> to vector<64x32xf32>
    %115 = arith.mulf %113, %114 : vector<64x32xf32>
    %116 = vector.broadcast %95 : vector<1x32xf32> to vector<64x32xf32>
    %117 = arith.addf %115, %116 : vector<64x32xf32>
    %c0_44 = arith.constant 0 : index
    %c0_45 = arith.constant 0 : index
    %c0_46 = arith.constant 0 : index
    %118 = vector.load %arg9[%c0_44, %c0_45, %c0_46] : memref<2x32x128xf32, #tpu.memory_space<vmem>>, vector<1x32x128xf32>
    %119 = vector.shape_cast %118 : vector<1x32x128xf32> to vector<32x128xf32>
    %cst_47 = arith.constant dense<0.000000e+00> : vector<64x128xf32>
    %120 = tpu.matmul %117, %119, %cst_47 {dimension_numbers = #tpu.dot_dimension_numbers<[1], [0], [0], [1], [0, 0, 1, 1], [], []>} : vector<64x32xf32>, vector<32x128xf32>, vector<64x128xf32> -> vector<64x128xf32>
    %c0_48 = arith.constant 0 : index
    %c0_49 = arith.constant 0 : index
    %c0_50 = arith.constant 0 : index
    %121 = vector.load %arg10[%c0_48, %c0_49, %c0_50] : memref<2x1x128xf32, #tpu.memory_space<vmem>>, vector<1x1x128xf32>
    %122 = vector.shape_cast %121 : vector<1x1x128xf32> to vector<1x128xf32>
    %123 = vector.broadcast %122 : vector<1x128xf32> to vector<64x128xf32>
    %124 = arith.addf %120, %123 : vector<64x128xf32>
    %125 = arith.mulf %124, %124 : vector<64x128xf32>
    %126 = arith.mulf %124, %125 : vector<64x128xf32>
    %cst_51 = arith.constant 4.471500e-02 : f32
    %127 = vector.broadcast %cst_51 : f32 to vector<64x128xf32>
    %128 = arith.mulf %127, %126 : vector<64x128xf32>
    %129 = arith.addf %124, %128 : vector<64x128xf32>
    %cst_52 = arith.constant 0.797884583 : f32
    %130 = vector.broadcast %cst_52 : f32 to vector<64x128xf32>
    %131 = arith.mulf %130, %129 : vector<64x128xf32>
    %132 = math.tanh %131 : vector<64x128xf32>
    %cst_53 = arith.constant 1.000000e+00 : f32
    %133 = vector.broadcast %cst_53 : f32 to vector<64x128xf32>
    %134 = arith.addf %133, %132 : vector<64x128xf32>
    %cst_54 = arith.constant 5.000000e-01 : f32
    %135 = vector.broadcast %cst_54 : f32 to vector<64x128xf32>
    %136 = arith.mulf %135, %134 : vector<64x128xf32>
    %137 = arith.mulf %124, %136 : vector<64x128xf32>
    %c0_55 = arith.constant 0 : index
    %c0_56 = arith.constant 0 : index
    %c0_57 = arith.constant 0 : index
    %138 = vector.load %arg11[%c0_55, %c0_56, %c0_57] : memref<2x128x32xf32, #tpu.memory_space<vmem>>, vector<1x128x32xf32>
    %139 = vector.shape_cast %138 : vector<1x128x32xf32> to vector<128x32xf32>
    %cst_58 = arith.constant dense<0.000000e+00> : vector<64x32xf32>
    %140 = tpu.matmul %137, %139, %cst_58 {dimension_numbers = #tpu.dot_dimension_numbers<[1], [0], [0], [1], [0, 0, 1, 1], [], []>} : vector<64x128xf32>, vector<128x32xf32>, vector<64x32xf32> -> vector<64x32xf32>
    %c0_59 = arith.constant 0 : index
    %c0_60 = arith.constant 0 : index
    %c0_61 = arith.constant 0 : index
    %141 = vector.load %arg12[%c0_59, %c0_60, %c0_61] : memref<2x1x32xf32, #tpu.memory_space<vmem>>, vector<1x1x32xf32>
    %142 = vector.shape_cast %141 : vector<1x1x32xf32> to vector<1x32xf32>
    %143 = vector.broadcast %142 : vector<1x32xf32> to vector<64x32xf32>
    %144 = arith.addf %140, %143 : vector<64x32xf32>
    %c0_62 = arith.constant 0 : index
    %c0_63 = arith.constant 0 : index
    %c0_64 = arith.constant 0 : index
    %145 = vector.load %arg13[%c0_62, %c0_63, %c0_64] : memref<2x2x32xf32, #tpu.memory_space<vmem>>, vector<1x2x32xf32>
    %146 = vector.shape_cast %145 : vector<1x2x32xf32> to vector<2x32xf32>
    %147 = arith.addf %117, %144 : vector<64x32xf32>
    %148 = vector.extract_strided_slice %146 {offsets = [0, 0], sizes = [1, 32], strides = [1, 1]} : vector<2x32xf32> to vector<1x32xf32>
    %149 = vector.extract_strided_slice %146 {offsets = [1, 0], sizes = [1, 32], strides = [1, 1]} : vector<2x32xf32> to vector<1x32xf32>
    %cst_65 = arith.constant dense<0.000000e+00> : vector<64xf32>
    %150 = vector.multi_reduction <add>, %147, %cst_65 [1] : vector<64x32xf32> to vector<64xf32>
    %151 = vector.shape_cast %150 : vector<64xf32> to vector<64x1xf32>
    %cst_66 = arith.constant 3.200000e+01 : f32
    %152 = vector.broadcast %cst_66 : f32 to vector<64x1xf32>
    %153 = arith.divf %151, %152 : vector<64x1xf32>
    %154 = vector.broadcast %153 : vector<64x1xf32> to vector<64x32xf32>
    %155 = arith.subf %147, %154 : vector<64x32xf32>
    %156 = arith.mulf %155, %155 : vector<64x32xf32>
    %cst_67 = arith.constant dense<0.000000e+00> : vector<64xf32>
    %157 = vector.multi_reduction <add>, %156, %cst_67 [1] : vector<64x32xf32> to vector<64xf32>
    %158 = vector.shape_cast %157 : vector<64xf32> to vector<64x1xf32>
    %cst_68 = arith.constant 3.200000e+01 : f32
    %159 = vector.broadcast %cst_68 : f32 to vector<64x1xf32>
    %160 = arith.divf %158, %159 : vector<64x1xf32>
    %161 = vector.broadcast %153 : vector<64x1xf32> to vector<64x32xf32>
    %162 = arith.subf %147, %161 : vector<64x32xf32>
    %cst_69 = arith.constant 9.99999974E-6 : f32
    %163 = vector.broadcast %cst_69 : f32 to vector<64x1xf32>
    %164 = arith.addf %160, %163 : vector<64x1xf32>
    %165 = math.rsqrt %164 : vector<64x1xf32>
    %166 = vector.broadcast %165 : vector<64x1xf32> to vector<64x32xf32>
    %167 = arith.mulf %162, %166 : vector<64x32xf32>
    %168 = vector.broadcast %148 : vector<1x32xf32> to vector<64x32xf32>
    %169 = arith.mulf %167, %168 : vector<64x32xf32>
    %170 = vector.broadcast %149 : vector<1x32xf32> to vector<64x32xf32>
    %171 = arith.addf %169, %170 : vector<64x32xf32>
    %c1 = arith.constant 1 : index
    %c0_70 = arith.constant 0 : index
    %c0_71 = arith.constant 0 : index
    %172 = vector.load %arg4[%c1, %c0_70, %c0_71] : memref<2x32x96xf32, #tpu.memory_space<vmem>>, vector<1x32x96xf32>
    %173 = vector.shape_cast %172 : vector<1x32x96xf32> to vector<32x96xf32>
    %cst_72 = arith.constant dense<0.000000e+00> : vector<64x96xf32>
    %174 = tpu.matmul %171, %173, %cst_72 {dimension_numbers = #tpu.dot_dimension_numbers<[1], [0], [0], [1], [0, 0, 1, 1], [], []>} : vector<64x32xf32>, vector<32x96xf32>, vector<64x96xf32> -> vector<64x96xf32>
    %c1_73 = arith.constant 1 : index
    %c0_74 = arith.constant 0 : index
    %c0_75 = arith.constant 0 : index
    %175 = vector.load %arg5[%c1_73, %c0_74, %c0_75] : memref<2x1x96xf32, #tpu.memory_space<vmem>>, vector<1x1x96xf32>
    %176 = vector.shape_cast %175 : vector<1x1x96xf32> to vector<1x96xf32>
    %177 = vector.broadcast %176 : vector<1x96xf32> to vector<64x96xf32>
    %178 = arith.addf %174, %177 : vector<64x96xf32>
    %179 = vector.extract_strided_slice %178 {offsets = [0, 0], sizes = [64, 32], strides = [1, 1]} : vector<64x96xf32> to vector<64x32xf32>
    %180 = vector.shape_cast %179 : vector<64x32xf32> to vector<8x8x32xf32>
    %181 = vector.extract_strided_slice %178 {offsets = [0, 32], sizes = [64, 32], strides = [1, 1]} : vector<64x96xf32> to vector<64x32xf32>
    %182 = vector.shape_cast %181 : vector<64x32xf32> to vector<8x8x32xf32>
    %183 = vector.extract_strided_slice %178 {offsets = [0, 64], sizes = [64, 32], strides = [1, 1]} : vector<64x96xf32> to vector<64x32xf32>
    %184 = vector.shape_cast %183 : vector<64x32xf32> to vector<8x8x32xf32>
    %185 = vector.extract_strided_slice %180 {offsets = [0, 0, 0], sizes = [8, 8, 16], strides = [1, 1, 1]} : vector<8x8x32xf32> to vector<8x8x16xf32>
    %186 = vector.extract_strided_slice %182 {offsets = [0, 0, 0], sizes = [8, 8, 16], strides = [1, 1, 1]} : vector<8x8x32xf32> to vector<8x8x16xf32>
    %187 = vector.extract_strided_slice %184 {offsets = [0, 0, 0], sizes = [8, 8, 16], strides = [1, 1, 1]} : vector<8x8x32xf32> to vector<8x8x16xf32>
    "tpu.trace_start"() <{level = 10 : i32, message = "bqd,bkd->bqk"}> : () -> ()
    %cst_76 = arith.constant dense<0.000000e+00> : vector<8x8x8xf32>
    %188 = tpu.matmul %185, %186, %cst_76 {dimension_numbers = #tpu.dot_dimension_numbers<[2], [2], [1], [1], [0, 0, 0, 1, 1, 1], [0], [0]>} : vector<8x8x16xf32>, vector<8x8x16xf32>, vector<8x8x8xf32> -> vector<8x8x8xf32>
    "tpu.trace_stop"() : () -> ()
    %cst_77 = arith.constant 2.500000e-01 : f32
    %189 = vector.broadcast %cst_77 : f32 to vector<8x8x8xf32>
    %190 = arith.mulf %188, %189 : vector<8x8x8xf32>
    %191 = vector.broadcast %30 : vector<8x1x8xf32> to vector<8x8x8xf32>
    %192 = arith.addf %190, %191 : vector<8x8x8xf32>
    %cst_78 = arith.constant dense<0xFF800000> : vector<8x8xf32>
    %193 = vector.multi_reduction <maximumf>, %192, %cst_78 [2] : vector<8x8x8xf32> to vector<8x8xf32>
    %194 = vector.shape_cast %193 : vector<8x8xf32> to vector<8x8x1xf32>
    %195 = vector.broadcast %194 : vector<8x8x1xf32> to vector<8x8x8xf32>
    %196 = arith.subf %192, %195 : vector<8x8x8xf32>
    %197 = math.exp %196 : vector<8x8x8xf32>
    %cst_79 = arith.constant dense<0.000000e+00> : vector<8x8xf32>
    %198 = vector.multi_reduction <add>, %197, %cst_79 [2] : vector<8x8x8xf32> to vector<8x8xf32>
    %199 = vector.shape_cast %198 : vector<8x8xf32> to vector<8x8x1xf32>
    %200 = tpu.reciprocal %199 {approx = true} : vector<8x8x1xf32> -> vector<8x8x1xf32>
    %201 = vector.broadcast %200 : vector<8x8x1xf32> to vector<8x8x8xf32>
    %202 = arith.mulf %197, %201 : vector<8x8x8xf32>
    "tpu.trace_start"() <{level = 10 : i32, message = "bqk,bkd->bqd"}> : () -> ()
    %cst_80 = arith.constant dense<0.000000e+00> : vector<8x8x16xf32>
    %203 = tpu.matmul %202, %187, %cst_80 {dimension_numbers = #tpu.dot_dimension_numbers<[2], [1], [1], [2], [0, 0, 0, 1, 1, 2], [0], [0]>} : vector<8x8x8xf32>, vector<8x8x16xf32>, vector<8x8x16xf32> -> vector<8x8x16xf32>
    "tpu.trace_stop"() : () -> ()
    %204 = vector.extract_strided_slice %180 {offsets = [0, 0, 16], sizes = [8, 8, 16], strides = [1, 1, 1]} : vector<8x8x32xf32> to vector<8x8x16xf32>
    %205 = vector.extract_strided_slice %182 {offsets = [0, 0, 16], sizes = [8, 8, 16], strides = [1, 1, 1]} : vector<8x8x32xf32> to vector<8x8x16xf32>
    %206 = vector.extract_strided_slice %184 {offsets = [0, 0, 16], sizes = [8, 8, 16], strides = [1, 1, 1]} : vector<8x8x32xf32> to vector<8x8x16xf32>
    "tpu.trace_start"() <{level = 10 : i32, message = "bqd,bkd->bqk"}> : () -> ()
    %cst_81 = arith.constant dense<0.000000e+00> : vector<8x8x8xf32>
    %207 = tpu.matmul %204, %205, %cst_81 {dimension_numbers = #tpu.dot_dimension_numbers<[2], [2], [1], [1], [0, 0, 0, 1, 1, 1], [0], [0]>} : vector<8x8x16xf32>, vector<8x8x16xf32>, vector<8x8x8xf32> -> vector<8x8x8xf32>
    "tpu.trace_stop"() : () -> ()
    %cst_82 = arith.constant 2.500000e-01 : f32
    %208 = vector.broadcast %cst_82 : f32 to vector<8x8x8xf32>
    %209 = arith.mulf %207, %208 : vector<8x8x8xf32>
    %210 = vector.broadcast %30 : vector<8x1x8xf32> to vector<8x8x8xf32>
    %211 = arith.addf %209, %210 : vector<8x8x8xf32>
    %cst_83 = arith.constant dense<0xFF800000> : vector<8x8xf32>
    %212 = vector.multi_reduction <maximumf>, %211, %cst_83 [2] : vector<8x8x8xf32> to vector<8x8xf32>
    %213 = vector.shape_cast %212 : vector<8x8xf32> to vector<8x8x1xf32>
    %214 = vector.broadcast %213 : vector<8x8x1xf32> to vector<8x8x8xf32>
    %215 = arith.subf %211, %214 : vector<8x8x8xf32>
    %216 = math.exp %215 : vector<8x8x8xf32>
    %cst_84 = arith.constant dense<0.000000e+00> : vector<8x8xf32>
    %217 = vector.multi_reduction <add>, %216, %cst_84 [2] : vector<8x8x8xf32> to vector<8x8xf32>
    %218 = vector.shape_cast %217 : vector<8x8xf32> to vector<8x8x1xf32>
    %219 = tpu.reciprocal %218 {approx = true} : vector<8x8x1xf32> -> vector<8x8x1xf32>
    %220 = vector.broadcast %219 : vector<8x8x1xf32> to vector<8x8x8xf32>
    %221 = arith.mulf %216, %220 : vector<8x8x8xf32>
    "tpu.trace_start"() <{level = 10 : i32, message = "bqk,bkd->bqd"}> : () -> ()
    %cst_85 = arith.constant dense<0.000000e+00> : vector<8x8x16xf32>
    %222 = tpu.matmul %221, %206, %cst_85 {dimension_numbers = #tpu.dot_dimension_numbers<[2], [1], [1], [2], [0, 0, 0, 1, 1, 2], [0], [0]>} : vector<8x8x8xf32>, vector<8x8x16xf32>, vector<8x8x16xf32> -> vector<8x8x16xf32>
    "tpu.trace_stop"() : () -> ()
    %223 = tpu.concatenate %203, %222 in 2 : vector<8x8x16xf32>, vector<8x8x16xf32> -> vector<8x8x32xf32>
    %224 = vector.shape_cast %223 : vector<8x8x32xf32> to vector<64x32xf32>
    %c1_86 = arith.constant 1 : index
    %c0_87 = arith.constant 0 : index
    %c0_88 = arith.constant 0 : index
    %225 = vector.load %arg6[%c1_86, %c0_87, %c0_88] : memref<2x32x32xf32, #tpu.memory_space<vmem>>, vector<1x32x32xf32>
    %226 = vector.shape_cast %225 : vector<1x32x32xf32> to vector<32x32xf32>
    %cst_89 = arith.constant dense<0.000000e+00> : vector<64x32xf32>
    %227 = tpu.matmul %224, %226, %cst_89 {dimension_numbers = #tpu.dot_dimension_numbers<[1], [0], [0], [1], [0, 0, 1, 1], [], []>} : vector<64x32xf32>, vector<32x32xf32>, vector<64x32xf32> -> vector<64x32xf32>
    %c1_90 = arith.constant 1 : index
    %c0_91 = arith.constant 0 : index
    %c0_92 = arith.constant 0 : index
    %228 = vector.load %arg7[%c1_90, %c0_91, %c0_92] : memref<2x1x32xf32, #tpu.memory_space<vmem>>, vector<1x1x32xf32>
    %229 = vector.shape_cast %228 : vector<1x1x32xf32> to vector<1x32xf32>
    %230 = vector.broadcast %229 : vector<1x32xf32> to vector<64x32xf32>
    %231 = arith.addf %227, %230 : vector<64x32xf32>
    %c1_93 = arith.constant 1 : index
    %c0_94 = arith.constant 0 : index
    %c0_95 = arith.constant 0 : index
    %232 = vector.load %arg8[%c1_93, %c0_94, %c0_95] : memref<2x2x32xf32, #tpu.memory_space<vmem>>, vector<1x2x32xf32>
    %233 = vector.shape_cast %232 : vector<1x2x32xf32> to vector<2x32xf32>
    %234 = arith.addf %171, %231 : vector<64x32xf32>
    %235 = vector.extract_strided_slice %233 {offsets = [0, 0], sizes = [1, 32], strides = [1, 1]} : vector<2x32xf32> to vector<1x32xf32>
    %236 = vector.extract_strided_slice %233 {offsets = [1, 0], sizes = [1, 32], strides = [1, 1]} : vector<2x32xf32> to vector<1x32xf32>
    %cst_96 = arith.constant dense<0.000000e+00> : vector<64xf32>
    %237 = vector.multi_reduction <add>, %234, %cst_96 [1] : vector<64x32xf32> to vector<64xf32>
    %238 = vector.shape_cast %237 : vector<64xf32> to vector<64x1xf32>
    %cst_97 = arith.constant 3.200000e+01 : f32
    %239 = vector.broadcast %cst_97 : f32 to vector<64x1xf32>
    %240 = arith.divf %238, %239 : vector<64x1xf32>
    %241 = vector.broadcast %240 : vector<64x1xf32> to vector<64x32xf32>
    %242 = arith.subf %234, %241 : vector<64x32xf32>
    %243 = arith.mulf %242, %242 : vector<64x32xf32>
    %cst_98 = arith.constant dense<0.000000e+00> : vector<64xf32>
    %244 = vector.multi_reduction <add>, %243, %cst_98 [1] : vector<64x32xf32> to vector<64xf32>
    %245 = vector.shape_cast %244 : vector<64xf32> to vector<64x1xf32>
    %cst_99 = arith.constant 3.200000e+01 : f32
    %246 = vector.broadcast %cst_99 : f32 to vector<64x1xf32>
    %247 = arith.divf %245, %246 : vector<64x1xf32>
    %248 = vector.broadcast %240 : vector<64x1xf32> to vector<64x32xf32>
    %249 = arith.subf %234, %248 : vector<64x32xf32>
    %cst_100 = arith.constant 9.99999974E-6 : f32
    %250 = vector.broadcast %cst_100 : f32 to vector<64x1xf32>
    %251 = arith.addf %247, %250 : vector<64x1xf32>
    %252 = math.rsqrt %251 : vector<64x1xf32>
    %253 = vector.broadcast %252 : vector<64x1xf32> to vector<64x32xf32>
    %254 = arith.mulf %249, %253 : vector<64x32xf32>
    %255 = vector.broadcast %235 : vector<1x32xf32> to vector<64x32xf32>
    %256 = arith.mulf %254, %255 : vector<64x32xf32>
    %257 = vector.broadcast %236 : vector<1x32xf32> to vector<64x32xf32>
    %258 = arith.addf %256, %257 : vector<64x32xf32>
    %c1_101 = arith.constant 1 : index
    %c0_102 = arith.constant 0 : index
    %c0_103 = arith.constant 0 : index
    %259 = vector.load %arg9[%c1_101, %c0_102, %c0_103] : memref<2x32x128xf32, #tpu.memory_space<vmem>>, vector<1x32x128xf32>
    %260 = vector.shape_cast %259 : vector<1x32x128xf32> to vector<32x128xf32>
    %cst_104 = arith.constant dense<0.000000e+00> : vector<64x128xf32>
    %261 = tpu.matmul %258, %260, %cst_104 {dimension_numbers = #tpu.dot_dimension_numbers<[1], [0], [0], [1], [0, 0, 1, 1], [], []>} : vector<64x32xf32>, vector<32x128xf32>, vector<64x128xf32> -> vector<64x128xf32>
    %c1_105 = arith.constant 1 : index
    %c0_106 = arith.constant 0 : index
    %c0_107 = arith.constant 0 : index
    %262 = vector.load %arg10[%c1_105, %c0_106, %c0_107] : memref<2x1x128xf32, #tpu.memory_space<vmem>>, vector<1x1x128xf32>
    %263 = vector.shape_cast %262 : vector<1x1x128xf32> to vector<1x128xf32>
    %264 = vector.broadcast %263 : vector<1x128xf32> to vector<64x128xf32>
    %265 = arith.addf %261, %264 : vector<64x128xf32>
    %266 = arith.mulf %265, %265 : vector<64x128xf32>
    %267 = arith.mulf %265, %266 : vector<64x128xf32>
    %cst_108 = arith.constant 4.471500e-02 : f32
    %268 = vector.broadcast %cst_108 : f32 to vector<64x128xf32>
    %269 = arith.mulf %268, %267 : vector<64x128xf32>
    %270 = arith.addf %265, %269 : vector<64x128xf32>
    %cst_109 = arith.constant 0.797884583 : f32
    %271 = vector.broadcast %cst_109 : f32 to vector<64x128xf32>
    %272 = arith.mulf %271, %270 : vector<64x128xf32>
    %273 = math.tanh %272 : vector<64x128xf32>
    %cst_110 = arith.constant 1.000000e+00 : f32
    %274 = vector.broadcast %cst_110 : f32 to vector<64x128xf32>
    %275 = arith.addf %274, %273 : vector<64x128xf32>
    %cst_111 = arith.constant 5.000000e-01 : f32
    %276 = vector.broadcast %cst_111 : f32 to vector<64x128xf32>
    %277 = arith.mulf %276, %275 : vector<64x128xf32>
    %278 = arith.mulf %265, %277 : vector<64x128xf32>
    %c1_112 = arith.constant 1 : index
    %c0_113 = arith.constant 0 : index
    %c0_114 = arith.constant 0 : index
    %279 = vector.load %arg11[%c1_112, %c0_113, %c0_114] : memref<2x128x32xf32, #tpu.memory_space<vmem>>, vector<1x128x32xf32>
    %280 = vector.shape_cast %279 : vector<1x128x32xf32> to vector<128x32xf32>
    %cst_115 = arith.constant dense<0.000000e+00> : vector<64x32xf32>
    %281 = tpu.matmul %278, %280, %cst_115 {dimension_numbers = #tpu.dot_dimension_numbers<[1], [0], [0], [1], [0, 0, 1, 1], [], []>} : vector<64x128xf32>, vector<128x32xf32>, vector<64x32xf32> -> vector<64x32xf32>
    %c1_116 = arith.constant 1 : index
    %c0_117 = arith.constant 0 : index
    %c0_118 = arith.constant 0 : index
    %282 = vector.load %arg12[%c1_116, %c0_117, %c0_118] : memref<2x1x32xf32, #tpu.memory_space<vmem>>, vector<1x1x32xf32>
    %283 = vector.shape_cast %282 : vector<1x1x32xf32> to vector<1x32xf32>
    %284 = vector.broadcast %283 : vector<1x32xf32> to vector<64x32xf32>
    %285 = arith.addf %281, %284 : vector<64x32xf32>
    %c1_119 = arith.constant 1 : index
    %c0_120 = arith.constant 0 : index
    %c0_121 = arith.constant 0 : index
    %286 = vector.load %arg13[%c1_119, %c0_120, %c0_121] : memref<2x2x32xf32, #tpu.memory_space<vmem>>, vector<1x2x32xf32>
    %287 = vector.shape_cast %286 : vector<1x2x32xf32> to vector<2x32xf32>
    %288 = arith.addf %258, %285 : vector<64x32xf32>
    %289 = vector.extract_strided_slice %287 {offsets = [0, 0], sizes = [1, 32], strides = [1, 1]} : vector<2x32xf32> to vector<1x32xf32>
    %290 = vector.extract_strided_slice %287 {offsets = [1, 0], sizes = [1, 32], strides = [1, 1]} : vector<2x32xf32> to vector<1x32xf32>
    %cst_122 = arith.constant dense<0.000000e+00> : vector<64xf32>
    %291 = vector.multi_reduction <add>, %288, %cst_122 [1] : vector<64x32xf32> to vector<64xf32>
    %292 = vector.shape_cast %291 : vector<64xf32> to vector<64x1xf32>
    %cst_123 = arith.constant 3.200000e+01 : f32
    %293 = vector.broadcast %cst_123 : f32 to vector<64x1xf32>
    %294 = arith.divf %292, %293 : vector<64x1xf32>
    %295 = vector.broadcast %294 : vector<64x1xf32> to vector<64x32xf32>
    %296 = arith.subf %288, %295 : vector<64x32xf32>
    %297 = arith.mulf %296, %296 : vector<64x32xf32>
    %cst_124 = arith.constant dense<0.000000e+00> : vector<64xf32>
    %298 = vector.multi_reduction <add>, %297, %cst_124 [1] : vector<64x32xf32> to vector<64xf32>
    %299 = vector.shape_cast %298 : vector<64xf32> to vector<64x1xf32>
    %cst_125 = arith.constant 3.200000e+01 : f32
    %300 = vector.broadcast %cst_125 : f32 to vector<64x1xf32>
    %301 = arith.divf %299, %300 : vector<64x1xf32>
    %302 = vector.broadcast %294 : vector<64x1xf32> to vector<64x32xf32>
    %303 = arith.subf %288, %302 : vector<64x32xf32>
    %cst_126 = arith.constant 9.99999974E-6 : f32
    %304 = vector.broadcast %cst_126 : f32 to vector<64x1xf32>
    %305 = arith.addf %301, %304 : vector<64x1xf32>
    %306 = math.rsqrt %305 : vector<64x1xf32>
    %307 = vector.broadcast %306 : vector<64x1xf32> to vector<64x32xf32>
    %308 = arith.mulf %303, %307 : vector<64x32xf32>
    %309 = vector.broadcast %289 : vector<1x32xf32> to vector<64x32xf32>
    %310 = arith.mulf %308, %309 : vector<64x32xf32>
    %311 = vector.broadcast %290 : vector<1x32xf32> to vector<64x32xf32>
    %312 = arith.addf %310, %311 : vector<64x32xf32>
    %313 = vector.shape_cast %312 : vector<64x32xf32> to vector<8x8x32xf32>
    %314 = vector.extract_strided_slice %313 {offsets = [0, 0, 0], sizes = [8, 1, 32], strides = [1, 1, 1]} : vector<8x8x32xf32> to vector<8x1x32xf32>
    %315 = vector.shape_cast %314 : vector<8x1x32xf32> to vector<8x32xf32>
    %c0_127 = arith.constant 0 : index
    %c0_128 = arith.constant 0 : index
    %316 = vector.load %arg14[%c0_127, %c0_128] : memref<32x32xf32, #tpu.memory_space<vmem>>, vector<32x32xf32>
    %cst_129 = arith.constant dense<0.000000e+00> : vector<8x32xf32>
    %317 = tpu.matmul %315, %316, %cst_129 {dimension_numbers = #tpu.dot_dimension_numbers<[1], [0], [0], [1], [0, 0, 1, 1], [], []>} : vector<8x32xf32>, vector<32x32xf32>, vector<8x32xf32> -> vector<8x32xf32>
    %c0_130 = arith.constant 0 : index
    %c0_131 = arith.constant 0 : index
    %318 = vector.load %arg15[%c0_130, %c0_131] : memref<1x32xf32, #tpu.memory_space<vmem>>, vector<1x32xf32>
    %319 = vector.broadcast %318 : vector<1x32xf32> to vector<8x32xf32>
    %320 = arith.addf %317, %319 : vector<8x32xf32>
    %321 = math.tanh %320 : vector<8x32xf32>
    %c0_132 = arith.constant 0 : index
    %c0_133 = arith.constant 0 : index
    %322 = vector.load %arg16[%c0_132, %c0_133] : memref<32x1xf32, #tpu.memory_space<vmem>>, vector<32x1xf32>
    %cst_134 = arith.constant dense<0.000000e+00> : vector<8x1xf32>
    %323 = tpu.matmul %321, %322, %cst_134 {dimension_numbers = #tpu.dot_dimension_numbers<[1], [0], [0], [1], [0, 0, 1, 1], [], []>} : vector<8x32xf32>, vector<32x1xf32>, vector<8x1xf32> -> vector<8x1xf32>
    %c0_135 = arith.constant 0 : index
    %c0_136 = arith.constant 0 : index
    %324 = vector.load %arg17[%c0_135, %c0_136] : memref<1x1xf32, #tpu.memory_space<vmem>>, vector<1x1xf32>
    %325 = vector.broadcast %324 : vector<1x1xf32> to vector<8x1xf32>
    %326 = arith.addf %323, %325 : vector<8x1xf32>
    %c0_137 = arith.constant 0 : index
    %c0_138 = arith.constant 0 : index
    %327 = vector.load %arg18[%c0_137, %c0_138] : memref<8x1xf32, #tpu.memory_space<vmem>>, vector<8x1xf32>
    tpu.vector_store %arg18[%c0_137, %c0_138], %326 {strides = array<i32>} : memref<8x1xf32, #tpu.memory_space<vmem>>, vector<8x1xf32>,
    return
  }
  func.func @transform_0(%arg0: i32) -> (i32, i32) {
    %c0_i32 = arith.constant 0 : i32
    %c0_i32_0 = arith.constant 0 : i32
    %c0_i32_1 = arith.constant 0 : i32
    return %c0_i32, %c0_i32_0 : i32, i32
  }
  func.func @transform_1(%arg0: i32) -> (i32, i32, i32) {
    %c0_i32 = arith.constant 0 : i32
    %c0_i32_0 = arith.constant 0 : i32
    %c0_i32_1 = arith.constant 0 : i32
    %c0_i32_2 = arith.constant 0 : i32
    return %c0_i32, %c0_i32_0, %c0_i32_1 : i32, i32, i32
  }
  func.func @transform_2(%arg0: i32) -> (i32, i32) {
    %c0_i32 = arith.constant 0 : i32
    %c0_i32_0 = arith.constant 0 : i32
    %c0_i32_1 = arith.constant 0 : i32
    return %c0_i32, %c0_i32_0 : i32, i32
  }
  func.func @transform_3(%arg0: i32) -> (i32, i32, i32) {
    %c0_i32 = arith.constant 0 : i32
    %c0_i32_0 = arith.constant 0 : i32
    %c0_i32_1 = arith.constant 0 : i32
    %c0_i32_2 = arith.constant 0 : i32
    return %c0_i32, %c0_i32_0, %c0_i32_1 : i32, i32, i32
  }
  func.func @transform_4(%arg0: i32) -> (i32, i32, i32) {
    %c0_i32 = arith.constant 0 : i32
    %c0_i32_0 = arith.constant 0 : i32
    %c0_i32_1 = arith.constant 0 : i32
    %c0_i32_2 = arith.constant 0 : i32
    return %c0_i32, %c0_i32_0, %c0_i32_1 : i32, i32, i32
  }
  func.func @transform_5(%arg0: i32) -> (i32, i32, i32) {
    %c0_i32 = arith.constant 0 : i32
    %c0_i32_0 = arith.constant 0 : i32
    %c0_i32_1 = arith.constant 0 : i32
    %c0_i32_2 = arith.constant 0 : i32
    return %c0_i32, %c0_i32_0, %c0_i32_1 : i32, i32, i32
  }
  func.func @transform_6(%arg0: i32) -> (i32, i32, i32) {
    %c0_i32 = arith.constant 0 : i32
    %c0_i32_0 = arith.constant 0 : i32
    %c0_i32_1 = arith.constant 0 : i32
    %c0_i32_2 = arith.constant 0 : i32
    return %c0_i32, %c0_i32_0, %c0_i32_1 : i32, i32, i32
  }
  func.func @transform_7(%arg0: i32) -> (i32, i32, i32) {
    %c0_i32 = arith.constant 0 : i32
    %c0_i32_0 = arith.constant 0 : i32
    %c0_i32_1 = arith.constant 0 : i32
    %c0_i32_2 = arith.constant 0 : i32
    return %c0_i32, %c0_i32_0, %c0_i32_1 : i32, i32, i32
  }
  func.func @transform_8(%arg0: i32) -> (i32, i32, i32) {
    %c0_i32 = arith.constant 0 : i32
    %c0_i32_0 = arith.constant 0 : i32
    %c0_i32_1 = arith.constant 0 : i32
    %c0_i32_2 = arith.constant 0 : i32
    return %c0_i32, %c0_i32_0, %c0_i32_1 : i32, i32, i32
  }
  func.func @transform_9(%arg0: i32) -> (i32, i32, i32) {
    %c0_i32 = arith.constant 0 : i32
    %c0_i32_0 = arith.constant 0 : i32
    %c0_i32_1 = arith.constant 0 : i32
    %c0_i32_2 = arith.constant 0 : i32
    return %c0_i32, %c0_i32_0, %c0_i32_1 : i32, i32, i32
  }
  func.func @transform_10(%arg0: i32) -> (i32, i32, i32) {
    %c0_i32 = arith.constant 0 : i32
    %c0_i32_0 = arith.constant 0 : i32
    %c0_i32_1 = arith.constant 0 : i32
    %c0_i32_2 = arith.constant 0 : i32
    return %c0_i32, %c0_i32_0, %c0_i32_1 : i32, i32, i32
  }
  func.func @transform_11(%arg0: i32) -> (i32, i32, i32) {
    %c0_i32 = arith.constant 0 : i32
    %c0_i32_0 = arith.constant 0 : i32
    %c0_i32_1 = arith.constant 0 : i32
    %c0_i32_2 = arith.constant 0 : i32
    return %c0_i32, %c0_i32_0, %c0_i32_1 : i32, i32, i32
  }
  func.func @transform_12(%arg0: i32) -> (i32, i32, i32) {
    %c0_i32 = arith.constant 0 : i32
    %c0_i32_0 = arith.constant 0 : i32
    %c0_i32_1 = arith.constant 0 : i32
    %c0_i32_2 = arith.constant 0 : i32
    return %c0_i32, %c0_i32_0, %c0_i32_1 : i32, i32, i32
  }
  func.func @transform_13(%arg0: i32) -> (i32, i32) {
    %c0_i32 = arith.constant 0 : i32
    %c0_i32_0 = arith.constant 0 : i32
    %c0_i32_1 = arith.constant 0 : i32
    return %c0_i32, %c0_i32_0 : i32, i32
  }
  func.func @transform_14(%arg0: i32) -> (i32, i32) {
    %c0_i32 = arith.constant 0 : i32
    %c0_i32_0 = arith.constant 0 : i32
    %c0_i32_1 = arith.constant 0 : i32
    return %c0_i32, %c0_i32_0 : i32, i32
  }
  func.func @transform_15(%arg0: i32) -> (i32, i32) {
    %c0_i32 = arith.constant 0 : i32
    %c0_i32_0 = arith.constant 0 : i32
    %c0_i32_1 = arith.constant 0 : i32
    return %c0_i32, %c0_i32_0 : i32, i32
  }
  func.func @transform_16(%arg0: i32) -> (i32, i32) {
    %c0_i32 = arith.constant 0 : i32
    %c0_i32_0 = arith.constant 0 : i32
    %c0_i32_1 = arith.constant 0 : i32
    return %c0_i32, %c0_i32_0 : i32, i32
  }
  func.func @transform_17(%arg0: i32) -> (i32, i32) {
    %c0_i32 = arith.constant 0 : i32
    %c0_i32_0 = arith.constant 0 : i32
    %c0_i32_1 = arith.constant 0 : i32
    return %c0_i32, %c0_i32_0 : i32, i32
  }
}

</mosaic_0001>

<llo_original>
// kernel: tpu_custom_call.1
$region0: #{tpu_custom_call.1}
  #allocation0 [shape = 'u32[]', space=smem, size = 0x4, offset = 0x4, fixed_abs, tag = 'smem constant byte address 0x4 - core index']
  #allocation1 [shape = 'u32[144,128]{1,0:T(1,128)}', space=vmem, size = 0x12000, scoped, tag = 'internal scratch']
  #allocation2 [shape = 'f32[1,1]{1,0:T(1,128)S(1)}', space=vmem, size = 0x200, scoped, tag = 'scoped memory for tpu_custom_call.1']
  %s0 = inlined_call_operand.vmem [shape: f32[64,32], index: 0, kind: input, shape index: {}]
  %s1 = inlined_call_operand.vmem [shape: f32[8,1,8], index: 1, kind: input, shape index: {}]
  %s2 = inlined_call_operand.vmem [shape: f32[2,32], index: 2, kind: input, shape index: {}]
  %s3 = inlined_call_operand.vmem [shape: f32[2,32,96], index: 3, kind: input, shape index: {}]
  %s4 = inlined_call_operand.vmem [shape: f32[2,1,96], index: 4, kind: input, shape index: {}]
  %s5 = inlined_call_operand.vmem [shape: f32[2,32,32], index: 5, kind: input, shape index: {}]
  %s6 = inlined_call_operand.vmem [shape: f32[2,1,32], index: 6, kind: input, shape index: {}]
  %s7 = inlined_call_operand.vmem [shape: f32[2,2,32], index: 7, kind: input, shape index: {}]
  %s8 = inlined_call_operand.vmem [shape: f32[2,32,128], index: 8, kind: input, shape index: {}]
  %s9 = inlined_call_operand.vmem [shape: f32[2,1,128], index: 9, kind: input, shape index: {}]
  %s10 = inlined_call_operand.vmem [shape: f32[2,128,32], index: 10, kind: input, shape index: {}]
  %s11 = inlined_call_operand.vmem [shape: f32[2,1,32], index: 11, kind: input, shape index: {}]
  %s12 = inlined_call_operand.vmem [shape: f32[2,2,32], index: 12, kind: input, shape index: {}]
  %s13 = inlined_call_operand.vmem [shape: f32[32,32], index: 13, kind: input, shape index: {}]
  %s14 = inlined_call_operand.vmem [shape: f32[1,32], index: 14, kind: input, shape index: {}]
  %s15 = inlined_call_operand.vmem [shape: f32[32,1], index: 15, kind: input, shape index: {}]
  %s16 = inlined_call_operand.<no memory space> [shape: f32[1,1], index: 16, kind: input, shape index: {}]
  %s17 = inlined_call_operand.vmem [shape: f32[8,1], index: 17, kind: output, shape index: {}]
  %s18 = sld [smem:[#allocation0]]
  $region78: #{tpu_custom_call.1} parent=0
    _
  %s20 = ssub.s32 1, %s18
  %s21 = scalar_select 0, %s20, %s18
  %v22 = vstv %s16
  %23 = vst [vmem:[#allocation2] sm:$0x1] %v22
  // Predicated region
  $region2: #{tpu_custom_call.1} parent=0 // pred_check
    _
  $region3: #{tpu_custom_call.1} parent=0 // pred_check_branch
    %25 = sbr.rel (0) target = $region5
  $region4: #{tpu_custom_call.1} parent=0 // pred_region
    _
  $region5: #{tpu_custom_call.1} parent=0 // pred_fallthru
    _
  // Predicated region
  $region6: #{tpu_custom_call.1} parent=0 // pred_check
    _
  $region7: #{tpu_custom_call.1} parent=0 // pred_check_branch
    %27 = sbr.rel (0) target = $region9
  $region8: #{tpu_custom_call.1} parent=0 // pred_region
    _
  $region9: #{tpu_custom_call.1} parent=0 // pred_fallthru
    _
  // Predicated region
  $region10: #{tpu_custom_call.1} parent=0 // pred_check
    _
  $region11: #{tpu_custom_call.1} parent=0 // pred_check_branch
    %29 = sbr.rel (0) target = $region13
  $region12: #{tpu_custom_call.1} parent=0 // pred_region
    _
  $region13: #{tpu_custom_call.1} parent=0 // pred_fallthru
    _
  // Predicated region
  $region14: #{tpu_custom_call.1} parent=0 // pred_check
    _
  $region15: #{tpu_custom_call.1} parent=0 // pred_check_branch
    %31 = sbr.rel (0) target = $region17
  $region16: #{tpu_custom_call.1} parent=0 // pred_region
    _
  $region17: #{tpu_custom_call.1} parent=0 // pred_fallthru
    _
  // Predicated region
  $region18: #{tpu_custom_call.1} parent=0 // pred_check
    _
  $region19: #{tpu_custom_call.1} parent=0 // pred_check_branch
    %33 = sbr.rel (0) target = $region21
  $region20: #{tpu_custom_call.1} parent=0 // pred_region
    _
  $region21: #{tpu_custom_call.1} parent=0 // pred_fallthru
    _
  // Predicated region
  $region22: #{tpu_custom_call.1} parent=0 // pred_check
    _
  $region23: #{tpu_custom_call.1} parent=0 // pred_check_branch
    %35 = sbr.rel (0) target = $region25
  $region24: #{tpu_custom_call.1} parent=0 // pred_region
    _
  $region25: #{tpu_custom_call.1} parent=0 // pred_fallthru
    _
  // Predicated region
  $region26: #{tpu_custom_call.1} parent=0 // pred_check
    _
  $region27: #{tpu_custom_call.1} parent=0 // pred_check_branch
    %37 = sbr.rel (0) target = $region29
  $region28: #{tpu_custom_call.1} parent=0 // pred_region
    _
  $region29: #{tpu_custom_call.1} parent=0 // pred_fallthru
    _
  // Predicated region
  $region30: #{tpu_custom_call.1} parent=0 // pred_check
    _
  $region31: #{tpu_custom_call.1} parent=0 // pred_check_branch
    %39 = sbr.rel (0) target = $region33
  $region32: #{tpu_custom_call.1} parent=0 // pred_region
    _
  $region33: #{tpu_custom_call.1} parent=0 // pred_fallthru
    _
  // Predicated region
  $region34: #{tpu_custom_call.1} parent=0 // pred_check
    _
  $region35: #{tpu_custom_call.1} parent=0 // pred_check_branch
    %41 = sbr.rel (0) target = $region37
  $region36: #{tpu_custom_call.1} parent=0 // pred_region
    _
  $region37: #{tpu_custom_call.1} parent=0 // pred_fallthru
    _
  // Predicated region
  $region38: #{tpu_custom_call.1} parent=0 // pred_check
    _
  $region39: #{tpu_custom_call.1} parent=0 // pred_check_branch
    %43 = sbr.rel (0) target = $region41
  $region40: #{tpu_custom_call.1} parent=0 // pred_region
    _
  $region41: #{tpu_custom_call.1} parent=0 // pred_fallthru
    _
  // Predicated region
  $region42: #{tpu_custom_call.1} parent=0 // pred_check
    _
  $region43: #{tpu_custom_call.1} parent=0 // pred_check_branch
    %45 = sbr.rel (0) target = $region45
  $region44: #{tpu_custom_call.1} parent=0 // pred_region
    _
  $region45: #{tpu_custom_call.1} parent=0 // pred_fallthru
    _
  // Predicated region
  $region46: #{tpu_custom_call.1} parent=0 // pred_check
    _
  $region47: #{tpu_custom_call.1} parent=0 // pred_check_branch
    %47 = sbr.rel (0) target = $region49
  $region48: #{tpu_custom_call.1} parent=0 // pred_region
    _
  $region49: #{tpu_custom_call.1} parent=0 // pred_fallthru
    _
  // Predicated region
  $region50: #{tpu_custom_call.1} parent=0 // pred_check
    _
  $region51: #{tpu_custom_call.1} parent=0 // pred_check_branch
    %49 = sbr.rel (0) target = $region53
  $region52: #{tpu_custom_call.1} parent=0 // pred_region
    _
  $region53: #{tpu_custom_call.1} parent=0 // pred_fallthru
    _
  // Predicated region
  $region54: #{tpu_custom_call.1} parent=0 // pred_check
    _
  $region55: #{tpu_custom_call.1} parent=0 // pred_check_branch
    %51 = sbr.rel (0) target = $region57
  $region56: #{tpu_custom_call.1} parent=0 // pred_region
    _
  $region57: #{tpu_custom_call.1} parent=0 // pred_fallthru
    _
  // Predicated region
  $region58: #{tpu_custom_call.1} parent=0 // pred_check
    _
  $region59: #{tpu_custom_call.1} parent=0 // pred_check_branch
    %53 = sbr.rel (0) target = $region61
  $region60: #{tpu_custom_call.1} parent=0 // pred_region
    _
  $region61: #{tpu_custom_call.1} parent=0 // pred_fallthru
    _
  // Predicated region
  $region62: #{tpu_custom_call.1} parent=0 // pred_check
    _
  $region63: #{tpu_custom_call.1} parent=0 // pred_check_branch
    %55 = sbr.rel (0) target = $region65
  $region64: #{tpu_custom_call.1} parent=0 // pred_region
    _
  $region65: #{tpu_custom_call.1} parent=0 // pred_fallthru
    _
  // Predicated region
  $region66: #{tpu_custom_call.1} parent=0 // pred_check
    _
  $region67: #{tpu_custom_call.1} parent=0 // pred_check_branch
    %57 = sbr.rel (0) target = $region69
  $region68: #{tpu_custom_call.1} parent=0 // pred_region
    _
  $region69: #{tpu_custom_call.1} parent=0 // pred_fallthru
    _
  %v58 = vld [vmem:[%s2] sm:$0x3]
  %v59 = vld [vmem:[%s0] sm:$0xff]
  %v60 = vld [vmem:[%s0 + $0x8] sm:$0xff]
  %v61 = vld [vmem:[%s0 + $0x10] sm:$0xff]
  %v62 = vld [vmem:[%s0 + $0x18] sm:$0xff]
  %v63 = vld [vmem:[%s0 + $0x20] sm:$0xff]
  %v64 = vld [vmem:[%s0 + $0x28] sm:$0xff]
  %v65 = vld [vmem:[%s0 + $0x30] sm:$0xff]
  %v66 = vld [vmem:[%s0 + $0x38] sm:$0xff]
  %vm67 = vcmask 261120
  %v68 = vsel %vm67, %v59, 0.0
  %69 = vadd.xlane.f32.xlu0 %v68
  %v70 = vpop.xlane.xlu0 %69
  %v71 = vsel %vm67, %v60, 0.0
  %72 = vadd.xlane.f32.xlu0 %v71
  %v73 = vpop.xlane.xlu0 %72
  %v74 = vsel %vm67, %v61, 0.0
  %75 = vadd.xlane.f32.xlu0 %v74
  %v76 = vpop.xlane.xlu0 %75
  %v77 = vsel %vm67, %v62, 0.0
  %78 = vadd.xlane.f32.xlu0 %v77
  %v79 = vpop.xlane.xlu0 %78
  %v80 = vsel %vm67, %v63, 0.0
  %81 = vadd.xlane.f32.xlu0 %v80
  %v82 = vpop.xlane.xlu0 %81
  %v83 = vsel %vm67, %v64, 0.0
  %84 = vadd.xlane.f32.xlu0 %v83
  %v85 = vpop.xlane.xlu0 %84
  %v86 = vsel %vm67, %v65, 0.0
  %87 = vadd.xlane.f32.xlu0 %v86
  %v88 = vpop.xlane.xlu0 %87
  %v89 = vsel %vm67, %v66, 0.0
  %90 = vadd.xlane.f32.xlu0 %v89
  %v91 = vpop.xlane.xlu0 %90
  %v92 = vrcp.pop 32.0
  %v93 = vmul.f32 %v70, %v92
  %v94 = vmul.f32 %v73, %v92
  %v95 = vmul.f32 %v76, %v92
  %v96 = vmul.f32 %v79, %v92
  %v97 = vmul.f32 %v82, %v92
  %v98 = vmul.f32 %v85, %v92
  %v99 = vmul.f32 %v88, %v92
  %v100 = vmul.f32 %v91, %v92
  %v101 = vsub.f32 %v59, %v93
  %v102 = vsub.f32 %v60, %v94
  %v103 = vsub.f32 %v61, %v95
  %v104 = vsub.f32 %v62, %v96
  %v105 = vsub.f32 %v63, %v97
  %v106 = vsub.f32 %v64, %v98
  %v107 = vsub.f32 %v65, %v99
  %v108 = vsub.f32 %v66, %v100
  %v109 = vmul.f32 %v101, %v101
  %v110 = vmul.f32 %v102, %v102
  %v111 = vmul.f32 %v103, %v103
  %v112 = vmul.f32 %v104, %v104
  %v113 = vmul.f32 %v105, %v105
  %v114 = vmul.f32 %v106, %v106
  %v115 = vmul.f32 %v107, %v107
  %v116 = vmul.f32 %v108, %v108
  %v117 = vsel %vm67, %v109, 0.0
  %118 = vadd.xlane.f32.xlu0 %v117
  %v119 = vpop.xlane.xlu0 %118
  %v120 = vsel %vm67, %v110, 0.0
  %121 = vadd.xlane.f32.xlu0 %v120
  %v122 = vpop.xlane.xlu0 %121
  %v123 = vsel %vm67, %v111, 0.0
  %124 = vadd.xlane.f32.xlu0 %v123
  %v125 = vpop.xlane.xlu0 %124
  %v126 = vsel %vm67, %v112, 0.0
  %127 = vadd.xlane.f32.xlu0 %v126
  %v128 = vpop.xlane.xlu0 %127
  %v129 = vsel %vm67, %v113, 0.0
  %130 = vadd.xlane.f32.xlu0 %v129
  %v131 = vpop.xlane.xlu0 %130
  %v132 = vsel %vm67, %v114, 0.0
  %133 = vadd.xlane.f32.xlu0 %v132
  %v134 = vpop.xlane.xlu0 %133
  %v135 = vsel %vm67, %v115, 0.0
  %136 = vadd.xlane.f32.xlu0 %v135
  %v137 = vpop.xlane.xlu0 %136
  %v138 = vsel %vm67, %v116, 0.0
  %139 = vadd.xlane.f32.xlu0 %v138
  %v140 = vpop.xlane.xlu0 %139
  %v141 = vmul.f32 %v119, %v92
  %v142 = vmul.f32 %v122, %v92
  %v143 = vmul.f32 %v125, %v92
  %v144 = vmul.f32 %v128, %v92
  %v145 = vmul.f32 %v131, %v92
  %v146 = vmul.f32 %v134, %v92
  %v147 = vmul.f32 %v137, %v92
  %v148 = vmul.f32 %v140, %v92
  %v149 = vadd.f32 %v141, 1e-05
  %v150 = vadd.f32 %v142, 1e-05
  %v151 = vadd.f32 %v143, 1e-05
  %v152 = vadd.f32 %v144, 1e-05
  %v153 = vadd.f32 %v145, 1e-05
  %v154 = vadd.f32 %v146, 1e-05
  %v155 = vadd.f32 %v147, 1e-05
  %v156 = vadd.f32 %v148, 1e-05
  %v157 = vrsqrt.pop %v149
  %v158 = vrsqrt.pop %v150
  %v159 = vrsqrt.pop %v151
  %v160 = vrsqrt.pop %v152
  %v161 = vrsqrt.pop %v153
  %v162 = vrsqrt.pop %v154
  %v163 = vrsqrt.pop %v155
  %v164 = vrsqrt.pop %v156
  %v165 = vmul.f32 %v101, %v157
  %v166 = vmul.f32 %v102, %v158
  %v167 = vmul.f32 %v103, %v159
  %v168 = vmul.f32 %v104, %v160
  %v169 = vmul.f32 %v105, %v161
  %v170 = vmul.f32 %v106, %v162
  %v171 = vmul.f32 %v107, %v163
  %v172 = vmul.f32 %v108, %v164
  %v173 = vlaneseq
  %v174 = vshrl.u32 %v173, 7
  %v175 = vsub.s32 0, %v174
  %v176 = vrot.slane %v58, %v175
  %v177 = vmul.f32 %v165, %v176
  %v178 = vmul.f32 %v166, %v176
  %v179 = vmul.f32 %v167, %v176
  %v180 = vmul.f32 %v168, %v176
  %v181 = vmul.f32 %v169, %v176
  %v182 = vmul.f32 %v170, %v176
  %v183 = vmul.f32 %v171, %v176
  %v184 = vmul.f32 %v172, %v176
  %v185 = vlaneseq
  %v186 = vshrl.u32 %v185, 7
  %v187 = vsub.s32 1, %v186
  %v188 = vrot.slane %v58, %v187
  %v189 = vadd.f32 %v177, %v188
  %v190 = vadd.f32 %v178, %v188
  %v191 = vadd.f32 %v179, %v188
  %v192 = vadd.f32 %v180, %v188
  %v193 = vadd.f32 %v181, %v188
  %v194 = vadd.f32 %v182, %v188
  %v195 = vadd.f32 %v183, %v188
  %v196 = vadd.f32 %v184, %v188
  %v197 = vld [vmem:[%s1] sm:$0x1]
  %v198 = vld [vmem:[%s1 + $0x1] sm:$0x1]
  %v199 = vld [vmem:[%s1 + $0x2] sm:$0x1]
  %v200 = vld [vmem:[%s1 + $0x3] sm:$0x1]
  %v201 = vld [vmem:[%s1 + $0x4] sm:$0x1]
  %v202 = vld [vmem:[%s1 + $0x5] sm:$0x1]
  %v203 = vld [vmem:[%s1 + $0x6] sm:$0x1]
  %v204 = vld [vmem:[%s1 + $0x7] sm:$0x1]
  %v205 = vsub.f32 1.0, %v197
  %v206 = vsub.f32 1.0, %v198
  %v207 = vsub.f32 1.0, %v199
  %v208 = vsub.f32 1.0, %v200
  %v209 = vsub.f32 1.0, %v201
  %v210 = vsub.f32 1.0, %v202
  %v211 = vsub.f32 1.0, %v203
  %v212 = vsub.f32 1.0, %v204
  %v213 = vmul.f32 %v205, -10000.0
  %v214 = vmul.f32 %v206, -10000.0
  %v215 = vmul.f32 %v207, -10000.0
  %v216 = vmul.f32 %v208, -10000.0
  %v217 = vmul.f32 %v209, -10000.0
  %v218 = vmul.f32 %v210, -10000.0
  %v219 = vmul.f32 %v211, -10000.0
  %v220 = vmul.f32 %v212, -10000.0
  %v221 = vld [vmem:[%s3] sm:$0xff]
  %v222 = vld [vmem:[%s3 + $0x8] sm:$0xff]
  %v223 = vld [vmem:[%s3 + $0x10] sm:$0xff]
  %v224 = vld [vmem:[%s3 + $0x18] sm:$0xff]
  %v225 = vld [vmem:[%s4] sm:$0x1]
  %v227 = vlaneseq
  %v228 = vshrl.u32 %v227, 7
  %v229 = vsub.s32 0, %v228
  %v230 = vrot.slane %v225, %v229
  %v233 = vsel %vm67, %v189, 0
  %v236 = vsel %vm67, %v190, 0
  %v239 = vsel %vm67, %v191, 0
  %v242 = vsel %vm67, %v192, 0
  %v245 = vsel %vm67, %v193, 0
  %v248 = vsel %vm67, %v194, 0
  %v251 = vsel %vm67, %v195, 0
  %v254 = vsel %vm67, %v196, 0
  %256 = vmatprep.subr.mxu0 0.0
  %257 = vmatpush1.msra.mxu0 %v221
  %258 = vmatprep.subr.mxu0 0.0
  %259 = vmatpush1.msra.mxu0 %v222
  %260 = vmatprep.subr.mxu0 0.0
  %261 = vmatpush1.msra.mxu0 %v223
  %262 = vmatprep.subr.mxu0 0.0
  %263 = vmatpush1.msra.mxu0 %v224
  %264 = vmatprep.subr.mxu0 0.0
  %265 = vmatpush1.msra.mxu0 0.0
  %266 = vmatprep.subr.mxu0 0.0
  %267 = vmatpush1.msra.mxu0 0.0
  %268 = vmatprep.subr.mxu0 0.0
  %269 = vmatpush1.msra.mxu0 0.0
  %270 = vmatprep.subr.mxu0 0.0
  %271 = vmatpush1.msra.mxu0 0.0
  %272 = vmatprep.subr.mxu0 0.0
  %273 = vmatpush1.msra.mxu0 0.0
  %274 = vmatprep.subr.mxu0 0.0
  %275 = vmatpush1.msra.mxu0 0.0
  %276 = vmatprep.subr.mxu0 0.0
  %277 = vmatpush1.msra.mxu0 0.0
  %278 = vmatprep.subr.mxu0 0.0
  %279 = vmatpush1.msra.mxu0 0.0
  %280 = vmatprep.subr.mxu0 0.0
  %281 = vmatpush1.msra.mxu0 0.0
  %282 = vmatprep.subr.mxu0 0.0
  %283 = vmatpush1.msra.mxu0 0.0
  %284 = vmatprep.subr.mxu0 0.0
  %285 = vmatpush1.msra.mxu0 0.0
  %286 = vmatprep.subr.mxu0 0.0
  %287 = vmatpush1.msra.mxu0 0.0
  %288 = vmatprep.subr.mxu0 0.0
  %289 = vmatpush1.msra.mxu0 0.0
  %290 = vmatprep.subr.mxu0 0.0
  %291 = vmatpush1.msra.mxu0 0.0
  %292 = vmatprep.subr.mxu0 0.0
  %293 = vmatpush1.msra.mxu0 0.0
  %294 = vmatprep.subr.mxu0 0.0
  %295 = vmatpush1.msra.mxu0 0.0
  %296 = vmatprep.subr.mxu0 0.0
  %297 = vmatpush1.msra.mxu0 0.0
  %298 = vmatprep.subr.mxu0 0.0
  %299 = vmatpush1.msra.mxu0 0.0
  %300 = vmatprep.subr.mxu0 0.0
  %301 = vmatpush1.msra.mxu0 0.0
  %302 = vmatprep.subr.mxu0 0.0
  %303 = vmatpush1.msra.mxu0 0.0
  %304 = vmatprep.subr.mxu0 0.0
  %305 = vmatpush1.msra.mxu0 0.0
  %306 = vmatprep.subr.mxu0 0.0
  %307 = vmatpush1.msra.mxu0 0.0
  %308 = vmatprep.subr.mxu0 0.0
  %309 = vmatpush1.msra.mxu0 0.0
  %310 = vmatprep.subr.mxu0 0.0
  %311 = vmatpush1.msra.mxu0 0.0
  %312 = vmatprep.subr.mxu0 0.0
  %313 = vmatpush1.msra.mxu0 0.0
  %314 = vmatprep.subr.mxu0 0.0
  %315 = vmatpush1.msra.mxu0 0.0
  %316 = vmatprep.subr.mxu0 0.0
  %317 = vmatpush1.msra.mxu0 0.0
  %318 = vmatprep.subr.mxu0 0.0
  %319 = vmatpush1.msra.mxu0 0.0
  %320 = vmatprep.mubr.f32.mxu0 0.0
  %321 = vmatmul.mubr.f32.gmra.mrb[0].mxu0 %v233
  %v322 = vpop.f32.mrb[0].mxu0
  %v323 = vadd.f32 %v230, %v322
  %v324 = vpop.f32.mrb[0].mxu0
  %325 = vmatprep.mubr.f32.mxu0 0.0
  %326 = vmatmul.mubr.f32.gmra.mrb[0].mxu0 %v236
  %v327 = vpop.f32.mrb[0].mxu0
  %v328 = vadd.f32 %v230, %v327
  %v329 = vpop.f32.mrb[0].mxu0
  %330 = vmatprep.mubr.f32.mxu0 0.0
  %331 = vmatmul.mubr.f32.gmra.mrb[0].mxu0 %v239
  %v332 = vpop.f32.mrb[0].mxu0
  %v333 = vadd.f32 %v230, %v332
  %v334 = vpop.f32.mrb[0].mxu0
  %335 = vmatprep.mubr.f32.mxu0 0.0
  %336 = vmatmul.mubr.f32.gmra.mrb[0].mxu0 %v242
  %v337 = vpop.f32.mrb[0].mxu0
  %v338 = vadd.f32 %v230, %v337
  %v339 = vpop.f32.mrb[0].mxu0
  %340 = vmatprep.mubr.f32.mxu0 0.0
  %341 = vmatmul.mubr.f32.gmra.mrb[0].mxu0 %v245
  %v342 = vpop.f32.mrb[0].mxu0
  %v343 = vadd.f32 %v230, %v342
  %v344 = vpop.f32.mrb[0].mxu0
  %345 = vmatprep.mubr.f32.mxu0 0.0
  %346 = vmatmul.mubr.f32.gmra.mrb[0].mxu0 %v248
  %v347 = vpop.f32.mrb[0].mxu0
  %v348 = vadd.f32 %v230, %v347
  %v349 = vpop.f32.mrb[0].mxu0
  %350 = vmatprep.mubr.f32.mxu0 0.0
  %351 = vmatmul.mubr.f32.gmra.mrb[0].mxu0 %v251
  %v352 = vpop.f32.mrb[0].mxu0
  %v353 = vadd.f32 %v230, %v352
  %v354 = vpop.f32.mrb[0].mxu0
  %355 = vmatprep.mubr.f32.mxu0 0.0
  %356 = vmatmul.mubr.f32.gmra.mrb[0].mxu0 %v254
  %v357 = vpop.f32.mrb[0].mxu0
  %v358 = vadd.f32 %v230, %v357
  %v359 = vpop.f32.mrb[0].mxu0
  %360 = vdwg.mxu0
  %362 = vrot.lane.b32.xlu0 %v323, 96
  %v363 = vpop.permute.xlu0 %362
  %vm364 = vcmask 130048
  %v365 = vsel %vm364, %v323, 0
  %v367 = vsel %vm364, %v363, 0
  %369 = vmatprep.subr.mxu0 0.0
  %370 = vmatpush1.xpose.msra.mxu0 %v367
  %371 = vmatprep.subr.mxu0 0.0
  %372 = vmatpush1.xpose.msra.mxu0 0.0
  %373 = vmatprep.subr.mxu0 0.0
  %374 = vmatpush1.xpose.msra.mxu0 0.0
  %375 = vmatprep.subr.mxu0 0.0
  %376 = vmatpush1.xpose.msra.mxu0 0.0
  %377 = vmatprep.subr.mxu0 0.0
  %378 = vmatpush1.xpose.msra.mxu0 0.0
  %379 = vmatprep.subr.mxu0 0.0
  %380 = vmatpush1.xpose.msra.mxu0 0.0
  %381 = vmatprep.subr.mxu0 0.0
  %382 = vmatpush1.xpose.msra.mxu0 0.0
  %383 = vmatprep.subr.mxu0 0.0
  %384 = vmatpush1.xpose.msra.mxu0 0.0
  %385 = vmatprep.subr.mxu0 0.0
  %386 = vmatpush1.xpose.msra.mxu0 0.0
  %387 = vmatprep.subr.mxu0 0.0
  %388 = vmatpush1.xpose.msra.mxu0 0.0
  %389 = vmatprep.subr.mxu0 0.0
  %390 = vmatpush1.xpose.msra.mxu0 0.0
  %391 = vmatprep.subr.mxu0 0.0
  %392 = vmatpush1.xpose.msra.mxu0 0.0
  %393 = vmatprep.subr.mxu0 0.0
  %394 = vmatpush1.xpose.msra.mxu0 0.0
  %395 = vmatprep.subr.mxu0 0.0
  %396 = vmatpush1.xpose.msra.mxu0 0.0
  %397 = vmatprep.subr.mxu0 0.0
  %398 = vmatpush1.xpose.msra.mxu0 0.0
  %399 = vmatprep.subr.mxu0 0.0
  %400 = vmatpush1.xpose.msra.mxu0 0.0
  %401 = vmatprep.subr.mxu0 0.0
  %402 = vmatpush1.xpose.msra.mxu0 0.0
  %403 = vmatprep.subr.mxu0 0.0
  %404 = vmatpush1.xpose.msra.mxu0 0.0
  %405 = vmatprep.subr.mxu0 0.0
  %406 = vmatpush1.xpose.msra.mxu0 0.0
  %407 = vmatprep.subr.mxu0 0.0
  %408 = vmatpush1.xpose.msra.mxu0 0.0
  %409 = vmatprep.subr.mxu0 0.0
  %410 = vmatpush1.xpose.msra.mxu0 0.0
  %411 = vmatprep.subr.mxu0 0.0
  %412 = vmatpush1.xpose.msra.mxu0 0.0
  %413 = vmatprep.subr.mxu0 0.0
  %414 = vmatpush1.xpose.msra.mxu0 0.0
  %415 = vmatprep.subr.mxu0 0.0
  %416 = vmatpush1.xpose.msra.mxu0 0.0
  %417 = vmatprep.subr.mxu0 0.0
  %418 = vmatpush1.xpose.msra.mxu0 0.0
  %419 = vmatprep.subr.mxu0 0.0
  %420 = vmatpush1.xpose.msra.mxu0 0.0
  %421 = vmatprep.subr.mxu0 0.0
  %422 = vmatpush1.xpose.msra.mxu0 0.0
  %423 = vmatprep.subr.mxu0 0.0
  %424 = vmatpush1.xpose.msra.mxu0 0.0
  %425 = vmatprep.subr.mxu0 0.0
  %426 = vmatpush1.xpose.msra.mxu0 0.0
  %427 = vmatprep.subr.mxu0 0.0
  %428 = vmatpush1.xpose.msra.mxu0 0.0
  %429 = vmatprep.subr.mxu0 0.0
  %430 = vmatpush1.xpose.msra.mxu0 0.0
  %431 = vmatprep.subr.mxu0 0.0
  %432 = vmatpush1.xpose.msra.mxu0 0.0
  %433 = vmatprep.mubr.f32.mxu0 0.0
  %434 = vmatmul.mubr.f32.gmra.mrb[0].mxu0 %v365
  %v435 = vpop.f32.mrb[0].mxu0
  %v436 = vadd.f32 0.0, %v435
  %v437 = vpop.f32.mrb[0].mxu0
  %438 = vdwg.mxu0
  %440 = vrot.lane.b32.xlu0 %v328, 96
  %v441 = vpop.permute.xlu0 %440
  %v442 = vsel %vm364, %v328, 0
  %v444 = vsel %vm364, %v441, 0
  %446 = vmatprep.subr.mxu0 0.0
  %447 = vmatpush1.xpose.msra.mxu0 %v444
  %448 = vmatprep.subr.mxu0 0.0
  %449 = vmatpush1.xpose.msra.mxu0 0.0
  %450 = vmatprep.subr.mxu0 0.0
  %451 = vmatpush1.xpose.msra.mxu0 0.0
  %452 = vmatprep.subr.mxu0 0.0
  %453 = vmatpush1.xpose.msra.mxu0 0.0
  %454 = vmatprep.subr.mxu0 0.0
  %455 = vmatpush1.xpose.msra.mxu0 0.0
  %456 = vmatprep.subr.mxu0 0.0
  %457 = vmatpush1.xpose.msra.mxu0 0.0
  %458 = vmatprep.subr.mxu0 0.0
  %459 = vmatpush1.xpose.msra.mxu0 0.0
  %460 = vmatprep.subr.mxu0 0.0
  %461 = vmatpush1.xpose.msra.mxu0 0.0
  %462 = vmatprep.subr.mxu0 0.0
  %463 = vmatpush1.xpose.msra.mxu0 0.0
  %464 = vmatprep.subr.mxu0 0.0
  %465 = vmatpush1.xpose.msra.mxu0 0.0
  %466 = vmatprep.subr.mxu0 0.0
  %467 = vmatpush1.xpose.msra.mxu0 0.0
  %468 = vmatprep.subr.mxu0 0.0
  %469 = vmatpush1.xpose.msra.mxu0 0.0
  %470 = vmatprep.subr.mxu0 0.0
  %471 = vmatpush1.xpose.msra.mxu0 0.0
  %472 = vmatprep.subr.mxu0 0.0
  %473 = vmatpush1.xpose.msra.mxu0 0.0
  %474 = vmatprep.subr.mxu0 0.0
  %475 = vmatpush1.xpose.msra.mxu0 0.0
  %476 = vmatprep.subr.mxu0 0.0
  %477 = vmatpush1.xpose.msra.mxu0 0.0
  %478 = vmatprep.subr.mxu0 0.0
  %479 = vmatpush1.xpose.msra.mxu0 0.0
  %480 = vmatprep.subr.mxu0 0.0
  %481 = vmatpush1.xpose.msra.mxu0 0.0
  %482 = vmatprep.subr.mxu0 0.0
  %483 = vmatpush1.xpose.msra.mxu0 0.0
  %484 = vmatprep.subr.mxu0 0.0
  %485 = vmatpush1.xpose.msra.mxu0 0.0
  %486 = vmatprep.subr.mxu0 0.0
  %487 = vmatpush1.xpose.msra.mxu0 0.0
  %488 = vmatprep.subr.mxu0 0.0
  %489 = vmatpush1.xpose.msra.mxu0 0.0
  %490 = vmatprep.subr.mxu0 0.0
  %491 = vmatpush1.xpose.msra.mxu0 0.0
  %492 = vmatprep.subr.mxu0 0.0
  %493 = vmatpush1.xpose.msra.mxu0 0.0
  %494 = vmatprep.subr.mxu0 0.0
  %495 = vmatpush1.xpose.msra.mxu0 0.0
  %496 = vmatprep.subr.mxu0 0.0
  %497 = vmatpush1.xpose.msra.mxu0 0.0
  %498 = vmatprep.subr.mxu0 0.0
  %499 = vmatpush1.xpose.msra.mxu0 0.0
  %500 = vmatprep.subr.mxu0 0.0
  %501 = vmatpush1.xpose.msra.mxu0 0.0
  %502 = vmatprep.subr.mxu0 0.0
  %503 = vmatpush1.xpose.msra.mxu0 0.0
  %504 = vmatprep.subr.mxu0 0.0
  %505 = vmatpush1.xpose.msra.mxu0 0.0
  %506 = vmatprep.subr.mxu0 0.0
  %507 = vmatpush1.xpose.msra.mxu0 0.0
  %508 = vmatprep.subr.mxu0 0.0
  %509 = vmatpush1.xpose.msra.mxu0 0.0
  %510 = vmatprep.mubr.f32.mxu0 0.0
  %511 = vmatmul.mubr.f32.gmra.mrb[0].mxu0 %v442
  %v512 = vpop.f32.mrb[0].mxu0
  %v513 = vadd.f32 0.0, %v512
  %v514 = vpop.f32.mrb[0].mxu0
  %515 = vdwg.mxu0
  %517 = vrot.lane.b32.xlu0 %v333, 96
  %v518 = vpop.permute.xlu0 %517
  %v519 = vsel %vm364, %v333, 0
  %v521 = vsel %vm364, %v518, 0
  %523 = vmatprep.subr.mxu0 0.0
  %524 = vmatpush1.xpose.msra.mxu0 %v521
  %525 = vmatprep.subr.mxu0 0.0
  %526 = vmatpush1.xpose.msra.mxu0 0.0
  %527 = vmatprep.subr.mxu0 0.0
  %528 = vmatpush1.xpose.msra.mxu0 0.0
  %529 = vmatprep.subr.mxu0 0.0
  %530 = vmatpush1.xpose.msra.mxu0 0.0
  %531 = vmatprep.subr.mxu0 0.0
  %532 = vmatpush1.xpose.msra.mxu0 0.0
  %533 = vmatprep.subr.mxu0 0.0
  %534 = vmatpush1.xpose.msra.mxu0 0.0
  %535 = vmatprep.subr.mxu0 0.0
  %536 = vmatpush1.xpose.msra.mxu0 0.0
  %537 = vmatprep.subr.mxu0 0.0
  %538 = vmatpush1.xpose.msra.mxu0 0.0
  %539 = vmatprep.subr.mxu0 0.0
  %540 = vmatpush1.xpose.msra.mxu0 0.0
  %541 = vmatprep.subr.mxu0 0.0
  %542 = vmatpush1.xpose.msra.mxu0 0.0
  %543 = vmatprep.subr.mxu0 0.0
  %544 = vmatpush1.xpose.msra.mxu0 0.0
  %545 = vmatprep.subr.mxu0 0.0
  %546 = vmatpush1.xpose.msra.mxu0 0.0
  %547 = vmatprep.subr.mxu0 0.0
  %548 = vmatpush1.xpose.msra.mxu0 0.0
  %549 = vmatprep.subr.mxu0 0.0
  %550 = vmatpush1.xpose.msra.mxu0 0.0
  %551 = vmatprep.subr.mxu0 0.0
  %552 = vmatpush1.xpose.msra.mxu0 0.0
  %553 = vmatprep.subr.mxu0 0.0
  %554 = vmatpush1.xpose.msra.mxu0 0.0
  %555 = vmatprep.subr.mxu0 0.0
  %556 = vmatpush1.xpose.msra.mxu0 0.0
  %557 = vmatprep.subr.mxu0 0.0
  %558 = vmatpush1.xpose.msra.mxu0 0.0
  %559 = vmatprep.subr.mxu0 0.0
  %560 = vmatpush1.xpose.msra.mxu0 0.0
  %561 = vmatprep.subr.mxu0 0.0
  %562 = vmatpush1.xpose.msra.mxu0 0.0
  %563 = vmatprep.subr.mxu0 0.0
  %564 = vmatpush1.xpose.msra.mxu0 0.0
  %565 = vmatprep.subr.mxu0 0.0
  %566 = vmatpush1.xpose.msra.mxu0 0.0
  %567 = vmatprep.subr.mxu0 0.0
  %568 = vmatpush1.xpose.msra.mxu0 0.0
  %569 = vmatprep.subr.mxu0 0.0
  %570 = vmatpush1.xpose.msra.mxu0 0.0
  %571 = vmatprep.subr.mxu0 0.0
  %572 = vmatpush1.xpose.msra.mxu0 0.0
  %573 = vmatprep.subr.mxu0 0.0
  %574 = vmatpush1.xpose.msra.mxu0 0.0
  %575 = vmatprep.subr.mxu0 0.0
  %576 = vmatpush1.xpose.msra.mxu0 0.0
  %577 = vmatprep.subr.mxu0 0.0
  %578 = vmatpush1.xpose.msra.mxu0 0.0
  %579 = vmatprep.subr.mxu0 0.0
  %580 = vmatpush1.xpose.msra.mxu0 0.0
  %581 = vmatprep.subr.mxu0 0.0
  %582 = vmatpush1.xpose.msra.mxu0 0.0
  %583 = vmatprep.subr.mxu0 0.0
  %584 = vmatpush1.xpose.msra.mxu0 0.0
  %585 = vmatprep.subr.mxu0 0.0
  %586 = vmatpush1.xpose.msra.mxu0 0.0
  %587 = vmatprep.mubr.f32.mxu0 0.0
  %588 = vmatmul.mubr.f32.gmra.mrb[0].mxu0 %v519
  %v589 = vpop.f32.mrb[0].mxu0
  %v590 = vadd.f32 0.0, %v589
  %v591 = vpop.f32.mrb[0].mxu0
  %592 = vdwg.mxu0
  %594 = vrot.lane.b32.xlu0 %v338, 96
  %v595 = vpop.permute.xlu0 %594
  %v596 = vsel %vm364, %v338, 0
  %v598 = vsel %vm364, %v595, 0
  %600 = vmatprep.subr.mxu0 0.0
  %601 = vmatpush1.xpose.msra.mxu0 %v598
  %602 = vmatprep.subr.mxu0 0.0
  %603 = vmatpush1.xpose.msra.mxu0 0.0
  %604 = vmatprep.subr.mxu0 0.0
  %605 = vmatpush1.xpose.msra.mxu0 0.0
  %606 = vmatprep.subr.mxu0 0.0
  %607 = vmatpush1.xpose.msra.mxu0 0.0
  %608 = vmatprep.subr.mxu0 0.0
  %609 = vmatpush1.xpose.msra.mxu0 0.0
  %610 = vmatprep.subr.mxu0 0.0
  %611 = vmatpush1.xpose.msra.mxu0 0.0
  %612 = vmatprep.subr.mxu0 0.0
  %613 = vmatpush1.xpose.msra.mxu0 0.0
  %614 = vmatprep.subr.mxu0 0.0
  %615 = vmatpush1.xpose.msra.mxu0 0.0
  %616 = vmatprep.subr.mxu0 0.0
  %617 = vmatpush1.xpose.msra.mxu0 0.0
  %618 = vmatprep.subr.mxu0 0.0
  %619 = vmatpush1.xpose.msra.mxu0 0.0
  %620 = vmatprep.subr.mxu0 0.0
  %621 = vmatpush1.xpose.msra.mxu0 0.0
  %622 = vmatprep.subr.mxu0 0.0
  %623 = vmatpush1.xpose.msra.mxu0 0.0
  %624 = vmatprep.subr.mxu0 0.0
  %625 = vmatpush1.xpose.msra.mxu0 0.0
  %626 = vmatprep.subr.mxu0 0.0
  %627 = vmatpush1.xpose.msra.mxu0 0.0
  %628 = vmatprep.subr.mxu0 0.0
  %629 = vmatpush1.xpose.msra.mxu0 0.0
  %630 = vmatprep.subr.mxu0 0.0
  %631 = vmatpush1.xpose.msra.mxu0 0.0
  %632 = vmatprep.subr.mxu0 0.0
  %633 = vmatpush1.xpose.msra.mxu0 0.0
  %634 = vmatprep.subr.mxu0 0.0
  %635 = vmatpush1.xpose.msra.mxu0 0.0
  %636 = vmatprep.subr.mxu0 0.0
  %637 = vmatpush1.xpose.msra.mxu0 0.0
  %638 = vmatprep.subr.mxu0 0.0
  %639 = vmatpush1.xpose.msra.mxu0 0.0
  %640 = vmatprep.subr.mxu0 0.0
  %641 = vmatpush1.xpose.msra.mxu0 0.0
  %642 = vmatprep.subr.mxu0 0.0
  %643 = vmatpush1.xpose.msra.mxu0 0.0
  %644 = vmatprep.subr.mxu0 0.0
  %645 = vmatpush1.xpose.msra.mxu0 0.0
  %646 = vmatprep.subr.mxu0 0.0
  %647 = vmatpush1.xpose.msra.mxu0 0.0
  %648 = vmatprep.subr.mxu0 0.0
  %649 = vmatpush1.xpose.msra.mxu0 0.0
  %650 = vmatprep.subr.mxu0 0.0
  %651 = vmatpush1.xpose.msra.mxu0 0.0
  %652 = vmatprep.subr.mxu0 0.0
  %653 = vmatpush1.xpose.msra.mxu0 0.0
  %654 = vmatprep.subr.mxu0 0.0
  %655 = vmatpush1.xpose.msra.mxu0 0.0
  %656 = vmatprep.subr.mxu0 0.0
  %657 = vmatpush1.xpose.msra.mxu0 0.0
  %658 = vmatprep.subr.mxu0 0.0
  %659 = vmatpush1.xpose.msra.mxu0 0.0
  %660 = vmatprep.subr.mxu0 0.0
  %661 = vmatpush1.xpose.msra.mxu0 0.0
  %662 = vmatprep.subr.mxu0 0.0
  %663 = vmatpush1.xpose.msra.mxu0 0.0
  %664 = vmatprep.mubr.f32.mxu0 0.0
  %665 = vmatmul.mubr.f32.gmra.mrb[0].mxu0 %v596
  %v666 = vpop.f32.mrb[0].mxu0
  %v667 = vadd.f32 0.0, %v666
  %v668 = vpop.f32.mrb[0].mxu0
  %669 = vdwg.mxu0
  %671 = vrot.lane.b32.xlu0 %v343, 96
  %v672 = vpop.permute.xlu0 %671
  %v673 = vsel %vm364, %v343, 0
  %v675 = vsel %vm364, %v672, 0
  %677 = vmatprep.subr.mxu0 0.0
  %678 = vmatpush1.xpose.msra.mxu0 %v675
  %679 = vmatprep.subr.mxu0 0.0
  %680 = vmatpush1.xpose.msra.mxu0 0.0
  %681 = vmatprep.subr.mxu0 0.0
  %682 = vmatpush1.xpose.msra.mxu0 0.0
  %683 = vmatprep.subr.mxu0 0.0
  %684 = vmatpush1.xpose.msra.mxu0 0.0
  %685 = vmatprep.subr.mxu0 0.0
  %686 = vmatpush1.xpose.msra.mxu0 0.0
  %687 = vmatprep.subr.mxu0 0.0
  %688 = vmatpush1.xpose.msra.mxu0 0.0
  %689 = vmatprep.subr.mxu0 0.0
  %690 = vmatpush1.xpose.msra.mxu0 0.0
  %691 = vmatprep.subr.mxu0 0.0
  %692 = vmatpush1.xpose.msra.mxu0 0.0
  %693 = vmatprep.subr.mxu0 0.0
  %694 = vmatpush1.xpose.msra.mxu0 0.0
  %695 = vmatprep.subr.mxu0 0.0
  %696 = vmatpush1.xpose.msra.mxu0 0.0
  %697 = vmatprep.subr.mxu0 0.0
  %698 = vmatpush1.xpose.msra.mxu0 0.0
  %699 = vmatprep.subr.mxu0 0.0
  %700 = vmatpush1.xpose.msra.mxu0 0.0
  %701 = vmatprep.subr.mxu0 0.0
  %702 = vmatpush1.xpose.msra.mxu0 0.0
  %703 = vmatprep.subr.mxu0 0.0
  %704 = vmatpush1.xpose.msra.mxu0 0.0
  %705 = vmatprep.subr.mxu0 0.0
  %706 = vmatpush1.xpose.msra.mxu0 0.0
  %707 = vmatprep.subr.mxu0 0.0
  %708 = vmatpush1.xpose.msra.mxu0 0.0
  %709 = vmatprep.subr.mxu0 0.0
  %710 = vmatpush1.xpose.msra.mxu0 0.0
  %711 = vmatprep.subr.mxu0 0.0
  %712 = vmatpush1.xpose.msra.mxu0 0.0
  %713 = vmatprep.subr.mxu0 0.0
  %714 = vmatpush1.xpose.msra.mxu0 0.0
  %715 = vmatprep.subr.mxu0 0.0
  %716 = vmatpush1.xpose.msra.mxu0 0.0
  %717 = vmatprep.subr.mxu0 0.0
  %718 = vmatpush1.xpose.msra.mxu0 0.0
  %719 = vmatprep.subr.mxu0 0.0
  %720 = vmatpush1.xpose.msra.mxu0 0.0
  %721 = vmatprep.subr.mxu0 0.0
  %722 = vmatpush1.xpose.msra.mxu0 0.0
  %723 = vmatprep.subr.mxu0 0.0
  %724 = vmatpush1.xpose.msra.mxu0 0.0
  %725 = vmatprep.subr.mxu0 0.0
  %726 = vmatpush1.xpose.msra.mxu0 0.0
  %727 = vmatprep.subr.mxu0 0.0
  %728 = vmatpush1.xpose.msra.mxu0 0.0
  %729 = vmatprep.subr.mxu0 0.0
  %730 = vmatpush1.xpose.msra.mxu0 0.0
  %731 = vmatprep.subr.mxu0 0.0
  %732 = vmatpush1.xpose.msra.mxu0 0.0
  %733 = vmatprep.subr.mxu0 0.0
  %734 = vmatpush1.xpose.msra.mxu0 0.0
  %735 = vmatprep.subr.mxu0 0.0
  %736 = vmatpush1.xpose.msra.mxu0 0.0
  %737 = vmatprep.subr.mxu0 0.0
  %738 = vmatpush1.xpose.msra.mxu0 0.0
  %739 = vmatprep.subr.mxu0 0.0
  %740 = vmatpush1.xpose.msra.mxu0 0.0
  %741 = vmatprep.mubr.f32.mxu0 0.0
  %742 = vmatmul.mubr.f32.gmra.mrb[0].mxu0 %v673
  %v743 = vpop.f32.mrb[0].mxu0
  %v744 = vadd.f32 0.0, %v743
  %v745 = vpop.f32.mrb[0].mxu0
  %746 = vdwg.mxu0
  %748 = vrot.lane.b32.xlu0 %v348, 96
  %v749 = vpop.permute.xlu0 %748
  %v750 = vsel %vm364, %v348, 0
  %v752 = vsel %vm364, %v749, 0
  %754 = vmatprep.subr.mxu0 0.0
  %755 = vmatpush1.xpose.msra.mxu0 %v752
  %756 = vmatprep.subr.mxu0 0.0
  %757 = vmatpush1.xpose.msra.mxu0 0.0
  %758 = vmatprep.subr.mxu0 0.0
  %759 = vmatpush1.xpose.msra.mxu0 0.0
  %760 = vmatprep.subr.mxu0 0.0
  %761 = vmatpush1.xpose.msra.mxu0 0.0
  %762 = vmatprep.subr.mxu0 0.0
  %763 = vmatpush1.xpose.msra.mxu0 0.0
  %764 = vmatprep.subr.mxu0 0.0
  %765 = vmatpush1.xpose.msra.mxu0 0.0
  %766 = vmatprep.subr.mxu0 0.0
  %767 = vmatpush1.xpose.msra.mxu0 0.0
  %768 = vmatprep.subr.mxu0 0.0
  %769 = vmatpush1.xpose.msra.mxu0 0.0
  %770 = vmatprep.subr.mxu0 0.0
  %771 = vmatpush1.xpose.msra.mxu0 0.0
  %772 = vmatprep.subr.mxu0 0.0
  %773 = vmatpush1.xpose.msra.mxu0 0.0
  %774 = vmatprep.subr.mxu0 0.0
  %775 = vmatpush1.xpose.msra.mxu0 0.0
  %776 = vmatprep.subr.mxu0 0.0
  %777 = vmatpush1.xpose.msra.mxu0 0.0
  %778 = vmatprep.subr.mxu0 0.0
  %779 = vmatpush1.xpose.msra.mxu0 0.0
  %780 = vmatprep.subr.mxu0 0.0
  %781 = vmatpush1.xpose.msra.mxu0 0.0
  %782 = vmatprep.subr.mxu0 0.0
  %783 = vmatpush1.xpose.msra.mxu0 0.0
  %784 = vmatprep.subr.mxu0 0.0
  %785 = vmatpush1.xpose.msra.mxu0 0.0
  %786 = vmatprep.subr.mxu0 0.0
  %787 = vmatpush1.xpose.msra.mxu0 0.0
  %788 = vmatprep.subr.mxu0 0.0
  %789 = vmatpush1.xpose.msra.mxu0 0.0
  %790 = vmatprep.subr.mxu0 0.0
  %791 = vmatpush1.xpose.msra.mxu0 0.0
  %792 = vmatprep.subr.mxu0 0.0
  %793 = vmatpush1.xpose.msra.mxu0 0.0
  %794 = vmatprep.subr.mxu0 0.0
  %795 = vmatpush1.xpose.msra.mxu0 0.0
  %796 = vmatprep.subr.mxu0 0.0
  %797 = vmatpush1.xpose.msra.mxu0 0.0
  %798 = vmatprep.subr.mxu0 0.0
  %799 = vmatpush1.xpose.msra.mxu0 0.0
  %800 = vmatprep.subr.mxu0 0.0
  %801 = vmatpush1.xpose.msra.mxu0 0.0
  %802 = vmatprep.subr.mxu0 0.0
  %803 = vmatpush1.xpose.msra.mxu0 0.0
  %804 = vmatprep.subr.mxu0 0.0
  %805 = vmatpush1.xpose.msra.mxu0 0.0
  %806 = vmatprep.subr.mxu0 0.0
  %807 = vmatpush1.xpose.msra.mxu0 0.0
  %808 = vmatprep.subr.mxu0 0.0
  %809 = vmatpush1.xpose.msra.mxu0 0.0
  %810 = vmatprep.subr.mxu0 0.0
  %811 = vmatpush1.xpose.msra.mxu0 0.0
  %812 = vmatprep.subr.mxu0 0.0
  %813 = vmatpush1.xpose.msra.mxu0 0.0
  %814 = vmatprep.subr.mxu0 0.0
  %815 = vmatpush1.xpose.msra.mxu0 0.0
  %816 = vmatprep.subr.mxu0 0.0
  %817 = vmatpush1.xpose.msra.mxu0 0.0
  %818 = vmatprep.mubr.f32.mxu0 0.0
  %819 = vmatmul.mubr.f32.gmra.mrb[0].mxu0 %v750
  %v820 = vpop.f32.mrb[0].mxu0
  %v821 = vadd.f32 0.0, %v820
  %v822 = vpop.f32.mrb[0].mxu0
  %823 = vdwg.mxu0
  %825 = vrot.lane.b32.xlu0 %v353, 96
  %v826 = vpop.permute.xlu0 %825
  %v827 = vsel %vm364, %v353, 0
  %v829 = vsel %vm364, %v826, 0
  %831 = vmatprep.subr.mxu0 0.0
  %832 = vmatpush1.xpose.msra.mxu0 %v829
  %833 = vmatprep.subr.mxu0 0.0
  %834 = vmatpush1.xpose.msra.mxu0 0.0
  %835 = vmatprep.subr.mxu0 0.0
  %836 = vmatpush1.xpose.msra.mxu0 0.0
  %837 = vmatprep.subr.mxu0 0.0
  %838 = vmatpush1.xpose.msra.mxu0 0.0
  %839 = vmatprep.subr.mxu0 0.0
  %840 = vmatpush1.xpose.msra.mxu0 0.0
  %841 = vmatprep.subr.mxu0 0.0
  %842 = vmatpush1.xpose.msra.mxu0 0.0
  %843 = vmatprep.subr.mxu0 0.0
  %844 = vmatpush1.xpose.msra.mxu0 0.0
  %845 = vmatprep.subr.mxu0 0.0
  %846 = vmatpush1.xpose.msra.mxu0 0.0
  %847 = vmatprep.subr.mxu0 0.0
  %848 = vmatpush1.xpose.msra.mxu0 0.0
  %849 = vmatprep.subr.mxu0 0.0
  %850 = vmatpush1.xpose.msra.mxu0 0.0
  %851 = vmatprep.subr.mxu0 0.0
  %852 = vmatpush1.xpose.msra.mxu0 0.0
  %853 = vmatprep.subr.mxu0 0.0
  %854 = vmatpush1.xpose.msra.mxu0 0.0
  %855 = vmatprep.subr.mxu0 0.0
  %856 = vmatpush1.xpose.msra.mxu0 0.0
  %857 = vmatprep.subr.mxu0 0.0
  %858 = vmatpush1.xpose.msra.mxu0 0.0
  %859 = vmatprep.subr.mxu0 0.0
  %860 = vmatpush1.xpose.msra.mxu0 0.0
  %861 = vmatprep.subr.mxu0 0.0
  %862 = vmatpush1.xpose.msra.mxu0 0.0
  %863 = vmatprep.subr.mxu0 0.0
  %864 = vmatpush1.xpose.msra.mxu0 0.0
  %865 = vmatprep.subr.mxu0 0.0
  %866 = vmatpush1.xpose.msra.mxu0 0.0
  %867 = vmatprep.subr.mxu0 0.0
  %868 = vmatpush1.xpose.msra.mxu0 0.0
  %869 = vmatprep.subr.mxu0 0.0
  %870 = vmatpush1.xpose.msra.mxu0 0.0
  %871 = vmatprep.subr.mxu0 0.0
  %872 = vmatpush1.xpose.msra.mxu0 0.0
  %873 = vmatprep.subr.mxu0 0.0
  %874 = vmatpush1.xpose.msra.mxu0 0.0
  %875 = vmatprep.subr.mxu0 0.0
  %876 = vmatpush1.xpose.msra.mxu0 0.0
  %877 = vmatprep.subr.mxu0 0.0
  %878 = vmatpush1.xpose.msra.mxu0 0.0
  %879 = vmatprep.subr.mxu0 0.0
  %880 = vmatpush1.xpose.msra.mxu0 0.0
  %881 = vmatprep.subr.mxu0 0.0
  %882 = vmatpush1.xpose.msra.mxu0 0.0
  %883 = vmatprep.subr.mxu0 0.0
  %884 = vmatpush1.xpose.msra.mxu0 0.0
  %885 = vmatprep.subr.mxu0 0.0
  %886 = vmatpush1.xpose.msra.mxu0 0.0
  %887 = vmatprep.subr.mxu0 0.0
  %888 = vmatpush1.xpose.msra.mxu0 0.0
  %889 = vmatprep.subr.mxu0 0.0
  %890 = vmatpush1.xpose.msra.mxu0 0.0
  %891 = vmatprep.subr.mxu0 0.0
  %892 = vmatpush1.xpose.msra.mxu0 0.0
  %893 = vmatprep.subr.mxu0 0.0
  %894 = vmatpush1.xpose.msra.mxu0 0.0
  %895 = vmatprep.mubr.f32.mxu0 0.0
  %896 = vmatmul.mubr.f32.gmra.mrb[0].mxu0 %v827
  %v897 = vpop.f32.mrb[0].mxu0
  %v898 = vadd.f32 0.0, %v897
  %v899 = vpop.f32.mrb[0].mxu0
  %900 = vdwg.mxu0
  %902 = vrot.lane.b32.xlu0 %v358, 96
  %v903 = vpop.permute.xlu0 %902
  %v904 = vsel %vm364, %v358, 0
  %v906 = vsel %vm364, %v903, 0
  %908 = vmatprep.subr.mxu0 0.0
  %909 = vmatpush1.xpose.msra.mxu0 %v906
  %910 = vmatprep.subr.mxu0 0.0
  %911 = vmatpush1.xpose.msra.mxu0 0.0
  %912 = vmatprep.subr.mxu0 0.0
  %913 = vmatpush1.xpose.msra.mxu0 0.0
  %914 = vmatprep.subr.mxu0 0.0
  %915 = vmatpush1.xpose.msra.mxu0 0.0
  %916 = vmatprep.subr.mxu0 0.0
  %917 = vmatpush1.xpose.msra.mxu0 0.0
  %918 = vmatprep.subr.mxu0 0.0
  %919 = vmatpush1.xpose.msra.mxu0 0.0
  %920 = vmatprep.subr.mxu0 0.0
  %921 = vmatpush1.xpose.msra.mxu0 0.0
  %922 = vmatprep.subr.mxu0 0.0
  %923 = vmatpush1.xpose.msra.mxu0 0.0
  %924 = vmatprep.subr.mxu0 0.0
  %925 = vmatpush1.xpose.msra.mxu0 0.0
  %926 = vmatprep.subr.mxu0 0.0
  %927 = vmatpush1.xpose.msra.mxu0 0.0
  %928 = vmatprep.subr.mxu0 0.0
  %929 = vmatpush1.xpose.msra.mxu0 0.0
  %930 = vmatprep.subr.mxu0 0.0
  %931 = vmatpush1.xpose.msra.mxu0 0.0
  %932 = vmatprep.subr.mxu0 0.0
  %933 = vmatpush1.xpose.msra.mxu0 0.0
  %934 = vmatprep.subr.mxu0 0.0
  %935 = vmatpush1.xpose.msra.mxu0 0.0
  %936 = vmatprep.subr.mxu0 0.0
  %937 = vmatpush1.xpose.msra.mxu0 0.0
  %938 = vmatprep.subr.mxu0 0.0
  %939 = vmatpush1.xpose.msra.mxu0 0.0
  %940 = vmatprep.subr.mxu0 0.0
  %941 = vmatpush1.xpose.msra.mxu0 0.0
  %942 = vmatprep.subr.mxu0 0.0
  %943 = vmatpush1.xpose.msra.mxu0 0.0
  %944 = vmatprep.subr.mxu0 0.0
  %945 = vmatpush1.xpose.msra.mxu0 0.0
  %946 = vmatprep.subr.mxu0 0.0
  %947 = vmatpush1.xpose.msra.mxu0 0.0
  %948 = vmatprep.subr.mxu0 0.0
  %949 = vmatpush1.xpose.msra.mxu0 0.0
  %950 = vmatprep.subr.mxu0 0.0
  %951 = vmatpush1.xpose.msra.mxu0 0.0
  %952 = vmatprep.subr.mxu0 0.0
  %953 = vmatpush1.xpose.msra.mxu0 0.0
  %954 = vmatprep.subr.mxu0 0.0
  %955 = vmatpush1.xpose.msra.mxu0 0.0
  %956 = vmatprep.subr.mxu0 0.0
  %957 = vmatpush1.xpose.msra.mxu0 0.0
  %958 = vmatprep.subr.mxu0 0.0
  %959 = vmatpush1.xpose.msra.mxu0 0.0
  %960 = vmatprep.subr.mxu0 0.0
  %961 = vmatpush1.xpose.msra.mxu0 0.0
  %962 = vmatprep.subr.mxu0 0.0
  %963 = vmatpush1.xpose.msra.mxu0 0.0
  %964 = vmatprep.subr.mxu0 0.0
  %965 = vmatpush1.xpose.msra.mxu0 0.0
  %966 = vmatprep.subr.mxu0 0.0
  %967 = vmatpush1.xpose.msra.mxu0 0.0
  %968 = vmatprep.subr.mxu0 0.0
  %969 = vmatpush1.xpose.msra.mxu0 0.0
  %970 = vmatprep.subr.mxu0 0.0
  %971 = vmatpush1.xpose.msra.mxu0 0.0
  %972 = vmatprep.mubr.f32.mxu0 0.0
  %973 = vmatmul.mubr.f32.gmra.mrb[0].mxu0 %v904
  %v974 = vpop.f32.mrb[0].mxu0
  %v975 = vadd.f32 0.0, %v974
  %v976 = vpop.f32.mrb[0].mxu0
  %977 = vdwg.mxu0
  %v978 = vmul.f32 %v436, 0.25
  %v979 = vmul.f32 %v513, 0.25
  %v980 = vmul.f32 %v590, 0.25
  %v981 = vmul.f32 %v667, 0.25
  %v982 = vmul.f32 %v744, 0.25
  %v983 = vmul.f32 %v821, 0.25
  %v984 = vmul.f32 %v898, 0.25
  %v985 = vmul.f32 %v975, 0.25
  %v994 = vlaneseq
  %v995 = vshrl.u32 %v994, 7
  %v996 = vsub.s32 0, %v995
  %v997 = vrot.slane %v213, %v996
  %v998 = vlaneseq
  %v999 = vshrl.u32 %v998, 7
  %v1000 = vsub.s32 0, %v999
  %v1001 = vrot.slane %v214, %v1000
  %v1002 = vlaneseq
  %v1003 = vshrl.u32 %v1002, 7
  %v1004 = vsub.s32 0, %v1003
  %v1005 = vrot.slane %v215, %v1004
  %v1006 = vlaneseq
  %v1007 = vshrl.u32 %v1006, 7
  %v1008 = vsub.s32 0, %v1007
  %v1009 = vrot.slane %v216, %v1008
  %v1010 = vlaneseq
  %v1011 = vshrl.u32 %v1010, 7
  %v1012 = vsub.s32 0, %v1011
  %v1013 = vrot.slane %v217, %v1012
  %v1014 = vlaneseq
  %v1015 = vshrl.u32 %v1014, 7
  %v1016 = vsub.s32 0, %v1015
  %v1017 = vrot.slane %v218, %v1016
  %v1018 = vlaneseq
  %v1019 = vshrl.u32 %v1018, 7
  %v1020 = vsub.s32 0, %v1019
  %v1021 = vrot.slane %v219, %v1020
  %v1022 = vlaneseq
  %v1023 = vshrl.u32 %v1022, 7
  %v1024 = vsub.s32 0, %v1023
  %v1025 = vrot.slane %v220, %v1024
  %v1034 = vadd.f32 %v978, %v997
  %v1035 = vadd.f32 %v979, %v1001
  %v1036 = vadd.f32 %v980, %v1005
  %v1037 = vadd.f32 %v981, %v1009
  %v1038 = vadd.f32 %v982, %v1013
  %v1039 = vadd.f32 %v983, %v1017
  %v1040 = vadd.f32 %v984, %v1021
  %v1041 = vadd.f32 %v985, %v1025
  %vm1042 = vcmask 64512
  %v1043 = vsel %vm1042, %v1034, -inf
  %1044 = vmax.xlane.f32.xlu0 %v1043
  %v1045 = vpop.xlane.xlu0 %1044
  %v1046 = vsel %vm1042, %v1035, -inf
  %1047 = vmax.xlane.f32.xlu0 %v1046
  %v1048 = vpop.xlane.xlu0 %1047
  %v1049 = vsel %vm1042, %v1036, -inf
  %1050 = vmax.xlane.f32.xlu0 %v1049
  %v1051 = vpop.xlane.xlu0 %1050
  %v1052 = vsel %vm1042, %v1037, -inf
  %1053 = vmax.xlane.f32.xlu0 %v1052
  %v1054 = vpop.xlane.xlu0 %1053
  %v1055 = vsel %vm1042, %v1038, -inf
  %1056 = vmax.xlane.f32.xlu0 %v1055
  %v1057 = vpop.xlane.xlu0 %1056
  %v1058 = vsel %vm1042, %v1039, -inf
  %1059 = vmax.xlane.f32.xlu0 %v1058
  %v1060 = vpop.xlane.xlu0 %1059
  %v1061 = vsel %vm1042, %v1040, -inf
  %1062 = vmax.xlane.f32.xlu0 %v1061
  %v1063 = vpop.xlane.xlu0 %1062
  %v1064 = vsel %vm1042, %v1041, -inf
  %1065 = vmax.xlane.f32.xlu0 %v1064
  %v1066 = vpop.xlane.xlu0 %1065
  %v1067 = vsub.f32 %v1034, %v1045
  %v1068 = vsub.f32 %v1035, %v1048
  %v1069 = vsub.f32 %v1036, %v1051
  %v1070 = vsub.f32 %v1037, %v1054
  %v1071 = vsub.f32 %v1038, %v1057
  %v1072 = vsub.f32 %v1039, %v1060
  %v1073 = vsub.f32 %v1040, %v1063
  %v1074 = vsub.f32 %v1041, %v1066
  %v1075 = vmul.f32 %v1067, 1.442695
  %v1076 = vpow.pop %v1075
  %v1077 = vmul.f32 %v1068, 1.442695
  %v1078 = vpow.pop %v1077
  %v1079 = vmul.f32 %v1069, 1.442695
  %v1080 = vpow.pop %v1079
  %v1081 = vmul.f32 %v1070, 1.442695
  %v1082 = vpow.pop %v1081
  %v1083 = vmul.f32 %v1071, 1.442695
  %v1084 = vpow.pop %v1083
  %v1085 = vmul.f32 %v1072, 1.442695
  %v1086 = vpow.pop %v1085
  %v1087 = vmul.f32 %v1073, 1.442695
  %v1088 = vpow.pop %v1087
  %v1089 = vmul.f32 %v1074, 1.442695
  %v1090 = vpow.pop %v1089
  %v1091 = vsel %vm1042, %v1076, 0.0
  %1092 = vadd.xlane.f32.xlu0 %v1091
  %v1093 = vpop.xlane.xlu0 %1092
  %v1094 = vsel %vm1042, %v1078, 0.0
  %1095 = vadd.xlane.f32.xlu0 %v1094
  %v1096 = vpop.xlane.xlu0 %1095
  %v1097 = vsel %vm1042, %v1080, 0.0
  %1098 = vadd.xlane.f32.xlu0 %v1097
  %v1099 = vpop.xlane.xlu0 %1098
  %v1100 = vsel %vm1042, %v1082, 0.0
  %1101 = vadd.xlane.f32.xlu0 %v1100
  %v1102 = vpop.xlane.xlu0 %1101
  %v1103 = vsel %vm1042, %v1084, 0.0
  %1104 = vadd.xlane.f32.xlu0 %v1103
  %v1105 = vpop.xlane.xlu0 %1104
  %v1106 = vsel %vm1042, %v1086, 0.0
  %1107 = vadd.xlane.f32.xlu0 %v1106
  %v1108 = vpop.xlane.xlu0 %1107
  %v1109 = vsel %vm1042, %v1088, 0.0
  %1110 = vadd.xlane.f32.xlu0 %v1109
  %v1111 = vpop.xlane.xlu0 %1110
  %v1112 = vsel %vm1042, %v1090, 0.0
  %1113 = vadd.xlane.f32.xlu0 %v1112
  %v1114 = vpop.xlane.xlu0 %1113
  %v1115 = vrcp.pop %v1093
  %v1116 = vrcp.pop %v1096
  %v1117 = vrcp.pop %v1099
  %v1118 = vrcp.pop %v1102
  %v1119 = vrcp.pop %v1105
  %v1120 = vrcp.pop %v1108
  %v1121 = vrcp.pop %v1111
  %v1122 = vrcp.pop %v1114
  %v1123 = vmul.f32 %v1076, %v1115
  %v1124 = vmul.f32 %v1078, %v1116
  %v1125 = vmul.f32 %v1080, %v1117
  %v1126 = vmul.f32 %v1082, %v1118
  %v1127 = vmul.f32 %v1084, %v1119
  %v1128 = vmul.f32 %v1086, %v1120
  %v1129 = vmul.f32 %v1088, %v1121
  %v1130 = vmul.f32 %v1090, %v1122
  %1131 = vrot.lane.b32.xlu0 %v323, 64
  %v1132 = vpop.permute.xlu0 %1131
  %v1135 = vsel %vm1042, %v1123, 0
  %1137 = vmatprep.subr.mxu0 0.0
  %1138 = vmatpush1.msra.mxu0 %v1132
  %1139 = vmatprep.subr.mxu0 0.0
  %1140 = vmatpush1.msra.mxu0 0.0
  %1141 = vmatprep.subr.mxu0 0.0
  %1142 = vmatpush1.msra.mxu0 0.0
  %1143 = vmatprep.subr.mxu0 0.0
  %1144 = vmatpush1.msra.mxu0 0.0
  %1145 = vmatprep.subr.mxu0 0.0
  %1146 = vmatpush1.msra.mxu0 0.0
  %1147 = vmatprep.subr.mxu0 0.0
  %1148 = vmatpush1.msra.mxu0 0.0
  %1149 = vmatprep.subr.mxu0 0.0
  %1150 = vmatpush1.msra.mxu0 0.0
  %1151 = vmatprep.subr.mxu0 0.0
  %1152 = vmatpush1.msra.mxu0 0.0
  %1153 = vmatprep.subr.mxu0 0.0
  %1154 = vmatpush1.msra.mxu0 0.0
  %1155 = vmatprep.subr.mxu0 0.0
  %1156 = vmatpush1.msra.mxu0 0.0
  %1157 = vmatprep.subr.mxu0 0.0
  %1158 = vmatpush1.msra.mxu0 0.0
  %1159 = vmatprep.subr.mxu0 0.0
  %1160 = vmatpush1.msra.mxu0 0.0
  %1161 = vmatprep.subr.mxu0 0.0
  %1162 = vmatpush1.msra.mxu0 0.0
  %1163 = vmatprep.subr.mxu0 0.0
  %1164 = vmatpush1.msra.mxu0 0.0
  %1165 = vmatprep.subr.mxu0 0.0
  %1166 = vmatpush1.msra.mxu0 0.0
  %1167 = vmatprep.subr.mxu0 0.0
  %1168 = vmatpush1.msra.mxu0 0.0
  %1169 = vmatprep.subr.mxu0 0.0
  %1170 = vmatpush1.msra.mxu0 0.0
  %1171 = vmatprep.subr.mxu0 0.0
  %1172 = vmatpush1.msra.mxu0 0.0
  %1173 = vmatprep.subr.mxu0 0.0
  %1174 = vmatpush1.msra.mxu0 0.0
  %1175 = vmatprep.subr.mxu0 0.0
  %1176 = vmatpush1.msra.mxu0 0.0
  %1177 = vmatprep.subr.mxu0 0.0
  %1178 = vmatpush1.msra.mxu0 0.0
  %1179 = vmatprep.subr.mxu0 0.0
  %1180 = vmatpush1.msra.mxu0 0.0
  %1181 = vmatprep.subr.mxu0 0.0
  %1182 = vmatpush1.msra.mxu0 0.0
  %1183 = vmatprep.subr.mxu0 0.0
  %1184 = vmatpush1.msra.mxu0 0.0
  %1185 = vmatprep.subr.mxu0 0.0
  %1186 = vmatpush1.msra.mxu0 0.0
  %1187 = vmatprep.subr.mxu0 0.0
  %1188 = vmatpush1.msra.mxu0 0.0
  %1189 = vmatprep.subr.mxu0 0.0
  %1190 = vmatpush1.msra.mxu0 0.0
  %1191 = vmatprep.subr.mxu0 0.0
  %1192 = vmatpush1.msra.mxu0 0.0
  %1193 = vmatprep.subr.mxu0 0.0
  %1194 = vmatpush1.msra.mxu0 0.0
  %1195 = vmatprep.subr.mxu0 0.0
  %1196 = vmatpush1.msra.mxu0 0.0
  %1197 = vmatprep.subr.mxu0 0.0
  %1198 = vmatpush1.msra.mxu0 0.0
  %1199 = vmatprep.subr.mxu0 0.0
  %1200 = vmatpush1.msra.mxu0 0.0
  %1201 = vmatprep.mubr.f32.mxu0 0.0
  %1202 = vmatmul.mubr.f32.gmra.mrb[0].mxu0 %v1135
  %v1203 = vpop.f32.mrb[0].mxu0
  %v1204 = vadd.f32 0.0, %v1203
  %v1205 = vpop.f32.mrb[0].mxu0
  %1206 = vdwg.mxu0
  %1207 = vrot.lane.b32.xlu0 %v328, 64
  %v1208 = vpop.permute.xlu0 %1207
  %v1211 = vsel %vm1042, %v1124, 0
  %1213 = vmatprep.subr.mxu0 0.0
  %1214 = vmatpush1.msra.mxu0 %v1208
  %1215 = vmatprep.subr.mxu0 0.0
  %1216 = vmatpush1.msra.mxu0 0.0
  %1217 = vmatprep.subr.mxu0 0.0
  %1218 = vmatpush1.msra.mxu0 0.0
  %1219 = vmatprep.subr.mxu0 0.0
  %1220 = vmatpush1.msra.mxu0 0.0
  %1221 = vmatprep.subr.mxu0 0.0
  %1222 = vmatpush1.msra.mxu0 0.0
  %1223 = vmatprep.subr.mxu0 0.0
  %1224 = vmatpush1.msra.mxu0 0.0
  %1225 = vmatprep.subr.mxu0 0.0
  %1226 = vmatpush1.msra.mxu0 0.0
  %1227 = vmatprep.subr.mxu0 0.0
  %1228 = vmatpush1.msra.mxu0 0.0
  %1229 = vmatprep.subr.mxu0 0.0
  %1230 = vmatpush1.msra.mxu0 0.0
  %1231 = vmatprep.subr.mxu0 0.0
  %1232 = vmatpush1.msra.mxu0 0.0
  %1233 = vmatprep.subr.mxu0 0.0
  %1234 = vmatpush1.msra.mxu0 0.0
  %1235 = vmatprep.subr.mxu0 0.0
  %1236 = vmatpush1.msra.mxu0 0.0
  %1237 = vmatprep.subr.mxu0 0.0
  %1238 = vmatpush1.msra.mxu0 0.0
  %1239 = vmatprep.subr.mxu0 0.0
  %1240 = vmatpush1.msra.mxu0 0.0
  %1241 = vmatprep.subr.mxu0 0.0
  %1242 = vmatpush1.msra.mxu0 0.0
  %1243 = vmatprep.subr.mxu0 0.0
  %1244 = vmatpush1.msra.mxu0 0.0
  %1245 = vmatprep.subr.mxu0 0.0
  %1246 = vmatpush1.msra.mxu0 0.0
  %1247 = vmatprep.subr.mxu0 0.0
  %1248 = vmatpush1.msra.mxu0 0.0
  %1249 = vmatprep.subr.mxu0 0.0
  %1250 = vmatpush1.msra.mxu0 0.0
  %1251 = vmatprep.subr.mxu0 0.0
  %1252 = vmatpush1.msra.mxu0 0.0
  %1253 = vmatprep.subr.mxu0 0.0
  %1254 = vmatpush1.msra.mxu0 0.0
  %1255 = vmatprep.subr.mxu0 0.0
  %1256 = vmatpush1.msra.mxu0 0.0
  %1257 = vmatprep.subr.mxu0 0.0
  %1258 = vmatpush1.msra.mxu0 0.0
  %1259 = vmatprep.subr.mxu0 0.0
  %1260 = vmatpush1.msra.mxu0 0.0
  %1261 = vmatprep.subr.mxu0 0.0
  %1262 = vmatpush1.msra.mxu0 0.0
  %1263 = vmatprep.subr.mxu0 0.0
  %1264 = vmatpush1.msra.mxu0 0.0
  %1265 = vmatprep.subr.mxu0 0.0
  %1266 = vmatpush1.msra.mxu0 0.0
  %1267 = vmatprep.subr.mxu0 0.0
  %1268 = vmatpush1.msra.mxu0 0.0
  %1269 = vmatprep.subr.mxu0 0.0
  %1270 = vmatpush1.msra.mxu0 0.0
  %1271 = vmatprep.subr.mxu0 0.0
  %1272 = vmatpush1.msra.mxu0 0.0
  %1273 = vmatprep.subr.mxu0 0.0
  %1274 = vmatpush1.msra.mxu0 0.0
  %1275 = vmatprep.subr.mxu0 0.0
  %1276 = vmatpush1.msra.mxu0 0.0
  %1277 = vmatprep.mubr.f32.mxu0 0.0
  %1278 = vmatmul.mubr.f32.gmra.mrb[0].mxu0 %v1211
  %v1279 = vpop.f32.mrb[0].mxu0
  %v1280 = vadd.f32 0.0, %v1279
  %v1281 = vpop.f32.mrb[0].mxu0
  %1282 = vdwg.mxu0
  %1283 = vrot.lane.b32.xlu0 %v333, 64
  %v1284 = vpop.permute.xlu0 %1283
  %v1287 = vsel %vm1042, %v1125, 0
  %1289 = vmatprep.subr.mxu0 0.0
  %1290 = vmatpush1.msra.mxu0 %v1284
  %1291 = vmatprep.subr.mxu0 0.0
  %1292 = vmatpush1.msra.mxu0 0.0
  %1293 = vmatprep.subr.mxu0 0.0
  %1294 = vmatpush1.msra.mxu0 0.0
  %1295 = vmatprep.subr.mxu0 0.0
  %1296 = vmatpush1.msra.mxu0 0.0
  %1297 = vmatprep.subr.mxu0 0.0
  %1298 = vmatpush1.msra.mxu0 0.0
  %1299 = vmatprep.subr.mxu0 0.0
  %1300 = vmatpush1.msra.mxu0 0.0
  %1301 = vmatprep.subr.mxu0 0.0
  %1302 = vmatpush1.msra.mxu0 0.0
  %1303 = vmatprep.subr.mxu0 0.0
  %1304 = vmatpush1.msra.mxu0 0.0
  %1305 = vmatprep.subr.mxu0 0.0
  %1306 = vmatpush1.msra.mxu0 0.0
  %1307 = vmatprep.subr.mxu0 0.0
  %1308 = vmatpush1.msra.mxu0 0.0
  %1309 = vmatprep.subr.mxu0 0.0
  %1310 = vmatpush1.msra.mxu0 0.0
  %1311 = vmatprep.subr.mxu0 0.0
  %1312 = vmatpush1.msra.mxu0 0.0
  %1313 = vmatprep.subr.mxu0 0.0
  %1314 = vmatpush1.msra.mxu0 0.0
  %1315 = vmatprep.subr.mxu0 0.0
  %1316 = vmatpush1.msra.mxu0 0.0
  %1317 = vmatprep.subr.mxu0 0.0
  %1318 = vmatpush1.msra.mxu0 0.0
  %1319 = vmatprep.subr.mxu0 0.0
  %1320 = vmatpush1.msra.mxu0 0.0
  %1321 = vmatprep.subr.mxu0 0.0
  %1322 = vmatpush1.msra.mxu0 0.0
  %1323 = vmatprep.subr.mxu0 0.0
  %1324 = vmatpush1.msra.mxu0 0.0
  %1325 = vmatprep.subr.mxu0 0.0
  %1326 = vmatpush1.msra.mxu0 0.0
  %1327 = vmatprep.subr.mxu0 0.0
  %1328 = vmatpush1.msra.mxu0 0.0
  %1329 = vmatprep.subr.mxu0 0.0
  %1330 = vmatpush1.msra.mxu0 0.0
  %1331 = vmatprep.subr.mxu0 0.0
  %1332 = vmatpush1.msra.mxu0 0.0
  %1333 = vmatprep.subr.mxu0 0.0
  %1334 = vmatpush1.msra.mxu0 0.0
  %1335 = vmatprep.subr.mxu0 0.0
  %1336 = vmatpush1.msra.mxu0 0.0
  %1337 = vmatprep.subr.mxu0 0.0
  %1338 = vmatpush1.msra.mxu0 0.0
  %1339 = vmatprep.subr.mxu0 0.0
  %1340 = vmatpush1.msra.mxu0 0.0
  %1341 = vmatprep.subr.mxu0 0.0
  %1342 = vmatpush1.msra.mxu0 0.0
  %1343 = vmatprep.subr.mxu0 0.0
  %1344 = vmatpush1.msra.mxu0 0.0
  %1345 = vmatprep.subr.mxu0 0.0
  %1346 = vmatpush1.msra.mxu0 0.0
  %1347 = vmatprep.subr.mxu0 0.0
  %1348 = vmatpush1.msra.mxu0 0.0
  %1349 = vmatprep.subr.mxu0 0.0
  %1350 = vmatpush1.msra.mxu0 0.0
  %1351 = vmatprep.subr.mxu0 0.0
  %1352 = vmatpush1.msra.mxu0 0.0
  %1353 = vmatprep.mubr.f32.mxu0 0.0
  %1354 = vmatmul.mubr.f32.gmra.mrb[0].mxu0 %v1287
  %v1355 = vpop.f32.mrb[0].mxu0
  %v1356 = vadd.f32 0.0, %v1355
  %v1357 = vpop.f32.mrb[0].mxu0
  %1358 = vdwg.mxu0
  %1359 = vrot.lane.b32.xlu0 %v338, 64
  %v1360 = vpop.permute.xlu0 %1359
  %v1363 = vsel %vm1042, %v1126, 0
  %1365 = vmatprep.subr.mxu0 0.0
  %1366 = vmatpush1.msra.mxu0 %v1360
  %1367 = vmatprep.subr.mxu0 0.0
  %1368 = vmatpush1.msra.mxu0 0.0
  %1369 = vmatprep.subr.mxu0 0.0
  %1370 = vmatpush1.msra.mxu0 0.0
  %1371 = vmatprep.subr.mxu0 0.0
  %1372 = vmatpush1.msra.mxu0 0.0
  %1373 = vmatprep.subr.mxu0 0.0
  %1374 = vmatpush1.msra.mxu0 0.0
  %1375 = vmatprep.subr.mxu0 0.0
  %1376 = vmatpush1.msra.mxu0 0.0
  %1377 = vmatprep.subr.mxu0 0.0
  %1378 = vmatpush1.msra.mxu0 0.0
  %1379 = vmatprep.subr.mxu0 0.0
  %1380 = vmatpush1.msra.mxu0 0.0
  %1381 = vmatprep.subr.mxu0 0.0
  %1382 = vmatpush1.msra.mxu0 0.0
  %1383 = vmatprep.subr.mxu0 0.0
  %1384 = vmatpush1.msra.mxu0 0.0
  %1385 = vmatprep.subr.mxu0 0.0
  %1386 = vmatpush1.msra.mxu0 0.0
  %1387 = vmatprep.subr.mxu0 0.0
  %1388 = vmatpush1.msra.mxu0 0.0
  %1389 = vmatprep.subr.mxu0 0.0
  %1390 = vmatpush1.msra.mxu0 0.0
  %1391 = vmatprep.subr.mxu0 0.0
  %1392 = vmatpush1.msra.mxu0 0.0
  %1393 = vmatprep.subr.mxu0 0.0
  %1394 = vmatpush1.msra.mxu0 0.0
  %1395 = vmatprep.subr.mxu0 0.0
  %1396 = vmatpush1.msra.mxu0 0.0
  %1397 = vmatprep.subr.mxu0 0.0
  %1398 = vmatpush1.msra.mxu0 0.0
  %1399 = vmatprep.subr.mxu0 0.0
  %1400 = vmatpush1.msra.mxu0 0.0
  %1401 = vmatprep.subr.mxu0 0.0
  %1402 = vmatpush1.msra.mxu0 0.0
  %1403 = vmatprep.subr.mxu0 0.0
  %1404 = vmatpush1.msra.mxu0 0.0
  %1405 = vmatprep.subr.mxu0 0.0
  %1406 = vmatpush1.msra.mxu0 0.0
  %1407 = vmatprep.subr.mxu0 0.0
  %1408 = vmatpush1.msra.mxu0 0.0
  %1409 = vmatprep.subr.mxu0 0.0
  %1410 = vmatpush1.msra.mxu0 0.0
  %1411 = vmatprep.subr.mxu0 0.0
  %1412 = vmatpush1.msra.mxu0 0.0
  %1413 = vmatprep.subr.mxu0 0.0
  %1414 = vmatpush1.msra.mxu0 0.0
  %1415 = vmatprep.subr.mxu0 0.0
  %1416 = vmatpush1.msra.mxu0 0.0
  %1417 = vmatprep.subr.mxu0 0.0
  %1418 = vmatpush1.msra.mxu0 0.0
  %1419 = vmatprep.subr.mxu0 0.0
  %1420 = vmatpush1.msra.mxu0 0.0
  %1421 = vmatprep.subr.mxu0 0.0
  %1422 = vmatpush1.msra.mxu0 0.0
  %1423 = vmatprep.subr.mxu0 0.0
  %1424 = vmatpush1.msra.mxu0 0.0
  %1425 = vmatprep.subr.mxu0 0.0
  %1426 = vmatpush1.msra.mxu0 0.0
  %1427 = vmatprep.subr.mxu0 0.0
  %1428 = vmatpush1.msra.mxu0 0.0
  %1429 = vmatprep.mubr.f32.mxu0 0.0
  %1430 = vmatmul.mubr.f32.gmra.mrb[0].mxu0 %v1363
  %v1431 = vpop.f32.mrb[0].mxu0
  %v1432 = vadd.f32 0.0, %v1431
  %v1433 = vpop.f32.mrb[0].mxu0
  %1434 = vdwg.mxu0
  %1435 = vrot.lane.b32.xlu0 %v343, 64
  %v1436 = vpop.permute.xlu0 %1435
  %v1439 = vsel %vm1042, %v1127, 0
  %1441 = vmatprep.subr.mxu0 0.0
  %1442 = vmatpush1.msra.mxu0 %v1436
  %1443 = vmatprep.subr.mxu0 0.0
  %1444 = vmatpush1.msra.mxu0 0.0
  %1445 = vmatprep.subr.mxu0 0.0
  %1446 = vmatpush1.msra.mxu0 0.0
  %1447 = vmatprep.subr.mxu0 0.0
  %1448 = vmatpush1.msra.mxu0 0.0
  %1449 = vmatprep.subr.mxu0 0.0
  %1450 = vmatpush1.msra.mxu0 0.0
  %1451 = vmatprep.subr.mxu0 0.0
  %1452 = vmatpush1.msra.mxu0 0.0
  %1453 = vmatprep.subr.mxu0 0.0
  %1454 = vmatpush1.msra.mxu0 0.0
  %1455 = vmatprep.subr.mxu0 0.0
  %1456 = vmatpush1.msra.mxu0 0.0
  %1457 = vmatprep.subr.mxu0 0.0
  %1458 = vmatpush1.msra.mxu0 0.0
  %1459 = vmatprep.subr.mxu0 0.0
  %1460 = vmatpush1.msra.mxu0 0.0
  %1461 = vmatprep.subr.mxu0 0.0
  %1462 = vmatpush1.msra.mxu0 0.0
  %1463 = vmatprep.subr.mxu0 0.0
  %1464 = vmatpush1.msra.mxu0 0.0
  %1465 = vmatprep.subr.mxu0 0.0
  %1466 = vmatpush1.msra.mxu0 0.0
  %1467 = vmatprep.subr.mxu0 0.0
  %1468 = vmatpush1.msra.mxu0 0.0
  %1469 = vmatprep.subr.mxu0 0.0
  %1470 = vmatpush1.msra.mxu0 0.0
  %1471 = vmatprep.subr.mxu0 0.0
  %1472 = vmatpush1.msra.mxu0 0.0
  %1473 = vmatprep.subr.mxu0 0.0
  %1474 = vmatpush1.msra.mxu0 0.0
  %1475 = vmatprep.subr.mxu0 0.0
  %1476 = vmatpush1.msra.mxu0 0.0
  %1477 = vmatprep.subr.mxu0 0.0
  %1478 = vmatpush1.msra.mxu0 0.0
  %1479 = vmatprep.subr.mxu0 0.0
  %1480 = vmatpush1.msra.mxu0 0.0
  %1481 = vmatprep.subr.mxu0 0.0
  %1482 = vmatpush1.msra.mxu0 0.0
  %1483 = vmatprep.subr.mxu0 0.0
  %1484 = vmatpush1.msra.mxu0 0.0
  %1485 = vmatprep.subr.mxu0 0.0
  %1486 = vmatpush1.msra.mxu0 0.0
  %1487 = vmatprep.subr.mxu0 0.0
  %1488 = vmatpush1.msra.mxu0 0.0
  %1489 = vmatprep.subr.mxu0 0.0
  %1490 = vmatpush1.msra.mxu0 0.0
  %1491 = vmatprep.subr.mxu0 0.0
  %1492 = vmatpush1.msra.mxu0 0.0
  %1493 = vmatprep.subr.mxu0 0.0
  %1494 = vmatpush1.msra.mxu0 0.0
  %1495 = vmatprep.subr.mxu0 0.0
  %1496 = vmatpush1.msra.mxu0 0.0
  %1497 = vmatprep.subr.mxu0 0.0
  %1498 = vmatpush1.msra.mxu0 0.0
  %1499 = vmatprep.subr.mxu0 0.0
  %1500 = vmatpush1.msra.mxu0 0.0
  %1501 = vmatprep.subr.mxu0 0.0
  %1502 = vmatpush1.msra.mxu0 0.0
  %1503 = vmatprep.subr.mxu0 0.0
  %1504 = vmatpush1.msra.mxu0 0.0
  %1505 = vmatprep.mubr.f32.mxu0 0.0
  %1506 = vmatmul.mubr.f32.gmra.mrb[0].mxu0 %v1439
  %v1507 = vpop.f32.mrb[0].mxu0
  %v1508 = vadd.f32 0.0, %v1507
  %v1509 = vpop.f32.mrb[0].mxu0
  %1510 = vdwg.mxu0
  %1511 = vrot.lane.b32.xlu0 %v348, 64
  %v1512 = vpop.permute.xlu0 %1511
  %v1515 = vsel %vm1042, %v1128, 0
  %1517 = vmatprep.subr.mxu0 0.0
  %1518 = vmatpush1.msra.mxu0 %v1512
  %1519 = vmatprep.subr.mxu0 0.0
  %1520 = vmatpush1.msra.mxu0 0.0
  %1521 = vmatprep.subr.mxu0 0.0
  %1522 = vmatpush1.msra.mxu0 0.0
  %1523 = vmatprep.subr.mxu0 0.0
  %1524 = vmatpush1.msra.mxu0 0.0
  %1525 = vmatprep.subr.mxu0 0.0
  %1526 = vmatpush1.msra.mxu0 0.0
  %1527 = vmatprep.subr.mxu0 0.0
  %1528 = vmatpush1.msra.mxu0 0.0
  %1529 = vmatprep.subr.mxu0 0.0
  %1530 = vmatpush1.msra.mxu0 0.0
  %1531 = vmatprep.subr.mxu0 0.0
  %1532 = vmatpush1.msra.mxu0 0.0
  %1533 = vmatprep.subr.mxu0 0.0
  %1534 = vmatpush1.msra.mxu0 0.0
  %1535 = vmatprep.subr.mxu0 0.0
  %1536 = vmatpush1.msra.mxu0 0.0
  %1537 = vmatprep.subr.mxu0 0.0
  %1538 = vmatpush1.msra.mxu0 0.0
  %1539 = vmatprep.subr.mxu0 0.0
  %1540 = vmatpush1.msra.mxu0 0.0
  %1541 = vmatprep.subr.mxu0 0.0
  %1542 = vmatpush1.msra.mxu0 0.0
  %1543 = vmatprep.subr.mxu0 0.0
  %1544 = vmatpush1.msra.mxu0 0.0
  %1545 = vmatprep.subr.mxu0 0.0
  %1546 = vmatpush1.msra.mxu0 0.0
  %1547 = vmatprep.subr.mxu0 0.0
  %1548 = vmatpush1.msra.mxu0 0.0
  %1549 = vmatprep.subr.mxu0 0.0
  %1550 = vmatpush1.msra.mxu0 0.0
  %1551 = vmatprep.subr.mxu0 0.0
  %1552 = vmatpush1.msra.mxu0 0.0
  %1553 = vmatprep.subr.mxu0 0.0
  %1554 = vmatpush1.msra.mxu0 0.0
  %1555 = vmatprep.subr.mxu0 0.0
  %1556 = vmatpush1.msra.mxu0 0.0
  %1557 = vmatprep.subr.mxu0 0.0
  %1558 = vmatpush1.msra.mxu0 0.0
  %1559 = vmatprep.subr.mxu0 0.0
  %1560 = vmatpush1.msra.mxu0 0.0
  %1561 = vmatprep.subr.mxu0 0.0
  %1562 = vmatpush1.msra.mxu0 0.0
  %1563 = vmatprep.subr.mxu0 0.0
  %1564 = vmatpush1.msra.mxu0 0.0
  %1565 = vmatprep.subr.mxu0 0.0
  %1566 = vmatpush1.msra.mxu0 0.0
  %1567 = vmatprep.subr.mxu0 0.0
  %1568 = vmatpush1.msra.mxu0 0.0
  %1569 = vmatprep.subr.mxu0 0.0
  %1570 = vmatpush1.msra.mxu0 0.0
  %1571 = vmatprep.subr.mxu0 0.0
  %1572 = vmatpush1.msra.mxu0 0.0
  %1573 = vmatprep.subr.mxu0 0.0
  %1574 = vmatpush1.msra.mxu0 0.0
  %1575 = vmatprep.subr.mxu0 0.0
  %1576 = vmatpush1.msra.mxu0 0.0
  %1577 = vmatprep.subr.mxu0 0.0
  %1578 = vmatpush1.msra.mxu0 0.0
  %1579 = vmatprep.subr.mxu0 0.0
  %1580 = vmatpush1.msra.mxu0 0.0
  %1581 = vmatprep.mubr.f32.mxu0 0.0
  %1582 = vmatmul.mubr.f32.gmra.mrb[0].mxu0 %v1515
  %v1583 = vpop.f32.mrb[0].mxu0
  %v1584 = vadd.f32 0.0, %v1583
  %v1585 = vpop.f32.mrb[0].mxu0
  %1586 = vdwg.mxu0
  %1587 = vrot.lane.b32.xlu0 %v353, 64
  %v1588 = vpop.permute.xlu0 %1587
  %v1591 = vsel %vm1042, %v1129, 0
  %1593 = vmatprep.subr.mxu0 0.0
  %1594 = vmatpush1.msra.mxu0 %v1588
  %1595 = vmatprep.subr.mxu0 0.0
  %1596 = vmatpush1.msra.mxu0 0.0
  %1597 = vmatprep.subr.mxu0 0.0
  %1598 = vmatpush1.msra.mxu0 0.0
  %1599 = vmatprep.subr.mxu0 0.0
  %1600 = vmatpush1.msra.mxu0 0.0
  %1601 = vmatprep.subr.mxu0 0.0
  %1602 = vmatpush1.msra.mxu0 0.0
  %1603 = vmatprep.subr.mxu0 0.0
  %1604 = vmatpush1.msra.mxu0 0.0
  %1605 = vmatprep.subr.mxu0 0.0
  %1606 = vmatpush1.msra.mxu0 0.0
  %1607 = vmatprep.subr.mxu0 0.0
  %1608 = vmatpush1.msra.mxu0 0.0
  %1609 = vmatprep.subr.mxu0 0.0
  %1610 = vmatpush1.msra.mxu0 0.0
  %1611 = vmatprep.subr.mxu0 0.0
  %1612 = vmatpush1.msra.mxu0 0.0
  %1613 = vmatprep.subr.mxu0 0.0
  %1614 = vmatpush1.msra.mxu0 0.0
  %1615 = vmatprep.subr.mxu0 0.0
  %1616 = vmatpush1.msra.mxu0 0.0
  %1617 = vmatprep.subr.mxu0 0.0
  %1618 = vmatpush1.msra.mxu0 0.0
  %1619 = vmatprep.subr.mxu0 0.0
  %1620 = vmatpush1.msra.mxu0 0.0
  %1621 = vmatprep.subr.mxu0 0.0
  %1622 = vmatpush1.msra.mxu0 0.0
  %1623 = vmatprep.subr.mxu0 0.0
  %1624 = vmatpush1.msra.mxu0 0.0
  %1625 = vmatprep.subr.mxu0 0.0
  %1626 = vmatpush1.msra.mxu0 0.0
  %1627 = vmatprep.subr.mxu0 0.0
  %1628 = vmatpush1.msra.mxu0 0.0
  %1629 = vmatprep.subr.mxu0 0.0
  %1630 = vmatpush1.msra.mxu0 0.0
  %1631 = vmatprep.subr.mxu0 0.0
  %1632 = vmatpush1.msra.mxu0 0.0
  %1633 = vmatprep.subr.mxu0 0.0
  %1634 = vmatpush1.msra.mxu0 0.0
  %1635 = vmatprep.subr.mxu0 0.0
  %1636 = vmatpush1.msra.mxu0 0.0
  %1637 = vmatprep.subr.mxu0 0.0
  %1638 = vmatpush1.msra.mxu0 0.0
  %1639 = vmatprep.subr.mxu0 0.0
  %1640 = vmatpush1.msra.mxu0 0.0
  %1641 = vmatprep.subr.mxu0 0.0
  %1642 = vmatpush1.msra.mxu0 0.0
  %1643 = vmatprep.subr.mxu0 0.0
  %1644 = vmatpush1.msra.mxu0 0.0
  %1645 = vmatprep.subr.mxu0 0.0
  %1646 = vmatpush1.msra.mxu0 0.0
  %1647 = vmatprep.subr.mxu0 0.0
  %1648 = vmatpush1.msra.mxu0 0.0
  %1649 = vmatprep.subr.mxu0 0.0
  %1650 = vmatpush1.msra.mxu0 0.0
  %1651 = vmatprep.subr.mxu0 0.0
  %1652 = vmatpush1.msra.mxu0 0.0
  %1653 = vmatprep.subr.mxu0 0.0
  %1654 = vmatpush1.msra.mxu0 0.0
  %1655 = vmatprep.subr.mxu0 0.0
  %1656 = vmatpush1.msra.mxu0 0.0
  %1657 = vmatprep.mubr.f32.mxu0 0.0
  %1658 = vmatmul.mubr.f32.gmra.mrb[0].mxu0 %v1591
  %v1659 = vpop.f32.mrb[0].mxu0
  %v1660 = vadd.f32 0.0, %v1659
  %v1661 = vpop.f32.mrb[0].mxu0
  %1662 = vdwg.mxu0
  %1663 = vrot.lane.b32.xlu0 %v358, 64
  %v1664 = vpop.permute.xlu0 %1663
  %v1667 = vsel %vm1042, %v1130, 0
  %1669 = vmatprep.subr.mxu0 0.0
  %1670 = vmatpush1.msra.mxu0 %v1664
  %1671 = vmatprep.subr.mxu0 0.0
  %1672 = vmatpush1.msra.mxu0 0.0
  %1673 = vmatprep.subr.mxu0 0.0
  %1674 = vmatpush1.msra.mxu0 0.0
  %1675 = vmatprep.subr.mxu0 0.0
  %1676 = vmatpush1.msra.mxu0 0.0
  %1677 = vmatprep.subr.mxu0 0.0
  %1678 = vmatpush1.msra.mxu0 0.0
  %1679 = vmatprep.subr.mxu0 0.0
  %1680 = vmatpush1.msra.mxu0 0.0
  %1681 = vmatprep.subr.mxu0 0.0
  %1682 = vmatpush1.msra.mxu0 0.0
  %1683 = vmatprep.subr.mxu0 0.0
  %1684 = vmatpush1.msra.mxu0 0.0
  %1685 = vmatprep.subr.mxu0 0.0
  %1686 = vmatpush1.msra.mxu0 0.0
  %1687 = vmatprep.subr.mxu0 0.0
  %1688 = vmatpush1.msra.mxu0 0.0
  %1689 = vmatprep.subr.mxu0 0.0
  %1690 = vmatpush1.msra.mxu0 0.0
  %1691 = vmatprep.subr.mxu0 0.0
  %1692 = vmatpush1.msra.mxu0 0.0
  %1693 = vmatprep.subr.mxu0 0.0
  %1694 = vmatpush1.msra.mxu0 0.0
  %1695 = vmatprep.subr.mxu0 0.0
  %1696 = vmatpush1.msra.mxu0 0.0
  %1697 = vmatprep.subr.mxu0 0.0
  %1698 = vmatpush1.msra.mxu0 0.0
  %1699 = vmatprep.subr.mxu0 0.0
  %1700 = vmatpush1.msra.mxu0 0.0
  %1701 = vmatprep.subr.mxu0 0.0
  %1702 = vmatpush1.msra.mxu0 0.0
  %1703 = vmatprep.subr.mxu0 0.0
  %1704 = vmatpush1.msra.mxu0 0.0
  %1705 = vmatprep.subr.mxu0 0.0
  %1706 = vmatpush1.msra.mxu0 0.0
  %1707 = vmatprep.subr.mxu0 0.0
  %1708 = vmatpush1.msra.mxu0 0.0
  %1709 = vmatprep.subr.mxu0 0.0
  %1710 = vmatpush1.msra.mxu0 0.0
  %1711 = vmatprep.subr.mxu0 0.0
  %1712 = vmatpush1.msra.mxu0 0.0
  %1713 = vmatprep.subr.mxu0 0.0
  %1714 = vmatpush1.msra.mxu0 0.0
  %1715 = vmatprep.subr.mxu0 0.0
  %1716 = vmatpush1.msra.mxu0 0.0
  %1717 = vmatprep.subr.mxu0 0.0
  %1718 = vmatpush1.msra.mxu0 0.0
  %1719 = vmatprep.subr.mxu0 0.0
  %1720 = vmatpush1.msra.mxu0 0.0
  %1721 = vmatprep.subr.mxu0 0.0
  %1722 = vmatpush1.msra.mxu0 0.0
  %1723 = vmatprep.subr.mxu0 0.0
  %1724 = vmatpush1.msra.mxu0 0.0
  %1725 = vmatprep.subr.mxu0 0.0
  %1726 = vmatpush1.msra.mxu0 0.0
  %1727 = vmatprep.subr.mxu0 0.0
  %1728 = vmatpush1.msra.mxu0 0.0
  %1729 = vmatprep.subr.mxu0 0.0
  %1730 = vmatpush1.msra.mxu0 0.0
  %1731 = vmatprep.subr.mxu0 0.0
  %1732 = vmatpush1.msra.mxu0 0.0
  %1733 = vmatprep.mubr.f32.mxu0 0.0
  %1734 = vmatmul.mubr.f32.gmra.mrb[0].mxu0 %v1667
  %v1735 = vpop.f32.mrb[0].mxu0
  %v1736 = vadd.f32 0.0, %v1735
  %v1737 = vpop.f32.mrb[0].mxu0
  %1738 = vdwg.mxu0
  %1739 = vrot.lane.b32.xlu0 %v323, 112
  %v1740 = vpop.permute.xlu0 %1739
  %1741 = vrot.lane.b32.xlu0 %v323, 80
  %v1742 = vpop.permute.xlu0 %1741
  %v1743 = vsel %vm364, %v1740, 0
  %v1745 = vsel %vm364, %v1742, 0
  %1747 = vmatprep.subr.mxu0 0.0
  %1748 = vmatpush1.xpose.msra.mxu0 %v1745
  %1749 = vmatprep.subr.mxu0 0.0
  %1750 = vmatpush1.xpose.msra.mxu0 0.0
  %1751 = vmatprep.subr.mxu0 0.0
  %1752 = vmatpush1.xpose.msra.mxu0 0.0
  %1753 = vmatprep.subr.mxu0 0.0
  %1754 = vmatpush1.xpose.msra.mxu0 0.0
  %1755 = vmatprep.subr.mxu0 0.0
  %1756 = vmatpush1.xpose.msra.mxu0 0.0
  %1757 = vmatprep.subr.mxu0 0.0
  %1758 = vmatpush1.xpose.msra.mxu0 0.0
  %1759 = vmatprep.subr.mxu0 0.0
  %1760 = vmatpush1.xpose.msra.mxu0 0.0
  %1761 = vmatprep.subr.mxu0 0.0
  %1762 = vmatpush1.xpose.msra.mxu0 0.0
  %1763 = vmatprep.subr.mxu0 0.0
  %1764 = vmatpush1.xpose.msra.mxu0 0.0
  %1765 = vmatprep.subr.mxu0 0.0
  %1766 = vmatpush1.xpose.msra.mxu0 0.0
  %1767 = vmatprep.subr.mxu0 0.0
  %1768 = vmatpush1.xpose.msra.mxu0 0.0
  %1769 = vmatprep.subr.mxu0 0.0
  %1770 = vmatpush1.xpose.msra.mxu0 0.0
  %1771 = vmatprep.subr.mxu0 0.0
  %1772 = vmatpush1.xpose.msra.mxu0 0.0
  %1773 = vmatprep.subr.mxu0 0.0
  %1774 = vmatpush1.xpose.msra.mxu0 0.0
  %1775 = vmatprep.subr.mxu0 0.0
  %1776 = vmatpush1.xpose.msra.mxu0 0.0
  %1777 = vmatprep.subr.mxu0 0.0
  %1778 = vmatpush1.xpose.msra.mxu0 0.0
  %1779 = vmatprep.subr.mxu0 0.0
  %1780 = vmatpush1.xpose.msra.mxu0 0.0
  %1781 = vmatprep.subr.mxu0 0.0
  %1782 = vmatpush1.xpose.msra.mxu0 0.0
  %1783 = vmatprep.subr.mxu0 0.0
  %1784 = vmatpush1.xpose.msra.mxu0 0.0
  %1785 = vmatprep.subr.mxu0 0.0
  %1786 = vmatpush1.xpose.msra.mxu0 0.0
  %1787 = vmatprep.subr.mxu0 0.0
  %1788 = vmatpush1.xpose.msra.mxu0 0.0
  %1789 = vmatprep.subr.mxu0 0.0
  %1790 = vmatpush1.xpose.msra.mxu0 0.0
  %1791 = vmatprep.subr.mxu0 0.0
  %1792 = vmatpush1.xpose.msra.mxu0 0.0
  %1793 = vmatprep.subr.mxu0 0.0
  %1794 = vmatpush1.xpose.msra.mxu0 0.0
  %1795 = vmatprep.subr.mxu0 0.0
  %1796 = vmatpush1.xpose.msra.mxu0 0.0
  %1797 = vmatprep.subr.mxu0 0.0
  %1798 = vmatpush1.xpose.msra.mxu0 0.0
  %1799 = vmatprep.subr.mxu0 0.0
  %1800 = vmatpush1.xpose.msra.mxu0 0.0
  %1801 = vmatprep.subr.mxu0 0.0
  %1802 = vmatpush1.xpose.msra.mxu0 0.0
  %1803 = vmatprep.subr.mxu0 0.0
  %1804 = vmatpush1.xpose.msra.mxu0 0.0
  %1805 = vmatprep.subr.mxu0 0.0
  %1806 = vmatpush1.xpose.msra.mxu0 0.0
  %1807 = vmatprep.subr.mxu0 0.0
  %1808 = vmatpush1.xpose.msra.mxu0 0.0
  %1809 = vmatprep.subr.mxu0 0.0
  %1810 = vmatpush1.xpose.msra.mxu0 0.0
  %1811 = vmatprep.mubr.f32.mxu0 0.0
  %1812 = vmatmul.mubr.f32.gmra.mrb[0].mxu0 %v1743
  %v1813 = vpop.f32.mrb[0].mxu0
  %v1814 = vadd.f32 0.0, %v1813
  %v1815 = vpop.f32.mrb[0].mxu0
  %1816 = vdwg.mxu0
  %1817 = vrot.lane.b32.xlu0 %v328, 112
  %v1818 = vpop.permute.xlu0 %1817
  %1819 = vrot.lane.b32.xlu0 %v328, 80
  %v1820 = vpop.permute.xlu0 %1819
  %v1821 = vsel %vm364, %v1818, 0
  %v1823 = vsel %vm364, %v1820, 0
  %1825 = vmatprep.subr.mxu0 0.0
  %1826 = vmatpush1.xpose.msra.mxu0 %v1823
  %1827 = vmatprep.subr.mxu0 0.0
  %1828 = vmatpush1.xpose.msra.mxu0 0.0
  %1829 = vmatprep.subr.mxu0 0.0
  %1830 = vmatpush1.xpose.msra.mxu0 0.0
  %1831 = vmatprep.subr.mxu0 0.0
  %1832 = vmatpush1.xpose.msra.mxu0 0.0
  %1833 = vmatprep.subr.mxu0 0.0
  %1834 = vmatpush1.xpose.msra.mxu0 0.0
  %1835 = vmatprep.subr.mxu0 0.0
  %1836 = vmatpush1.xpose.msra.mxu0 0.0
  %1837 = vmatprep.subr.mxu0 0.0
  %1838 = vmatpush1.xpose.msra.mxu0 0.0
  %1839 = vmatprep.subr.mxu0 0.0
  %1840 = vmatpush1.xpose.msra.mxu0 0.0
  %1841 = vmatprep.subr.mxu0 0.0
  %1842 = vmatpush1.xpose.msra.mxu0 0.0
  %1843 = vmatprep.subr.mxu0 0.0
  %1844 = vmatpush1.xpose.msra.mxu0 0.0
  %1845 = vmatprep.subr.mxu0 0.0
  %1846 = vmatpush1.xpose.msra.mxu0 0.0
  %1847 = vmatprep.subr.mxu0 0.0
  %1848 = vmatpush1.xpose.msra.mxu0 0.0
  %1849 = vmatprep.subr.mxu0 0.0
  %1850 = vmatpush1.xpose.msra.mxu0 0.0
  %1851 = vmatprep.subr.mxu0 0.0
  %1852 = vmatpush1.xpose.msra.mxu0 0.0
  %1853 = vmatprep.subr.mxu0 0.0
  %1854 = vmatpush1.xpose.msra.mxu0 0.0
  %1855 = vmatprep.subr.mxu0 0.0
  %1856 = vmatpush1.xpose.msra.mxu0 0.0
  %1857 = vmatprep.subr.mxu0 0.0
  %1858 = vmatpush1.xpose.msra.mxu0 0.0
  %1859 = vmatprep.subr.mxu0 0.0
  %1860 = vmatpush1.xpose.msra.mxu0 0.0
  %1861 = vmatprep.subr.mxu0 0.0
  %1862 = vmatpush1.xpose.msra.mxu0 0.0
  %1863 = vmatprep.subr.mxu0 0.0
  %1864 = vmatpush1.xpose.msra.mxu0 0.0
  %1865 = vmatprep.subr.mxu0 0.0
  %1866 = vmatpush1.xpose.msra.mxu0 0.0
  %1867 = vmatprep.subr.mxu0 0.0
  %1868 = vmatpush1.xpose.msra.mxu0 0.0
  %1869 = vmatprep.subr.mxu0 0.0
  %1870 = vmatpush1.xpose.msra.mxu0 0.0
  %1871 = vmatprep.subr.mxu0 0.0
  %1872 = vmatpush1.xpose.msra.mxu0 0.0
  %1873 = vmatprep.subr.mxu0 0.0
  %1874 = vmatpush1.xpose.msra.mxu0 0.0
  %1875 = vmatprep.subr.mxu0 0.0
  %1876 = vmatpush1.xpose.msra.mxu0 0.0
  %1877 = vmatprep.subr.mxu0 0.0
  %1878 = vmatpush1.xpose.msra.mxu0 0.0
  %1879 = vmatprep.subr.mxu0 0.0
  %1880 = vmatpush1.xpose.msra.mxu0 0.0
  %1881 = vmatprep.subr.mxu0 0.0
  %1882 = vmatpush1.xpose.msra.mxu0 0.0
  %1883 = vmatprep.subr.mxu0 0.0
  %1884 = vmatpush1.xpose.msra.mxu0 0.0
  %1885 = vmatprep.subr.mxu0 0.0
  %1886 = vmatpush1.xpose.msra.mxu0 0.0
  %1887 = vmatprep.subr.mxu0 0.0
  %1888 = vmatpush1.xpose.msra.mxu0 0.0
  %1889 = vmatprep.mubr.f32.mxu0 0.0
  %1890 = vmatmul.mubr.f32.gmra.mrb[0].mxu0 %v1821
  %v1891 = vpop.f32.mrb[0].mxu0
  %v1892 = vadd.f32 0.0, %v1891
  %v1893 = vpop.f32.mrb[0].mxu0
  %1894 = vdwg.mxu0
  %1895 = vrot.lane.b32.xlu0 %v333, 112
  %v1896 = vpop.permute.xlu0 %1895
  %1897 = vrot.lane.b32.xlu0 %v333, 80
  %v1898 = vpop.permute.xlu0 %1897
  %v1899 = vsel %vm364, %v1896, 0
  %v1901 = vsel %vm364, %v1898, 0
  %1903 = vmatprep.subr.mxu0 0.0
  %1904 = vmatpush1.xpose.msra.mxu0 %v1901
  %1905 = vmatprep.subr.mxu0 0.0
  %1906 = vmatpush1.xpose.msra.mxu0 0.0
  %1907 = vmatprep.subr.mxu0 0.0
  %1908 = vmatpush1.xpose.msra.mxu0 0.0
  %1909 = vmatprep.subr.mxu0 0.0
  %1910 = vmatpush1.xpose.msra.mxu0 0.0
  %1911 = vmatprep.subr.mxu0 0.0
  %1912 = vmatpush1.xpose.msra.mxu0 0.0
  %1913 = vmatprep.subr.mxu0 0.0
  %1914 = vmatpush1.xpose.msra.mxu0 0.0
  %1915 = vmatprep.subr.mxu0 0.0
  %1916 = vmatpush1.xpose.msra.mxu0 0.0
  %1917 = vmatprep.subr.mxu0 0.0
  %1918 = vmatpush1.xpose.msra.mxu0 0.0
  %1919 = vmatprep.subr.mxu0 0.0
  %1920 = vmatpush1.xpose.msra.mxu0 0.0
  %1921 = vmatprep.subr.mxu0 0.0
  %1922 = vmatpush1.xpose.msra.mxu0 0.0
  %1923 = vmatprep.subr.mxu0 0.0
  %1924 = vmatpush1.xpose.msra.mxu0 0.0
  %1925 = vmatprep.subr.mxu0 0.0
  %1926 = vmatpush1.xpose.msra.mxu0 0.0
  %1927 = vmatprep.subr.mxu0 0.0
  %1928 = vmatpush1.xpose.msra.mxu0 0.0
  %1929 = vmatprep.subr.mxu0 0.0
  %1930 = vmatpush1.xpose.msra.mxu0 0.0
  %1931 = vmatprep.subr.mxu0 0.0
  %1932 = vmatpush1.xpose.msra.mxu0 0.0
  %1933 = vmatprep.subr.mxu0 0.0
  %1934 = vmatpush1.xpose.msra.mxu0 0.0
  %1935 = vmatprep.subr.mxu0 0.0
  %1936 = vmatpush1.xpose.msra.mxu0 0.0
  %1937 = vmatprep.subr.mxu0 0.0
  %1938 = vmatpush1.xpose.msra.mxu0 0.0
  %1939 = vmatprep.subr.mxu0 0.0
  %1940 = vmatpush1.xpose.msra.mxu0 0.0
  %1941 = vmatprep.subr.mxu0 0.0
  %1942 = vmatpush1.xpose.msra.mxu0 0.0
  %1943 = vmatprep.subr.mxu0 0.0
  %1944 = vmatpush1.xpose.msra.mxu0 0.0
  %1945 = vmatprep.subr.mxu0 0.0
  %1946 = vmatpush1.xpose.msra.mxu0 0.0
  %1947 = vmatprep.subr.mxu0 0.0
  %1948 = vmatpush1.xpose.msra.mxu0 0.0
  %1949 = vmatprep.subr.mxu0 0.0
  %1950 = vmatpush1.xpose.msra.mxu0 0.0
  %1951 = vmatprep.subr.mxu0 0.0
  %1952 = vmatpush1.xpose.msra.mxu0 0.0
  %1953 = vmatprep.subr.mxu0 0.0
  %1954 = vmatpush1.xpose.msra.mxu0 0.0
  %1955 = vmatprep.subr.mxu0 0.0
  %1956 = vmatpush1.xpose.msra.mxu0 0.0
  %1957 = vmatprep.subr.mxu0 0.0
  %1958 = vmatpush1.xpose.msra.mxu0 0.0
  %1959 = vmatprep.subr.mxu0 0.0
  %1960 = vmatpush1.xpose.msra.mxu0 0.0
  %1961 = vmatprep.subr.mxu0 0.0
  %1962 = vmatpush1.xpose.msra.mxu0 0.0
  %1963 = vmatprep.subr.mxu0 0.0
  %1964 = vmatpush1.xpose.msra.mxu0 0.0
  %1965 = vmatprep.subr.mxu0 0.0
  %1966 = vmatpush1.xpose.msra.mxu0 0.0
  %1967 = vmatprep.mubr.f32.mxu0 0.0
  %1968 = vmatmul.mubr.f32.gmra.mrb[0].mxu0 %v1899
  %v1969 = vpop.f32.mrb[0].mxu0
  %v1970 = vadd.f32 0.0, %v1969
  %v1971 = vpop.f32.mrb[0].mxu0
  %1972 = vdwg.mxu0
  %1973 = vrot.lane.b32.xlu0 %v338, 112
  %v1974 = vpop.permute.xlu0 %1973
  %1975 = vrot.lane.b32.xlu0 %v338, 80
  %v1976 = vpop.permute.xlu0 %1975
  %v1977 = vsel %vm364, %v1974, 0
  %v1979 = vsel %vm364, %v1976, 0
  %1981 = vmatprep.subr.mxu0 0.0
  %1982 = vmatpush1.xpose.msra.mxu0 %v1979
  %1983 = vmatprep.subr.mxu0 0.0
  %1984 = vmatpush1.xpose.msra.mxu0 0.0
  %1985 = vmatprep.subr.mxu0 0.0
  %1986 = vmatpush1.xpose.msra.mxu0 0.0
  %1987 = vmatprep.subr.mxu0 0.0
  %1988 = vmatpush1.xpose.msra.mxu0 0.0
  %1989 = vmatprep.subr.mxu0 0.0
  %1990 = vmatpush1.xpose.msra.mxu0 0.0
  %1991 = vmatprep.subr.mxu0 0.0
  %1992 = vmatpush1.xpose.msra.mxu0 0.0
  %1993 = vmatprep.subr.mxu0 0.0
  %1994 = vmatpush1.xpose.msra.mxu0 0.0
  %1995 = vmatprep.subr.mxu0 0.0
  %1996 = vmatpush1.xpose.msra.mxu0 0.0
  %1997 = vmatprep.subr.mxu0 0.0
  %1998 = vmatpush1.xpose.msra.mxu0 0.0
  %1999 = vmatprep.subr.mxu0 0.0
  %2000 = vmatpush1.xpose.msra.mxu0 0.0
  %2001 = vmatprep.subr.mxu0 0.0
  %2002 = vmatpush1.xpose.msra.mxu0 0.0
  %2003 = vmatprep.subr.mxu0 0.0
  %2004 = vmatpush1.xpose.msra.mxu0 0.0
  %2005 = vmatprep.subr.mxu0 0.0
  %2006 = vmatpush1.xpose.msra.mxu0 0.0
  %2007 = vmatprep.subr.mxu0 0.0
  %2008 = vmatpush1.xpose.msra.mxu0 0.0
  %2009 = vmatprep.subr.mxu0 0.0
  %2010 = vmatpush1.xpose.msra.mxu0 0.0
  %2011 = vmatprep.subr.mxu0 0.0
  %2012 = vmatpush1.xpose.msra.mxu0 0.0
  %2013 = vmatprep.subr.mxu0 0.0
  %2014 = vmatpush1.xpose.msra.mxu0 0.0
  %2015 = vmatprep.subr.mxu0 0.0
  %2016 = vmatpush1.xpose.msra.mxu0 0.0
  %2017 = vmatprep.subr.mxu0 0.0
  %2018 = vmatpush1.xpose.msra.mxu0 0.0
  %2019 = vmatprep.subr.mxu0 0.0
  %2020 = vmatpush1.xpose.msra.mxu0 0.0
  %2021 = vmatprep.subr.mxu0 0.0
  %2022 = vmatpush1.xpose.msra.mxu0 0.0
  %2023 = vmatprep.subr.mxu0 0.0
  %2024 = vmatpush1.xpose.msra.mxu0 0.0
  %2025 = vmatprep.subr.mxu0 0.0
  %2026 = vmatpush1.xpose.msra.mxu0 0.0
  %2027 = vmatprep.subr.mxu0 0.0
  %2028 = vmatpush1.xpose.msra.mxu0 0.0
  %2029 = vmatprep.subr.mxu0 0.0
  %2030 = vmatpush1.xpose.msra.mxu0 0.0
  %2031 = vmatprep.subr.mxu0 0.0
  %2032 = vmatpush1.xpose.msra.mxu0 0.0
  %2033 = vmatprep.subr.mxu0 0.0
  %2034 = vmatpush1.xpose.msra.mxu0 0.0
  %2035 = vmatprep.subr.mxu0 0.0
  %2036 = vmatpush1.xpose.msra.mxu0 0.0
  %2037 = vmatprep.subr.mxu0 0.0
  %2038 = vmatpush1.xpose.msra.mxu0 0.0
  %2039 = vmatprep.subr.mxu0 0.0
  %2040 = vmatpush1.xpose.msra.mxu0 0.0
  %2041 = vmatprep.subr.mxu0 0.0
  %2042 = vmatpush1.xpose.msra.mxu0 0.0
  %2043 = vmatprep.subr.mxu0 0.0
  %2044 = vmatpush1.xpose.msra.mxu0 0.0
  %2045 = vmatprep.mubr.f32.mxu0 0.0
  %2046 = vmatmul.mubr.f32.gmra.mrb[0].mxu0 %v1977
  %v2047 = vpop.f32.mrb[0].mxu0
  %v2048 = vadd.f32 0.0, %v2047
  %v2049 = vpop.f32.mrb[0].mxu0
  %2050 = vdwg.mxu0
  %2051 = vrot.lane.b32.xlu0 %v343, 112
  %v2052 = vpop.permute.xlu0 %2051
  %2053 = vrot.lane.b32.xlu0 %v343, 80
  %v2054 = vpop.permute.xlu0 %2053
  %v2055 = vsel %vm364, %v2052, 0
  %v2057 = vsel %vm364, %v2054, 0
  %2059 = vmatprep.subr.mxu0 0.0
  %2060 = vmatpush1.xpose.msra.mxu0 %v2057
  %2061 = vmatprep.subr.mxu0 0.0
  %2062 = vmatpush1.xpose.msra.mxu0 0.0
  %2063 = vmatprep.subr.mxu0 0.0
  %2064 = vmatpush1.xpose.msra.mxu0 0.0
  %2065 = vmatprep.subr.mxu0 0.0
  %2066 = vmatpush1.xpose.msra.mxu0 0.0
  %2067 = vmatprep.subr.mxu0 0.0
  %2068 = vmatpush1.xpose.msra.mxu0 0.0
  %2069 = vmatprep.subr.mxu0 0.0
  %2070 = vmatpush1.xpose.msra.mxu0 0.0
  %2071 = vmatprep.subr.mxu0 0.0
  %2072 = vmatpush1.xpose.msra.mxu0 0.0
  %2073 = vmatprep.subr.mxu0 0.0
  %2074 = vmatpush1.xpose.msra.mxu0 0.0
  %2075 = vmatprep.subr.mxu0 0.0
  %2076 = vmatpush1.xpose.msra.mxu0 0.0
  %2077 = vmatprep.subr.mxu0 0.0
  %2078 = vmatpush1.xpose.msra.mxu0 0.0
  %2079 = vmatprep.subr.mxu0 0.0
  %2080 = vmatpush1.xpose.msra.mxu0 0.0
  %2081 = vmatprep.subr.mxu0 0.0
  %2082 = vmatpush1.xpose.msra.mxu0 0.0
  %2083 = vmatprep.subr.mxu0 0.0
  %2084 = vmatpush1.xpose.msra.mxu0 0.0
  %2085 = vmatprep.subr.mxu0 0.0
  %2086 = vmatpush1.xpose.msra.mxu0 0.0
  %2087 = vmatprep.subr.mxu0 0.0
  %2088 = vmatpush1.xpose.msra.mxu0 0.0
  %2089 = vmatprep.subr.mxu0 0.0
  %2090 = vmatpush1.xpose.msra.mxu0 0.0
  %2091 = vmatprep.subr.mxu0 0.0
  %2092 = vmatpush1.xpose.msra.mxu0 0.0
  %2093 = vmatprep.subr.mxu0 0.0
  %2094 = vmatpush1.xpose.msra.mxu0 0.0
  %2095 = vmatprep.subr.mxu0 0.0
  %2096 = vmatpush1.xpose.msra.mxu0 0.0
  %2097 = vmatprep.subr.mxu0 0.0
  %2098 = vmatpush1.xpose.msra.mxu0 0.0
  %2099 = vmatprep.subr.mxu0 0.0
  %2100 = vmatpush1.xpose.msra.mxu0 0.0
  %2101 = vmatprep.subr.mxu0 0.0
  %2102 = vmatpush1.xpose.msra.mxu0 0.0
  %2103 = vmatprep.subr.mxu0 0.0
  %2104 = vmatpush1.xpose.msra.mxu0 0.0
  %2105 = vmatprep.subr.mxu0 0.0
  %2106 = vmatpush1.xpose.msra.mxu0 0.0
  %2107 = vmatprep.subr.mxu0 0.0
  %2108 = vmatpush1.xpose.msra.mxu0 0.0
  %2109 = vmatprep.subr.mxu0 0.0
  %2110 = vmatpush1.xpose.msra.mxu0 0.0
  %2111 = vmatprep.subr.mxu0 0.0
  %2112 = vmatpush1.xpose.msra.mxu0 0.0
  %2113 = vmatprep.subr.mxu0 0.0
  %2114 = vmatpush1.xpose.msra.mxu0 0.0
  %2115 = vmatprep.subr.mxu0 0.0
  %2116 = vmatpush1.xpose.msra.mxu0 0.0
  %2117 = vmatprep.subr.mxu0 0.0
  %2118 = vmatpush1.xpose.msra.mxu0 0.0
  %2119 = vmatprep.subr.mxu0 0.0
  %2120 = vmatpush1.xpose.msra.mxu0 0.0
  %2121 = vmatprep.subr.mxu0 0.0
  %2122 = vmatpush1.xpose.msra.mxu0 0.0
  %2123 = vmatprep.mubr.f32.mxu0 0.0
  %2124 = vmatmul.mubr.f32.gmra.mrb[0].mxu0 %v2055
  %v2125 = vpop.f32.mrb[0].mxu0
  %v2126 = vadd.f32 0.0, %v2125
  %v2127 = vpop.f32.mrb[0].mxu0
  %2128 = vdwg.mxu0
  %2129 = vrot.lane.b32.xlu0 %v348, 112
  %v2130 = vpop.permute.xlu0 %2129
  %2131 = vrot.lane.b32.xlu0 %v348, 80
  %v2132 = vpop.permute.xlu0 %2131
  %v2133 = vsel %vm364, %v2130, 0
  %v2135 = vsel %vm364, %v2132, 0
  %2137 = vmatprep.subr.mxu0 0.0
  %2138 = vmatpush1.xpose.msra.mxu0 %v2135
  %2139 = vmatprep.subr.mxu0 0.0
  %2140 = vmatpush1.xpose.msra.mxu0 0.0
  %2141 = vmatprep.subr.mxu0 0.0
  %2142 = vmatpush1.xpose.msra.mxu0 0.0
  %2143 = vmatprep.subr.mxu0 0.0
  %2144 = vmatpush1.xpose.msra.mxu0 0.0
  %2145 = vmatprep.subr.mxu0 0.0
  %2146 = vmatpush1.xpose.msra.mxu0 0.0
  %2147 = vmatprep.subr.mxu0 0.0
  %2148 = vmatpush1.xpose.msra.mxu0 0.0
  %2149 = vmatprep.subr.mxu0 0.0
  %2150 = vmatpush1.xpose.msra.mxu0 0.0
  %2151 = vmatprep.subr.mxu0 0.0
  %2152 = vmatpush1.xpose.msra.mxu0 0.0
  %2153 = vmatprep.subr.mxu0 0.0
  %2154 = vmatpush1.xpose.msra.mxu0 0.0
  %2155 = vmatprep.subr.mxu0 0.0
  %2156 = vmatpush1.xpose.msra.mxu0 0.0
  %2157 = vmatprep.subr.mxu0 0.0
  %2158 = vmatpush1.xpose.msra.mxu0 0.0
  %2159 = vmatprep.subr.mxu0 0.0
  %2160 = vmatpush1.xpose.msra.mxu0 0.0
  %2161 = vmatprep.subr.mxu0 0.0
  %2162 = vmatpush1.xpose.msra.mxu0 0.0
  %2163 = vmatprep.subr.mxu0 0.0
  %2164 = vmatpush1.xpose.msra.mxu0 0.0
  %2165 = vmatprep.subr.mxu0 0.0
  %2166 = vmatpush1.xpose.msra.mxu0 0.0
  %2167 = vmatprep.subr.mxu0 0.0
  %2168 = vmatpush1.xpose.msra.mxu0 0.0
  %2169 = vmatprep.subr.mxu0 0.0
  %2170 = vmatpush1.xpose.msra.mxu0 0.0
  %2171 = vmatprep.subr.mxu0 0.0
  %2172 = vmatpush1.xpose.msra.mxu0 0.0
  %2173 = vmatprep.subr.mxu0 0.0
  %2174 = vmatpush1.xpose.msra.mxu0 0.0
  %2175 = vmatprep.subr.mxu0 0.0
  %2176 = vmatpush1.xpose.msra.mxu0 0.0
  %2177 = vmatprep.subr.mxu0 0.0
  %2178 = vmatpush1.xpose.msra.mxu0 0.0
  %2179 = vmatprep.subr.mxu0 0.0
  %2180 = vmatpush1.xpose.msra.mxu0 0.0
  %2181 = vmatprep.subr.mxu0 0.0
  %2182 = vmatpush1.xpose.msra.mxu0 0.0
  %2183 = vmatprep.subr.mxu0 0.0
  %2184 = vmatpush1.xpose.msra.mxu0 0.0
  %2185 = vmatprep.subr.mxu0 0.0
  %2186 = vmatpush1.xpose.msra.mxu0 0.0
  %2187 = vmatprep.subr.mxu0 0.0
  %2188 = vmatpush1.xpose.msra.mxu0 0.0
  %2189 = vmatprep.subr.mxu0 0.0
  %2190 = vmatpush1.xpose.msra.mxu0 0.0
  %2191 = vmatprep.subr.mxu0 0.0
  %2192 = vmatpush1.xpose.msra.mxu0 0.0
  %2193 = vmatprep.subr.mxu0 0.0
  %2194 = vmatpush1.xpose.msra.mxu0 0.0
  %2195 = vmatprep.subr.mxu0 0.0
  %2196 = vmatpush1.xpose.msra.mxu0 0.0
  %2197 = vmatprep.subr.mxu0 0.0
  %2198 = vmatpush1.xpose.msra.mxu0 0.0
  %2199 = vmatprep.subr.mxu0 0.0
  %2200 = vmatpush1.xpose.msra.mxu0 0.0
  %2201 = vmatprep.mubr.f32.mxu0 0.0
  %2202 = vmatmul.mubr.f32.gmra.mrb[0].mxu0 %v2133
  %v2203 = vpop.f32.mrb[0].mxu0
  %v2204 = vadd.f32 0.0, %v2203
  %v2205 = vpop.f32.mrb[0].mxu0
  %2206 = vdwg.mxu0
  %2207 = vrot.lane.b32.xlu0 %v353, 112
  %v2208 = vpop.permute.xlu0 %2207
  %2209 = vrot.lane.b32.xlu0 %v353, 80
  %v2210 = vpop.permute.xlu0 %2209
  %v2211 = vsel %vm364, %v2208, 0
  %v2213 = vsel %vm364, %v2210, 0
  %2215 = vmatprep.subr.mxu0 0.0
  %2216 = vmatpush1.xpose.msra.mxu0 %v2213
  %2217 = vmatprep.subr.mxu0 0.0
  %2218 = vmatpush1.xpose.msra.mxu0 0.0
  %2219 = vmatprep.subr.mxu0 0.0
  %2220 = vmatpush1.xpose.msra.mxu0 0.0
  %2221 = vmatprep.subr.mxu0 0.0
  %2222 = vmatpush1.xpose.msra.mxu0 0.0
  %2223 = vmatprep.subr.mxu0 0.0
  %2224 = vmatpush1.xpose.msra.mxu0 0.0
  %2225 = vmatprep.subr.mxu0 0.0
  %2226 = vmatpush1.xpose.msra.mxu0 0.0
  %2227 = vmatprep.subr.mxu0 0.0
  %2228 = vmatpush1.xpose.msra.mxu0 0.0
  %2229 = vmatprep.subr.mxu0 0.0
  %2230 = vmatpush1.xpose.msra.mxu0 0.0
  %2231 = vmatprep.subr.mxu0 0.0
  %2232 = vmatpush1.xpose.msra.mxu0 0.0
  %2233 = vmatprep.subr.mxu0 0.0
  %2234 = vmatpush1.xpose.msra.mxu0 0.0
  %2235 = vmatprep.subr.mxu0 0.0
  %2236 = vmatpush1.xpose.msra.mxu0 0.0
  %2237 = vmatprep.subr.mxu0 0.0
  %2238 = vmatpush1.xpose.msra.mxu0 0.0
  %2239 = vmatprep.subr.mxu0 0.0
  %2240 = vmatpush1.xpose.msra.mxu0 0.0
  %2241 = vmatprep.subr.mxu0 0.0
  %2242 = vmatpush1.xpose.msra.mxu0 0.0
  %2243 = vmatprep.subr.mxu0 0.0
  %2244 = vmatpush1.xpose.msra.mxu0 0.0
  %2245 = vmatprep.subr.mxu0 0.0
  %2246 = vmatpush1.xpose.msra.mxu0 0.0
  %2247 = vmatprep.subr.mxu0 0.0
  %2248 = vmatpush1.xpose.msra.mxu0 0.0
  %2249 = vmatprep.subr.mxu0 0.0
  %2250 = vmatpush1.xpose.msra.mxu0 0.0
  %2251 = vmatprep.subr.mxu0 0.0
  %2252 = vmatpush1.xpose.msra.mxu0 0.0
  %2253 = vmatprep.subr.mxu0 0.0
  %2254 = vmatpush1.xpose.msra.mxu0 0.0
  %2255 = vmatprep.subr.mxu0 0.0
  %2256 = vmatpush1.xpose.msra.mxu0 0.0
  %2257 = vmatprep.subr.mxu0 0.0
  %2258 = vmatpush1.xpose.msra.mxu0 0.0
  %2259 = vmatprep.subr.mxu0 0.0
  %2260 = vmatpush1.xpose.msra.mxu0 0.0
  %2261 = vmatprep.subr.mxu0 0.0
  %2262 = vmatpush1.xpose.msra.mxu0 0.0
  %2263 = vmatprep.subr.mxu0 0.0
  %2264 = vmatpush1.xpose.msra.mxu0 0.0
  %2265 = vmatprep.subr.mxu0 0.0
  %2266 = vmatpush1.xpose.msra.mxu0 0.0
  %2267 = vmatprep.subr.mxu0 0.0
  %2268 = vmatpush1.xpose.msra.mxu0 0.0
  %2269 = vmatprep.subr.mxu0 0.0
  %2270 = vmatpush1.xpose.msra.mxu0 0.0
  %2271 = vmatprep.subr.mxu0 0.0
  %2272 = vmatpush1.xpose.msra.mxu0 0.0
  %2273 = vmatprep.subr.mxu0 0.0
  %2274 = vmatpush1.xpose.msra.mxu0 0.0
  %2275 = vmatprep.subr.mxu0 0.0
  %2276 = vmatpush1.xpose.msra.mxu0 0.0
  %2277 = vmatprep.subr.mxu0 0.0
  %2278 = vmatpush1.xpose.msra.mxu0 0.0
  %2279 = vmatprep.mubr.f32.mxu0 0.0
  %2280 = vmatmul.mubr.f32.gmra.mrb[0].mxu0 %v2211
  %v2281 = vpop.f32.mrb[0].mxu0
  %v2282 = vadd.f32 0.0, %v2281
  %v2283 = vpop.f32.mrb[0].mxu0
  %2284 = vdwg.mxu0
  %2285 = vrot.lane.b32.xlu0 %v358, 112
  %v2286 = vpop.permute.xlu0 %2285
  %2287 = vrot.lane.b32.xlu0 %v358, 80
  %v2288 = vpop.permute.xlu0 %2287
  %v2289 = vsel %vm364, %v2286, 0
  %v2291 = vsel %vm364, %v2288, 0
  %2293 = vmatprep.subr.mxu0 0.0
  %2294 = vmatpush1.xpose.msra.mxu0 %v2291
  %2295 = vmatprep.subr.mxu0 0.0
  %2296 = vmatpush1.xpose.msra.mxu0 0.0
  %2297 = vmatprep.subr.mxu0 0.0
  %2298 = vmatpush1.xpose.msra.mxu0 0.0
  %2299 = vmatprep.subr.mxu0 0.0
  %2300 = vmatpush1.xpose.msra.mxu0 0.0
  %2301 = vmatprep.subr.mxu0 0.0
  %2302 = vmatpush1.xpose.msra.mxu0 0.0
  %2303 = vmatprep.subr.mxu0 0.0
  %2304 = vmatpush1.xpose.msra.mxu0 0.0
  %2305 = vmatprep.subr.mxu0 0.0
  %2306 = vmatpush1.xpose.msra.mxu0 0.0
  %2307 = vmatprep.subr.mxu0 0.0
  %2308 = vmatpush1.xpose.msra.mxu0 0.0
  %2309 = vmatprep.subr.mxu0 0.0
  %2310 = vmatpush1.xpose.msra.mxu0 0.0
  %2311 = vmatprep.subr.mxu0 0.0
  %2312 = vmatpush1.xpose.msra.mxu0 0.0
  %2313 = vmatprep.subr.mxu0 0.0
  %2314 = vmatpush1.xpose.msra.mxu0 0.0
  %2315 = vmatprep.subr.mxu0 0.0
  %2316 = vmatpush1.xpose.msra.mxu0 0.0
  %2317 = vmatprep.subr.mxu0 0.0
  %2318 = vmatpush1.xpose.msra.mxu0 0.0
  %2319 = vmatprep.subr.mxu0 0.0
  %2320 = vmatpush1.xpose.msra.mxu0 0.0
  %2321 = vmatprep.subr.mxu0 0.0
  %2322 = vmatpush1.xpose.msra.mxu0 0.0
  %2323 = vmatprep.subr.mxu0 0.0
  %2324 = vmatpush1.xpose.msra.mxu0 0.0
  %2325 = vmatprep.subr.mxu0 0.0
  %2326 = vmatpush1.xpose.msra.mxu0 0.0
  %2327 = vmatprep.subr.mxu0 0.0
  %2328 = vmatpush1.xpose.msra.mxu0 0.0
  %2329 = vmatprep.subr.mxu0 0.0
  %2330 = vmatpush1.xpose.msra.mxu0 0.0
  %2331 = vmatprep.subr.mxu0 0.0
  %2332 = vmatpush1.xpose.msra.mxu0 0.0
  %2333 = vmatprep.subr.mxu0 0.0
  %2334 = vmatpush1.xpose.msra.mxu0 0.0
  %2335 = vmatprep.subr.mxu0 0.0
  %2336 = vmatpush1.xpose.msra.mxu0 0.0
  %2337 = vmatprep.subr.mxu0 0.0
  %2338 = vmatpush1.xpose.msra.mxu0 0.0
  %2339 = vmatprep.subr.mxu0 0.0
  %2340 = vmatpush1.xpose.msra.mxu0 0.0
  %2341 = vmatprep.subr.mxu0 0.0
  %2342 = vmatpush1.xpose.msra.mxu0 0.0
  %2343 = vmatprep.subr.mxu0 0.0
  %2344 = vmatpush1.xpose.msra.mxu0 0.0
  %2345 = vmatprep.subr.mxu0 0.0
  %2346 = vmatpush1.xpose.msra.mxu0 0.0
  %2347 = vmatprep.subr.mxu0 0.0
  %2348 = vmatpush1.xpose.msra.mxu0 0.0
  %2349 = vmatprep.subr.mxu0 0.0
  %2350 = vmatpush1.xpose.msra.mxu0 0.0
  %2351 = vmatprep.subr.mxu0 0.0
  %2352 = vmatpush1.xpose.msra.mxu0 0.0
  %2353 = vmatprep.subr.mxu0 0.0
  %2354 = vmatpush1.xpose.msra.mxu0 0.0
  %2355 = vmatprep.subr.mxu0 0.0
  %2356 = vmatpush1.xpose.msra.mxu0 0.0
  %2357 = vmatprep.mubr.f32.mxu0 0.0
  %2358 = vmatmul.mubr.f32.gmra.mrb[0].mxu0 %v2289
  %v2359 = vpop.f32.mrb[0].mxu0
  %v2360 = vadd.f32 0.0, %v2359
  %v2361 = vpop.f32.mrb[0].mxu0
  %2362 = vdwg.mxu0
  %v2363 = vmul.f32 %v1814, 0.25
  %v2364 = vmul.f32 %v1892, 0.25
  %v2365 = vmul.f32 %v1970, 0.25
  %v2366 = vmul.f32 %v2048, 0.25
  %v2367 = vmul.f32 %v2126, 0.25
  %v2368 = vmul.f32 %v2204, 0.25
  %v2369 = vmul.f32 %v2282, 0.25
  %v2370 = vmul.f32 %v2360, 0.25
  %v2371 = vadd.f32 %v2363, %v997
  %v2372 = vadd.f32 %v2364, %v1001
  %v2373 = vadd.f32 %v2365, %v1005
  %v2374 = vadd.f32 %v2366, %v1009
  %v2375 = vadd.f32 %v2367, %v1013
  %v2376 = vadd.f32 %v2368, %v1017
  %v2377 = vadd.f32 %v2369, %v1021
  %v2378 = vadd.f32 %v2370, %v1025
  %v2379 = vsel %vm1042, %v2371, -inf
  %2380 = vmax.xlane.f32.xlu0 %v2379
  %v2381 = vpop.xlane.xlu0 %2380
  %v2382 = vsel %vm1042, %v2372, -inf
  %2383 = vmax.xlane.f32.xlu0 %v2382
  %v2384 = vpop.xlane.xlu0 %2383
  %v2385 = vsel %vm1042, %v2373, -inf
  %2386 = vmax.xlane.f32.xlu0 %v2385
  %v2387 = vpop.xlane.xlu0 %2386
  %v2388 = vsel %vm1042, %v2374, -inf
  %2389 = vmax.xlane.f32.xlu0 %v2388
  %v2390 = vpop.xlane.xlu0 %2389
  %v2391 = vsel %vm1042, %v2375, -inf
  %2392 = vmax.xlane.f32.xlu0 %v2391
  %v2393 = vpop.xlane.xlu0 %2392
  %v2394 = vsel %vm1042, %v2376, -inf
  %2395 = vmax.xlane.f32.xlu0 %v2394
  %v2396 = vpop.xlane.xlu0 %2395
  %v2397 = vsel %vm1042, %v2377, -inf
  %2398 = vmax.xlane.f32.xlu0 %v2397
  %v2399 = vpop.xlane.xlu0 %2398
  %v2400 = vsel %vm1042, %v2378, -inf
  %2401 = vmax.xlane.f32.xlu0 %v2400
  %v2402 = vpop.xlane.xlu0 %2401
  %v2403 = vsub.f32 %v2371, %v2381
  %v2404 = vsub.f32 %v2372, %v2384
  %v2405 = vsub.f32 %v2373, %v2387
  %v2406 = vsub.f32 %v2374, %v2390
  %v2407 = vsub.f32 %v2375, %v2393
  %v2408 = vsub.f32 %v2376, %v2396
  %v2409 = vsub.f32 %v2377, %v2399
  %v2410 = vsub.f32 %v2378, %v2402
  %v2411 = vmul.f32 %v2403, 1.442695
  %v2412 = vpow.pop %v2411
  %v2413 = vmul.f32 %v2404, 1.442695
  %v2414 = vpow.pop %v2413
  %v2415 = vmul.f32 %v2405, 1.442695
  %v2416 = vpow.pop %v2415
  %v2417 = vmul.f32 %v2406, 1.442695
  %v2418 = vpow.pop %v2417
  %v2419 = vmul.f32 %v2407, 1.442695
  %v2420 = vpow.pop %v2419
  %v2421 = vmul.f32 %v2408, 1.442695
  %v2422 = vpow.pop %v2421
  %v2423 = vmul.f32 %v2409, 1.442695
  %v2424 = vpow.pop %v2423
  %v2425 = vmul.f32 %v2410, 1.442695
  %v2426 = vpow.pop %v2425
  %v2427 = vsel %vm1042, %v2412, 0.0
  %2428 = vadd.xlane.f32.xlu0 %v2427
  %v2429 = vpop.xlane.xlu0 %2428
  %v2430 = vsel %vm1042, %v2414, 0.0
  %2431 = vadd.xlane.f32.xlu0 %v2430
  %v2432 = vpop.xlane.xlu0 %2431
  %v2433 = vsel %vm1042, %v2416, 0.0
  %2434 = vadd.xlane.f32.xlu0 %v2433
  %v2435 = vpop.xlane.xlu0 %2434
  %v2436 = vsel %vm1042, %v2418, 0.0
  %2437 = vadd.xlane.f32.xlu0 %v2436
  %v2438 = vpop.xlane.xlu0 %2437
  %v2439 = vsel %vm1042, %v2420, 0.0
  %2440 = vadd.xlane.f32.xlu0 %v2439
  %v2441 = vpop.xlane.xlu0 %2440
  %v2442 = vsel %vm1042, %v2422, 0.0
  %2443 = vadd.xlane.f32.xlu0 %v2442
  %v2444 = vpop.xlane.xlu0 %2443
  %v2445 = vsel %vm1042, %v2424, 0.0
  %2446 = vadd.xlane.f32.xlu0 %v2445
  %v2447 = vpop.xlane.xlu0 %2446
  %v2448 = vsel %vm1042, %v2426, 0.0
  %2449 = vadd.xlane.f32.xlu0 %v2448
  %v2450 = vpop.xlane.xlu0 %2449
  %v2451 = vrcp.pop %v2429
  %v2452 = vrcp.pop %v2432
  %v2453 = vrcp.pop %v2435
  %v2454 = vrcp.pop %v2438
  %v2455 = vrcp.pop %v2441
  %v2456 = vrcp.pop %v2444
  %v2457 = vrcp.pop %v2447
  %v2458 = vrcp.pop %v2450
  %v2459 = vmul.f32 %v2412, %v2451
  %v2460 = vmul.f32 %v2414, %v2452
  %v2461 = vmul.f32 %v2416, %v2453
  %v2462 = vmul.f32 %v2418, %v2454
  %v2463 = vmul.f32 %v2420, %v2455
  %v2464 = vmul.f32 %v2422, %v2456
  %v2465 = vmul.f32 %v2424, %v2457
  %v2466 = vmul.f32 %v2426, %v2458
  %2467 = vrot.lane.b32.xlu0 %v323, 48
  %v2468 = vpop.permute.xlu0 %2467
  %v2471 = vsel %vm1042, %v2459, 0
  %2473 = vmatprep.subr.mxu0 0.0
  %2474 = vmatpush1.msra.mxu0 %v2468
  %2475 = vmatprep.subr.mxu0 0.0
  %2476 = vmatpush1.msra.mxu0 0.0
  %2477 = vmatprep.subr.mxu0 0.0
  %2478 = vmatpush1.msra.mxu0 0.0
  %2479 = vmatprep.subr.mxu0 0.0
  %2480 = vmatpush1.msra.mxu0 0.0
  %2481 = vmatprep.subr.mxu0 0.0
  %2482 = vmatpush1.msra.mxu0 0.0
  %2483 = vmatprep.subr.mxu0 0.0
  %2484 = vmatpush1.msra.mxu0 0.0
  %2485 = vmatprep.subr.mxu0 0.0
  %2486 = vmatpush1.msra.mxu0 0.0
  %2487 = vmatprep.subr.mxu0 0.0
  %2488 = vmatpush1.msra.mxu0 0.0
  %2489 = vmatprep.subr.mxu0 0.0
  %2490 = vmatpush1.msra.mxu0 0.0
  %2491 = vmatprep.subr.mxu0 0.0
  %2492 = vmatpush1.msra.mxu0 0.0
  %2493 = vmatprep.subr.mxu0 0.0
  %2494 = vmatpush1.msra.mxu0 0.0
  %2495 = vmatprep.subr.mxu0 0.0
  %2496 = vmatpush1.msra.mxu0 0.0
  %2497 = vmatprep.subr.mxu0 0.0
  %2498 = vmatpush1.msra.mxu0 0.0
  %2499 = vmatprep.subr.mxu0 0.0
  %2500 = vmatpush1.msra.mxu0 0.0
  %2501 = vmatprep.subr.mxu0 0.0
  %2502 = vmatpush1.msra.mxu0 0.0
  %2503 = vmatprep.subr.mxu0 0.0
  %2504 = vmatpush1.msra.mxu0 0.0
  %2505 = vmatprep.subr.mxu0 0.0
  %2506 = vmatpush1.msra.mxu0 0.0
  %2507 = vmatprep.subr.mxu0 0.0
  %2508 = vmatpush1.msra.mxu0 0.0
  %2509 = vmatprep.subr.mxu0 0.0
  %2510 = vmatpush1.msra.mxu0 0.0
  %2511 = vmatprep.subr.mxu0 0.0
  %2512 = vmatpush1.msra.mxu0 0.0
  %2513 = vmatprep.subr.mxu0 0.0
  %2514 = vmatpush1.msra.mxu0 0.0
  %2515 = vmatprep.subr.mxu0 0.0
  %2516 = vmatpush1.msra.mxu0 0.0
  %2517 = vmatprep.subr.mxu0 0.0
  %2518 = vmatpush1.msra.mxu0 0.0
  %2519 = vmatprep.subr.mxu0 0.0
  %2520 = vmatpush1.msra.mxu0 0.0
  %2521 = vmatprep.subr.mxu0 0.0
  %2522 = vmatpush1.msra.mxu0 0.0
  %2523 = vmatprep.subr.mxu0 0.0
  %2524 = vmatpush1.msra.mxu0 0.0
  %2525 = vmatprep.subr.mxu0 0.0
  %2526 = vmatpush1.msra.mxu0 0.0
  %2527 = vmatprep.subr.mxu0 0.0
  %2528 = vmatpush1.msra.mxu0 0.0
  %2529 = vmatprep.subr.mxu0 0.0
  %2530 = vmatpush1.msra.mxu0 0.0
  %2531 = vmatprep.subr.mxu0 0.0
  %2532 = vmatpush1.msra.mxu0 0.0
  %2533 = vmatprep.subr.mxu0 0.0
  %2534 = vmatpush1.msra.mxu0 0.0
  %2535 = vmatprep.subr.mxu0 0.0
  %2536 = vmatpush1.msra.mxu0 0.0
  %2537 = vmatprep.mubr.f32.mxu0 0.0
  %2538 = vmatmul.mubr.f32.gmra.mrb[0].mxu0 %v2471
  %v2539 = vpop.f32.mrb[0].mxu0
  %v2540 = vadd.f32 0.0, %v2539
  %v2541 = vpop.f32.mrb[0].mxu0
  %2542 = vdwg.mxu0
  %2543 = vrot.lane.b32.xlu0 %v328, 48
  %v2544 = vpop.permute.xlu0 %2543
  %v2547 = vsel %vm1042, %v2460, 0
  %2549 = vmatprep.subr.mxu0 0.0
  %2550 = vmatpush1.msra.mxu0 %v2544
  %2551 = vmatprep.subr.mxu0 0.0
  %2552 = vmatpush1.msra.mxu0 0.0
  %2553 = vmatprep.subr.mxu0 0.0
  %2554 = vmatpush1.msra.mxu0 0.0
  %2555 = vmatprep.subr.mxu0 0.0
  %2556 = vmatpush1.msra.mxu0 0.0
  %2557 = vmatprep.subr.mxu0 0.0
  %2558 = vmatpush1.msra.mxu0 0.0
  %2559 = vmatprep.subr.mxu0 0.0
  %2560 = vmatpush1.msra.mxu0 0.0
  %2561 = vmatprep.subr.mxu0 0.0
  %2562 = vmatpush1.msra.mxu0 0.0
  %2563 = vmatprep.subr.mxu0 0.0
  %2564 = vmatpush1.msra.mxu0 0.0
  %2565 = vmatprep.subr.mxu0 0.0
  %2566 = vmatpush1.msra.mxu0 0.0
  %2567 = vmatprep.subr.mxu0 0.0
  %2568 = vmatpush1.msra.mxu0 0.0
  %2569 = vmatprep.subr.mxu0 0.0
  %2570 = vmatpush1.msra.mxu0 0.0
  %2571 = vmatprep.subr.mxu0 0.0
  %2572 = vmatpush1.msra.mxu0 0.0
  %2573 = vmatprep.subr.mxu0 0.0
  %2574 = vmatpush1.msra.mxu0 0.0
  %2575 = vmatprep.subr.mxu0 0.0
  %2576 = vmatpush1.msra.mxu0 0.0
  %2577 = vmatprep.subr.mxu0 0.0
  %2578 = vmatpush1.msra.mxu0 0.0
  %2579 = vmatprep.subr.mxu0 0.0
  %2580 = vmatpush1.msra.mxu0 0.0
  %2581 = vmatprep.subr.mxu0 0.0
  %2582 = vmatpush1.msra.mxu0 0.0
  %2583 = vmatprep.subr.mxu0 0.0
  %2584 = vmatpush1.msra.mxu0 0.0
  %2585 = vmatprep.subr.mxu0 0.0
  %2586 = vmatpush1.msra.mxu0 0.0
  %2587 = vmatprep.subr.mxu0 0.0
  %2588 = vmatpush1.msra.mxu0 0.0
  %2589 = vmatprep.subr.mxu0 0.0
  %2590 = vmatpush1.msra.mxu0 0.0
  %2591 = vmatprep.subr.mxu0 0.0
  %2592 = vmatpush1.msra.mxu0 0.0
  %2593 = vmatprep.subr.mxu0 0.0
  %2594 = vmatpush1.msra.mxu0 0.0
  %2595 = vmatprep.subr.mxu0 0.0
  %2596 = vmatpush1.msra.mxu0 0.0
  %2597 = vmatprep.subr.mxu0 0.0
  %2598 = vmatpush1.msra.mxu0 0.0
  %2599 = vmatprep.subr.mxu0 0.0
  %2600 = vmatpush1.msra.mxu0 0.0
  %2601 = vmatprep.subr.mxu0 0.0
  %2602 = vmatpush1.msra.mxu0 0.0
  %2603 = vmatprep.subr.mxu0 0.0
  %2604 = vmatpush1.msra.mxu0 0.0
  %2605 = vmatprep.subr.mxu0 0.0
  %2606 = vmatpush1.msra.mxu0 0.0
  %2607 = vmatprep.subr.mxu0 0.0
  %2608 = vmatpush1.msra.mxu0 0.0
  %2609 = vmatprep.subr.mxu0 0.0
  %2610 = vmatpush1.msra.mxu0 0.0
  %2611 = vmatprep.subr.mxu0 0.0
  %2612 = vmatpush1.msra.mxu0 0.0
  %2613 = vmatprep.mubr.f32.mxu0 0.0
  %2614 = vmatmul.mubr.f32.gmra.mrb[0].mxu0 %v2547
  %v2615 = vpop.f32.mrb[0].mxu0
  %v2616 = vadd.f32 0.0, %v2615
  %v2617 = vpop.f32.mrb[0].mxu0
  %2618 = vdwg.mxu0
  %2619 = vrot.lane.b32.xlu0 %v333, 48
  %v2620 = vpop.permute.xlu0 %2619
  %v2623 = vsel %vm1042, %v2461, 0
  %2625 = vmatprep.subr.mxu0 0.0
  %2626 = vmatpush1.msra.mxu0 %v2620
  %2627 = vmatprep.subr.mxu0 0.0
  %2628 = vmatpush1.msra.mxu0 0.0
  %2629 = vmatprep.subr.mxu0 0.0
  %2630 = vmatpush1.msra.mxu0 0.0
  %2631 = vmatprep.subr.mxu0 0.0
  %2632 = vmatpush1.msra.mxu0 0.0
  %2633 = vmatprep.subr.mxu0 0.0
  %2634 = vmatpush1.msra.mxu0 0.0
  %2635 = vmatprep.subr.mxu0 0.0
  %2636 = vmatpush1.msra.mxu0 0.0
  %2637 = vmatprep.subr.mxu0 0.0
  %2638 = vmatpush1.msra.mxu0 0.0
  %2639 = vmatprep.subr.mxu0 0.0
  %2640 = vmatpush1.msra.mxu0 0.0
  %2641 = vmatprep.subr.mxu0 0.0
  %2642 = vmatpush1.msra.mxu0 0.0
  %2643 = vmatprep.subr.mxu0 0.0
  %2644 = vmatpush1.msra.mxu0 0.0
  %2645 = vmatprep.subr.mxu0 0.0
  %2646 = vmatpush1.msra.mxu0 0.0
  %2647 = vmatprep.subr.mxu0 0.0
  %2648 = vmatpush1.msra.mxu0 0.0
  %2649 = vmatprep.subr.mxu0 0.0
  %2650 = vmatpush1.msra.mxu0 0.0
  %2651 = vmatprep.subr.mxu0 0.0
  %2652 = vmatpush1.msra.mxu0 0.0
  %2653 = vmatprep.subr.mxu0 0.0
  %2654 = vmatpush1.msra.mxu0 0.0
  %2655 = vmatprep.subr.mxu0 0.0
  %2656 = vmatpush1.msra.mxu0 0.0
  %2657 = vmatprep.subr.mxu0 0.0
  %2658 = vmatpush1.msra.mxu0 0.0
  %2659 = vmatprep.subr.mxu0 0.0
  %2660 = vmatpush1.msra.mxu0 0.0
  %2661 = vmatprep.subr.mxu0 0.0
  %2662 = vmatpush1.msra.mxu0 0.0
  %2663 = vmatprep.subr.mxu0 0.0
  %2664 = vmatpush1.msra.mxu0 0.0
  %2665 = vmatprep.subr.mxu0 0.0
  %2666 = vmatpush1.msra.mxu0 0.0
  %2667 = vmatprep.subr.mxu0 0.0
  %2668 = vmatpush1.msra.mxu0 0.0
  %2669 = vmatprep.subr.mxu0 0.0
  %2670 = vmatpush1.msra.mxu0 0.0
  %2671 = vmatprep.subr.mxu0 0.0
  %2672 = vmatpush1.msra.mxu0 0.0
  %2673 = vmatprep.subr.mxu0 0.0
  %2674 = vmatpush1.msra.mxu0 0.0
  %2675 = vmatprep.subr.mxu0 0.0
  %2676 = vmatpush1.msra.mxu0 0.0
  %2677 = vmatprep.subr.mxu0 0.0
  %2678 = vmatpush1.msra.mxu0 0.0
  %2679 = vmatprep.subr.mxu0 0.0
  %2680 = vmatpush1.msra.mxu0 0.0
  %2681 = vmatprep.subr.mxu0 0.0
  %2682 = vmatpush1.msra.mxu0 0.0
  %2683 = vmatprep.subr.mxu0 0.0
  %2684 = vmatpush1.msra.mxu0 0.0
  %2685 = vmatprep.subr.mxu0 0.0
  %2686 = vmatpush1.msra.mxu0 0.0
  %2687 = vmatprep.subr.mxu0 0.0
  %2688 = vmatpush1.msra.mxu0 0.0
  %2689 = vmatprep.mubr.f32.mxu0 0.0
  %2690 = vmatmul.mubr.f32.gmra.mrb[0].mxu0 %v2623
  %v2691 = vpop.f32.mrb[0].mxu0
  %v2692 = vadd.f32 0.0, %v2691
  %v2693 = vpop.f32.mrb[0].mxu0
  %2694 = vdwg.mxu0
  %2695 = vrot.lane.b32.xlu0 %v338, 48
  %v2696 = vpop.permute.xlu0 %2695
  %v2699 = vsel %vm1042, %v2462, 0
  %2701 = vmatprep.subr.mxu0 0.0
  %2702 = vmatpush1.msra.mxu0 %v2696
  %2703 = vmatprep.subr.mxu0 0.0
  %2704 = vmatpush1.msra.mxu0 0.0
  %2705 = vmatprep.subr.mxu0 0.0
  %2706 = vmatpush1.msra.mxu0 0.0
  %2707 = vmatprep.subr.mxu0 0.0
  %2708 = vmatpush1.msra.mxu0 0.0
  %2709 = vmatprep.subr.mxu0 0.0
  %2710 = vmatpush1.msra.mxu0 0.0
  %2711 = vmatprep.subr.mxu0 0.0
  %2712 = vmatpush1.msra.mxu0 0.0
  %2713 = vmatprep.subr.mxu0 0.0
  %2714 = vmatpush1.msra.mxu0 0.0
  %2715 = vmatprep.subr.mxu0 0.0
  %2716 = vmatpush1.msra.mxu0 0.0
  %2717 = vmatprep.subr.mxu0 0.0
  %2718 = vmatpush1.msra.mxu0 0.0
  %2719 = vmatprep.subr.mxu0 0.0
  %2720 = vmatpush1.msra.mxu0 0.0
  %2721 = vmatprep.subr.mxu0 0.0
  %2722 = vmatpush1.msra.mxu0 0.0
  %2723 = vmatprep.subr.mxu0 0.0
  %2724 = vmatpush1.msra.mxu0 0.0
  %2725 = vmatprep.subr.mxu0 0.0
  %2726 = vmatpush1.msra.mxu0 0.0
  %2727 = vmatprep.subr.mxu0 0.0
  %2728 = vmatpush1.msra.mxu0 0.0
  %2729 = vmatprep.subr.mxu0 0.0
  %2730 = vmatpush1.msra.mxu0 0.0
  %2731 = vmatprep.subr.mxu0 0.0
  %2732 = vmatpush1.msra.mxu0 0.0
  %2733 = vmatprep.subr.mxu0 0.0
  %2734 = vmatpush1.msra.mxu0 0.0
  %2735 = vmatprep.subr.mxu0 0.0
  %2736 = vmatpush1.msra.mxu0 0.0
  %2737 = vmatprep.subr.mxu0 0.0
  %2738 = vmatpush1.msra.mxu0 0.0
  %2739 = vmatprep.subr.mxu0 0.0
  %2740 = vmatpush1.msra.mxu0 0.0
  %2741 = vmatprep.subr.mxu0 0.0
  %2742 = vmatpush1.msra.mxu0 0.0
  %2743 = vmatprep.subr.mxu0 0.0
  %2744 = vmatpush1.msra.mxu0 0.0
  %2745 = vmatprep.subr.mxu0 0.0
  %2746 = vmatpush1.msra.mxu0 0.0
  %2747 = vmatprep.subr.mxu0 0.0
  %2748 = vmatpush1.msra.mxu0 0.0
  %2749 = vmatprep.subr.mxu0 0.0
  %2750 = vmatpush1.msra.mxu0 0.0
  %2751 = vmatprep.subr.mxu0 0.0
  %2752 = vmatpush1.msra.mxu0 0.0
  %2753 = vmatprep.subr.mxu0 0.0
  %2754 = vmatpush1.msra.mxu0 0.0
  %2755 = vmatprep.subr.mxu0 0.0
  %2756 = vmatpush1.msra.mxu0 0.0
  %2757 = vmatprep.subr.mxu0 0.0
  %2758 = vmatpush1.msra.mxu0 0.0
  %2759 = vmatprep.subr.mxu0 0.0
  %2760 = vmatpush1.msra.mxu0 0.0
  %2761 = vmatprep.subr.mxu0 0.0
  %2762 = vmatpush1.msra.mxu0 0.0
  %2763 = vmatprep.subr.mxu0 0.0
  %2764 = vmatpush1.msra.mxu0 0.0
  %2765 = vmatprep.mubr.f32.mxu0 0.0
  %2766 = vmatmul.mubr.f32.gmra.mrb[0].mxu0 %v2699
  %v2767 = vpop.f32.mrb[0].mxu0
  %v2768 = vadd.f32 0.0, %v2767
  %v2769 = vpop.f32.mrb[0].mxu0
  %2770 = vdwg.mxu0
  %2771 = vrot.lane.b32.xlu0 %v343, 48
  %v2772 = vpop.permute.xlu0 %2771
  %v2775 = vsel %vm1042, %v2463, 0
  %2777 = vmatprep.subr.mxu0 0.0
  %2778 = vmatpush1.msra.mxu0 %v2772
  %2779 = vmatprep.subr.mxu0 0.0
  %2780 = vmatpush1.msra.mxu0 0.0
  %2781 = vmatprep.subr.mxu0 0.0
  %2782 = vmatpush1.msra.mxu0 0.0
  %2783 = vmatprep.subr.mxu0 0.0
  %2784 = vmatpush1.msra.mxu0 0.0
  %2785 = vmatprep.subr.mxu0 0.0
  %2786 = vmatpush1.msra.mxu0 0.0
  %2787 = vmatprep.subr.mxu0 0.0
  %2788 = vmatpush1.msra.mxu0 0.0
  %2789 = vmatprep.subr.mxu0 0.0
  %2790 = vmatpush1.msra.mxu0 0.0
  %2791 = vmatprep.subr.mxu0 0.0
  %2792 = vmatpush1.msra.mxu0 0.0
  %2793 = vmatprep.subr.mxu0 0.0
  %2794 = vmatpush1.msra.mxu0 0.0
  %2795 = vmatprep.subr.mxu0 0.0
  %2796 = vmatpush1.msra.mxu0 0.0
  %2797 = vmatprep.subr.mxu0 0.0
  %2798 = vmatpush1.msra.mxu0 0.0
  %2799 = vmatprep.subr.mxu0 0.0
  %2800 = vmatpush1.msra.mxu0 0.0
  %2801 = vmatprep.subr.mxu0 0.0
  %2802 = vmatpush1.msra.mxu0 0.0
  %2803 = vmatprep.subr.mxu0 0.0
  %2804 = vmatpush1.msra.mxu0 0.0
  %2805 = vmatprep.subr.mxu0 0.0
  %2806 = vmatpush1.msra.mxu0 0.0
  %2807 = vmatprep.subr.mxu0 0.0
  %2808 = vmatpush1.msra.mxu0 0.0
  %2809 = vmatprep.subr.mxu0 0.0
  %2810 = vmatpush1.msra.mxu0 0.0
  %2811 = vmatprep.subr.mxu0 0.0
  %2812 = vmatpush1.msra.mxu0 0.0
  %2813 = vmatprep.subr.mxu0 0.0
  %2814 = vmatpush1.msra.mxu0 0.0
  %2815 = vmatprep.subr.mxu0 0.0
  %2816 = vmatpush1.msra.mxu0 0.0
  %2817 = vmatprep.subr.mxu0 0.0
  %2818 = vmatpush1.msra.mxu0 0.0
  %2819 = vmatprep.subr.mxu0 0.0
  %2820 = vmatpush1.msra.mxu0 0.0
  %2821 = vmatprep.subr.mxu0 0.0
  %2822 = vmatpush1.msra.mxu0 0.0
  %2823 = vmatprep.subr.mxu0 0.0
  %2824 = vmatpush1.msra.mxu0 0.0
  %2825 = vmatprep.subr.mxu0 0.0
  %2826 = vmatpush1.msra.mxu0 0.0
  %2827 = vmatprep.subr.mxu0 0.0
  %2828 = vmatpush1.msra.mxu0 0.0
  %2829 = vmatprep.subr.mxu0 0.0
  %2830 = vmatpush1.msra.mxu0 0.0
  %2831 = vmatprep.subr.mxu0 0.0
  %2832 = vmatpush1.msra.mxu0 0.0
  %2833 = vmatprep.subr.mxu0 0.0
  %2834 = vmatpush1.msra.mxu0 0.0
  %2835 = vmatprep.subr.mxu0 0.0
  %2836 = vmatpush1.msra.mxu0 0.0
  %2837 = vmatprep.subr.mxu0 0.0
  %2838 = vmatpush1.msra.mxu0 0.0
  %2839 = vmatprep.subr.mxu0 0.0
  %2840 = vmatpush1.msra.mxu0 0.0
  %2841 = vmatprep.mubr.f32.mxu0 0.0
  %2842 = vmatmul.mubr.f32.gmra.mrb[0].mxu0 %v2775
  %v2843 = vpop.f32.mrb[0].mxu0
  %v2844 = vadd.f32 0.0, %v2843
  %v2845 = vpop.f32.mrb[0].mxu0
  %2846 = vdwg.mxu0
  %2847 = vrot.lane.b32.xlu0 %v348, 48
  %v2848 = vpop.permute.xlu0 %2847
  %v2851 = vsel %vm1042, %v2464, 0
  %2853 = vmatprep.subr.mxu0 0.0
  %2854 = vmatpush1.msra.mxu0 %v2848
  %2855 = vmatprep.subr.mxu0 0.0
  %2856 = vmatpush1.msra.mxu0 0.0
  %2857 = vmatprep.subr.mxu0 0.0
  %2858 = vmatpush1.msra.mxu0 0.0
  %2859 = vmatprep.subr.mxu0 0.0
  %2860 = vmatpush1.msra.mxu0 0.0
  %2861 = vmatprep.subr.mxu0 0.0
  %2862 = vmatpush1.msra.mxu0 0.0
  %2863 = vmatprep.subr.mxu0 0.0
  %2864 = vmatpush1.msra.mxu0 0.0
  %2865 = vmatprep.subr.mxu0 0.0
  %2866 = vmatpush1.msra.mxu0 0.0
  %2867 = vmatprep.subr.mxu0 0.0
  %2868 = vmatpush1.msra.mxu0 0.0
  %2869 = vmatprep.subr.mxu0 0.0
  %2870 = vmatpush1.msra.mxu0 0.0
  %2871 = vmatprep.subr.mxu0 0.0
  %2872 = vmatpush1.msra.mxu0 0.0
  %2873 = vmatprep.subr.mxu0 0.0
  %2874 = vmatpush1.msra.mxu0 0.0
  %2875 = vmatprep.subr.mxu0 0.0
  %2876 = vmatpush1.msra.mxu0 0.0
  %2877 = vmatprep.subr.mxu0 0.0
  %2878 = vmatpush1.msra.mxu0 0.0
  %2879 = vmatprep.subr.mxu0 0.0
  %2880 = vmatpush1.msra.mxu0 0.0
  %2881 = vmatprep.subr.mxu0 0.0
  %2882 = vmatpush1.msra.mxu0 0.0
  %2883 = vmatprep.subr.mxu0 0.0
  %2884 = vmatpush1.msra.mxu0 0.0
  %2885 = vmatprep.subr.mxu0 0.0
  %2886 = vmatpush1.msra.mxu0 0.0
  %2887 = vmatprep.subr.mxu0 0.0
  %2888 = vmatpush1.msra.mxu0 0.0
  %2889 = vmatprep.subr.mxu0 0.0
  %2890 = vmatpush1.msra.mxu0 0.0
  %2891 = vmatprep.subr.mxu0 0.0
  %2892 = vmatpush1.msra.mxu0 0.0
  %2893 = vmatprep.subr.mxu0 0.0
  %2894 = vmatpush1.msra.mxu0 0.0
  %2895 = vmatprep.subr.mxu0 0.0
  %2896 = vmatpush1.msra.mxu0 0.0
  %2897 = vmatprep.subr.mxu0 0.0
  %2898 = vmatpush1.msra.mxu0 0.0
  %2899 = vmatprep.subr.mxu0 0.0
  %2900 = vmatpush1.msra.mxu0 0.0
  %2901 = vmatprep.subr.mxu0 0.0
  %2902 = vmatpush1.msra.mxu0 0.0
  %2903 = vmatprep.subr.mxu0 0.0
  %2904 = vmatpush1.msra.mxu0 0.0
  %2905 = vmatprep.subr.mxu0 0.0
  %2906 = vmatpush1.msra.mxu0 0.0
  %2907 = vmatprep.subr.mxu0 0.0
  %2908 = vmatpush1.msra.mxu0 0.0
  %2909 = vmatprep.subr.mxu0 0.0
  %2910 = vmatpush1.msra.mxu0 0.0
  %2911 = vmatprep.subr.mxu0 0.0
  %2912 = vmatpush1.msra.mxu0 0.0
  %2913 = vmatprep.subr.mxu0 0.0
  %2914 = vmatpush1.msra.mxu0 0.0
  %2915 = vmatprep.subr.mxu0 0.0
  %2916 = vmatpush1.msra.mxu0 0.0
  %2917 = vmatprep.mubr.f32.mxu0 0.0
  %2918 = vmatmul.mubr.f32.gmra.mrb[0].mxu0 %v2851
  %v2919 = vpop.f32.mrb[0].mxu0
  %v2920 = vadd.f32 0.0, %v2919
  %v2921 = vpop.f32.mrb[0].mxu0
  %2922 = vdwg.mxu0
  %2923 = vrot.lane.b32.xlu0 %v353, 48
  %v2924 = vpop.permute.xlu0 %2923
  %v2927 = vsel %vm1042, %v2465, 0
  %2929 = vmatprep.subr.mxu0 0.0
  %2930 = vmatpush1.msra.mxu0 %v2924
  %2931 = vmatprep.subr.mxu0 0.0
  %2932 = vmatpush1.msra.mxu0 0.0
  %2933 = vmatprep.subr.mxu0 0.0
  %2934 = vmatpush1.msra.mxu0 0.0
  %2935 = vmatprep.subr.mxu0 0.0
  %2936 = vmatpush1.msra.mxu0 0.0
  %2937 = vmatprep.subr.mxu0 0.0
  %2938 = vmatpush1.msra.mxu0 0.0
  %2939 = vmatprep.subr.mxu0 0.0
  %2940 = vmatpush1.msra.mxu0 0.0
  %2941 = vmatprep.subr.mxu0 0.0
  %2942 = vmatpush1.msra.mxu0 0.0
  %2943 = vmatprep.subr.mxu0 0.0
  %2944 = vmatpush1.msra.mxu0 0.0
  %2945 = vmatprep.subr.mxu0 0.0
  %2946 = vmatpush1.msra.mxu0 0.0
  %2947 = vmatprep.subr.mxu0 0.0
  %2948 = vmatpush1.msra.mxu0 0.0
  %2949 = vmatprep.subr.mxu0 0.0
  %2950 = vmatpush1.msra.mxu0 0.0
  %2951 = vmatprep.subr.mxu0 0.0
  %2952 = vmatpush1.msra.mxu0 0.0
  %2953 = vmatprep.subr.mxu0 0.0
  %2954 = vmatpush1.msra.mxu0 0.0
  %2955 = vmatprep.subr.mxu0 0.0
  %2956 = vmatpush1.msra.mxu0 0.0
  %2957 = vmatprep.subr.mxu0 0.0
  %2958 = vmatpush1.msra.mxu0 0.0
  %2959 = vmatprep.subr.mxu0 0.0
  %2960 = vmatpush1.msra.mxu0 0.0
  %2961 = vmatprep.subr.mxu0 0.0
  %2962 = vmatpush1.msra.mxu0 0.0
  %2963 = vmatprep.subr.mxu0 0.0
  %2964 = vmatpush1.msra.mxu0 0.0
  %2965 = vmatprep.subr.mxu0 0.0
  %2966 = vmatpush1.msra.mxu0 0.0
  %2967 = vmatprep.subr.mxu0 0.0
  %2968 = vmatpush1.msra.mxu0 0.0
  %2969 = vmatprep.subr.mxu0 0.0
  %2970 = vmatpush1.msra.mxu0 0.0
  %2971 = vmatprep.subr.mxu0 0.0
  %2972 = vmatpush1.msra.mxu0 0.0
  %2973 = vmatprep.subr.mxu0 0.0
  %2974 = vmatpush1.msra.mxu0 0.0
  %2975 = vmatprep.subr.mxu0 0.0
  %2976 = vmatpush1.msra.mxu0 0.0
  %2977 = vmatprep.subr.mxu0 0.0
  %2978 = vmatpush1.msra.mxu0 0.0
  %2979 = vmatprep.subr.mxu0 0.0
  %2980 = vmatpush1.msra.mxu0 0.0
  %2981 = vmatprep.subr.mxu0 0.0
  %2982 = vmatpush1.msra.mxu0 0.0
  %2983 = vmatprep.subr.mxu0 0.0
  %2984 = vmatpush1.msra.mxu0 0.0
  %2985 = vmatprep.subr.mxu0 0.0
  %2986 = vmatpush1.msra.mxu0 0.0
  %2987 = vmatprep.subr.mxu0 0.0
  %2988 = vmatpush1.msra.mxu0 0.0
  %2989 = vmatprep.subr.mxu0 0.0
  %2990 = vmatpush1.msra.mxu0 0.0
  %2991 = vmatprep.subr.mxu0 0.0
  %2992 = vmatpush1.msra.mxu0 0.0
  %2993 = vmatprep.mubr.f32.mxu0 0.0
  %2994 = vmatmul.mubr.f32.gmra.mrb[0].mxu0 %v2927
  %v2995 = vpop.f32.mrb[0].mxu0
  %v2996 = vadd.f32 0.0, %v2995
  %v2997 = vpop.f32.mrb[0].mxu0
  %2998 = vdwg.mxu0
  %2999 = vrot.lane.b32.xlu0 %v358, 48
  %v3000 = vpop.permute.xlu0 %2999
  %v3003 = vsel %vm1042, %v2466, 0
  %3005 = vmatprep.subr.mxu0 0.0
  %3006 = vmatpush1.msra.mxu0 %v3000
  %3007 = vmatprep.subr.mxu0 0.0
  %3008 = vmatpush1.msra.mxu0 0.0
  %3009 = vmatprep.subr.mxu0 0.0
  %3010 = vmatpush1.msra.mxu0 0.0
  %3011 = vmatprep.subr.mxu0 0.0
  %3012 = vmatpush1.msra.mxu0 0.0
  %3013 = vmatprep.subr.mxu0 0.0
  %3014 = vmatpush1.msra.mxu0 0.0
  %3015 = vmatprep.subr.mxu0 0.0
  %3016 = vmatpush1.msra.mxu0 0.0
  %3017 = vmatprep.subr.mxu0 0.0
  %3018 = vmatpush1.msra.mxu0 0.0
  %3019 = vmatprep.subr.mxu0 0.0
  %3020 = vmatpush1.msra.mxu0 0.0
  %3021 = vmatprep.subr.mxu0 0.0
  %3022 = vmatpush1.msra.mxu0 0.0
  %3023 = vmatprep.subr.mxu0 0.0
  %3024 = vmatpush1.msra.mxu0 0.0
  %3025 = vmatprep.subr.mxu0 0.0
  %3026 = vmatpush1.msra.mxu0 0.0
  %3027 = vmatprep.subr.mxu0 0.0
  %3028 = vmatpush1.msra.mxu0 0.0
  %3029 = vmatprep.subr.mxu0 0.0
  %3030 = vmatpush1.msra.mxu0 0.0
  %3031 = vmatprep.subr.mxu0 0.0
  %3032 = vmatpush1.msra.mxu0 0.0
  %3033 = vmatprep.subr.mxu0 0.0
  %3034 = vmatpush1.msra.mxu0 0.0
  %3035 = vmatprep.subr.mxu0 0.0
  %3036 = vmatpush1.msra.mxu0 0.0
  %3037 = vmatprep.subr.mxu0 0.0
  %3038 = vmatpush1.msra.mxu0 0.0
  %3039 = vmatprep.subr.mxu0 0.0
  %3040 = vmatpush1.msra.mxu0 0.0
  %3041 = vmatprep.subr.mxu0 0.0
  %3042 = vmatpush1.msra.mxu0 0.0
  %3043 = vmatprep.subr.mxu0 0.0
  %3044 = vmatpush1.msra.mxu0 0.0
  %3045 = vmatprep.subr.mxu0 0.0
  %3046 = vmatpush1.msra.mxu0 0.0
  %3047 = vmatprep.subr.mxu0 0.0
  %3048 = vmatpush1.msra.mxu0 0.0
  %3049 = vmatprep.subr.mxu0 0.0
  %3050 = vmatpush1.msra.mxu0 0.0
  %3051 = vmatprep.subr.mxu0 0.0
  %3052 = vmatpush1.msra.mxu0 0.0
  %3053 = vmatprep.subr.mxu0 0.0
  %3054 = vmatpush1.msra.mxu0 0.0
  %3055 = vmatprep.subr.mxu0 0.0
  %3056 = vmatpush1.msra.mxu0 0.0
  %3057 = vmatprep.subr.mxu0 0.0
  %3058 = vmatpush1.msra.mxu0 0.0
  %3059 = vmatprep.subr.mxu0 0.0
  %3060 = vmatpush1.msra.mxu0 0.0
  %3061 = vmatprep.subr.mxu0 0.0
  %3062 = vmatpush1.msra.mxu0 0.0
  %3063 = vmatprep.subr.mxu0 0.0
  %3064 = vmatpush1.msra.mxu0 0.0
  %3065 = vmatprep.subr.mxu0 0.0
  %3066 = vmatpush1.msra.mxu0 0.0
  %3067 = vmatprep.subr.mxu0 0.0
  %3068 = vmatpush1.msra.mxu0 0.0
  %3069 = vmatprep.mubr.f32.mxu0 0.0
  %3070 = vmatmul.mubr.f32.gmra.mrb[0].mxu0 %v3003
  %v3071 = vpop.f32.mrb[0].mxu0
  %v3072 = vadd.f32 0.0, %v3071
  %v3073 = vpop.f32.mrb[0].mxu0
  %3074 = vdwg.mxu0
  %3083 = vrot.lane.b32.xlu0 %v2540, 16
  %v3084 = vpop.permute.xlu0 %3083
  %3085 = vrot.lane.b32.xlu0 %v2616, 16
  %v3086 = vpop.permute.xlu0 %3085
  %3087 = vrot.lane.b32.xlu0 %v2692, 16
  %v3088 = vpop.permute.xlu0 %3087
  %3089 = vrot.lane.b32.xlu0 %v2768, 16
  %v3090 = vpop.permute.xlu0 %3089
  %3091 = vrot.lane.b32.xlu0 %v2844, 16
  %v3092 = vpop.permute.xlu0 %3091
  %3093 = vrot.lane.b32.xlu0 %v2920, 16
  %v3094 = vpop.permute.xlu0 %3093
  %3095 = vrot.lane.b32.xlu0 %v2996, 16
  %v3096 = vpop.permute.xlu0 %3095
  %3097 = vrot.lane.b32.xlu0 %v3072, 16
  %v3098 = vpop.permute.xlu0 %3097
  %v3107 = vsel %vm364, %v1204, %v3084
  %v3108 = vsel %vm364, %v1280, %v3086
  %v3109 = vsel %vm364, %v1356, %v3088
  %v3110 = vsel %vm364, %v1432, %v3090
  %v3111 = vsel %vm364, %v1508, %v3092
  %v3112 = vsel %vm364, %v1584, %v3094
  %v3113 = vsel %vm364, %v1660, %v3096
  %v3114 = vsel %vm364, %v1736, %v3098
  %v3115 = vld [vmem:[%s5] sm:$0xff]
  %v3116 = vld [vmem:[%s5 + $0x8] sm:$0xff]
  %v3117 = vld [vmem:[%s5 + $0x10] sm:$0xff]
  %v3118 = vld [vmem:[%s5 + $0x18] sm:$0xff]
  %v3119 = vld [vmem:[%s6] sm:$0x1]
  %v3121 = vlaneseq
  %v3122 = vshrl.u32 %v3121, 7
  %v3123 = vsub.s32 0, %v3122
  %v3124 = vrot.slane %v3119, %v3123
  %v3127 = vsel %vm67, %v3107, 0
  %v3130 = vsel %vm67, %v3108, 0
  %v3133 = vsel %vm67, %v3109, 0
  %v3136 = vsel %vm67, %v3110, 0
  %v3139 = vsel %vm67, %v3111, 0
  %v3142 = vsel %vm67, %v3112, 0
  %v3145 = vsel %vm67, %v3113, 0
  %v3148 = vsel %vm67, %v3114, 0
  %3150 = vmatprep.subr.mxu0 0.0
  %3151 = vmatpush1.msra.mxu0 %v3115
  %3152 = vmatprep.subr.mxu0 0.0
  %3153 = vmatpush1.msra.mxu0 %v3116
  %3154 = vmatprep.subr.mxu0 0.0
  %3155 = vmatpush1.msra.mxu0 %v3117
  %3156 = vmatprep.subr.mxu0 0.0
  %3157 = vmatpush1.msra.mxu0 %v3118
  %3158 = vmatprep.subr.mxu0 0.0
  %3159 = vmatpush1.msra.mxu0 0.0
  %3160 = vmatprep.subr.mxu0 0.0
  %3161 = vmatpush1.msra.mxu0 0.0
  %3162 = vmatprep.subr.mxu0 0.0
  %3163 = vmatpush1.msra.mxu0 0.0
  %3164 = vmatprep.subr.mxu0 0.0
  %3165 = vmatpush1.msra.mxu0 0.0
  %3166 = vmatprep.subr.mxu0 0.0
  %3167 = vmatpush1.msra.mxu0 0.0
  %3168 = vmatprep.subr.mxu0 0.0
  %3169 = vmatpush1.msra.mxu0 0.0
  %3170 = vmatprep.subr.mxu0 0.0
  %3171 = vmatpush1.msra.mxu0 0.0
  %3172 = vmatprep.subr.mxu0 0.0
  %3173 = vmatpush1.msra.mxu0 0.0
  %3174 = vmatprep.subr.mxu0 0.0
  %3175 = vmatpush1.msra.mxu0 0.0
  %3176 = vmatprep.subr.mxu0 0.0
  %3177 = vmatpush1.msra.mxu0 0.0
  %3178 = vmatprep.subr.mxu0 0.0
  %3179 = vmatpush1.msra.mxu0 0.0
  %3180 = vmatprep.subr.mxu0 0.0
  %3181 = vmatpush1.msra.mxu0 0.0
  %3182 = vmatprep.subr.mxu0 0.0
  %3183 = vmatpush1.msra.mxu0 0.0
  %3184 = vmatprep.subr.mxu0 0.0
  %3185 = vmatpush1.msra.mxu0 0.0
  %3186 = vmatprep.subr.mxu0 0.0
  %3187 = vmatpush1.msra.mxu0 0.0
  %3188 = vmatprep.subr.mxu0 0.0
  %3189 = vmatpush1.msra.mxu0 0.0
  %3190 = vmatprep.subr.mxu0 0.0
  %3191 = vmatpush1.msra.mxu0 0.0
  %3192 = vmatprep.subr.mxu0 0.0
  %3193 = vmatpush1.msra.mxu0 0.0
  %3194 = vmatprep.subr.mxu0 0.0
  %3195 = vmatpush1.msra.mxu0 0.0
  %3196 = vmatprep.subr.mxu0 0.0
  %3197 = vmatpush1.msra.mxu0 0.0
  %3198 = vmatprep.subr.mxu0 0.0
  %3199 = vmatpush1.msra.mxu0 0.0
  %3200 = vmatprep.subr.mxu0 0.0
  %3201 = vmatpush1.msra.mxu0 0.0
  %3202 = vmatprep.subr.mxu0 0.0
  %3203 = vmatpush1.msra.mxu0 0.0
  %3204 = vmatprep.subr.mxu0 0.0
  %3205 = vmatpush1.msra.mxu0 0.0
  %3206 = vmatprep.subr.mxu0 0.0
  %3207 = vmatpush1.msra.mxu0 0.0
  %3208 = vmatprep.subr.mxu0 0.0
  %3209 = vmatpush1.msra.mxu0 0.0
  %3210 = vmatprep.subr.mxu0 0.0
  %3211 = vmatpush1.msra.mxu0 0.0
  %3212 = vmatprep.subr.mxu0 0.0
  %3213 = vmatpush1.msra.mxu0 0.0
  %3214 = vmatprep.mubr.f32.mxu0 0.0
  %3215 = vmatmul.mubr.f32.gmra.mrb[0].mxu0 %v3127
  %v3216 = vpop.f32.mrb[0].mxu0
  %v3217 = vadd.f32 %v3124, %v3216
  %v3218 = vpop.f32.mrb[0].mxu0
  %3219 = vmatprep.mubr.f32.mxu0 0.0
  %3220 = vmatmul.mubr.f32.gmra.mrb[0].mxu0 %v3130
  %v3221 = vpop.f32.mrb[0].mxu0
  %v3222 = vadd.f32 %v3124, %v3221
  %v3223 = vpop.f32.mrb[0].mxu0
  %3224 = vmatprep.mubr.f32.mxu0 0.0
  %3225 = vmatmul.mubr.f32.gmra.mrb[0].mxu0 %v3133
  %v3226 = vpop.f32.mrb[0].mxu0
  %v3227 = vadd.f32 %v3124, %v3226
  %v3228 = vpop.f32.mrb[0].mxu0
  %3229 = vmatprep.mubr.f32.mxu0 0.0
  %3230 = vmatmul.mubr.f32.gmra.mrb[0].mxu0 %v3136
  %v3231 = vpop.f32.mrb[0].mxu0
  %v3232 = vadd.f32 %v3124, %v3231
  %v3233 = vpop.f32.mrb[0].mxu0
  %3234 = vmatprep.mubr.f32.mxu0 0.0
  %3235 = vmatmul.mubr.f32.gmra.mrb[0].mxu0 %v3139
  %v3236 = vpop.f32.mrb[0].mxu0
  %v3237 = vadd.f32 %v3124, %v3236
  %v3238 = vpop.f32.mrb[0].mxu0
  %3239 = vmatprep.mubr.f32.mxu0 0.0
  %3240 = vmatmul.mubr.f32.gmra.mrb[0].mxu0 %v3142
  %v3241 = vpop.f32.mrb[0].mxu0
  %v3242 = vadd.f32 %v3124, %v3241
  %v3243 = vpop.f32.mrb[0].mxu0
  %3244 = vmatprep.mubr.f32.mxu0 0.0
  %3245 = vmatmul.mubr.f32.gmra.mrb[0].mxu0 %v3145
  %v3246 = vpop.f32.mrb[0].mxu0
  %v3247 = vadd.f32 %v3124, %v3246
  %v3248 = vpop.f32.mrb[0].mxu0
  %3249 = vmatprep.mubr.f32.mxu0 0.0
  %3250 = vmatmul.mubr.f32.gmra.mrb[0].mxu0 %v3148
  %v3251 = vpop.f32.mrb[0].mxu0
  %v3252 = vadd.f32 %v3124, %v3251
  %v3253 = vpop.f32.mrb[0].mxu0
  %3254 = vdwg.mxu0
  %v3255 = vld [vmem:[%s7] sm:$0x3]
  %v3256 = vadd.f32 %v189, %v3217
  %v3257 = vadd.f32 %v190, %v3222
  %v3258 = vadd.f32 %v191, %v3227
  %v3259 = vadd.f32 %v192, %v3232
  %v3260 = vadd.f32 %v193, %v3237
  %v3261 = vadd.f32 %v194, %v3242
  %v3262 = vadd.f32 %v195, %v3247
  %v3263 = vadd.f32 %v196, %v3252
  %v3264 = vsel %vm67, %v3256, 0.0
  %3265 = vadd.xlane.f32.xlu0 %v3264
  %v3266 = vpop.xlane.xlu0 %3265
  %v3267 = vsel %vm67, %v3257, 0.0
  %3268 = vadd.xlane.f32.xlu0 %v3267
  %v3269 = vpop.xlane.xlu0 %3268
  %v3270 = vsel %vm67, %v3258, 0.0
  %3271 = vadd.xlane.f32.xlu0 %v3270
  %v3272 = vpop.xlane.xlu0 %3271
  %v3273 = vsel %vm67, %v3259, 0.0
  %3274 = vadd.xlane.f32.xlu0 %v3273
  %v3275 = vpop.xlane.xlu0 %3274
  %v3276 = vsel %vm67, %v3260, 0.0
  %3277 = vadd.xlane.f32.xlu0 %v3276
  %v3278 = vpop.xlane.xlu0 %3277
  %v3279 = vsel %vm67, %v3261, 0.0
  %3280 = vadd.xlane.f32.xlu0 %v3279
  %v3281 = vpop.xlane.xlu0 %3280
  %v3282 = vsel %vm67, %v3262, 0.0
  %3283 = vadd.xlane.f32.xlu0 %v3282
  %v3284 = vpop.xlane.xlu0 %3283
  %v3285 = vsel %vm67, %v3263, 0.0
  %3286 = vadd.xlane.f32.xlu0 %v3285
  %v3287 = vpop.xlane.xlu0 %3286
  %v3288 = vmul.f32 %v3266, %v92
  %v3289 = vmul.f32 %v3269, %v92
  %v3290 = vmul.f32 %v3272, %v92
  %v3291 = vmul.f32 %v3275, %v92
  %v3292 = vmul.f32 %v3278, %v92
  %v3293 = vmul.f32 %v3281, %v92
  %v3294 = vmul.f32 %v3284, %v92
  %v3295 = vmul.f32 %v3287, %v92
  %v3296 = vsub.f32 %v3256, %v3288
  %v3297 = vsub.f32 %v3257, %v3289
  %v3298 = vsub.f32 %v3258, %v3290
  %v3299 = vsub.f32 %v3259, %v3291
  %v3300 = vsub.f32 %v3260, %v3292
  %v3301 = vsub.f32 %v3261, %v3293
  %v3302 = vsub.f32 %v3262, %v3294
  %v3303 = vsub.f32 %v3263, %v3295
  %v3304 = vmul.f32 %v3296, %v3296
  %v3305 = vmul.f32 %v3297, %v3297
  %v3306 = vmul.f32 %v3298, %v3298
  %v3307 = vmul.f32 %v3299, %v3299
  %v3308 = vmul.f32 %v3300, %v3300
  %v3309 = vmul.f32 %v3301, %v3301
  %v3310 = vmul.f32 %v3302, %v3302
  %v3311 = vmul.f32 %v3303, %v3303
  %v3312 = vsel %vm67, %v3304, 0.0
  %3313 = vadd.xlane.f32.xlu0 %v3312
  %v3314 = vpop.xlane.xlu0 %3313
  %v3315 = vsel %vm67, %v3305, 0.0
  %3316 = vadd.xlane.f32.xlu0 %v3315
  %v3317 = vpop.xlane.xlu0 %3316
  %v3318 = vsel %vm67, %v3306, 0.0
  %3319 = vadd.xlane.f32.xlu0 %v3318
  %v3320 = vpop.xlane.xlu0 %3319
  %v3321 = vsel %vm67, %v3307, 0.0
  %3322 = vadd.xlane.f32.xlu0 %v3321
  %v3323 = vpop.xlane.xlu0 %3322
  %v3324 = vsel %vm67, %v3308, 0.0
  %3325 = vadd.xlane.f32.xlu0 %v3324
  %v3326 = vpop.xlane.xlu0 %3325
  %v3327 = vsel %vm67, %v3309, 0.0
  %3328 = vadd.xlane.f32.xlu0 %v3327
  %v3329 = vpop.xlane.xlu0 %3328
  %v3330 = vsel %vm67, %v3310, 0.0
  %3331 = vadd.xlane.f32.xlu0 %v3330
  %v3332 = vpop.xlane.xlu0 %3331
  %v3333 = vsel %vm67, %v3311, 0.0
  %3334 = vadd.xlane.f32.xlu0 %v3333
  %v3335 = vpop.xlane.xlu0 %3334
  %v3336 = vmul.f32 %v3314, %v92
  %v3337 = vmul.f32 %v3317, %v92
  %v3338 = vmul.f32 %v3320, %v92
  %v3339 = vmul.f32 %v3323, %v92
  %v3340 = vmul.f32 %v3326, %v92
  %v3341 = vmul.f32 %v3329, %v92
  %v3342 = vmul.f32 %v3332, %v92
  %v3343 = vmul.f32 %v3335, %v92
  %v3344 = vadd.f32 %v3336, 1e-05
  %v3345 = vadd.f32 %v3337, 1e-05
  %v3346 = vadd.f32 %v3338, 1e-05
  %v3347 = vadd.f32 %v3339, 1e-05
  %v3348 = vadd.f32 %v3340, 1e-05
  %v3349 = vadd.f32 %v3341, 1e-05
  %v3350 = vadd.f32 %v3342, 1e-05
  %v3351 = vadd.f32 %v3343, 1e-05
  %v3352 = vrsqrt.pop %v3344
  %v3353 = vrsqrt.pop %v3345
  %v3354 = vrsqrt.pop %v3346
  %v3355 = vrsqrt.pop %v3347
  %v3356 = vrsqrt.pop %v3348
  %v3357 = vrsqrt.pop %v3349
  %v3358 = vrsqrt.pop %v3350
  %v3359 = vrsqrt.pop %v3351
  %v3360 = vmul.f32 %v3296, %v3352
  %v3361 = vmul.f32 %v3297, %v3353
  %v3362 = vmul.f32 %v3298, %v3354
  %v3363 = vmul.f32 %v3299, %v3355
  %v3364 = vmul.f32 %v3300, %v3356
  %v3365 = vmul.f32 %v3301, %v3357
  %v3366 = vmul.f32 %v3302, %v3358
  %v3367 = vmul.f32 %v3303, %v3359
  %v3368 = vlaneseq
  %v3369 = vshrl.u32 %v3368, 7
  %v3370 = vsub.s32 0, %v3369
  %v3371 = vrot.slane %v3255, %v3370
  %v3372 = vmul.f32 %v3360, %v3371
  %v3373 = vmul.f32 %v3361, %v3371
  %v3374 = vmul.f32 %v3362, %v3371
  %v3375 = vmul.f32 %v3363, %v3371
  %v3376 = vmul.f32 %v3364, %v3371
  %v3377 = vmul.f32 %v3365, %v3371
  %v3378 = vmul.f32 %v3366, %v3371
  %v3379 = vmul.f32 %v3367, %v3371
  %v3380 = vlaneseq
  %v3381 = vshrl.u32 %v3380, 7
  %v3382 = vsub.s32 1, %v3381
  %v3383 = vrot.slane %v3255, %v3382
  %v3384 = vadd.f32 %v3372, %v3383
  %v3385 = vadd.f32 %v3373, %v3383
  %v3386 = vadd.f32 %v3374, %v3383
  %v3387 = vadd.f32 %v3375, %v3383
  %v3388 = vadd.f32 %v3376, %v3383
  %v3389 = vadd.f32 %v3377, %v3383
  %v3390 = vadd.f32 %v3378, %v3383
  %v3391 = vadd.f32 %v3379, %v3383
  %v3392 = vld [vmem:[%s8] sm:$0xff]
  %v3393 = vld [vmem:[%s8 + $0x8] sm:$0xff]
  %v3394 = vld [vmem:[%s8 + $0x10] sm:$0xff]
  %v3395 = vld [vmem:[%s8 + $0x18] sm:$0xff]
  %v3396 = vld [vmem:[%s9] sm:$0x1]
  %v3398 = vlaneseq
  %v3399 = vshrl.u32 %v3398, 7
  %v3400 = vsub.s32 0, %v3399
  %v3401 = vrot.slane %v3396, %v3400
  %v3404 = vsel %vm67, %v3384, 0
  %v3407 = vsel %vm67, %v3385, 0
  %v3410 = vsel %vm67, %v3386, 0
  %v3413 = vsel %vm67, %v3387, 0
  %v3416 = vsel %vm67, %v3388, 0
  %v3419 = vsel %vm67, %v3389, 0
  %v3422 = vsel %vm67, %v3390, 0
  %v3425 = vsel %vm67, %v3391, 0
  %3427 = vmatprep.subr.mxu0 0.0
  %3428 = vmatpush1.msra.mxu0 %v3392
  %3429 = vmatprep.subr.mxu0 0.0
  %3430 = vmatpush1.msra.mxu0 %v3393
  %3431 = vmatprep.subr.mxu0 0.0
  %3432 = vmatpush1.msra.mxu0 %v3394
  %3433 = vmatprep.subr.mxu0 0.0
  %3434 = vmatpush1.msra.mxu0 %v3395
  %3435 = vmatprep.subr.mxu0 0.0
  %3436 = vmatpush1.msra.mxu0 0.0
  %3437 = vmatprep.subr.mxu0 0.0
  %3438 = vmatpush1.msra.mxu0 0.0
  %3439 = vmatprep.subr.mxu0 0.0
  %3440 = vmatpush1.msra.mxu0 0.0
  %3441 = vmatprep.subr.mxu0 0.0
  %3442 = vmatpush1.msra.mxu0 0.0
  %3443 = vmatprep.subr.mxu0 0.0
  %3444 = vmatpush1.msra.mxu0 0.0
  %3445 = vmatprep.subr.mxu0 0.0
  %3446 = vmatpush1.msra.mxu0 0.0
  %3447 = vmatprep.subr.mxu0 0.0
  %3448 = vmatpush1.msra.mxu0 0.0
  %3449 = vmatprep.subr.mxu0 0.0
  %3450 = vmatpush1.msra.mxu0 0.0
  %3451 = vmatprep.subr.mxu0 0.0
  %3452 = vmatpush1.msra.mxu0 0.0
  %3453 = vmatprep.subr.mxu0 0.0
  %3454 = vmatpush1.msra.mxu0 0.0
  %3455 = vmatprep.subr.mxu0 0.0
  %3456 = vmatpush1.msra.mxu0 0.0
  %3457 = vmatprep.subr.mxu0 0.0
  %3458 = vmatpush1.msra.mxu0 0.0
  %3459 = vmatprep.subr.mxu0 0.0
  %3460 = vmatpush1.msra.mxu0 0.0
  %3461 = vmatprep.subr.mxu0 0.0
  %3462 = vmatpush1.msra.mxu0 0.0
  %3463 = vmatprep.subr.mxu0 0.0
  %3464 = vmatpush1.msra.mxu0 0.0
  %3465 = vmatprep.subr.mxu0 0.0
  %3466 = vmatpush1.msra.mxu0 0.0
  %3467 = vmatprep.subr.mxu0 0.0
  %3468 = vmatpush1.msra.mxu0 0.0
  %3469 = vmatprep.subr.mxu0 0.0
  %3470 = vmatpush1.msra.mxu0 0.0
  %3471 = vmatprep.subr.mxu0 0.0
  %3472 = vmatpush1.msra.mxu0 0.0
  %3473 = vmatprep.subr.mxu0 0.0
  %3474 = vmatpush1.msra.mxu0 0.0
  %3475 = vmatprep.subr.mxu0 0.0
  %3476 = vmatpush1.msra.mxu0 0.0
  %3477 = vmatprep.subr.mxu0 0.0
  %3478 = vmatpush1.msra.mxu0 0.0
  %3479 = vmatprep.subr.mxu0 0.0
  %3480 = vmatpush1.msra.mxu0 0.0
  %3481 = vmatprep.subr.mxu0 0.0
  %3482 = vmatpush1.msra.mxu0 0.0
  %3483 = vmatprep.subr.mxu0 0.0
  %3484 = vmatpush1.msra.mxu0 0.0
  %3485 = vmatprep.subr.mxu0 0.0
  %3486 = vmatpush1.msra.mxu0 0.0
  %3487 = vmatprep.subr.mxu0 0.0
  %3488 = vmatpush1.msra.mxu0 0.0
  %3489 = vmatprep.subr.mxu0 0.0
  %3490 = vmatpush1.msra.mxu0 0.0
  %3491 = vmatprep.mubr.f32.mxu0 0.0
  %3492 = vmatmul.mubr.f32.gmra.mrb[0].mxu0 %v3404
  %v3493 = vpop.f32.mrb[0].mxu0
  %v3494 = vadd.f32 %v3401, %v3493
  %v3495 = vpop.f32.mrb[0].mxu0
  %3496 = vmatprep.mubr.f32.mxu0 0.0
  %3497 = vmatmul.mubr.f32.gmra.mrb[0].mxu0 %v3407
  %v3498 = vpop.f32.mrb[0].mxu0
  %v3499 = vadd.f32 %v3401, %v3498
  %v3500 = vpop.f32.mrb[0].mxu0
  %3501 = vmatprep.mubr.f32.mxu0 0.0
  %3502 = vmatmul.mubr.f32.gmra.mrb[0].mxu0 %v3410
  %v3503 = vpop.f32.mrb[0].mxu0
  %v3504 = vadd.f32 %v3401, %v3503
  %v3505 = vpop.f32.mrb[0].mxu0
  %3506 = vmatprep.mubr.f32.mxu0 0.0
  %3507 = vmatmul.mubr.f32.gmra.mrb[0].mxu0 %v3413
  %v3508 = vpop.f32.mrb[0].mxu0
  %v3509 = vadd.f32 %v3401, %v3508
  %v3510 = vpop.f32.mrb[0].mxu0
  %3511 = vmatprep.mubr.f32.mxu0 0.0
  %3512 = vmatmul.mubr.f32.gmra.mrb[0].mxu0 %v3416
  %v3513 = vpop.f32.mrb[0].mxu0
  %v3514 = vadd.f32 %v3401, %v3513
  %v3515 = vpop.f32.mrb[0].mxu0
  %3516 = vmatprep.mubr.f32.mxu0 0.0
  %3517 = vmatmul.mubr.f32.gmra.mrb[0].mxu0 %v3419
  %v3518 = vpop.f32.mrb[0].mxu0
  %v3519 = vadd.f32 %v3401, %v3518
  %v3520 = vpop.f32.mrb[0].mxu0
  %3521 = vmatprep.mubr.f32.mxu0 0.0
  %3522 = vmatmul.mubr.f32.gmra.mrb[0].mxu0 %v3422
  %v3523 = vpop.f32.mrb[0].mxu0
  %v3524 = vadd.f32 %v3401, %v3523
  %v3525 = vpop.f32.mrb[0].mxu0
  %3526 = vmatprep.mubr.f32.mxu0 0.0
  %3527 = vmatmul.mubr.f32.gmra.mrb[0].mxu0 %v3425
  %v3528 = vpop.f32.mrb[0].mxu0
  %v3529 = vadd.f32 %v3401, %v3528
  %v3530 = vpop.f32.mrb[0].mxu0
  %3531 = vdwg.mxu0
  %v3532 = vmul.f32 %v3494, %v3494
  %v3533 = vmul.f32 %v3499, %v3499
  %v3534 = vmul.f32 %v3504, %v3504
  %v3535 = vmul.f32 %v3509, %v3509
  %v3536 = vmul.f32 %v3514, %v3514
  %v3537 = vmul.f32 %v3519, %v3519
  %v3538 = vmul.f32 %v3524, %v3524
  %v3539 = vmul.f32 %v3529, %v3529
  %v3540 = vmul.f32 %v3494, %v3532
  %v3541 = vmul.f32 %v3499, %v3533
  %v3542 = vmul.f32 %v3504, %v3534
  %v3543 = vmul.f32 %v3509, %v3535
  %v3544 = vmul.f32 %v3514, %v3536
  %v3545 = vmul.f32 %v3519, %v3537
  %v3546 = vmul.f32 %v3524, %v3538
  %v3547 = vmul.f32 %v3529, %v3539
  %v3548 = vmul.f32 %v3540, 0.044715
  %v3549 = vmul.f32 %v3541, 0.044715
  %v3550 = vmul.f32 %v3542, 0.044715
  %v3551 = vmul.f32 %v3543, 0.044715
  %v3552 = vmul.f32 %v3544, 0.044715
  %v3553 = vmul.f32 %v3545, 0.044715
  %v3554 = vmul.f32 %v3546, 0.044715
  %v3555 = vmul.f32 %v3547, 0.044715
  %v3556 = vadd.f32 %v3494, %v3548
  %v3557 = vadd.f32 %v3499, %v3549
  %v3558 = vadd.f32 %v3504, %v3550
  %v3559 = vadd.f32 %v3509, %v3551
  %v3560 = vadd.f32 %v3514, %v3552
  %v3561 = vadd.f32 %v3519, %v3553
  %v3562 = vadd.f32 %v3524, %v3554
  %v3563 = vadd.f32 %v3529, %v3555
  %v3564 = vmul.f32 %v3556, 0.7978846
  %v3565 = vmul.f32 %v3557, 0.7978846
  %v3566 = vmul.f32 %v3558, 0.7978846
  %v3567 = vmul.f32 %v3559, 0.7978846
  %v3568 = vmul.f32 %v3560, 0.7978846
  %v3569 = vmul.f32 %v3561, 0.7978846
  %v3570 = vmul.f32 %v3562, 0.7978846
  %v3571 = vmul.f32 %v3563, 0.7978846
  %v3572 = vtanh.pop %v3564
  %v3573 = vtanh.pop %v3565
  %v3574 = vtanh.pop %v3566
  %v3575 = vtanh.pop %v3567
  %v3576 = vtanh.pop %v3568
  %v3577 = vtanh.pop %v3569
  %v3578 = vtanh.pop %v3570
  %v3579 = vtanh.pop %v3571
  %v3580 = vadd.f32 %v3572, 1.0
  %v3581 = vadd.f32 %v3573, 1.0
  %v3582 = vadd.f32 %v3574, 1.0
  %v3583 = vadd.f32 %v3575, 1.0
  %v3584 = vadd.f32 %v3576, 1.0
  %v3585 = vadd.f32 %v3577, 1.0
  %v3586 = vadd.f32 %v3578, 1.0
  %v3587 = vadd.f32 %v3579, 1.0
  %v3588 = vmul.f32 %v3580, 0.5
  %v3589 = vmul.f32 %v3581, 0.5
  %v3590 = vmul.f32 %v3582, 0.5
  %v3591 = vmul.f32 %v3583, 0.5
  %v3592 = vmul.f32 %v3584, 0.5
  %v3593 = vmul.f32 %v3585, 0.5
  %v3594 = vmul.f32 %v3586, 0.5
  %v3595 = vmul.f32 %v3587, 0.5
  %v3596 = vmul.f32 %v3494, %v3588
  %v3597 = vmul.f32 %v3499, %v3589
  %v3598 = vmul.f32 %v3504, %v3590
  %v3599 = vmul.f32 %v3509, %v3591
  %v3600 = vmul.f32 %v3514, %v3592
  %v3601 = vmul.f32 %v3519, %v3593
  %v3602 = vmul.f32 %v3524, %v3594
  %v3603 = vmul.f32 %v3529, %v3595
  %v3604 = vld [vmem:[%s10] sm:$0xff]
  %v3605 = vld [vmem:[%s10 + $0x8] sm:$0xff]
  %v3606 = vld [vmem:[%s10 + $0x10] sm:$0xff]
  %v3607 = vld [vmem:[%s10 + $0x18] sm:$0xff]
  %v3608 = vld [vmem:[%s10 + $0x20] sm:$0xff]
  %v3609 = vld [vmem:[%s10 + $0x28] sm:$0xff]
  %v3610 = vld [vmem:[%s10 + $0x30] sm:$0xff]
  %v3611 = vld [vmem:[%s10 + $0x38] sm:$0xff]
  %v3612 = vld [vmem:[%s10 + $0x40] sm:$0xff]
  %v3613 = vld [vmem:[%s10 + $0x48] sm:$0xff]
  %v3614 = vld [vmem:[%s10 + $0x50] sm:$0xff]
  %v3615 = vld [vmem:[%s10 + $0x58] sm:$0xff]
  %v3616 = vld [vmem:[%s10 + $0x60] sm:$0xff]
  %v3617 = vld [vmem:[%s10 + $0x68] sm:$0xff]
  %v3618 = vld [vmem:[%s10 + $0x70] sm:$0xff]
  %v3619 = vld [vmem:[%s10 + $0x78] sm:$0xff]
  %v3620 = vld [vmem:[%s11] sm:$0x1]
  %v3622 = vlaneseq
  %v3623 = vshrl.u32 %v3622, 7
  %v3624 = vsub.s32 0, %v3623
  %v3625 = vrot.slane %v3620, %v3624
  %3627 = vmatprep.subr.mxu0 0.0
  %3628 = vmatpush1.msra.mxu0 %v3604
  %3629 = vmatprep.subr.mxu0 0.0
  %3630 = vmatpush1.msra.mxu0 %v3605
  %3631 = vmatprep.subr.mxu0 0.0
  %3632 = vmatpush1.msra.mxu0 %v3606
  %3633 = vmatprep.subr.mxu0 0.0
  %3634 = vmatpush1.msra.mxu0 %v3607
  %3635 = vmatprep.subr.mxu0 0.0
  %3636 = vmatpush1.msra.mxu0 %v3608
  %3637 = vmatprep.subr.mxu0 0.0
  %3638 = vmatpush1.msra.mxu0 %v3609
  %3639 = vmatprep.subr.mxu0 0.0
  %3640 = vmatpush1.msra.mxu0 %v3610
  %3641 = vmatprep.subr.mxu0 0.0
  %3642 = vmatpush1.msra.mxu0 %v3611
  %3643 = vmatprep.subr.mxu0 0.0
  %3644 = vmatpush1.msra.mxu0 %v3612
  %3645 = vmatprep.subr.mxu0 0.0
  %3646 = vmatpush1.msra.mxu0 %v3613
  %3647 = vmatprep.subr.mxu0 0.0
  %3648 = vmatpush1.msra.mxu0 %v3614
  %3649 = vmatprep.subr.mxu0 0.0
  %3650 = vmatpush1.msra.mxu0 %v3615
  %3651 = vmatprep.subr.mxu0 0.0
  %3652 = vmatpush1.msra.mxu0 %v3616
  %3653 = vmatprep.subr.mxu0 0.0
  %3654 = vmatpush1.msra.mxu0 %v3617
  %3655 = vmatprep.subr.mxu0 0.0
  %3656 = vmatpush1.msra.mxu0 %v3618
  %3657 = vmatprep.subr.mxu0 0.0
  %3658 = vmatpush1.msra.mxu0 %v3619
  %3659 = vmatprep.subr.mxu0 0.0
  %3660 = vmatpush1.msra.mxu0 0.0
  %3661 = vmatprep.subr.mxu0 0.0
  %3662 = vmatpush1.msra.mxu0 0.0
  %3663 = vmatprep.subr.mxu0 0.0
  %3664 = vmatpush1.msra.mxu0 0.0
  %3665 = vmatprep.subr.mxu0 0.0
  %3666 = vmatpush1.msra.mxu0 0.0
  %3667 = vmatprep.subr.mxu0 0.0
  %3668 = vmatpush1.msra.mxu0 0.0
  %3669 = vmatprep.subr.mxu0 0.0
  %3670 = vmatpush1.msra.mxu0 0.0
  %3671 = vmatprep.subr.mxu0 0.0
  %3672 = vmatpush1.msra.mxu0 0.0
  %3673 = vmatprep.subr.mxu0 0.0
  %3674 = vmatpush1.msra.mxu0 0.0
  %3675 = vmatprep.subr.mxu0 0.0
  %3676 = vmatpush1.msra.mxu0 0.0
  %3677 = vmatprep.subr.mxu0 0.0
  %3678 = vmatpush1.msra.mxu0 0.0
  %3679 = vmatprep.subr.mxu0 0.0
  %3680 = vmatpush1.msra.mxu0 0.0
  %3681 = vmatprep.subr.mxu0 0.0
  %3682 = vmatpush1.msra.mxu0 0.0
  %3683 = vmatprep.subr.mxu0 0.0
  %3684 = vmatpush1.msra.mxu0 0.0
  %3685 = vmatprep.subr.mxu0 0.0
  %3686 = vmatpush1.msra.mxu0 0.0
  %3687 = vmatprep.subr.mxu0 0.0
  %3688 = vmatpush1.msra.mxu0 0.0
  %3689 = vmatprep.subr.mxu0 0.0
  %3690 = vmatpush1.msra.mxu0 0.0
  %3691 = vmatprep.mubr.f32.mxu0 0.0
  %3692 = vmatmul.mubr.f32.gmra.mrb[0].mxu0 %v3596
  %v3693 = vpop.f32.mrb[0].mxu0
  %v3694 = vadd.f32 %v3625, %v3693
  %v3695 = vpop.f32.mrb[0].mxu0
  %3696 = vmatprep.mubr.f32.mxu0 0.0
  %3697 = vmatmul.mubr.f32.gmra.mrb[0].mxu0 %v3597
  %v3698 = vpop.f32.mrb[0].mxu0
  %v3699 = vadd.f32 %v3625, %v3698
  %v3700 = vpop.f32.mrb[0].mxu0
  %3701 = vmatprep.mubr.f32.mxu0 0.0
  %3702 = vmatmul.mubr.f32.gmra.mrb[0].mxu0 %v3598
  %v3703 = vpop.f32.mrb[0].mxu0
  %v3704 = vadd.f32 %v3625, %v3703
  %v3705 = vpop.f32.mrb[0].mxu0
  %3706 = vmatprep.mubr.f32.mxu0 0.0
  %3707 = vmatmul.mubr.f32.gmra.mrb[0].mxu0 %v3599
  %v3708 = vpop.f32.mrb[0].mxu0
  %v3709 = vadd.f32 %v3625, %v3708
  %v3710 = vpop.f32.mrb[0].mxu0
  %3711 = vmatprep.mubr.f32.mxu0 0.0
  %3712 = vmatmul.mubr.f32.gmra.mrb[0].mxu0 %v3600
  %v3713 = vpop.f32.mrb[0].mxu0
  %v3714 = vadd.f32 %v3625, %v3713
  %v3715 = vpop.f32.mrb[0].mxu0
  %3716 = vmatprep.mubr.f32.mxu0 0.0
  %3717 = vmatmul.mubr.f32.gmra.mrb[0].mxu0 %v3601
  %v3718 = vpop.f32.mrb[0].mxu0
  %v3719 = vadd.f32 %v3625, %v3718
  %v3720 = vpop.f32.mrb[0].mxu0
  %3721 = vmatprep.mubr.f32.mxu0 0.0
  %3722 = vmatmul.mubr.f32.gmra.mrb[0].mxu0 %v3602
  %v3723 = vpop.f32.mrb[0].mxu0
  %v3724 = vadd.f32 %v3625, %v3723
  %v3725 = vpop.f32.mrb[0].mxu0
  %3726 = vmatprep.mubr.f32.mxu0 0.0
  %3727 = vmatmul.mubr.f32.gmra.mrb[0].mxu0 %v3603
  %v3728 = vpop.f32.mrb[0].mxu0
  %v3729 = vadd.f32 %v3625, %v3728
  %v3730 = vpop.f32.mrb[0].mxu0
  %3731 = vdwg.mxu0
  %v3732 = vld [vmem:[%s12] sm:$0x3]
  %v3733 = vadd.f32 %v3384, %v3694
  %v3734 = vadd.f32 %v3385, %v3699
  %v3735 = vadd.f32 %v3386, %v3704
  %v3736 = vadd.f32 %v3387, %v3709
  %v3737 = vadd.f32 %v3388, %v3714
  %v3738 = vadd.f32 %v3389, %v3719
  %v3739 = vadd.f32 %v3390, %v3724
  %v3740 = vadd.f32 %v3391, %v3729
  %v3741 = vsel %vm67, %v3733, 0.0
  %3742 = vadd.xlane.f32.xlu0 %v3741
  %v3743 = vpop.xlane.xlu0 %3742
  %v3744 = vsel %vm67, %v3734, 0.0
  %3745 = vadd.xlane.f32.xlu0 %v3744
  %v3746 = vpop.xlane.xlu0 %3745
  %v3747 = vsel %vm67, %v3735, 0.0
  %3748 = vadd.xlane.f32.xlu0 %v3747
  %v3749 = vpop.xlane.xlu0 %3748
  %v3750 = vsel %vm67, %v3736, 0.0
  %3751 = vadd.xlane.f32.xlu0 %v3750
  %v3752 = vpop.xlane.xlu0 %3751
  %v3753 = vsel %vm67, %v3737, 0.0
  %3754 = vadd.xlane.f32.xlu0 %v3753
  %v3755 = vpop.xlane.xlu0 %3754
  %v3756 = vsel %vm67, %v3738, 0.0
  %3757 = vadd.xlane.f32.xlu0 %v3756
  %v3758 = vpop.xlane.xlu0 %3757
  %v3759 = vsel %vm67, %v3739, 0.0
  %3760 = vadd.xlane.f32.xlu0 %v3759
  %v3761 = vpop.xlane.xlu0 %3760
  %v3762 = vsel %vm67, %v3740, 0.0
  %3763 = vadd.xlane.f32.xlu0 %v3762
  %v3764 = vpop.xlane.xlu0 %3763
  %v3765 = vmul.f32 %v3743, %v92
  %v3766 = vmul.f32 %v3746, %v92
  %v3767 = vmul.f32 %v3749, %v92
  %v3768 = vmul.f32 %v3752, %v92
  %v3769 = vmul.f32 %v3755, %v92
  %v3770 = vmul.f32 %v3758, %v92
  %v3771 = vmul.f32 %v3761, %v92
  %v3772 = vmul.f32 %v3764, %v92
  %v3773 = vsub.f32 %v3733, %v3765
  %v3774 = vsub.f32 %v3734, %v3766
  %v3775 = vsub.f32 %v3735, %v3767
  %v3776 = vsub.f32 %v3736, %v3768
  %v3777 = vsub.f32 %v3737, %v3769
  %v3778 = vsub.f32 %v3738, %v3770
  %v3779 = vsub.f32 %v3739, %v3771
  %v3780 = vsub.f32 %v3740, %v3772
  %v3781 = vmul.f32 %v3773, %v3773
  %v3782 = vmul.f32 %v3774, %v3774
  %v3783 = vmul.f32 %v3775, %v3775
  %v3784 = vmul.f32 %v3776, %v3776
  %v3785 = vmul.f32 %v3777, %v3777
  %v3786 = vmul.f32 %v3778, %v3778
  %v3787 = vmul.f32 %v3779, %v3779
  %v3788 = vmul.f32 %v3780, %v3780
  %v3789 = vsel %vm67, %v3781, 0.0
  %3790 = vadd.xlane.f32.xlu0 %v3789
  %v3791 = vpop.xlane.xlu0 %3790
  %v3792 = vsel %vm67, %v3782, 0.0
  %3793 = vadd.xlane.f32.xlu0 %v3792
  %v3794 = vpop.xlane.xlu0 %3793
  %v3795 = vsel %vm67, %v3783, 0.0
  %3796 = vadd.xlane.f32.xlu0 %v3795
  %v3797 = vpop.xlane.xlu0 %3796
  %v3798 = vsel %vm67, %v3784, 0.0
  %3799 = vadd.xlane.f32.xlu0 %v3798
  %v3800 = vpop.xlane.xlu0 %3799
  %v3801 = vsel %vm67, %v3785, 0.0
  %3802 = vadd.xlane.f32.xlu0 %v3801
  %v3803 = vpop.xlane.xlu0 %3802
  %v3804 = vsel %vm67, %v3786, 0.0
  %3805 = vadd.xlane.f32.xlu0 %v3804
  %v3806 = vpop.xlane.xlu0 %3805
  %v3807 = vsel %vm67, %v3787, 0.0
  %3808 = vadd.xlane.f32.xlu0 %v3807
  %v3809 = vpop.xlane.xlu0 %3808
  %v3810 = vsel %vm67, %v3788, 0.0
  %3811 = vadd.xlane.f32.xlu0 %v3810
  %v3812 = vpop.xlane.xlu0 %3811
  %v3813 = vmul.f32 %v3791, %v92
  %v3814 = vmul.f32 %v3794, %v92
  %v3815 = vmul.f32 %v3797, %v92
  %v3816 = vmul.f32 %v3800, %v92
  %v3817 = vmul.f32 %v3803, %v92
  %v3818 = vmul.f32 %v3806, %v92
  %v3819 = vmul.f32 %v3809, %v92
  %v3820 = vmul.f32 %v3812, %v92
  %v3821 = vadd.f32 %v3813, 1e-05
  %v3822 = vadd.f32 %v3814, 1e-05
  %v3823 = vadd.f32 %v3815, 1e-05
  %v3824 = vadd.f32 %v3816, 1e-05
  %v3825 = vadd.f32 %v3817, 1e-05
  %v3826 = vadd.f32 %v3818, 1e-05
  %v3827 = vadd.f32 %v3819, 1e-05
  %v3828 = vadd.f32 %v3820, 1e-05
  %v3829 = vrsqrt.pop %v3821
  %v3830 = vrsqrt.pop %v3822
  %v3831 = vrsqrt.pop %v3823
  %v3832 = vrsqrt.pop %v3824
  %v3833 = vrsqrt.pop %v3825
  %v3834 = vrsqrt.pop %v3826
  %v3835 = vrsqrt.pop %v3827
  %v3836 = vrsqrt.pop %v3828
  %v3837 = vmul.f32 %v3773, %v3829
  %v3838 = vmul.f32 %v3774, %v3830
  %v3839 = vmul.f32 %v3775, %v3831
  %v3840 = vmul.f32 %v3776, %v3832
  %v3841 = vmul.f32 %v3777, %v3833
  %v3842 = vmul.f32 %v3778, %v3834
  %v3843 = vmul.f32 %v3779, %v3835
  %v3844 = vmul.f32 %v3780, %v3836
  %v3845 = vlaneseq
  %v3846 = vshrl.u32 %v3845, 7
  %v3847 = vsub.s32 0, %v3846
  %v3848 = vrot.slane %v3732, %v3847
  %v3849 = vmul.f32 %v3837, %v3848
  %v3850 = vmul.f32 %v3838, %v3848
  %v3851 = vmul.f32 %v3839, %v3848
  %v3852 = vmul.f32 %v3840, %v3848
  %v3853 = vmul.f32 %v3841, %v3848
  %v3854 = vmul.f32 %v3842, %v3848
  %v3855 = vmul.f32 %v3843, %v3848
  %v3856 = vmul.f32 %v3844, %v3848
  %v3857 = vlaneseq
  %v3858 = vshrl.u32 %v3857, 7
  %v3859 = vsub.s32 1, %v3858
  %v3860 = vrot.slane %v3732, %v3859
  %v3861 = vadd.f32 %v3849, %v3860
  %v3862 = vadd.f32 %v3850, %v3860
  %v3863 = vadd.f32 %v3851, %v3860
  %v3864 = vadd.f32 %v3852, %v3860
  %v3865 = vadd.f32 %v3853, %v3860
  %v3866 = vadd.f32 %v3854, %v3860
  %v3867 = vadd.f32 %v3855, %v3860
  %v3868 = vadd.f32 %v3856, %v3860
  %s3869 = scalar_lea.vmem %s3, 32
  %v3870 = vld [vmem:[%s3869] sm:$0xff]
  %v3871 = vld [vmem:[%s3869 + $0x8] sm:$0xff]
  %v3872 = vld [vmem:[%s3869 + $0x10] sm:$0xff]
  %v3873 = vld [vmem:[%s3869 + $0x18] sm:$0xff]
  %s3874 = scalar_lea.vmem %s4, 1
  %v3875 = vld [vmem:[%s3874] sm:$0x1]
  %v3877 = vlaneseq
  %v3878 = vshrl.u32 %v3877, 7
  %v3879 = vsub.s32 0, %v3878
  %v3880 = vrot.slane %v3875, %v3879
  %v3883 = vsel %vm67, %v3861, 0
  %v3886 = vsel %vm67, %v3862, 0
  %v3889 = vsel %vm67, %v3863, 0
  %v3892 = vsel %vm67, %v3864, 0
  %v3895 = vsel %vm67, %v3865, 0
  %v3898 = vsel %vm67, %v3866, 0
  %v3901 = vsel %vm67, %v3867, 0
  %v3904 = vsel %vm67, %v3868, 0
  %3906 = vmatprep.subr.mxu0 0.0
  %3907 = vmatpush1.msra.mxu0 %v3870
  %3908 = vmatprep.subr.mxu0 0.0
  %3909 = vmatpush1.msra.mxu0 %v3871
  %3910 = vmatprep.subr.mxu0 0.0
  %3911 = vmatpush1.msra.mxu0 %v3872
  %3912 = vmatprep.subr.mxu0 0.0
  %3913 = vmatpush1.msra.mxu0 %v3873
  %3914 = vmatprep.subr.mxu0 0.0
  %3915 = vmatpush1.msra.mxu0 0.0
  %3916 = vmatprep.subr.mxu0 0.0
  %3917 = vmatpush1.msra.mxu0 0.0
  %3918 = vmatprep.subr.mxu0 0.0
  %3919 = vmatpush1.msra.mxu0 0.0
  %3920 = vmatprep.subr.mxu0 0.0
  %3921 = vmatpush1.msra.mxu0 0.0
  %3922 = vmatprep.subr.mxu0 0.0
  %3923 = vmatpush1.msra.mxu0 0.0
  %3924 = vmatprep.subr.mxu0 0.0
  %3925 = vmatpush1.msra.mxu0 0.0
  %3926 = vmatprep.subr.mxu0 0.0
  %3927 = vmatpush1.msra.mxu0 0.0
  %3928 = vmatprep.subr.mxu0 0.0
  %3929 = vmatpush1.msra.mxu0 0.0
  %3930 = vmatprep.subr.mxu0 0.0
  %3931 = vmatpush1.msra.mxu0 0.0
  %3932 = vmatprep.subr.mxu0 0.0
  %3933 = vmatpush1.msra.mxu0 0.0
  %3934 = vmatprep.subr.mxu0 0.0
  %3935 = vmatpush1.msra.mxu0 0.0
  %3936 = vmatprep.subr.mxu0 0.0
  %3937 = vmatpush1.msra.mxu0 0.0
  %3938 = vmatprep.subr.mxu0 0.0
  %3939 = vmatpush1.msra.mxu0 0.0
  %3940 = vmatprep.subr.mxu0 0.0
  %3941 = vmatpush1.msra.mxu0 0.0
  %3942 = vmatprep.subr.mxu0 0.0
  %3943 = vmatpush1.msra.mxu0 0.0
  %3944 = vmatprep.subr.mxu0 0.0
  %3945 = vmatpush1.msra.mxu0 0.0
  %3946 = vmatprep.subr.mxu0 0.0
  %3947 = vmatpush1.msra.mxu0 0.0
  %3948 = vmatprep.subr.mxu0 0.0
  %3949 = vmatpush1.msra.mxu0 0.0
  %3950 = vmatprep.subr.mxu0 0.0
  %3951 = vmatpush1.msra.mxu0 0.0
  %3952 = vmatprep.subr.mxu0 0.0
  %3953 = vmatpush1.msra.mxu0 0.0
  %3954 = vmatprep.subr.mxu0 0.0
  %3955 = vmatpush1.msra.mxu0 0.0
  %3956 = vmatprep.subr.mxu0 0.0
  %3957 = vmatpush1.msra.mxu0 0.0
  %3958 = vmatprep.subr.mxu0 0.0
  %3959 = vmatpush1.msra.mxu0 0.0
  %3960 = vmatprep.subr.mxu0 0.0
  %3961 = vmatpush1.msra.mxu0 0.0
  %3962 = vmatprep.subr.mxu0 0.0
  %3963 = vmatpush1.msra.mxu0 0.0
  %3964 = vmatprep.subr.mxu0 0.0
  %3965 = vmatpush1.msra.mxu0 0.0
  %3966 = vmatprep.subr.mxu0 0.0
  %3967 = vmatpush1.msra.mxu0 0.0
  %3968 = vmatprep.subr.mxu0 0.0
  %3969 = vmatpush1.msra.mxu0 0.0
  %3970 = vmatprep.mubr.f32.mxu0 0.0
  %3971 = vmatmul.mubr.f32.gmra.mrb[0].mxu0 %v3883
  %v3972 = vpop.f32.mrb[0].mxu0
  %v3973 = vadd.f32 %v3880, %v3972
  %v3974 = vpop.f32.mrb[0].mxu0
  %3975 = vmatprep.mubr.f32.mxu0 0.0
  %3976 = vmatmul.mubr.f32.gmra.mrb[0].mxu0 %v3886
  %v3977 = vpop.f32.mrb[0].mxu0
  %v3978 = vadd.f32 %v3880, %v3977
  %v3979 = vpop.f32.mrb[0].mxu0
  %3980 = vmatprep.mubr.f32.mxu0 0.0
  %3981 = vmatmul.mubr.f32.gmra.mrb[0].mxu0 %v3889
  %v3982 = vpop.f32.mrb[0].mxu0
  %v3983 = vadd.f32 %v3880, %v3982
  %v3984 = vpop.f32.mrb[0].mxu0
  %3985 = vmatprep.mubr.f32.mxu0 0.0
  %3986 = vmatmul.mubr.f32.gmra.mrb[0].mxu0 %v3892
  %v3987 = vpop.f32.mrb[0].mxu0
  %v3988 = vadd.f32 %v3880, %v3987
  %v3989 = vpop.f32.mrb[0].mxu0
  %3990 = vmatprep.mubr.f32.mxu0 0.0
  %3991 = vmatmul.mubr.f32.gmra.mrb[0].mxu0 %v3895
  %v3992 = vpop.f32.mrb[0].mxu0
  %v3993 = vadd.f32 %v3880, %v3992
  %v3994 = vpop.f32.mrb[0].mxu0
  %3995 = vmatprep.mubr.f32.mxu0 0.0
  %3996 = vmatmul.mubr.f32.gmra.mrb[0].mxu0 %v3898
  %v3997 = vpop.f32.mrb[0].mxu0
  %v3998 = vadd.f32 %v3880, %v3997
  %v3999 = vpop.f32.mrb[0].mxu0
  %4000 = vmatprep.mubr.f32.mxu0 0.0
  %4001 = vmatmul.mubr.f32.gmra.mrb[0].mxu0 %v3901
  %v4002 = vpop.f32.mrb[0].mxu0
  %v4003 = vadd.f32 %v3880, %v4002
  %v4004 = vpop.f32.mrb[0].mxu0
  %4005 = vmatprep.mubr.f32.mxu0 0.0
  %4006 = vmatmul.mubr.f32.gmra.mrb[0].mxu0 %v3904
  %v4007 = vpop.f32.mrb[0].mxu0
  %v4008 = vadd.f32 %v3880, %v4007
  %v4009 = vpop.f32.mrb[0].mxu0
  %4010 = vdwg.mxu0
  %4012 = vrot.lane.b32.xlu0 %v3973, 96
  %v4013 = vpop.permute.xlu0 %4012
  %v4014 = vsel %vm364, %v3973, 0
  %v4016 = vsel %vm364, %v4013, 0
  %4018 = vmatprep.subr.mxu0 0.0
  %4019 = vmatpush1.xpose.msra.mxu0 %v4016
  %4020 = vmatprep.subr.mxu0 0.0
  %4021 = vmatpush1.xpose.msra.mxu0 0.0
  %4022 = vmatprep.subr.mxu0 0.0
  %4023 = vmatpush1.xpose.msra.mxu0 0.0
  %4024 = vmatprep.subr.mxu0 0.0
  %4025 = vmatpush1.xpose.msra.mxu0 0.0
  %4026 = vmatprep.subr.mxu0 0.0
  %4027 = vmatpush1.xpose.msra.mxu0 0.0
  %4028 = vmatprep.subr.mxu0 0.0
  %4029 = vmatpush1.xpose.msra.mxu0 0.0
  %4030 = vmatprep.subr.mxu0 0.0
  %4031 = vmatpush1.xpose.msra.mxu0 0.0
  %4032 = vmatprep.subr.mxu0 0.0
  %4033 = vmatpush1.xpose.msra.mxu0 0.0
  %4034 = vmatprep.subr.mxu0 0.0
  %4035 = vmatpush1.xpose.msra.mxu0 0.0
  %4036 = vmatprep.subr.mxu0 0.0
  %4037 = vmatpush1.xpose.msra.mxu0 0.0
  %4038 = vmatprep.subr.mxu0 0.0
  %4039 = vmatpush1.xpose.msra.mxu0 0.0
  %4040 = vmatprep.subr.mxu0 0.0
  %4041 = vmatpush1.xpose.msra.mxu0 0.0
  %4042 = vmatprep.subr.mxu0 0.0
  %4043 = vmatpush1.xpose.msra.mxu0 0.0
  %4044 = vmatprep.subr.mxu0 0.0
  %4045 = vmatpush1.xpose.msra.mxu0 0.0
  %4046 = vmatprep.subr.mxu0 0.0
  %4047 = vmatpush1.xpose.msra.mxu0 0.0
  %4048 = vmatprep.subr.mxu0 0.0
  %4049 = vmatpush1.xpose.msra.mxu0 0.0
  %4050 = vmatprep.subr.mxu0 0.0
  %4051 = vmatpush1.xpose.msra.mxu0 0.0
  %4052 = vmatprep.subr.mxu0 0.0
  %4053 = vmatpush1.xpose.msra.mxu0 0.0
  %4054 = vmatprep.subr.mxu0 0.0
  %4055 = vmatpush1.xpose.msra.mxu0 0.0
  %4056 = vmatprep.subr.mxu0 0.0
  %4057 = vmatpush1.xpose.msra.mxu0 0.0
  %4058 = vmatprep.subr.mxu0 0.0
  %4059 = vmatpush1.xpose.msra.mxu0 0.0
  %4060 = vmatprep.subr.mxu0 0.0
  %4061 = vmatpush1.xpose.msra.mxu0 0.0
  %4062 = vmatprep.subr.mxu0 0.0
  %4063 = vmatpush1.xpose.msra.mxu0 0.0
  %4064 = vmatprep.subr.mxu0 0.0
  %4065 = vmatpush1.xpose.msra.mxu0 0.0
  %4066 = vmatprep.subr.mxu0 0.0
  %4067 = vmatpush1.xpose.msra.mxu0 0.0
  %4068 = vmatprep.subr.mxu0 0.0
  %4069 = vmatpush1.xpose.msra.mxu0 0.0
  %4070 = vmatprep.subr.mxu0 0.0
  %4071 = vmatpush1.xpose.msra.mxu0 0.0
  %4072 = vmatprep.subr.mxu0 0.0
  %4073 = vmatpush1.xpose.msra.mxu0 0.0
  %4074 = vmatprep.subr.mxu0 0.0
  %4075 = vmatpush1.xpose.msra.mxu0 0.0
  %4076 = vmatprep.subr.mxu0 0.0
  %4077 = vmatpush1.xpose.msra.mxu0 0.0
  %4078 = vmatprep.subr.mxu0 0.0
  %4079 = vmatpush1.xpose.msra.mxu0 0.0
  %4080 = vmatprep.subr.mxu0 0.0
  %4081 = vmatpush1.xpose.msra.mxu0 0.0
  %4082 = vmatprep.mubr.f32.mxu0 0.0
  %4083 = vmatmul.mubr.f32.gmra.mrb[0].mxu0 %v4014
  %v4084 = vpop.f32.mrb[0].mxu0
  %v4085 = vadd.f32 0.0, %v4084
  %v4086 = vpop.f32.mrb[0].mxu0
  %4087 = vdwg.mxu0
  %4089 = vrot.lane.b32.xlu0 %v3978, 96
  %v4090 = vpop.permute.xlu0 %4089
  %v4091 = vsel %vm364, %v3978, 0
  %v4093 = vsel %vm364, %v4090, 0
  %4095 = vmatprep.subr.mxu0 0.0
  %4096 = vmatpush1.xpose.msra.mxu0 %v4093
  %4097 = vmatprep.subr.mxu0 0.0
  %4098 = vmatpush1.xpose.msra.mxu0 0.0
  %4099 = vmatprep.subr.mxu0 0.0
  %4100 = vmatpush1.xpose.msra.mxu0 0.0
  %4101 = vmatprep.subr.mxu0 0.0
  %4102 = vmatpush1.xpose.msra.mxu0 0.0
  %4103 = vmatprep.subr.mxu0 0.0
  %4104 = vmatpush1.xpose.msra.mxu0 0.0
  %4105 = vmatprep.subr.mxu0 0.0
  %4106 = vmatpush1.xpose.msra.mxu0 0.0
  %4107 = vmatprep.subr.mxu0 0.0
  %4108 = vmatpush1.xpose.msra.mxu0 0.0
  %4109 = vmatprep.subr.mxu0 0.0
  %4110 = vmatpush1.xpose.msra.mxu0 0.0
  %4111 = vmatprep.subr.mxu0 0.0
  %4112 = vmatpush1.xpose.msra.mxu0 0.0
  %4113 = vmatprep.subr.mxu0 0.0
  %4114 = vmatpush1.xpose.msra.mxu0 0.0
  %4115 = vmatprep.subr.mxu0 0.0
  %4116 = vmatpush1.xpose.msra.mxu0 0.0
  %4117 = vmatprep.subr.mxu0 0.0
  %4118 = vmatpush1.xpose.msra.mxu0 0.0
  %4119 = vmatprep.subr.mxu0 0.0
  %4120 = vmatpush1.xpose.msra.mxu0 0.0
  %4121 = vmatprep.subr.mxu0 0.0
  %4122 = vmatpush1.xpose.msra.mxu0 0.0
  %4123 = vmatprep.subr.mxu0 0.0
  %4124 = vmatpush1.xpose.msra.mxu0 0.0
  %4125 = vmatprep.subr.mxu0 0.0
  %4126 = vmatpush1.xpose.msra.mxu0 0.0
  %4127 = vmatprep.subr.mxu0 0.0
  %4128 = vmatpush1.xpose.msra.mxu0 0.0
  %4129 = vmatprep.subr.mxu0 0.0
  %4130 = vmatpush1.xpose.msra.mxu0 0.0
  %4131 = vmatprep.subr.mxu0 0.0
  %4132 = vmatpush1.xpose.msra.mxu0 0.0
  %4133 = vmatprep.subr.mxu0 0.0
  %4134 = vmatpush1.xpose.msra.mxu0 0.0
  %4135 = vmatprep.subr.mxu0 0.0
  %4136 = vmatpush1.xpose.msra.mxu0 0.0
  %4137 = vmatprep.subr.mxu0 0.0
  %4138 = vmatpush1.xpose.msra.mxu0 0.0
  %4139 = vmatprep.subr.mxu0 0.0
  %4140 = vmatpush1.xpose.msra.mxu0 0.0
  %4141 = vmatprep.subr.mxu0 0.0
  %4142 = vmatpush1.xpose.msra.mxu0 0.0
  %4143 = vmatprep.subr.mxu0 0.0
  %4144 = vmatpush1.xpose.msra.mxu0 0.0
  %4145 = vmatprep.subr.mxu0 0.0
  %4146 = vmatpush1.xpose.msra.mxu0 0.0
  %4147 = vmatprep.subr.mxu0 0.0
  %4148 = vmatpush1.xpose.msra.mxu0 0.0
  %4149 = vmatprep.subr.mxu0 0.0
  %4150 = vmatpush1.xpose.msra.mxu0 0.0
  %4151 = vmatprep.subr.mxu0 0.0
  %4152 = vmatpush1.xpose.msra.mxu0 0.0
  %4153 = vmatprep.subr.mxu0 0.0
  %4154 = vmatpush1.xpose.msra.mxu0 0.0
  %4155 = vmatprep.subr.mxu0 0.0
  %4156 = vmatpush1.xpose.msra.mxu0 0.0
  %4157 = vmatprep.subr.mxu0 0.0
  %4158 = vmatpush1.xpose.msra.mxu0 0.0
  %4159 = vmatprep.mubr.f32.mxu0 0.0
  %4160 = vmatmul.mubr.f32.gmra.mrb[0].mxu0 %v4091
  %v4161 = vpop.f32.mrb[0].mxu0
  %v4162 = vadd.f32 0.0, %v4161
  %v4163 = vpop.f32.mrb[0].mxu0
  %4164 = vdwg.mxu0
  %4166 = vrot.lane.b32.xlu0 %v3983, 96
  %v4167 = vpop.permute.xlu0 %4166
  %v4168 = vsel %vm364, %v3983, 0
  %v4170 = vsel %vm364, %v4167, 0
  %4172 = vmatprep.subr.mxu0 0.0
  %4173 = vmatpush1.xpose.msra.mxu0 %v4170
  %4174 = vmatprep.subr.mxu0 0.0
  %4175 = vmatpush1.xpose.msra.mxu0 0.0
  %4176 = vmatprep.subr.mxu0 0.0
  %4177 = vmatpush1.xpose.msra.mxu0 0.0
  %4178 = vmatprep.subr.mxu0 0.0
  %4179 = vmatpush1.xpose.msra.mxu0 0.0
  %4180 = vmatprep.subr.mxu0 0.0
  %4181 = vmatpush1.xpose.msra.mxu0 0.0
  %4182 = vmatprep.subr.mxu0 0.0
  %4183 = vmatpush1.xpose.msra.mxu0 0.0
  %4184 = vmatprep.subr.mxu0 0.0
  %4185 = vmatpush1.xpose.msra.mxu0 0.0
  %4186 = vmatprep.subr.mxu0 0.0
  %4187 = vmatpush1.xpose.msra.mxu0 0.0
  %4188 = vmatprep.subr.mxu0 0.0
  %4189 = vmatpush1.xpose.msra.mxu0 0.0
  %4190 = vmatprep.subr.mxu0 0.0
  %4191 = vmatpush1.xpose.msra.mxu0 0.0
  %4192 = vmatprep.subr.mxu0 0.0
  %4193 = vmatpush1.xpose.msra.mxu0 0.0
  %4194 = vmatprep.subr.mxu0 0.0
  %4195 = vmatpush1.xpose.msra.mxu0 0.0
  %4196 = vmatprep.subr.mxu0 0.0
  %4197 = vmatpush1.xpose.msra.mxu0 0.0
  %4198 = vmatprep.subr.mxu0 0.0
  %4199 = vmatpush1.xpose.msra.mxu0 0.0
  %4200 = vmatprep.subr.mxu0 0.0
  %4201 = vmatpush1.xpose.msra.mxu0 0.0
  %4202 = vmatprep.subr.mxu0 0.0
  %4203 = vmatpush1.xpose.msra.mxu0 0.0
  %4204 = vmatprep.subr.mxu0 0.0
  %4205 = vmatpush1.xpose.msra.mxu0 0.0
  %4206 = vmatprep.subr.mxu0 0.0
  %4207 = vmatpush1.xpose.msra.mxu0 0.0
  %4208 = vmatprep.subr.mxu0 0.0
  %4209 = vmatpush1.xpose.msra.mxu0 0.0
  %4210 = vmatprep.subr.mxu0 0.0
  %4211 = vmatpush1.xpose.msra.mxu0 0.0
  %4212 = vmatprep.subr.mxu0 0.0
  %4213 = vmatpush1.xpose.msra.mxu0 0.0
  %4214 = vmatprep.subr.mxu0 0.0
  %4215 = vmatpush1.xpose.msra.mxu0 0.0
  %4216 = vmatprep.subr.mxu0 0.0
  %4217 = vmatpush1.xpose.msra.mxu0 0.0
  %4218 = vmatprep.subr.mxu0 0.0
  %4219 = vmatpush1.xpose.msra.mxu0 0.0
  %4220 = vmatprep.subr.mxu0 0.0
  %4221 = vmatpush1.xpose.msra.mxu0 0.0
  %4222 = vmatprep.subr.mxu0 0.0
  %4223 = vmatpush1.xpose.msra.mxu0 0.0
  %4224 = vmatprep.subr.mxu0 0.0
  %4225 = vmatpush1.xpose.msra.mxu0 0.0
  %4226 = vmatprep.subr.mxu0 0.0
  %4227 = vmatpush1.xpose.msra.mxu0 0.0
  %4228 = vmatprep.subr.mxu0 0.0
  %4229 = vmatpush1.xpose.msra.mxu0 0.0
  %4230 = vmatprep.subr.mxu0 0.0
  %4231 = vmatpush1.xpose.msra.mxu0 0.0
  %4232 = vmatprep.subr.mxu0 0.0
  %4233 = vmatpush1.xpose.msra.mxu0 0.0
  %4234 = vmatprep.subr.mxu0 0.0
  %4235 = vmatpush1.xpose.msra.mxu0 0.0
  %4236 = vmatprep.mubr.f32.mxu0 0.0
  %4237 = vmatmul.mubr.f32.gmra.mrb[0].mxu0 %v4168
  %v4238 = vpop.f32.mrb[0].mxu0
  %v4239 = vadd.f32 0.0, %v4238
  %v4240 = vpop.f32.mrb[0].mxu0
  %4241 = vdwg.mxu0
  %4243 = vrot.lane.b32.xlu0 %v3988, 96
  %v4244 = vpop.permute.xlu0 %4243
  %v4245 = vsel %vm364, %v3988, 0
  %v4247 = vsel %vm364, %v4244, 0
  %4249 = vmatprep.subr.mxu0 0.0
  %4250 = vmatpush1.xpose.msra.mxu0 %v4247
  %4251 = vmatprep.subr.mxu0 0.0
  %4252 = vmatpush1.xpose.msra.mxu0 0.0
  %4253 = vmatprep.subr.mxu0 0.0
  %4254 = vmatpush1.xpose.msra.mxu0 0.0
  %4255 = vmatprep.subr.mxu0 0.0
  %4256 = vmatpush1.xpose.msra.mxu0 0.0
  %4257 = vmatprep.subr.mxu0 0.0
  %4258 = vmatpush1.xpose.msra.mxu0 0.0
  %4259 = vmatprep.subr.mxu0 0.0
  %4260 = vmatpush1.xpose.msra.mxu0 0.0
  %4261 = vmatprep.subr.mxu0 0.0
  %4262 = vmatpush1.xpose.msra.mxu0 0.0
  %4263 = vmatprep.subr.mxu0 0.0
  %4264 = vmatpush1.xpose.msra.mxu0 0.0
  %4265 = vmatprep.subr.mxu0 0.0
  %4266 = vmatpush1.xpose.msra.mxu0 0.0
  %4267 = vmatprep.subr.mxu0 0.0
  %4268 = vmatpush1.xpose.msra.mxu0 0.0
  %4269 = vmatprep.subr.mxu0 0.0
  %4270 = vmatpush1.xpose.msra.mxu0 0.0
  %4271 = vmatprep.subr.mxu0 0.0
  %4272 = vmatpush1.xpose.msra.mxu0 0.0
  %4273 = vmatprep.subr.mxu0 0.0
  %4274 = vmatpush1.xpose.msra.mxu0 0.0
  %4275 = vmatprep.subr.mxu0 0.0
  %4276 = vmatpush1.xpose.msra.mxu0 0.0
  %4277 = vmatprep.subr.mxu0 0.0
  %4278 = vmatpush1.xpose.msra.mxu0 0.0
  %4279 = vmatprep.subr.mxu0 0.0
  %4280 = vmatpush1.xpose.msra.mxu0 0.0
  %4281 = vmatprep.subr.mxu0 0.0
  %4282 = vmatpush1.xpose.msra.mxu0 0.0
  %4283 = vmatprep.subr.mxu0 0.0
  %4284 = vmatpush1.xpose.msra.mxu0 0.0
  %4285 = vmatprep.subr.mxu0 0.0
  %4286 = vmatpush1.xpose.msra.mxu0 0.0
  %4287 = vmatprep.subr.mxu0 0.0
  %4288 = vmatpush1.xpose.msra.mxu0 0.0
  %4289 = vmatprep.subr.mxu0 0.0
  %4290 = vmatpush1.xpose.msra.mxu0 0.0
  %4291 = vmatprep.subr.mxu0 0.0
  %4292 = vmatpush1.xpose.msra.mxu0 0.0
  %4293 = vmatprep.subr.mxu0 0.0
  %4294 = vmatpush1.xpose.msra.mxu0 0.0
  %4295 = vmatprep.subr.mxu0 0.0
  %4296 = vmatpush1.xpose.msra.mxu0 0.0
  %4297 = vmatprep.subr.mxu0 0.0
  %4298 = vmatpush1.xpose.msra.mxu0 0.0
  %4299 = vmatprep.subr.mxu0 0.0
  %4300 = vmatpush1.xpose.msra.mxu0 0.0
  %4301 = vmatprep.subr.mxu0 0.0
  %4302 = vmatpush1.xpose.msra.mxu0 0.0
  %4303 = vmatprep.subr.mxu0 0.0
  %4304 = vmatpush1.xpose.msra.mxu0 0.0
  %4305 = vmatprep.subr.mxu0 0.0
  %4306 = vmatpush1.xpose.msra.mxu0 0.0
  %4307 = vmatprep.subr.mxu0 0.0
  %4308 = vmatpush1.xpose.msra.mxu0 0.0
  %4309 = vmatprep.subr.mxu0 0.0
  %4310 = vmatpush1.xpose.msra.mxu0 0.0
  %4311 = vmatprep.subr.mxu0 0.0
  %4312 = vmatpush1.xpose.msra.mxu0 0.0
  %4313 = vmatprep.mubr.f32.mxu0 0.0
  %4314 = vmatmul.mubr.f32.gmra.mrb[0].mxu0 %v4245
  %v4315 = vpop.f32.mrb[0].mxu0
  %v4316 = vadd.f32 0.0, %v4315
  %v4317 = vpop.f32.mrb[0].mxu0
  %4318 = vdwg.mxu0
  %4320 = vrot.lane.b32.xlu0 %v3993, 96
  %v4321 = vpop.permute.xlu0 %4320
  %v4322 = vsel %vm364, %v3993, 0
  %v4324 = vsel %vm364, %v4321, 0
  %4326 = vmatprep.subr.mxu0 0.0
  %4327 = vmatpush1.xpose.msra.mxu0 %v4324
  %4328 = vmatprep.subr.mxu0 0.0
  %4329 = vmatpush1.xpose.msra.mxu0 0.0
  %4330 = vmatprep.subr.mxu0 0.0
  %4331 = vmatpush1.xpose.msra.mxu0 0.0
  %4332 = vmatprep.subr.mxu0 0.0
  %4333 = vmatpush1.xpose.msra.mxu0 0.0
  %4334 = vmatprep.subr.mxu0 0.0
  %4335 = vmatpush1.xpose.msra.mxu0 0.0
  %4336 = vmatprep.subr.mxu0 0.0
  %4337 = vmatpush1.xpose.msra.mxu0 0.0
  %4338 = vmatprep.subr.mxu0 0.0
  %4339 = vmatpush1.xpose.msra.mxu0 0.0
  %4340 = vmatprep.subr.mxu0 0.0
  %4341 = vmatpush1.xpose.msra.mxu0 0.0
  %4342 = vmatprep.subr.mxu0 0.0
  %4343 = vmatpush1.xpose.msra.mxu0 0.0
  %4344 = vmatprep.subr.mxu0 0.0
  %4345 = vmatpush1.xpose.msra.mxu0 0.0
  %4346 = vmatprep.subr.mxu0 0.0
  %4347 = vmatpush1.xpose.msra.mxu0 0.0
  %4348 = vmatprep.subr.mxu0 0.0
  %4349 = vmatpush1.xpose.msra.mxu0 0.0
  %4350 = vmatprep.subr.mxu0 0.0
  %4351 = vmatpush1.xpose.msra.mxu0 0.0
  %4352 = vmatprep.subr.mxu0 0.0
  %4353 = vmatpush1.xpose.msra.mxu0 0.0
  %4354 = vmatprep.subr.mxu0 0.0
  %4355 = vmatpush1.xpose.msra.mxu0 0.0
  %4356 = vmatprep.subr.mxu0 0.0
  %4357 = vmatpush1.xpose.msra.mxu0 0.0
  %4358 = vmatprep.subr.mxu0 0.0
  %4359 = vmatpush1.xpose.msra.mxu0 0.0
  %4360 = vmatprep.subr.mxu0 0.0
  %4361 = vmatpush1.xpose.msra.mxu0 0.0
  %4362 = vmatprep.subr.mxu0 0.0
  %4363 = vmatpush1.xpose.msra.mxu0 0.0
  %4364 = vmatprep.subr.mxu0 0.0
  %4365 = vmatpush1.xpose.msra.mxu0 0.0
  %4366 = vmatprep.subr.mxu0 0.0
  %4367 = vmatpush1.xpose.msra.mxu0 0.0
  %4368 = vmatprep.subr.mxu0 0.0
  %4369 = vmatpush1.xpose.msra.mxu0 0.0
  %4370 = vmatprep.subr.mxu0 0.0
  %4371 = vmatpush1.xpose.msra.mxu0 0.0
  %4372 = vmatprep.subr.mxu0 0.0
  %4373 = vmatpush1.xpose.msra.mxu0 0.0
  %4374 = vmatprep.subr.mxu0 0.0
  %4375 = vmatpush1.xpose.msra.mxu0 0.0
  %4376 = vmatprep.subr.mxu0 0.0
  %4377 = vmatpush1.xpose.msra.mxu0 0.0
  %4378 = vmatprep.subr.mxu0 0.0
  %4379 = vmatpush1.xpose.msra.mxu0 0.0
  %4380 = vmatprep.subr.mxu0 0.0
  %4381 = vmatpush1.xpose.msra.mxu0 0.0
  %4382 = vmatprep.subr.mxu0 0.0
  %4383 = vmatpush1.xpose.msra.mxu0 0.0
  %4384 = vmatprep.subr.mxu0 0.0
  %4385 = vmatpush1.xpose.msra.mxu0 0.0
  %4386 = vmatprep.subr.mxu0 0.0
  %4387 = vmatpush1.xpose.msra.mxu0 0.0
  %4388 = vmatprep.subr.mxu0 0.0
  %4389 = vmatpush1.xpose.msra.mxu0 0.0
  %4390 = vmatprep.mubr.f32.mxu0 0.0
  %4391 = vmatmul.mubr.f32.gmra.mrb[0].mxu0 %v4322
  %v4392 = vpop.f32.mrb[0].mxu0
  %v4393 = vadd.f32 0.0, %v4392
  %v4394 = vpop.f32.mrb[0].mxu0
  %4395 = vdwg.mxu0
  %4397 = vrot.lane.b32.xlu0 %v3998, 96
  %v4398 = vpop.permute.xlu0 %4397
  %v4399 = vsel %vm364, %v3998, 0
  %v4401 = vsel %vm364, %v4398, 0
  %4403 = vmatprep.subr.mxu0 0.0
  %4404 = vmatpush1.xpose.msra.mxu0 %v4401
  %4405 = vmatprep.subr.mxu0 0.0
  %4406 = vmatpush1.xpose.msra.mxu0 0.0
  %4407 = vmatprep.subr.mxu0 0.0
  %4408 = vmatpush1.xpose.msra.mxu0 0.0
  %4409 = vmatprep.subr.mxu0 0.0
  %4410 = vmatpush1.xpose.msra.mxu0 0.0
  %4411 = vmatprep.subr.mxu0 0.0
  %4412 = vmatpush1.xpose.msra.mxu0 0.0
  %4413 = vmatprep.subr.mxu0 0.0
  %4414 = vmatpush1.xpose.msra.mxu0 0.0
  %4415 = vmatprep.subr.mxu0 0.0
  %4416 = vmatpush1.xpose.msra.mxu0 0.0
  %4417 = vmatprep.subr.mxu0 0.0
  %4418 = vmatpush1.xpose.msra.mxu0 0.0
  %4419 = vmatprep.subr.mxu0 0.0
  %4420 = vmatpush1.xpose.msra.mxu0 0.0
  %4421 = vmatprep.subr.mxu0 0.0
  %4422 = vmatpush1.xpose.msra.mxu0 0.0
  %4423 = vmatprep.subr.mxu0 0.0
  %4424 = vmatpush1.xpose.msra.mxu0 0.0
  %4425 = vmatprep.subr.mxu0 0.0
  %4426 = vmatpush1.xpose.msra.mxu0 0.0
  %4427 = vmatprep.subr.mxu0 0.0
  %4428 = vmatpush1.xpose.msra.mxu0 0.0
  %4429 = vmatprep.subr.mxu0 0.0
  %4430 = vmatpush1.xpose.msra.mxu0 0.0
  %4431 = vmatprep.subr.mxu0 0.0
  %4432 = vmatpush1.xpose.msra.mxu0 0.0
  %4433 = vmatprep.subr.mxu0 0.0
  %4434 = vmatpush1.xpose.msra.mxu0 0.0
  %4435 = vmatprep.subr.mxu0 0.0
  %4436 = vmatpush1.xpose.msra.mxu0 0.0
  %4437 = vmatprep.subr.mxu0 0.0
  %4438 = vmatpush1.xpose.msra.mxu0 0.0
  %4439 = vmatprep.subr.mxu0 0.0
  %4440 = vmatpush1.xpose.msra.mxu0 0.0
  %4441 = vmatprep.subr.mxu0 0.0
  %4442 = vmatpush1.xpose.msra.mxu0 0.0
  %4443 = vmatprep.subr.mxu0 0.0
  %4444 = vmatpush1.xpose.msra.mxu0 0.0
  %4445 = vmatprep.subr.mxu0 0.0
  %4446 = vmatpush1.xpose.msra.mxu0 0.0
  %4447 = vmatprep.subr.mxu0 0.0
  %4448 = vmatpush1.xpose.msra.mxu0 0.0
  %4449 = vmatprep.subr.mxu0 0.0
  %4450 = vmatpush1.xpose.msra.mxu0 0.0
  %4451 = vmatprep.subr.mxu0 0.0
  %4452 = vmatpush1.xpose.msra.mxu0 0.0
  %4453 = vmatprep.subr.mxu0 0.0
  %4454 = vmatpush1.xpose.msra.mxu0 0.0
  %4455 = vmatprep.subr.mxu0 0.0
  %4456 = vmatpush1.xpose.msra.mxu0 0.0
  %4457 = vmatprep.subr.mxu0 0.0
  %4458 = vmatpush1.xpose.msra.mxu0 0.0
  %4459 = vmatprep.subr.mxu0 0.0
  %4460 = vmatpush1.xpose.msra.mxu0 0.0
  %4461 = vmatprep.subr.mxu0 0.0
  %4462 = vmatpush1.xpose.msra.mxu0 0.0
  %4463 = vmatprep.subr.mxu0 0.0
  %4464 = vmatpush1.xpose.msra.mxu0 0.0
  %4465 = vmatprep.subr.mxu0 0.0
  %4466 = vmatpush1.xpose.msra.mxu0 0.0
  %4467 = vmatprep.mubr.f32.mxu0 0.0
  %4468 = vmatmul.mubr.f32.gmra.mrb[0].mxu0 %v4399
  %v4469 = vpop.f32.mrb[0].mxu0
  %v4470 = vadd.f32 0.0, %v4469
  %v4471 = vpop.f32.mrb[0].mxu0
  %4472 = vdwg.mxu0
  %4474 = vrot.lane.b32.xlu0 %v4003, 96
  %v4475 = vpop.permute.xlu0 %4474
  %v4476 = vsel %vm364, %v4003, 0
  %v4478 = vsel %vm364, %v4475, 0
  %4480 = vmatprep.subr.mxu0 0.0
  %4481 = vmatpush1.xpose.msra.mxu0 %v4478
  %4482 = vmatprep.subr.mxu0 0.0
  %4483 = vmatpush1.xpose.msra.mxu0 0.0
  %4484 = vmatprep.subr.mxu0 0.0
  %4485 = vmatpush1.xpose.msra.mxu0 0.0
  %4486 = vmatprep.subr.mxu0 0.0
  %4487 = vmatpush1.xpose.msra.mxu0 0.0
  %4488 = vmatprep.subr.mxu0 0.0
  %4489 = vmatpush1.xpose.msra.mxu0 0.0
  %4490 = vmatprep.subr.mxu0 0.0
  %4491 = vmatpush1.xpose.msra.mxu0 0.0
  %4492 = vmatprep.subr.mxu0 0.0
  %4493 = vmatpush1.xpose.msra.mxu0 0.0
  %4494 = vmatprep.subr.mxu0 0.0
  %4495 = vmatpush1.xpose.msra.mxu0 0.0
  %4496 = vmatprep.subr.mxu0 0.0
  %4497 = vmatpush1.xpose.msra.mxu0 0.0
  %4498 = vmatprep.subr.mxu0 0.0
  %4499 = vmatpush1.xpose.msra.mxu0 0.0
  %4500 = vmatprep.subr.mxu0 0.0
  %4501 = vmatpush1.xpose.msra.mxu0 0.0
  %4502 = vmatprep.subr.mxu0 0.0
  %4503 = vmatpush1.xpose.msra.mxu0 0.0
  %4504 = vmatprep.subr.mxu0 0.0
  %4505 = vmatpush1.xpose.msra.mxu0 0.0
  %4506 = vmatprep.subr.mxu0 0.0
  %4507 = vmatpush1.xpose.msra.mxu0 0.0
  %4508 = vmatprep.subr.mxu0 0.0
  %4509 = vmatpush1.xpose.msra.mxu0 0.0
  %4510 = vmatprep.subr.mxu0 0.0
  %4511 = vmatpush1.xpose.msra.mxu0 0.0
  %4512 = vmatprep.subr.mxu0 0.0
  %4513 = vmatpush1.xpose.msra.mxu0 0.0
  %4514 = vmatprep.subr.mxu0 0.0
  %4515 = vmatpush1.xpose.msra.mxu0 0.0
  %4516 = vmatprep.subr.mxu0 0.0
  %4517 = vmatpush1.xpose.msra.mxu0 0.0
  %4518 = vmatprep.subr.mxu0 0.0
  %4519 = vmatpush1.xpose.msra.mxu0 0.0
  %4520 = vmatprep.subr.mxu0 0.0
  %4521 = vmatpush1.xpose.msra.mxu0 0.0
  %4522 = vmatprep.subr.mxu0 0.0
  %4523 = vmatpush1.xpose.msra.mxu0 0.0
  %4524 = vmatprep.subr.mxu0 0.0
  %4525 = vmatpush1.xpose.msra.mxu0 0.0
  %4526 = vmatprep.subr.mxu0 0.0
  %4527 = vmatpush1.xpose.msra.mxu0 0.0
  %4528 = vmatprep.subr.mxu0 0.0
  %4529 = vmatpush1.xpose.msra.mxu0 0.0
  %4530 = vmatprep.subr.mxu0 0.0
  %4531 = vmatpush1.xpose.msra.mxu0 0.0
  %4532 = vmatprep.subr.mxu0 0.0
  %4533 = vmatpush1.xpose.msra.mxu0 0.0
  %4534 = vmatprep.subr.mxu0 0.0
  %4535 = vmatpush1.xpose.msra.mxu0 0.0
  %4536 = vmatprep.subr.mxu0 0.0
  %4537 = vmatpush1.xpose.msra.mxu0 0.0
  %4538 = vmatprep.subr.mxu0 0.0
  %4539 = vmatpush1.xpose.msra.mxu0 0.0
  %4540 = vmatprep.subr.mxu0 0.0
  %4541 = vmatpush1.xpose.msra.mxu0 0.0
  %4542 = vmatprep.subr.mxu0 0.0
  %4543 = vmatpush1.xpose.msra.mxu0 0.0
  %4544 = vmatprep.mubr.f32.mxu0 0.0
  %4545 = vmatmul.mubr.f32.gmra.mrb[0].mxu0 %v4476
  %v4546 = vpop.f32.mrb[0].mxu0
  %v4547 = vadd.f32 0.0, %v4546
  %v4548 = vpop.f32.mrb[0].mxu0
  %4549 = vdwg.mxu0
  %4551 = vrot.lane.b32.xlu0 %v4008, 96
  %v4552 = vpop.permute.xlu0 %4551
  %v4553 = vsel %vm364, %v4008, 0
  %v4555 = vsel %vm364, %v4552, 0
  %4557 = vmatprep.subr.mxu0 0.0
  %4558 = vmatpush1.xpose.msra.mxu0 %v4555
  %4559 = vmatprep.subr.mxu0 0.0
  %4560 = vmatpush1.xpose.msra.mxu0 0.0
  %4561 = vmatprep.subr.mxu0 0.0
  %4562 = vmatpush1.xpose.msra.mxu0 0.0
  %4563 = vmatprep.subr.mxu0 0.0
  %4564 = vmatpush1.xpose.msra.mxu0 0.0
  %4565 = vmatprep.subr.mxu0 0.0
  %4566 = vmatpush1.xpose.msra.mxu0 0.0
  %4567 = vmatprep.subr.mxu0 0.0
  %4568 = vmatpush1.xpose.msra.mxu0 0.0
  %4569 = vmatprep.subr.mxu0 0.0
  %4570 = vmatpush1.xpose.msra.mxu0 0.0
  %4571 = vmatprep.subr.mxu0 0.0
  %4572 = vmatpush1.xpose.msra.mxu0 0.0
  %4573 = vmatprep.subr.mxu0 0.0
  %4574 = vmatpush1.xpose.msra.mxu0 0.0
  %4575 = vmatprep.subr.mxu0 0.0
  %4576 = vmatpush1.xpose.msra.mxu0 0.0
  %4577 = vmatprep.subr.mxu0 0.0
  %4578 = vmatpush1.xpose.msra.mxu0 0.0
  %4579 = vmatprep.subr.mxu0 0.0
  %4580 = vmatpush1.xpose.msra.mxu0 0.0
  %4581 = vmatprep.subr.mxu0 0.0
  %4582 = vmatpush1.xpose.msra.mxu0 0.0
  %4583 = vmatprep.subr.mxu0 0.0
  %4584 = vmatpush1.xpose.msra.mxu0 0.0
  %4585 = vmatprep.subr.mxu0 0.0
  %4586 = vmatpush1.xpose.msra.mxu0 0.0
  %4587 = vmatprep.subr.mxu0 0.0
  %4588 = vmatpush1.xpose.msra.mxu0 0.0
  %4589 = vmatprep.subr.mxu0 0.0
  %4590 = vmatpush1.xpose.msra.mxu0 0.0
  %4591 = vmatprep.subr.mxu0 0.0
  %4592 = vmatpush1.xpose.msra.mxu0 0.0
  %4593 = vmatprep.subr.mxu0 0.0
  %4594 = vmatpush1.xpose.msra.mxu0 0.0
  %4595 = vmatprep.subr.mxu0 0.0
  %4596 = vmatpush1.xpose.msra.mxu0 0.0
  %4597 = vmatprep.subr.mxu0 0.0
  %4598 = vmatpush1.xpose.msra.mxu0 0.0
  %4599 = vmatprep.subr.mxu0 0.0
  %4600 = vmatpush1.xpose.msra.mxu0 0.0
  %4601 = vmatprep.subr.mxu0 0.0
  %4602 = vmatpush1.xpose.msra.mxu0 0.0
  %4603 = vmatprep.subr.mxu0 0.0
  %4604 = vmatpush1.xpose.msra.mxu0 0.0
  %4605 = vmatprep.subr.mxu0 0.0
  %4606 = vmatpush1.xpose.msra.mxu0 0.0
  %4607 = vmatprep.subr.mxu0 0.0
  %4608 = vmatpush1.xpose.msra.mxu0 0.0
  %4609 = vmatprep.subr.mxu0 0.0
  %4610 = vmatpush1.xpose.msra.mxu0 0.0
  %4611 = vmatprep.subr.mxu0 0.0
  %4612 = vmatpush1.xpose.msra.mxu0 0.0
  %4613 = vmatprep.subr.mxu0 0.0
  %4614 = vmatpush1.xpose.msra.mxu0 0.0
  %4615 = vmatprep.subr.mxu0 0.0
  %4616 = vmatpush1.xpose.msra.mxu0 0.0
  %4617 = vmatprep.subr.mxu0 0.0
  %4618 = vmatpush1.xpose.msra.mxu0 0.0
  %4619 = vmatprep.subr.mxu0 0.0
  %4620 = vmatpush1.xpose.msra.mxu0 0.0
  %4621 = vmatprep.mubr.f32.mxu0 0.0
  %4622 = vmatmul.mubr.f32.gmra.mrb[0].mxu0 %v4553
  %v4623 = vpop.f32.mrb[0].mxu0
  %v4624 = vadd.f32 0.0, %v4623
  %v4625 = vpop.f32.mrb[0].mxu0
  %4626 = vdwg.mxu0
  %v4627 = vmul.f32 %v4085, 0.25
  %v4628 = vmul.f32 %v4162, 0.25
  %v4629 = vmul.f32 %v4239, 0.25
  %v4630 = vmul.f32 %v4316, 0.25
  %v4631 = vmul.f32 %v4393, 0.25
  %v4632 = vmul.f32 %v4470, 0.25
  %v4633 = vmul.f32 %v4547, 0.25
  %v4634 = vmul.f32 %v4624, 0.25
  %v4635 = vadd.f32 %v4627, %v997
  %v4636 = vadd.f32 %v4628, %v1001
  %v4637 = vadd.f32 %v4629, %v1005
  %v4638 = vadd.f32 %v4630, %v1009
  %v4639 = vadd.f32 %v4631, %v1013
  %v4640 = vadd.f32 %v4632, %v1017
  %v4641 = vadd.f32 %v4633, %v1021
  %v4642 = vadd.f32 %v4634, %v1025
  %v4643 = vsel %vm1042, %v4635, -inf
  %4644 = vmax.xlane.f32.xlu0 %v4643
  %v4645 = vpop.xlane.xlu0 %4644
  %v4646 = vsel %vm1042, %v4636, -inf
  %4647 = vmax.xlane.f32.xlu0 %v4646
  %v4648 = vpop.xlane.xlu0 %4647
  %v4649 = vsel %vm1042, %v4637, -inf
  %4650 = vmax.xlane.f32.xlu0 %v4649
  %v4651 = vpop.xlane.xlu0 %4650
  %v4652 = vsel %vm1042, %v4638, -inf
  %4653 = vmax.xlane.f32.xlu0 %v4652
  %v4654 = vpop.xlane.xlu0 %4653
  %v4655 = vsel %vm1042, %v4639, -inf
  %4656 = vmax.xlane.f32.xlu0 %v4655
  %v4657 = vpop.xlane.xlu0 %4656
  %v4658 = vsel %vm1042, %v4640, -inf
  %4659 = vmax.xlane.f32.xlu0 %v4658
  %v4660 = vpop.xlane.xlu0 %4659
  %v4661 = vsel %vm1042, %v4641, -inf
  %4662 = vmax.xlane.f32.xlu0 %v4661
  %v4663 = vpop.xlane.xlu0 %4662
  %v4664 = vsel %vm1042, %v4642, -inf
  %4665 = vmax.xlane.f32.xlu0 %v4664
  %v4666 = vpop.xlane.xlu0 %4665
  %v4667 = vsub.f32 %v4635, %v4645
  %v4668 = vsub.f32 %v4636, %v4648
  %v4669 = vsub.f32 %v4637, %v4651
  %v4670 = vsub.f32 %v4638, %v4654
  %v4671 = vsub.f32 %v4639, %v4657
  %v4672 = vsub.f32 %v4640, %v4660
  %v4673 = vsub.f32 %v4641, %v4663
  %v4674 = vsub.f32 %v4642, %v4666
  %v4675 = vmul.f32 %v4667, 1.442695
  %v4676 = vpow.pop %v4675
  %v4677 = vmul.f32 %v4668, 1.442695
  %v4678 = vpow.pop %v4677
  %v4679 = vmul.f32 %v4669, 1.442695
  %v4680 = vpow.pop %v4679
  %v4681 = vmul.f32 %v4670, 1.442695
  %v4682 = vpow.pop %v4681
  %v4683 = vmul.f32 %v4671, 1.442695
  %v4684 = vpow.pop %v4683
  %v4685 = vmul.f32 %v4672, 1.442695
  %v4686 = vpow.pop %v4685
  %v4687 = vmul.f32 %v4673, 1.442695
  %v4688 = vpow.pop %v4687
  %v4689 = vmul.f32 %v4674, 1.442695
  %v4690 = vpow.pop %v4689
  %v4691 = vsel %vm1042, %v4676, 0.0
  %4692 = vadd.xlane.f32.xlu0 %v4691
  %v4693 = vpop.xlane.xlu0 %4692
  %v4694 = vsel %vm1042, %v4678, 0.0
  %4695 = vadd.xlane.f32.xlu0 %v4694
  %v4696 = vpop.xlane.xlu0 %4695
  %v4697 = vsel %vm1042, %v4680, 0.0
  %4698 = vadd.xlane.f32.xlu0 %v4697
  %v4699 = vpop.xlane.xlu0 %4698
  %v4700 = vsel %vm1042, %v4682, 0.0
  %4701 = vadd.xlane.f32.xlu0 %v4700
  %v4702 = vpop.xlane.xlu0 %4701
  %v4703 = vsel %vm1042, %v4684, 0.0
  %4704 = vadd.xlane.f32.xlu0 %v4703
  %v4705 = vpop.xlane.xlu0 %4704
  %v4706 = vsel %vm1042, %v4686, 0.0
  %4707 = vadd.xlane.f32.xlu0 %v4706
  %v4708 = vpop.xlane.xlu0 %4707
  %v4709 = vsel %vm1042, %v4688, 0.0
  %4710 = vadd.xlane.f32.xlu0 %v4709
  %v4711 = vpop.xlane.xlu0 %4710
  %v4712 = vsel %vm1042, %v4690, 0.0
  %4713 = vadd.xlane.f32.xlu0 %v4712
  %v4714 = vpop.xlane.xlu0 %4713
  %v4715 = vrcp.pop %v4693
  %v4716 = vrcp.pop %v4696
  %v4717 = vrcp.pop %v4699
  %v4718 = vrcp.pop %v4702
  %v4719 = vrcp.pop %v4705
  %v4720 = vrcp.pop %v4708
  %v4721 = vrcp.pop %v4711
  %v4722 = vrcp.pop %v4714
  %v4723 = vmul.f32 %v4676, %v4715
  %v4724 = vmul.f32 %v4678, %v4716
  %v4725 = vmul.f32 %v4680, %v4717
  %v4726 = vmul.f32 %v4682, %v4718
  %v4727 = vmul.f32 %v4684, %v4719
  %v4728 = vmul.f32 %v4686, %v4720
  %v4729 = vmul.f32 %v4688, %v4721
  %v4730 = vmul.f32 %v4690, %v4722
  %4731 = vrot.lane.b32.xlu0 %v3973, 64
  %v4732 = vpop.permute.xlu0 %4731
  %v4735 = vsel %vm1042, %v4723, 0
  %4737 = vmatprep.subr.mxu0 0.0
  %4738 = vmatpush1.msra.mxu0 %v4732
  %4739 = vmatprep.subr.mxu0 0.0
  %4740 = vmatpush1.msra.mxu0 0.0
  %4741 = vmatprep.subr.mxu0 0.0
  %4742 = vmatpush1.msra.mxu0 0.0
  %4743 = vmatprep.subr.mxu0 0.0
  %4744 = vmatpush1.msra.mxu0 0.0
  %4745 = vmatprep.subr.mxu0 0.0
  %4746 = vmatpush1.msra.mxu0 0.0
  %4747 = vmatprep.subr.mxu0 0.0
  %4748 = vmatpush1.msra.mxu0 0.0
  %4749 = vmatprep.subr.mxu0 0.0
  %4750 = vmatpush1.msra.mxu0 0.0
  %4751 = vmatprep.subr.mxu0 0.0
  %4752 = vmatpush1.msra.mxu0 0.0
  %4753 = vmatprep.subr.mxu0 0.0
  %4754 = vmatpush1.msra.mxu0 0.0
  %4755 = vmatprep.subr.mxu0 0.0
  %4756 = vmatpush1.msra.mxu0 0.0
  %4757 = vmatprep.subr.mxu0 0.0
  %4758 = vmatpush1.msra.mxu0 0.0
  %4759 = vmatprep.subr.mxu0 0.0
  %4760 = vmatpush1.msra.mxu0 0.0
  %4761 = vmatprep.subr.mxu0 0.0
  %4762 = vmatpush1.msra.mxu0 0.0
  %4763 = vmatprep.subr.mxu0 0.0
  %4764 = vmatpush1.msra.mxu0 0.0
  %4765 = vmatprep.subr.mxu0 0.0
  %4766 = vmatpush1.msra.mxu0 0.0
  %4767 = vmatprep.subr.mxu0 0.0
  %4768 = vmatpush1.msra.mxu0 0.0
  %4769 = vmatprep.subr.mxu0 0.0
  %4770 = vmatpush1.msra.mxu0 0.0
  %4771 = vmatprep.subr.mxu0 0.0
  %4772 = vmatpush1.msra.mxu0 0.0
  %4773 = vmatprep.subr.mxu0 0.0
  %4774 = vmatpush1.msra.mxu0 0.0
  %4775 = vmatprep.subr.mxu0 0.0
  %4776 = vmatpush1.msra.mxu0 0.0
  %4777 = vmatprep.subr.mxu0 0.0
  %4778 = vmatpush1.msra.mxu0 0.0
  %4779 = vmatprep.subr.mxu0 0.0
  %4780 = vmatpush1.msra.mxu0 0.0
  %4781 = vmatprep.subr.mxu0 0.0
  %4782 = vmatpush1.msra.mxu0 0.0
  %4783 = vmatprep.subr.mxu0 0.0
  %4784 = vmatpush1.msra.mxu0 0.0
  %4785 = vmatprep.subr.mxu0 0.0
  %4786 = vmatpush1.msra.mxu0 0.0
  %4787 = vmatprep.subr.mxu0 0.0
  %4788 = vmatpush1.msra.mxu0 0.0
  %4789 = vmatprep.subr.mxu0 0.0
  %4790 = vmatpush1.msra.mxu0 0.0
  %4791 = vmatprep.subr.mxu0 0.0
  %4792 = vmatpush1.msra.mxu0 0.0
  %4793 = vmatprep.subr.mxu0 0.0
  %4794 = vmatpush1.msra.mxu0 0.0
  %4795 = vmatprep.subr.mxu0 0.0
  %4796 = vmatpush1.msra.mxu0 0.0
  %4797 = vmatprep.subr.mxu0 0.0
  %4798 = vmatpush1.msra.mxu0 0.0
  %4799 = vmatprep.subr.mxu0 0.0
  %4800 = vmatpush1.msra.mxu0 0.0
  %4801 = vmatprep.mubr.f32.mxu0 0.0
  %4802 = vmatmul.mubr.f32.gmra.mrb[0].mxu0 %v4735
  %v4803 = vpop.f32.mrb[0].mxu0
  %v4804 = vadd.f32 0.0, %v4803
  %v4805 = vpop.f32.mrb[0].mxu0
  %4806 = vdwg.mxu0
  %4807 = vrot.lane.b32.xlu0 %v3978, 64
  %v4808 = vpop.permute.xlu0 %4807
  %v4811 = vsel %vm1042, %v4724, 0
  %4813 = vmatprep.subr.mxu0 0.0
  %4814 = vmatpush1.msra.mxu0 %v4808
  %4815 = vmatprep.subr.mxu0 0.0
  %4816 = vmatpush1.msra.mxu0 0.0
  %4817 = vmatprep.subr.mxu0 0.0
  %4818 = vmatpush1.msra.mxu0 0.0
  %4819 = vmatprep.subr.mxu0 0.0
  %4820 = vmatpush1.msra.mxu0 0.0
  %4821 = vmatprep.subr.mxu0 0.0
  %4822 = vmatpush1.msra.mxu0 0.0
  %4823 = vmatprep.subr.mxu0 0.0
  %4824 = vmatpush1.msra.mxu0 0.0
  %4825 = vmatprep.subr.mxu0 0.0
  %4826 = vmatpush1.msra.mxu0 0.0
  %4827 = vmatprep.subr.mxu0 0.0
  %4828 = vmatpush1.msra.mxu0 0.0
  %4829 = vmatprep.subr.mxu0 0.0
  %4830 = vmatpush1.msra.mxu0 0.0
  %4831 = vmatprep.subr.mxu0 0.0
  %4832 = vmatpush1.msra.mxu0 0.0
  %4833 = vmatprep.subr.mxu0 0.0
  %4834 = vmatpush1.msra.mxu0 0.0
  %4835 = vmatprep.subr.mxu0 0.0
  %4836 = vmatpush1.msra.mxu0 0.0
  %4837 = vmatprep.subr.mxu0 0.0
  %4838 = vmatpush1.msra.mxu0 0.0
  %4839 = vmatprep.subr.mxu0 0.0
  %4840 = vmatpush1.msra.mxu0 0.0
  %4841 = vmatprep.subr.mxu0 0.0
  %4842 = vmatpush1.msra.mxu0 0.0
  %4843 = vmatprep.subr.mxu0 0.0
  %4844 = vmatpush1.msra.mxu0 0.0
  %4845 = vmatprep.subr.mxu0 0.0
  %4846 = vmatpush1.msra.mxu0 0.0
  %4847 = vmatprep.subr.mxu0 0.0
  %4848 = vmatpush1.msra.mxu0 0.0
  %4849 = vmatprep.subr.mxu0 0.0
  %4850 = vmatpush1.msra.mxu0 0.0
  %4851 = vmatprep.subr.mxu0 0.0
  %4852 = vmatpush1.msra.mxu0 0.0
  %4853 = vmatprep.subr.mxu0 0.0
  %4854 = vmatpush1.msra.mxu0 0.0
  %4855 = vmatprep.subr.mxu0 0.0
  %4856 = vmatpush1.msra.mxu0 0.0
  %4857 = vmatprep.subr.mxu0 0.0
  %4858 = vmatpush1.msra.mxu0 0.0
  %4859 = vmatprep.subr.mxu0 0.0
  %4860 = vmatpush1.msra.mxu0 0.0
  %4861 = vmatprep.subr.mxu0 0.0
  %4862 = vmatpush1.msra.mxu0 0.0
  %4863 = vmatprep.subr.mxu0 0.0
  %4864 = vmatpush1.msra.mxu0 0.0
  %4865 = vmatprep.subr.mxu0 0.0
  %4866 = vmatpush1.msra.mxu0 0.0
  %4867 = vmatprep.subr.mxu0 0.0
  %4868 = vmatpush1.msra.mxu0 0.0
  %4869 = vmatprep.subr.mxu0 0.0
  %4870 = vmatpush1.msra.mxu0 0.0
  %4871 = vmatprep.subr.mxu0 0.0
  %4872 = vmatpush1.msra.mxu0 0.0
  %4873 = vmatprep.subr.mxu0 0.0
  %4874 = vmatpush1.msra.mxu0 0.0
  %4875 = vmatprep.subr.mxu0 0.0
  %4876 = vmatpush1.msra.mxu0 0.0
  %4877 = vmatprep.mubr.f32.mxu0 0.0
  %4878 = vmatmul.mubr.f32.gmra.mrb[0].mxu0 %v4811
  %v4879 = vpop.f32.mrb[0].mxu0
  %v4880 = vadd.f32 0.0, %v4879
  %v4881 = vpop.f32.mrb[0].mxu0
  %4882 = vdwg.mxu0
  %4883 = vrot.lane.b32.xlu0 %v3983, 64
  %v4884 = vpop.permute.xlu0 %4883
  %v4887 = vsel %vm1042, %v4725, 0
  %4889 = vmatprep.subr.mxu0 0.0
  %4890 = vmatpush1.msra.mxu0 %v4884
  %4891 = vmatprep.subr.mxu0 0.0
  %4892 = vmatpush1.msra.mxu0 0.0
  %4893 = vmatprep.subr.mxu0 0.0
  %4894 = vmatpush1.msra.mxu0 0.0
  %4895 = vmatprep.subr.mxu0 0.0
  %4896 = vmatpush1.msra.mxu0 0.0
  %4897 = vmatprep.subr.mxu0 0.0
  %4898 = vmatpush1.msra.mxu0 0.0
  %4899 = vmatprep.subr.mxu0 0.0
  %4900 = vmatpush1.msra.mxu0 0.0
  %4901 = vmatprep.subr.mxu0 0.0
  %4902 = vmatpush1.msra.mxu0 0.0
  %4903 = vmatprep.subr.mxu0 0.0
  %4904 = vmatpush1.msra.mxu0 0.0
  %4905 = vmatprep.subr.mxu0 0.0
  %4906 = vmatpush1.msra.mxu0 0.0
  %4907 = vmatprep.subr.mxu0 0.0
  %4908 = vmatpush1.msra.mxu0 0.0
  %4909 = vmatprep.subr.mxu0 0.0
  %4910 = vmatpush1.msra.mxu0 0.0
  %4911 = vmatprep.subr.mxu0 0.0
  %4912 = vmatpush1.msra.mxu0 0.0
  %4913 = vmatprep.subr.mxu0 0.0
  %4914 = vmatpush1.msra.mxu0 0.0
  %4915 = vmatprep.subr.mxu0 0.0
  %4916 = vmatpush1.msra.mxu0 0.0
  %4917 = vmatprep.subr.mxu0 0.0
  %4918 = vmatpush1.msra.mxu0 0.0
  %4919 = vmatprep.subr.mxu0 0.0
  %4920 = vmatpush1.msra.mxu0 0.0
  %4921 = vmatprep.subr.mxu0 0.0
  %4922 = vmatpush1.msra.mxu0 0.0
  %4923 = vmatprep.subr.mxu0 0.0
  %4924 = vmatpush1.msra.mxu0 0.0
  %4925 = vmatprep.subr.mxu0 0.0
  %4926 = vmatpush1.msra.mxu0 0.0
  %4927 = vmatprep.subr.mxu0 0.0
  %4928 = vmatpush1.msra.mxu0 0.0
  %4929 = vmatprep.subr.mxu0 0.0
  %4930 = vmatpush1.msra.mxu0 0.0
  %4931 = vmatprep.subr.mxu0 0.0
  %4932 = vmatpush1.msra.mxu0 0.0
  %4933 = vmatprep.subr.mxu0 0.0
  %4934 = vmatpush1.msra.mxu0 0.0
  %4935 = vmatprep.subr.mxu0 0.0
  %4936 = vmatpush1.msra.mxu0 0.0
  %4937 = vmatprep.subr.mxu0 0.0
  %4938 = vmatpush1.msra.mxu0 0.0
  %4939 = vmatprep.subr.mxu0 0.0
  %4940 = vmatpush1.msra.mxu0 0.0
  %4941 = vmatprep.subr.mxu0 0.0
  %4942 = vmatpush1.msra.mxu0 0.0
  %4943 = vmatprep.subr.mxu0 0.0
  %4944 = vmatpush1.msra.mxu0 0.0
  %4945 = vmatprep.subr.mxu0 0.0
  %4946 = vmatpush1.msra.mxu0 0.0
  %4947 = vmatprep.subr.mxu0 0.0
  %4948 = vmatpush1.msra.mxu0 0.0
  %4949 = vmatprep.subr.mxu0 0.0
  %4950 = vmatpush1.msra.mxu0 0.0
  %4951 = vmatprep.subr.mxu0 0.0
  %4952 = vmatpush1.msra.mxu0 0.0
  %4953 = vmatprep.mubr.f32.mxu0 0.0
  %4954 = vmatmul.mubr.f32.gmra.mrb[0].mxu0 %v4887
  %v4955 = vpop.f32.mrb[0].mxu0
  %v4956 = vadd.f32 0.0, %v4955
  %v4957 = vpop.f32.mrb[0].mxu0
  %4958 = vdwg.mxu0
  %4959 = vrot.lane.b32.xlu0 %v3988, 64
  %v4960 = vpop.permute.xlu0 %4959
  %v4963 = vsel %vm1042, %v4726, 0
  %4965 = vmatprep.subr.mxu0 0.0
  %4966 = vmatpush1.msra.mxu0 %v4960
  %4967 = vmatprep.subr.mxu0 0.0
  %4968 = vmatpush1.msra.mxu0 0.0
  %4969 = vmatprep.subr.mxu0 0.0
  %4970 = vmatpush1.msra.mxu0 0.0
  %4971 = vmatprep.subr.mxu0 0.0
  %4972 = vmatpush1.msra.mxu0 0.0
  %4973 = vmatprep.subr.mxu0 0.0
  %4974 = vmatpush1.msra.mxu0 0.0
  %4975 = vmatprep.subr.mxu0 0.0
  %4976 = vmatpush1.msra.mxu0 0.0
  %4977 = vmatprep.subr.mxu0 0.0
  %4978 = vmatpush1.msra.mxu0 0.0
  %4979 = vmatprep.subr.mxu0 0.0
  %4980 = vmatpush1.msra.mxu0 0.0
  %4981 = vmatprep.subr.mxu0 0.0
  %4982 = vmatpush1.msra.mxu0 0.0
  %4983 = vmatprep.subr.mxu0 0.0
  %4984 = vmatpush1.msra.mxu0 0.0
  %4985 = vmatprep.subr.mxu0 0.0
  %4986 = vmatpush1.msra.mxu0 0.0
  %4987 = vmatprep.subr.mxu0 0.0
  %4988 = vmatpush1.msra.mxu0 0.0
  %4989 = vmatprep.subr.mxu0 0.0
  %4990 = vmatpush1.msra.mxu0 0.0
  %4991 = vmatprep.subr.mxu0 0.0
  %4992 = vmatpush1.msra.mxu0 0.0
  %4993 = vmatprep.subr.mxu0 0.0
  %4994 = vmatpush1.msra.mxu0 0.0
  %4995 = vmatprep.subr.mxu0 0.0
  %4996 = vmatpush1.msra.mxu0 0.0
  %4997 = vmatprep.subr.mxu0 0.0
  %4998 = vmatpush1.msra.mxu0 0.0
  %4999 = vmatprep.subr.mxu0 0.0
  %5000 = vmatpush1.msra.mxu0 0.0
  %5001 = vmatprep.subr.mxu0 0.0
  %5002 = vmatpush1.msra.mxu0 0.0
  %5003 = vmatprep.subr.mxu0 0.0
  %5004 = vmatpush1.msra.mxu0 0.0
  %5005 = vmatprep.subr.mxu0 0.0
  %5006 = vmatpush1.msra.mxu0 0.0
  %5007 = vmatprep.subr.mxu0 0.0
  %5008 = vmatpush1.msra.mxu0 0.0
  %5009 = vmatprep.subr.mxu0 0.0
  %5010 = vmatpush1.msra.mxu0 0.0
  %5011 = vmatprep.subr.mxu0 0.0
  %5012 = vmatpush1.msra.mxu0 0.0
  %5013 = vmatprep.subr.mxu0 0.0
  %5014 = vmatpush1.msra.mxu0 0.0
  %5015 = vmatprep.subr.mxu0 0.0
  %5016 = vmatpush1.msra.mxu0 0.0
  %5017 = vmatprep.subr.mxu0 0.0
  %5018 = vmatpush1.msra.mxu0 0.0
  %5019 = vmatprep.subr.mxu0 0.0
  %5020 = vmatpush1.msra.mxu0 0.0
  %5021 = vmatprep.subr.mxu0 0.0
  %5022 = vmatpush1.msra.mxu0 0.0
  %5023 = vmatprep.subr.mxu0 0.0
  %5024 = vmatpush1.msra.mxu0 0.0
  %5025 = vmatprep.subr.mxu0 0.0
  %5026 = vmatpush1.msra.mxu0 0.0
  %5027 = vmatprep.subr.mxu0 0.0
  %5028 = vmatpush1.msra.mxu0 0.0
  %5029 = vmatprep.mubr.f32.mxu0 0.0
  %5030 = vmatmul.mubr.f32.gmra.mrb[0].mxu0 %v4963
  %v5031 = vpop.f32.mrb[0].mxu0
  %v5032 = vadd.f32 0.0, %v5031
  %v5033 = vpop.f32.mrb[0].mxu0
  %5034 = vdwg.mxu0
  %5035 = vrot.lane.b32.xlu0 %v3993, 64
  %v5036 = vpop.permute.xlu0 %5035
  %v5039 = vsel %vm1042, %v4727, 0
  %5041 = vmatprep.subr.mxu0 0.0
  %5042 = vmatpush1.msra.mxu0 %v5036
  %5043 = vmatprep.subr.mxu0 0.0
  %5044 = vmatpush1.msra.mxu0 0.0
  %5045 = vmatprep.subr.mxu0 0.0
  %5046 = vmatpush1.msra.mxu0 0.0
  %5047 = vmatprep.subr.mxu0 0.0
  %5048 = vmatpush1.msra.mxu0 0.0
  %5049 = vmatprep.subr.mxu0 0.0
  %5050 = vmatpush1.msra.mxu0 0.0
  %5051 = vmatprep.subr.mxu0 0.0
  %5052 = vmatpush1.msra.mxu0 0.0
  %5053 = vmatprep.subr.mxu0 0.0
  %5054 = vmatpush1.msra.mxu0 0.0
  %5055 = vmatprep.subr.mxu0 0.0
  %5056 = vmatpush1.msra.mxu0 0.0
  %5057 = vmatprep.subr.mxu0 0.0
  %5058 = vmatpush1.msra.mxu0 0.0
  %5059 = vmatprep.subr.mxu0 0.0
  %5060 = vmatpush1.msra.mxu0 0.0
  %5061 = vmatprep.subr.mxu0 0.0
  %5062 = vmatpush1.msra.mxu0 0.0
  %5063 = vmatprep.subr.mxu0 0.0
  %5064 = vmatpush1.msra.mxu0 0.0
  %5065 = vmatprep.subr.mxu0 0.0
  %5066 = vmatpush1.msra.mxu0 0.0
  %5067 = vmatprep.subr.mxu0 0.0
  %5068 = vmatpush1.msra.mxu0 0.0
  %5069 = vmatprep.subr.mxu0 0.0
  %5070 = vmatpush1.msra.mxu0 0.0
  %5071 = vmatprep.subr.mxu0 0.0
  %5072 = vmatpush1.msra.mxu0 0.0
  %5073 = vmatprep.subr.mxu0 0.0
  %5074 = vmatpush1.msra.mxu0 0.0
  %5075 = vmatprep.subr.mxu0 0.0
  %5076 = vmatpush1.msra.mxu0 0.0
  %5077 = vmatprep.subr.mxu0 0.0
  %5078 = vmatpush1.msra.mxu0 0.0
  %5079 = vmatprep.subr.mxu0 0.0
  %5080 = vmatpush1.msra.mxu0 0.0
  %5081 = vmatprep.subr.mxu0 0.0
  %5082 = vmatpush1.msra.mxu0 0.0
  %5083 = vmatprep.subr.mxu0 0.0
  %5084 = vmatpush1.msra.mxu0 0.0
  %5085 = vmatprep.subr.mxu0 0.0
  %5086 = vmatpush1.msra.mxu0 0.0
  %5087 = vmatprep.subr.mxu0 0.0
  %5088 = vmatpush1.msra.mxu0 0.0
  %5089 = vmatprep.subr.mxu0 0.0
  %5090 = vmatpush1.msra.mxu0 0.0
  %5091 = vmatprep.subr.mxu0 0.0
  %5092 = vmatpush1.msra.mxu0 0.0
  %5093 = vmatprep.subr.mxu0 0.0
  %5094 = vmatpush1.msra.mxu0 0.0
  %5095 = vmatprep.subr.mxu0 0.0
  %5096 = vmatpush1.msra.mxu0 0.0
  %5097 = vmatprep.subr.mxu0 0.0
  %5098 = vmatpush1.msra.mxu0 0.0
  %5099 = vmatprep.subr.mxu0 0.0
  %5100 = vmatpush1.msra.mxu0 0.0
  %5101 = vmatprep.subr.mxu0 0.0
  %5102 = vmatpush1.msra.mxu0 0.0
  %5103 = vmatprep.subr.mxu0 0.0
  %5104 = vmatpush1.msra.mxu0 0.0
  %5105 = vmatprep.mubr.f32.mxu0 0.0
  %5106 = vmatmul.mubr.f32.gmra.mrb[0].mxu0 %v5039
  %v5107 = vpop.f32.mrb[0].mxu0
  %v5108 = vadd.f32 0.0, %v5107
  %v5109 = vpop.f32.mrb[0].mxu0
  %5110 = vdwg.mxu0
  %5111 = vrot.lane.b32.xlu0 %v3998, 64
  %v5112 = vpop.permute.xlu0 %5111
  %v5115 = vsel %vm1042, %v4728, 0
  %5117 = vmatprep.subr.mxu0 0.0
  %5118 = vmatpush1.msra.mxu0 %v5112
  %5119 = vmatprep.subr.mxu0 0.0
  %5120 = vmatpush1.msra.mxu0 0.0
  %5121 = vmatprep.subr.mxu0 0.0
  %5122 = vmatpush1.msra.mxu0 0.0
  %5123 = vmatprep.subr.mxu0 0.0
  %5124 = vmatpush1.msra.mxu0 0.0
  %5125 = vmatprep.subr.mxu0 0.0
  %5126 = vmatpush1.msra.mxu0 0.0
  %5127 = vmatprep.subr.mxu0 0.0
  %5128 = vmatpush1.msra.mxu0 0.0
  %5129 = vmatprep.subr.mxu0 0.0
  %5130 = vmatpush1.msra.mxu0 0.0
  %5131 = vmatprep.subr.mxu0 0.0
  %5132 = vmatpush1.msra.mxu0 0.0
  %5133 = vmatprep.subr.mxu0 0.0
  %5134 = vmatpush1.msra.mxu0 0.0
  %5135 = vmatprep.subr.mxu0 0.0
  %5136 = vmatpush1.msra.mxu0 0.0
  %5137 = vmatprep.subr.mxu0 0.0
  %5138 = vmatpush1.msra.mxu0 0.0
  %5139 = vmatprep.subr.mxu0 0.0
  %5140 = vmatpush1.msra.mxu0 0.0
  %5141 = vmatprep.subr.mxu0 0.0
  %5142 = vmatpush1.msra.mxu0 0.0
  %5143 = vmatprep.subr.mxu0 0.0
  %5144 = vmatpush1.msra.mxu0 0.0
  %5145 = vmatprep.subr.mxu0 0.0
  %5146 = vmatpush1.msra.mxu0 0.0
  %5147 = vmatprep.subr.mxu0 0.0
  %5148 = vmatpush1.msra.mxu0 0.0
  %5149 = vmatprep.subr.mxu0 0.0
  %5150 = vmatpush1.msra.mxu0 0.0
  %5151 = vmatprep.subr.mxu0 0.0
  %5152 = vmatpush1.msra.mxu0 0.0
  %5153 = vmatprep.subr.mxu0 0.0
  %5154 = vmatpush1.msra.mxu0 0.0
  %5155 = vmatprep.subr.mxu0 0.0
  %5156 = vmatpush1.msra.mxu0 0.0
  %5157 = vmatprep.subr.mxu0 0.0
  %5158 = vmatpush1.msra.mxu0 0.0
  %5159 = vmatprep.subr.mxu0 0.0
  %5160 = vmatpush1.msra.mxu0 0.0
  %5161 = vmatprep.subr.mxu0 0.0
  %5162 = vmatpush1.msra.mxu0 0.0
  %5163 = vmatprep.subr.mxu0 0.0
  %5164 = vmatpush1.msra.mxu0 0.0
  %5165 = vmatprep.subr.mxu0 0.0
  %5166 = vmatpush1.msra.mxu0 0.0
  %5167 = vmatprep.subr.mxu0 0.0
  %5168 = vmatpush1.msra.mxu0 0.0
  %5169 = vmatprep.subr.mxu0 0.0
  %5170 = vmatpush1.msra.mxu0 0.0
  %5171 = vmatprep.subr.mxu0 0.0
  %5172 = vmatpush1.msra.mxu0 0.0
  %5173 = vmatprep.subr.mxu0 0.0
  %5174 = vmatpush1.msra.mxu0 0.0
  %5175 = vmatprep.subr.mxu0 0.0
  %5176 = vmatpush1.msra.mxu0 0.0
  %5177 = vmatprep.subr.mxu0 0.0
  %5178 = vmatpush1.msra.mxu0 0.0
  %5179 = vmatprep.subr.mxu0 0.0
  %5180 = vmatpush1.msra.mxu0 0.0
  %5181 = vmatprep.mubr.f32.mxu0 0.0
  %5182 = vmatmul.mubr.f32.gmra.mrb[0].mxu0 %v5115
  %v5183 = vpop.f32.mrb[0].mxu0
  %v5184 = vadd.f32 0.0, %v5183
  %v5185 = vpop.f32.mrb[0].mxu0
  %5186 = vdwg.mxu0
  %5187 = vrot.lane.b32.xlu0 %v4003, 64
  %v5188 = vpop.permute.xlu0 %5187
  %v5191 = vsel %vm1042, %v4729, 0
  %5193 = vmatprep.subr.mxu0 0.0
  %5194 = vmatpush1.msra.mxu0 %v5188
  %5195 = vmatprep.subr.mxu0 0.0
  %5196 = vmatpush1.msra.mxu0 0.0
  %5197 = vmatprep.subr.mxu0 0.0
  %5198 = vmatpush1.msra.mxu0 0.0
  %5199 = vmatprep.subr.mxu0 0.0
  %5200 = vmatpush1.msra.mxu0 0.0
  %5201 = vmatprep.subr.mxu0 0.0
  %5202 = vmatpush1.msra.mxu0 0.0
  %5203 = vmatprep.subr.mxu0 0.0
  %5204 = vmatpush1.msra.mxu0 0.0
  %5205 = vmatprep.subr.mxu0 0.0
  %5206 = vmatpush1.msra.mxu0 0.0
  %5207 = vmatprep.subr.mxu0 0.0
  %5208 = vmatpush1.msra.mxu0 0.0
  %5209 = vmatprep.subr.mxu0 0.0
  %5210 = vmatpush1.msra.mxu0 0.0
  %5211 = vmatprep.subr.mxu0 0.0
  %5212 = vmatpush1.msra.mxu0 0.0
  %5213 = vmatprep.subr.mxu0 0.0
  %5214 = vmatpush1.msra.mxu0 0.0
  %5215 = vmatprep.subr.mxu0 0.0
  %5216 = vmatpush1.msra.mxu0 0.0
  %5217 = vmatprep.subr.mxu0 0.0
  %5218 = vmatpush1.msra.mxu0 0.0
  %5219 = vmatprep.subr.mxu0 0.0
  %5220 = vmatpush1.msra.mxu0 0.0
  %5221 = vmatprep.subr.mxu0 0.0
  %5222 = vmatpush1.msra.mxu0 0.0
  %5223 = vmatprep.subr.mxu0 0.0
  %5224 = vmatpush1.msra.mxu0 0.0
  %5225 = vmatprep.subr.mxu0 0.0
  %5226 = vmatpush1.msra.mxu0 0.0
  %5227 = vmatprep.subr.mxu0 0.0
  %5228 = vmatpush1.msra.mxu0 0.0
  %5229 = vmatprep.subr.mxu0 0.0
  %5230 = vmatpush1.msra.mxu0 0.0
  %5231 = vmatprep.subr.mxu0 0.0
  %5232 = vmatpush1.msra.mxu0 0.0
  %5233 = vmatprep.subr.mxu0 0.0
  %5234 = vmatpush1.msra.mxu0 0.0
  %5235 = vmatprep.subr.mxu0 0.0
  %5236 = vmatpush1.msra.mxu0 0.0
  %5237 = vmatprep.subr.mxu0 0.0
  %5238 = vmatpush1.msra.mxu0 0.0
  %5239 = vmatprep.subr.mxu0 0.0
  %5240 = vmatpush1.msra.mxu0 0.0
  %5241 = vmatprep.subr.mxu0 0.0
  %5242 = vmatpush1.msra.mxu0 0.0
  %5243 = vmatprep.subr.mxu0 0.0
  %5244 = vmatpush1.msra.mxu0 0.0
  %5245 = vmatprep.subr.mxu0 0.0
  %5246 = vmatpush1.msra.mxu0 0.0
  %5247 = vmatprep.subr.mxu0 0.0
  %5248 = vmatpush1.msra.mxu0 0.0
  %5249 = vmatprep.subr.mxu0 0.0
  %5250 = vmatpush1.msra.mxu0 0.0
  %5251 = vmatprep.subr.mxu0 0.0
  %5252 = vmatpush1.msra.mxu0 0.0
  %5253 = vmatprep.subr.mxu0 0.0
  %5254 = vmatpush1.msra.mxu0 0.0
  %5255 = vmatprep.subr.mxu0 0.0
  %5256 = vmatpush1.msra.mxu0 0.0
  %5257 = vmatprep.mubr.f32.mxu0 0.0
  %5258 = vmatmul.mubr.f32.gmra.mrb[0].mxu0 %v5191
  %v5259 = vpop.f32.mrb[0].mxu0
  %v5260 = vadd.f32 0.0, %v5259
  %v5261 = vpop.f32.mrb[0].mxu0
  %5262 = vdwg.mxu0
  %5263 = vrot.lane.b32.xlu0 %v4008, 64
  %v5264 = vpop.permute.xlu0 %5263
  %v5267 = vsel %vm1042, %v4730, 0
  %5269 = vmatprep.subr.mxu0 0.0
  %5270 = vmatpush1.msra.mxu0 %v5264
  %5271 = vmatprep.subr.mxu0 0.0
  %5272 = vmatpush1.msra.mxu0 0.0
  %5273 = vmatprep.subr.mxu0 0.0
  %5274 = vmatpush1.msra.mxu0 0.0
  %5275 = vmatprep.subr.mxu0 0.0
  %5276 = vmatpush1.msra.mxu0 0.0
  %5277 = vmatprep.subr.mxu0 0.0
  %5278 = vmatpush1.msra.mxu0 0.0
  %5279 = vmatprep.subr.mxu0 0.0
  %5280 = vmatpush1.msra.mxu0 0.0
  %5281 = vmatprep.subr.mxu0 0.0
  %5282 = vmatpush1.msra.mxu0 0.0
  %5283 = vmatprep.subr.mxu0 0.0
  %5284 = vmatpush1.msra.mxu0 0.0
  %5285 = vmatprep.subr.mxu0 0.0
  %5286 = vmatpush1.msra.mxu0 0.0
  %5287 = vmatprep.subr.mxu0 0.0
  %5288 = vmatpush1.msra.mxu0 0.0
  %5289 = vmatprep.subr.mxu0 0.0
  %5290 = vmatpush1.msra.mxu0 0.0
  %5291 = vmatprep.subr.mxu0 0.0
  %5292 = vmatpush1.msra.mxu0 0.0
  %5293 = vmatprep.subr.mxu0 0.0
  %5294 = vmatpush1.msra.mxu0 0.0
  %5295 = vmatprep.subr.mxu0 0.0
  %5296 = vmatpush1.msra.mxu0 0.0
  %5297 = vmatprep.subr.mxu0 0.0
  %5298 = vmatpush1.msra.mxu0 0.0
  %5299 = vmatprep.subr.mxu0 0.0
  %5300 = vmatpush1.msra.mxu0 0.0
  %5301 = vmatprep.subr.mxu0 0.0
  %5302 = vmatpush1.msra.mxu0 0.0
  %5303 = vmatprep.subr.mxu0 0.0
  %5304 = vmatpush1.msra.mxu0 0.0
  %5305 = vmatprep.subr.mxu0 0.0
  %5306 = vmatpush1.msra.mxu0 0.0
  %5307 = vmatprep.subr.mxu0 0.0
  %5308 = vmatpush1.msra.mxu0 0.0
  %5309 = vmatprep.subr.mxu0 0.0
  %5310 = vmatpush1.msra.mxu0 0.0
  %5311 = vmatprep.subr.mxu0 0.0
  %5312 = vmatpush1.msra.mxu0 0.0
  %5313 = vmatprep.subr.mxu0 0.0
  %5314 = vmatpush1.msra.mxu0 0.0
  %5315 = vmatprep.subr.mxu0 0.0
  %5316 = vmatpush1.msra.mxu0 0.0
  %5317 = vmatprep.subr.mxu0 0.0
  %5318 = vmatpush1.msra.mxu0 0.0
  %5319 = vmatprep.subr.mxu0 0.0
  %5320 = vmatpush1.msra.mxu0 0.0
  %5321 = vmatprep.subr.mxu0 0.0
  %5322 = vmatpush1.msra.mxu0 0.0
  %5323 = vmatprep.subr.mxu0 0.0
  %5324 = vmatpush1.msra.mxu0 0.0
  %5325 = vmatprep.subr.mxu0 0.0
  %5326 = vmatpush1.msra.mxu0 0.0
  %5327 = vmatprep.subr.mxu0 0.0
  %5328 = vmatpush1.msra.mxu0 0.0
  %5329 = vmatprep.subr.mxu0 0.0
  %5330 = vmatpush1.msra.mxu0 0.0
  %5331 = vmatprep.subr.mxu0 0.0
  %5332 = vmatpush1.msra.mxu0 0.0
  %5333 = vmatprep.mubr.f32.mxu0 0.0
  %5334 = vmatmul.mubr.f32.gmra.mrb[0].mxu0 %v5267
  %v5335 = vpop.f32.mrb[0].mxu0
  %v5336 = vadd.f32 0.0, %v5335
  %v5337 = vpop.f32.mrb[0].mxu0
  %5338 = vdwg.mxu0
  %5339 = vrot.lane.b32.xlu0 %v3973, 112
  %v5340 = vpop.permute.xlu0 %5339
  %5341 = vrot.lane.b32.xlu0 %v3973, 80
  %v5342 = vpop.permute.xlu0 %5341
  %v5343 = vsel %vm364, %v5340, 0
  %v5345 = vsel %vm364, %v5342, 0
  %5347 = vmatprep.subr.mxu0 0.0
  %5348 = vmatpush1.xpose.msra.mxu0 %v5345
  %5349 = vmatprep.subr.mxu0 0.0
  %5350 = vmatpush1.xpose.msra.mxu0 0.0
  %5351 = vmatprep.subr.mxu0 0.0
  %5352 = vmatpush1.xpose.msra.mxu0 0.0
  %5353 = vmatprep.subr.mxu0 0.0
  %5354 = vmatpush1.xpose.msra.mxu0 0.0
  %5355 = vmatprep.subr.mxu0 0.0
  %5356 = vmatpush1.xpose.msra.mxu0 0.0
  %5357 = vmatprep.subr.mxu0 0.0
  %5358 = vmatpush1.xpose.msra.mxu0 0.0
  %5359 = vmatprep.subr.mxu0 0.0
  %5360 = vmatpush1.xpose.msra.mxu0 0.0
  %5361 = vmatprep.subr.mxu0 0.0
  %5362 = vmatpush1.xpose.msra.mxu0 0.0
  %5363 = vmatprep.subr.mxu0 0.0
  %5364 = vmatpush1.xpose.msra.mxu0 0.0
  %5365 = vmatprep.subr.mxu0 0.0
  %5366 = vmatpush1.xpose.msra.mxu0 0.0
  %5367 = vmatprep.subr.mxu0 0.0
  %5368 = vmatpush1.xpose.msra.mxu0 0.0
  %5369 = vmatprep.subr.mxu0 0.0
  %5370 = vmatpush1.xpose.msra.mxu0 0.0
  %5371 = vmatprep.subr.mxu0 0.0
  %5372 = vmatpush1.xpose.msra.mxu0 0.0
  %5373 = vmatprep.subr.mxu0 0.0
  %5374 = vmatpush1.xpose.msra.mxu0 0.0
  %5375 = vmatprep.subr.mxu0 0.0
  %5376 = vmatpush1.xpose.msra.mxu0 0.0
  %5377 = vmatprep.subr.mxu0 0.0
  %5378 = vmatpush1.xpose.msra.mxu0 0.0
  %5379 = vmatprep.subr.mxu0 0.0
  %5380 = vmatpush1.xpose.msra.mxu0 0.0
  %5381 = vmatprep.subr.mxu0 0.0
  %5382 = vmatpush1.xpose.msra.mxu0 0.0
  %5383 = vmatprep.subr.mxu0 0.0
  %5384 = vmatpush1.xpose.msra.mxu0 0.0
  %5385 = vmatprep.subr.mxu0 0.0
  %5386 = vmatpush1.xpose.msra.mxu0 0.0
  %5387 = vmatprep.subr.mxu0 0.0
  %5388 = vmatpush1.xpose.msra.mxu0 0.0
  %5389 = vmatprep.subr.mxu0 0.0
  %5390 = vmatpush1.xpose.msra.mxu0 0.0
  %5391 = vmatprep.subr.mxu0 0.0
  %5392 = vmatpush1.xpose.msra.mxu0 0.0
  %5393 = vmatprep.subr.mxu0 0.0
  %5394 = vmatpush1.xpose.msra.mxu0 0.0
  %5395 = vmatprep.subr.mxu0 0.0
  %5396 = vmatpush1.xpose.msra.mxu0 0.0
  %5397 = vmatprep.subr.mxu0 0.0
  %5398 = vmatpush1.xpose.msra.mxu0 0.0
  %5399 = vmatprep.subr.mxu0 0.0
  %5400 = vmatpush1.xpose.msra.mxu0 0.0
  %5401 = vmatprep.subr.mxu0 0.0
  %5402 = vmatpush1.xpose.msra.mxu0 0.0
  %5403 = vmatprep.subr.mxu0 0.0
  %5404 = vmatpush1.xpose.msra.mxu0 0.0
  %5405 = vmatprep.subr.mxu0 0.0
  %5406 = vmatpush1.xpose.msra.mxu0 0.0
  %5407 = vmatprep.subr.mxu0 0.0
  %5408 = vmatpush1.xpose.msra.mxu0 0.0
  %5409 = vmatprep.subr.mxu0 0.0
  %5410 = vmatpush1.xpose.msra.mxu0 0.0
  %5411 = vmatprep.mubr.f32.mxu0 0.0
  %5412 = vmatmul.mubr.f32.gmra.mrb[0].mxu0 %v5343
  %v5413 = vpop.f32.mrb[0].mxu0
  %v5414 = vadd.f32 0.0, %v5413
  %v5415 = vpop.f32.mrb[0].mxu0
  %5416 = vdwg.mxu0
  %5417 = vrot.lane.b32.xlu0 %v3978, 112
  %v5418 = vpop.permute.xlu0 %5417
  %5419 = vrot.lane.b32.xlu0 %v3978, 80
  %v5420 = vpop.permute.xlu0 %5419
  %v5421 = vsel %vm364, %v5418, 0
  %v5423 = vsel %vm364, %v5420, 0
  %5425 = vmatprep.subr.mxu0 0.0
  %5426 = vmatpush1.xpose.msra.mxu0 %v5423
  %5427 = vmatprep.subr.mxu0 0.0
  %5428 = vmatpush1.xpose.msra.mxu0 0.0
  %5429 = vmatprep.subr.mxu0 0.0
  %5430 = vmatpush1.xpose.msra.mxu0 0.0
  %5431 = vmatprep.subr.mxu0 0.0
  %5432 = vmatpush1.xpose.msra.mxu0 0.0
  %5433 = vmatprep.subr.mxu0 0.0
  %5434 = vmatpush1.xpose.msra.mxu0 0.0
  %5435 = vmatprep.subr.mxu0 0.0
  %5436 = vmatpush1.xpose.msra.mxu0 0.0
  %5437 = vmatprep.subr.mxu0 0.0
  %5438 = vmatpush1.xpose.msra.mxu0 0.0
  %5439 = vmatprep.subr.mxu0 0.0
  %5440 = vmatpush1.xpose.msra.mxu0 0.0
  %5441 = vmatprep.subr.mxu0 0.0
  %5442 = vmatpush1.xpose.msra.mxu0 0.0
  %5443 = vmatprep.subr.mxu0 0.0
  %5444 = vmatpush1.xpose.msra.mxu0 0.0
  %5445 = vmatprep.subr.mxu0 0.0
  %5446 = vmatpush1.xpose.msra.mxu0 0.0
  %5447 = vmatprep.subr.mxu0 0.0
  %5448 = vmatpush1.xpose.msra.mxu0 0.0
  %5449 = vmatprep.subr.mxu0 0.0
  %5450 = vmatpush1.xpose.msra.mxu0 0.0
  %5451 = vmatprep.subr.mxu0 0.0
  %5452 = vmatpush1.xpose.msra.mxu0 0.0
  %5453 = vmatprep.subr.mxu0 0.0
  %5454 = vmatpush1.xpose.msra.mxu0 0.0
  %5455 = vmatprep.subr.mxu0 0.0
  %5456 = vmatpush1.xpose.msra.mxu0 0.0
  %5457 = vmatprep.subr.mxu0 0.0
  %5458 = vmatpush1.xpose.msra.mxu0 0.0
  %5459 = vmatprep.subr.mxu0 0.0
  %5460 = vmatpush1.xpose.msra.mxu0 0.0
  %5461 = vmatprep.subr.mxu0 0.0
  %5462 = vmatpush1.xpose.msra.mxu0 0.0
  %5463 = vmatprep.subr.mxu0 0.0
  %5464 = vmatpush1.xpose.msra.mxu0 0.0
  %5465 = vmatprep.subr.mxu0 0.0
  %5466 = vmatpush1.xpose.msra.mxu0 0.0
  %5467 = vmatprep.subr.mxu0 0.0
  %5468 = vmatpush1.xpose.msra.mxu0 0.0
  %5469 = vmatprep.subr.mxu0 0.0
  %5470 = vmatpush1.xpose.msra.mxu0 0.0
  %5471 = vmatprep.subr.mxu0 0.0
  %5472 = vmatpush1.xpose.msra.mxu0 0.0
  %5473 = vmatprep.subr.mxu0 0.0
  %5474 = vmatpush1.xpose.msra.mxu0 0.0
  %5475 = vmatprep.subr.mxu0 0.0
  %5476 = vmatpush1.xpose.msra.mxu0 0.0
  %5477 = vmatprep.subr.mxu0 0.0
  %5478 = vmatpush1.xpose.msra.mxu0 0.0
  %5479 = vmatprep.subr.mxu0 0.0
  %5480 = vmatpush1.xpose.msra.mxu0 0.0
  %5481 = vmatprep.subr.mxu0 0.0
  %5482 = vmatpush1.xpose.msra.mxu0 0.0
  %5483 = vmatprep.subr.mxu0 0.0
  %5484 = vmatpush1.xpose.msra.mxu0 0.0
  %5485 = vmatprep.subr.mxu0 0.0
  %5486 = vmatpush1.xpose.msra.mxu0 0.0
  %5487 = vmatprep.subr.mxu0 0.0
  %5488 = vmatpush1.xpose.msra.mxu0 0.0
  %5489 = vmatprep.mubr.f32.mxu0 0.0
  %5490 = vmatmul.mubr.f32.gmra.mrb[0].mxu0 %v5421
  %v5491 = vpop.f32.mrb[0].mxu0
  %v5492 = vadd.f32 0.0, %v5491
  %v5493 = vpop.f32.mrb[0].mxu0
  %5494 = vdwg.mxu0
  %5495 = vrot.lane.b32.xlu0 %v3983, 112
  %v5496 = vpop.permute.xlu0 %5495
  %5497 = vrot.lane.b32.xlu0 %v3983, 80
  %v5498 = vpop.permute.xlu0 %5497
  %v5499 = vsel %vm364, %v5496, 0
  %v5501 = vsel %vm364, %v5498, 0
  %5503 = vmatprep.subr.mxu0 0.0
  %5504 = vmatpush1.xpose.msra.mxu0 %v5501
  %5505 = vmatprep.subr.mxu0 0.0
  %5506 = vmatpush1.xpose.msra.mxu0 0.0
  %5507 = vmatprep.subr.mxu0 0.0
  %5508 = vmatpush1.xpose.msra.mxu0 0.0
  %5509 = vmatprep.subr.mxu0 0.0
  %5510 = vmatpush1.xpose.msra.mxu0 0.0
  %5511 = vmatprep.subr.mxu0 0.0
  %5512 = vmatpush1.xpose.msra.mxu0 0.0
  %5513 = vmatprep.subr.mxu0 0.0
  %5514 = vmatpush1.xpose.msra.mxu0 0.0
  %5515 = vmatprep.subr.mxu0 0.0
  %5516 = vmatpush1.xpose.msra.mxu0 0.0
  %5517 = vmatprep.subr.mxu0 0.0
  %5518 = vmatpush1.xpose.msra.mxu0 0.0
  %5519 = vmatprep.subr.mxu0 0.0
  %5520 = vmatpush1.xpose.msra.mxu0 0.0
  %5521 = vmatprep.subr.mxu0 0.0
  %5522 = vmatpush1.xpose.msra.mxu0 0.0
  %5523 = vmatprep.subr.mxu0 0.0
  %5524 = vmatpush1.xpose.msra.mxu0 0.0
  %5525 = vmatprep.subr.mxu0 0.0
  %5526 = vmatpush1.xpose.msra.mxu0 0.0
  %5527 = vmatprep.subr.mxu0 0.0
  %5528 = vmatpush1.xpose.msra.mxu0 0.0
  %5529 = vmatprep.subr.mxu0 0.0
  %5530 = vmatpush1.xpose.msra.mxu0 0.0
  %5531 = vmatprep.subr.mxu0 0.0
  %5532 = vmatpush1.xpose.msra.mxu0 0.0
  %5533 = vmatprep.subr.mxu0 0.0
  %5534 = vmatpush1.xpose.msra.mxu0 0.0
  %5535 = vmatprep.subr.mxu0 0.0
  %5536 = vmatpush1.xpose.msra.mxu0 0.0
  %5537 = vmatprep.subr.mxu0 0.0
  %5538 = vmatpush1.xpose.msra.mxu0 0.0
  %5539 = vmatprep.subr.mxu0 0.0
  %5540 = vmatpush1.xpose.msra.mxu0 0.0
  %5541 = vmatprep.subr.mxu0 0.0
  %5542 = vmatpush1.xpose.msra.mxu0 0.0
  %5543 = vmatprep.subr.mxu0 0.0
  %5544 = vmatpush1.xpose.msra.mxu0 0.0
  %5545 = vmatprep.subr.mxu0 0.0
  %5546 = vmatpush1.xpose.msra.mxu0 0.0
  %5547 = vmatprep.subr.mxu0 0.0
  %5548 = vmatpush1.xpose.msra.mxu0 0.0
  %5549 = vmatprep.subr.mxu0 0.0
  %5550 = vmatpush1.xpose.msra.mxu0 0.0
  %5551 = vmatprep.subr.mxu0 0.0
  %5552 = vmatpush1.xpose.msra.mxu0 0.0
  %5553 = vmatprep.subr.mxu0 0.0
  %5554 = vmatpush1.xpose.msra.mxu0 0.0
  %5555 = vmatprep.subr.mxu0 0.0
  %5556 = vmatpush1.xpose.msra.mxu0 0.0
  %5557 = vmatprep.subr.mxu0 0.0
  %5558 = vmatpush1.xpose.msra.mxu0 0.0
  %5559 = vmatprep.subr.mxu0 0.0
  %5560 = vmatpush1.xpose.msra.mxu0 0.0
  %5561 = vmatprep.subr.mxu0 0.0
  %5562 = vmatpush1.xpose.msra.mxu0 0.0
  %5563 = vmatprep.subr.mxu0 0.0
  %5564 = vmatpush1.xpose.msra.mxu0 0.0
  %5565 = vmatprep.subr.mxu0 0.0
  %5566 = vmatpush1.xpose.msra.mxu0 0.0
  %5567 = vmatprep.mubr.f32.mxu0 0.0
  %5568 = vmatmul.mubr.f32.gmra.mrb[0].mxu0 %v5499
  %v5569 = vpop.f32.mrb[0].mxu0
  %v5570 = vadd.f32 0.0, %v5569
  %v5571 = vpop.f32.mrb[0].mxu0
  %5572 = vdwg.mxu0
  %5573 = vrot.lane.b32.xlu0 %v3988, 112
  %v5574 = vpop.permute.xlu0 %5573
  %5575 = vrot.lane.b32.xlu0 %v3988, 80
  %v5576 = vpop.permute.xlu0 %5575
  %v5577 = vsel %vm364, %v5574, 0
  %v5579 = vsel %vm364, %v5576, 0
  %5581 = vmatprep.subr.mxu0 0.0
  %5582 = vmatpush1.xpose.msra.mxu0 %v5579
  %5583 = vmatprep.subr.mxu0 0.0
  %5584 = vmatpush1.xpose.msra.mxu0 0.0
  %5585 = vmatprep.subr.mxu0 0.0
  %5586 = vmatpush1.xpose.msra.mxu0 0.0
  %5587 = vmatprep.subr.mxu0 0.0
  %5588 = vmatpush1.xpose.msra.mxu0 0.0
  %5589 = vmatprep.subr.mxu0 0.0
  %5590 = vmatpush1.xpose.msra.mxu0 0.0
  %5591 = vmatprep.subr.mxu0 0.0
  %5592 = vmatpush1.xpose.msra.mxu0 0.0
  %5593 = vmatprep.subr.mxu0 0.0
  %5594 = vmatpush1.xpose.msra.mxu0 0.0
  %5595 = vmatprep.subr.mxu0 0.0
  %5596 = vmatpush1.xpose.msra.mxu0 0.0
  %5597 = vmatprep.subr.mxu0 0.0
  %5598 = vmatpush1.xpose.msra.mxu0 0.0
  %5599 = vmatprep.subr.mxu0 0.0
  %5600 = vmatpush1.xpose.msra.mxu0 0.0
  %5601 = vmatprep.subr.mxu0 0.0
  %5602 = vmatpush1.xpose.msra.mxu0 0.0
  %5603 = vmatprep.subr.mxu0 0.0
  %5604 = vmatpush1.xpose.msra.mxu0 0.0
  %5605 = vmatprep.subr.mxu0 0.0
  %5606 = vmatpush1.xpose.msra.mxu0 0.0
  %5607 = vmatprep.subr.mxu0 0.0
  %5608 = vmatpush1.xpose.msra.mxu0 0.0
  %5609 = vmatprep.subr.mxu0 0.0
  %5610 = vmatpush1.xpose.msra.mxu0 0.0
  %5611 = vmatprep.subr.mxu0 0.0
  %5612 = vmatpush1.xpose.msra.mxu0 0.0
  %5613 = vmatprep.subr.mxu0 0.0
  %5614 = vmatpush1.xpose.msra.mxu0 0.0
  %5615 = vmatprep.subr.mxu0 0.0
  %5616 = vmatpush1.xpose.msra.mxu0 0.0
  %5617 = vmatprep.subr.mxu0 0.0
  %5618 = vmatpush1.xpose.msra.mxu0 0.0
  %5619 = vmatprep.subr.mxu0 0.0
  %5620 = vmatpush1.xpose.msra.mxu0 0.0
  %5621 = vmatprep.subr.mxu0 0.0
  %5622 = vmatpush1.xpose.msra.mxu0 0.0
  %5623 = vmatprep.subr.mxu0 0.0
  %5624 = vmatpush1.xpose.msra.mxu0 0.0
  %5625 = vmatprep.subr.mxu0 0.0
  %5626 = vmatpush1.xpose.msra.mxu0 0.0
  %5627 = vmatprep.subr.mxu0 0.0
  %5628 = vmatpush1.xpose.msra.mxu0 0.0
  %5629 = vmatprep.subr.mxu0 0.0
  %5630 = vmatpush1.xpose.msra.mxu0 0.0
  %5631 = vmatprep.subr.mxu0 0.0
  %5632 = vmatpush1.xpose.msra.mxu0 0.0
  %5633 = vmatprep.subr.mxu0 0.0
  %5634 = vmatpush1.xpose.msra.mxu0 0.0
  %5635 = vmatprep.subr.mxu0 0.0
  %5636 = vmatpush1.xpose.msra.mxu0 0.0
  %5637 = vmatprep.subr.mxu0 0.0
  %5638 = vmatpush1.xpose.msra.mxu0 0.0
  %5639 = vmatprep.subr.mxu0 0.0
  %5640 = vmatpush1.xpose.msra.mxu0 0.0
  %5641 = vmatprep.subr.mxu0 0.0
  %5642 = vmatpush1.xpose.msra.mxu0 0.0
  %5643 = vmatprep.subr.mxu0 0.0
  %5644 = vmatpush1.xpose.msra.mxu0 0.0
  %5645 = vmatprep.mubr.f32.mxu0 0.0
  %5646 = vmatmul.mubr.f32.gmra.mrb[0].mxu0 %v5577
  %v5647 = vpop.f32.mrb[0].mxu0
  %v5648 = vadd.f32 0.0, %v5647
  %v5649 = vpop.f32.mrb[0].mxu0
  %5650 = vdwg.mxu0
  %5651 = vrot.lane.b32.xlu0 %v3993, 112
  %v5652 = vpop.permute.xlu0 %5651
  %5653 = vrot.lane.b32.xlu0 %v3993, 80
  %v5654 = vpop.permute.xlu0 %5653
  %v5655 = vsel %vm364, %v5652, 0
  %v5657 = vsel %vm364, %v5654, 0
  %5659 = vmatprep.subr.mxu0 0.0
  %5660 = vmatpush1.xpose.msra.mxu0 %v5657
  %5661 = vmatprep.subr.mxu0 0.0
  %5662 = vmatpush1.xpose.msra.mxu0 0.0
  %5663 = vmatprep.subr.mxu0 0.0
  %5664 = vmatpush1.xpose.msra.mxu0 0.0
  %5665 = vmatprep.subr.mxu0 0.0
  %5666 = vmatpush1.xpose.msra.mxu0 0.0
  %5667 = vmatprep.subr.mxu0 0.0
  %5668 = vmatpush1.xpose.msra.mxu0 0.0
  %5669 = vmatprep.subr.mxu0 0.0
  %5670 = vmatpush1.xpose.msra.mxu0 0.0
  %5671 = vmatprep.subr.mxu0 0.0
  %5672 = vmatpush1.xpose.msra.mxu0 0.0
  %5673 = vmatprep.subr.mxu0 0.0
  %5674 = vmatpush1.xpose.msra.mxu0 0.0
  %5675 = vmatprep.subr.mxu0 0.0
  %5676 = vmatpush1.xpose.msra.mxu0 0.0
  %5677 = vmatprep.subr.mxu0 0.0
  %5678 = vmatpush1.xpose.msra.mxu0 0.0
  %5679 = vmatprep.subr.mxu0 0.0
  %5680 = vmatpush1.xpose.msra.mxu0 0.0
  %5681 = vmatprep.subr.mxu0 0.0
  %5682 = vmatpush1.xpose.msra.mxu0 0.0
  %5683 = vmatprep.subr.mxu0 0.0
  %5684 = vmatpush1.xpose.msra.mxu0 0.0
  %5685 = vmatprep.subr.mxu0 0.0
  %5686 = vmatpush1.xpose.msra.mxu0 0.0
  %5687 = vmatprep.subr.mxu0 0.0
  %5688 = vmatpush1.xpose.msra.mxu0 0.0
  %5689 = vmatprep.subr.mxu0 0.0
  %5690 = vmatpush1.xpose.msra.mxu0 0.0
  %5691 = vmatprep.subr.mxu0 0.0
  %5692 = vmatpush1.xpose.msra.mxu0 0.0
  %5693 = vmatprep.subr.mxu0 0.0
  %5694 = vmatpush1.xpose.msra.mxu0 0.0
  %5695 = vmatprep.subr.mxu0 0.0
  %5696 = vmatpush1.xpose.msra.mxu0 0.0
  %5697 = vmatprep.subr.mxu0 0.0
  %5698 = vmatpush1.xpose.msra.mxu0 0.0
  %5699 = vmatprep.subr.mxu0 0.0
  %5700 = vmatpush1.xpose.msra.mxu0 0.0
  %5701 = vmatprep.subr.mxu0 0.0
  %5702 = vmatpush1.xpose.msra.mxu0 0.0
  %5703 = vmatprep.subr.mxu0 0.0
  %5704 = vmatpush1.xpose.msra.mxu0 0.0
  %5705 = vmatprep.subr.mxu0 0.0
  %5706 = vmatpush1.xpose.msra.mxu0 0.0
  %5707 = vmatprep.subr.mxu0 0.0
  %5708 = vmatpush1.xpose.msra.mxu0 0.0
  %5709 = vmatprep.subr.mxu0 0.0
  %5710 = vmatpush1.xpose.msra.mxu0 0.0
  %5711 = vmatprep.subr.mxu0 0.0
  %5712 = vmatpush1.xpose.msra.mxu0 0.0
  %5713 = vmatprep.subr.mxu0 0.0
  %5714 = vmatpush1.xpose.msra.mxu0 0.0
  %5715 = vmatprep.subr.mxu0 0.0
  %5716 = vmatpush1.xpose.msra.mxu0 0.0
  %5717 = vmatprep.subr.mxu0 0.0
  %5718 = vmatpush1.xpose.msra.mxu0 0.0
  %5719 = vmatprep.subr.mxu0 0.0
  %5720 = vmatpush1.xpose.msra.mxu0 0.0
  %5721 = vmatprep.subr.mxu0 0.0
  %5722 = vmatpush1.xpose.msra.mxu0 0.0
  %5723 = vmatprep.mubr.f32.mxu0 0.0
  %5724 = vmatmul.mubr.f32.gmra.mrb[0].mxu0 %v5655
  %v5725 = vpop.f32.mrb[0].mxu0
  %v5726 = vadd.f32 0.0, %v5725
  %v5727 = vpop.f32.mrb[0].mxu0
  %5728 = vdwg.mxu0
  %5729 = vrot.lane.b32.xlu0 %v3998, 112
  %v5730 = vpop.permute.xlu0 %5729
  %5731 = vrot.lane.b32.xlu0 %v3998, 80
  %v5732 = vpop.permute.xlu0 %5731
  %v5733 = vsel %vm364, %v5730, 0
  %v5735 = vsel %vm364, %v5732, 0
  %5737 = vmatprep.subr.mxu0 0.0
  %5738 = vmatpush1.xpose.msra.mxu0 %v5735
  %5739 = vmatprep.subr.mxu0 0.0
  %5740 = vmatpush1.xpose.msra.mxu0 0.0
  %5741 = vmatprep.subr.mxu0 0.0
  %5742 = vmatpush1.xpose.msra.mxu0 0.0
  %5743 = vmatprep.subr.mxu0 0.0
  %5744 = vmatpush1.xpose.msra.mxu0 0.0
  %5745 = vmatprep.subr.mxu0 0.0
  %5746 = vmatpush1.xpose.msra.mxu0 0.0
  %5747 = vmatprep.subr.mxu0 0.0
  %5748 = vmatpush1.xpose.msra.mxu0 0.0
  %5749 = vmatprep.subr.mxu0 0.0
  %5750 = vmatpush1.xpose.msra.mxu0 0.0
  %5751 = vmatprep.subr.mxu0 0.0
  %5752 = vmatpush1.xpose.msra.mxu0 0.0
  %5753 = vmatprep.subr.mxu0 0.0
  %5754 = vmatpush1.xpose.msra.mxu0 0.0
  %5755 = vmatprep.subr.mxu0 0.0
  %5756 = vmatpush1.xpose.msra.mxu0 0.0
  %5757 = vmatprep.subr.mxu0 0.0
  %5758 = vmatpush1.xpose.msra.mxu0 0.0
  %5759 = vmatprep.subr.mxu0 0.0
  %5760 = vmatpush1.xpose.msra.mxu0 0.0
  %5761 = vmatprep.subr.mxu0 0.0
  %5762 = vmatpush1.xpose.msra.mxu0 0.0
  %5763 = vmatprep.subr.mxu0 0.0
  %5764 = vmatpush1.xpose.msra.mxu0 0.0
  %5765 = vmatprep.subr.mxu0 0.0
  %5766 = vmatpush1.xpose.msra.mxu0 0.0
  %5767 = vmatprep.subr.mxu0 0.0
  %5768 = vmatpush1.xpose.msra.mxu0 0.0
  %5769 = vmatprep.subr.mxu0 0.0
  %5770 = vmatpush1.xpose.msra.mxu0 0.0
  %5771 = vmatprep.subr.mxu0 0.0
  %5772 = vmatpush1.xpose.msra.mxu0 0.0
  %5773 = vmatprep.subr.mxu0 0.0
  %5774 = vmatpush1.xpose.msra.mxu0 0.0
  %5775 = vmatprep.subr.mxu0 0.0
  %5776 = vmatpush1.xpose.msra.mxu0 0.0
  %5777 = vmatprep.subr.mxu0 0.0
  %5778 = vmatpush1.xpose.msra.mxu0 0.0
  %5779 = vmatprep.subr.mxu0 0.0
  %5780 = vmatpush1.xpose.msra.mxu0 0.0
  %5781 = vmatprep.subr.mxu0 0.0
  %5782 = vmatpush1.xpose.msra.mxu0 0.0
  %5783 = vmatprep.subr.mxu0 0.0
  %5784 = vmatpush1.xpose.msra.mxu0 0.0
  %5785 = vmatprep.subr.mxu0 0.0
  %5786 = vmatpush1.xpose.msra.mxu0 0.0
  %5787 = vmatprep.subr.mxu0 0.0
  %5788 = vmatpush1.xpose.msra.mxu0 0.0
  %5789 = vmatprep.subr.mxu0 0.0
  %5790 = vmatpush1.xpose.msra.mxu0 0.0
  %5791 = vmatprep.subr.mxu0 0.0
  %5792 = vmatpush1.xpose.msra.mxu0 0.0
  %5793 = vmatprep.subr.mxu0 0.0
  %5794 = vmatpush1.xpose.msra.mxu0 0.0
  %5795 = vmatprep.subr.mxu0 0.0
  %5796 = vmatpush1.xpose.msra.mxu0 0.0
  %5797 = vmatprep.subr.mxu0 0.0
  %5798 = vmatpush1.xpose.msra.mxu0 0.0
  %5799 = vmatprep.subr.mxu0 0.0
  %5800 = vmatpush1.xpose.msra.mxu0 0.0
  %5801 = vmatprep.mubr.f32.mxu0 0.0
  %5802 = vmatmul.mubr.f32.gmra.mrb[0].mxu0 %v5733
  %v5803 = vpop.f32.mrb[0].mxu0
  %v5804 = vadd.f32 0.0, %v5803
  %v5805 = vpop.f32.mrb[0].mxu0
  %5806 = vdwg.mxu0
  %5807 = vrot.lane.b32.xlu0 %v4003, 112
  %v5808 = vpop.permute.xlu0 %5807
  %5809 = vrot.lane.b32.xlu0 %v4003, 80
  %v5810 = vpop.permute.xlu0 %5809
  %v5811 = vsel %vm364, %v5808, 0
  %v5813 = vsel %vm364, %v5810, 0
  %5815 = vmatprep.subr.mxu0 0.0
  %5816 = vmatpush1.xpose.msra.mxu0 %v5813
  %5817 = vmatprep.subr.mxu0 0.0
  %5818 = vmatpush1.xpose.msra.mxu0 0.0
  %5819 = vmatprep.subr.mxu0 0.0
  %5820 = vmatpush1.xpose.msra.mxu0 0.0
  %5821 = vmatprep.subr.mxu0 0.0
  %5822 = vmatpush1.xpose.msra.mxu0 0.0
  %5823 = vmatprep.subr.mxu0 0.0
  %5824 = vmatpush1.xpose.msra.mxu0 0.0
  %5825 = vmatprep.subr.mxu0 0.0
  %5826 = vmatpush1.xpose.msra.mxu0 0.0
  %5827 = vmatprep.subr.mxu0 0.0
  %5828 = vmatpush1.xpose.msra.mxu0 0.0
  %5829 = vmatprep.subr.mxu0 0.0
  %5830 = vmatpush1.xpose.msra.mxu0 0.0
  %5831 = vmatprep.subr.mxu0 0.0
  %5832 = vmatpush1.xpose.msra.mxu0 0.0
  %5833 = vmatprep.subr.mxu0 0.0
  %5834 = vmatpush1.xpose.msra.mxu0 0.0
  %5835 = vmatprep.subr.mxu0 0.0
  %5836 = vmatpush1.xpose.msra.mxu0 0.0
  %5837 = vmatprep.subr.mxu0 0.0
  %5838 = vmatpush1.xpose.msra.mxu0 0.0
  %5839 = vmatprep.subr.mxu0 0.0
  %5840 = vmatpush1.xpose.msra.mxu0 0.0
  %5841 = vmatprep.subr.mxu0 0.0
  %5842 = vmatpush1.xpose.msra.mxu0 0.0
  %5843 = vmatprep.subr.mxu0 0.0
  %5844 = vmatpush1.xpose.msra.mxu0 0.0
  %5845 = vmatprep.subr.mxu0 0.0
  %5846 = vmatpush1.xpose.msra.mxu0 0.0
  %5847 = vmatprep.subr.mxu0 0.0
  %5848 = vmatpush1.xpose.msra.mxu0 0.0
  %5849 = vmatprep.subr.mxu0 0.0
  %5850 = vmatpush1.xpose.msra.mxu0 0.0
  %5851 = vmatprep.subr.mxu0 0.0
  %5852 = vmatpush1.xpose.msra.mxu0 0.0
  %5853 = vmatprep.subr.mxu0 0.0
  %5854 = vmatpush1.xpose.msra.mxu0 0.0
  %5855 = vmatprep.subr.mxu0 0.0
  %5856 = vmatpush1.xpose.msra.mxu0 0.0
  %5857 = vmatprep.subr.mxu0 0.0
  %5858 = vmatpush1.xpose.msra.mxu0 0.0
  %5859 = vmatprep.subr.mxu0 0.0
  %5860 = vmatpush1.xpose.msra.mxu0 0.0
  %5861 = vmatprep.subr.mxu0 0.0
  %5862 = vmatpush1.xpose.msra.mxu0 0.0
  %5863 = vmatprep.subr.mxu0 0.0
  %5864 = vmatpush1.xpose.msra.mxu0 0.0
  %5865 = vmatprep.subr.mxu0 0.0
  %5866 = vmatpush1.xpose.msra.mxu0 0.0
  %5867 = vmatprep.subr.mxu0 0.0
  %5868 = vmatpush1.xpose.msra.mxu0 0.0
  %5869 = vmatprep.subr.mxu0 0.0
  %5870 = vmatpush1.xpose.msra.mxu0 0.0
  %5871 = vmatprep.subr.mxu0 0.0
  %5872 = vmatpush1.xpose.msra.mxu0 0.0
  %5873 = vmatprep.subr.mxu0 0.0
  %5874 = vmatpush1.xpose.msra.mxu0 0.0
  %5875 = vmatprep.subr.mxu0 0.0
  %5876 = vmatpush1.xpose.msra.mxu0 0.0
  %5877 = vmatprep.subr.mxu0 0.0
  %5878 = vmatpush1.xpose.msra.mxu0 0.0
  %5879 = vmatprep.mubr.f32.mxu0 0.0
  %5880 = vmatmul.mubr.f32.gmra.mrb[0].mxu0 %v5811
  %v5881 = vpop.f32.mrb[0].mxu0
  %v5882 = vadd.f32 0.0, %v5881
  %v5883 = vpop.f32.mrb[0].mxu0
  %5884 = vdwg.mxu0
  %5885 = vrot.lane.b32.xlu0 %v4008, 112
  %v5886 = vpop.permute.xlu0 %5885
  %5887 = vrot.lane.b32.xlu0 %v4008, 80
  %v5888 = vpop.permute.xlu0 %5887
  %v5889 = vsel %vm364, %v5886, 0
  %v5891 = vsel %vm364, %v5888, 0
  %5893 = vmatprep.subr.mxu0 0.0
  %5894 = vmatpush1.xpose.msra.mxu0 %v5891
  %5895 = vmatprep.subr.mxu0 0.0
  %5896 = vmatpush1.xpose.msra.mxu0 0.0
  %5897 = vmatprep.subr.mxu0 0.0
  %5898 = vmatpush1.xpose.msra.mxu0 0.0
  %5899 = vmatprep.subr.mxu0 0.0
  %5900 = vmatpush1.xpose.msra.mxu0 0.0
  %5901 = vmatprep.subr.mxu0 0.0
  %5902 = vmatpush1.xpose.msra.mxu0 0.0
  %5903 = vmatprep.subr.mxu0 0.0
  %5904 = vmatpush1.xpose.msra.mxu0 0.0
  %5905 = vmatprep.subr.mxu0 0.0
  %5906 = vmatpush1.xpose.msra.mxu0 0.0
  %5907 = vmatprep.subr.mxu0 0.0
  %5908 = vmatpush1.xpose.msra.mxu0 0.0
  %5909 = vmatprep.subr.mxu0 0.0
  %5910 = vmatpush1.xpose.msra.mxu0 0.0
  %5911 = vmatprep.subr.mxu0 0.0
  %5912 = vmatpush1.xpose.msra.mxu0 0.0
  %5913 = vmatprep.subr.mxu0 0.0
  %5914 = vmatpush1.xpose.msra.mxu0 0.0
  %5915 = vmatprep.subr.mxu0 0.0
  %5916 = vmatpush1.xpose.msra.mxu0 0.0
  %5917 = vmatprep.subr.mxu0 0.0
  %5918 = vmatpush1.xpose.msra.mxu0 0.0
  %5919 = vmatprep.subr.mxu0 0.0
  %5920 = vmatpush1.xpose.msra.mxu0 0.0
  %5921 = vmatprep.subr.mxu0 0.0
  %5922 = vmatpush1.xpose.msra.mxu0 0.0
  %5923 = vmatprep.subr.mxu0 0.0
  %5924 = vmatpush1.xpose.msra.mxu0 0.0
  %5925 = vmatprep.subr.mxu0 0.0
  %5926 = vmatpush1.xpose.msra.mxu0 0.0
  %5927 = vmatprep.subr.mxu0 0.0
  %5928 = vmatpush1.xpose.msra.mxu0 0.0
  %5929 = vmatprep.subr.mxu0 0.0
  %5930 = vmatpush1.xpose.msra.mxu0 0.0
  %5931 = vmatprep.subr.mxu0 0.0
  %5932 = vmatpush1.xpose.msra.mxu0 0.0
  %5933 = vmatprep.subr.mxu0 0.0
  %5934 = vmatpush1.xpose.msra.mxu0 0.0
  %5935 = vmatprep.subr.mxu0 0.0
  %5936 = vmatpush1.xpose.msra.mxu0 0.0
  %5937 = vmatprep.subr.mxu0 0.0
  %5938 = vmatpush1.xpose.msra.mxu0 0.0
  %5939 = vmatprep.subr.mxu0 0.0
  %5940 = vmatpush1.xpose.msra.mxu0 0.0
  %5941 = vmatprep.subr.mxu0 0.0
  %5942 = vmatpush1.xpose.msra.mxu0 0.0
  %5943 = vmatprep.subr.mxu0 0.0
  %5944 = vmatpush1.xpose.msra.mxu0 0.0
  %5945 = vmatprep.subr.mxu0 0.0
  %5946 = vmatpush1.xpose.msra.mxu0 0.0
  %5947 = vmatprep.subr.mxu0 0.0
  %5948 = vmatpush1.xpose.msra.mxu0 0.0
  %5949 = vmatprep.subr.mxu0 0.0
  %5950 = vmatpush1.xpose.msra.mxu0 0.0
  %5951 = vmatprep.subr.mxu0 0.0
  %5952 = vmatpush1.xpose.msra.mxu0 0.0
  %5953 = vmatprep.subr.mxu0 0.0
  %5954 = vmatpush1.xpose.msra.mxu0 0.0
  %5955 = vmatprep.subr.mxu0 0.0
  %5956 = vmatpush1.xpose.msra.mxu0 0.0
  %5957 = vmatprep.mubr.f32.mxu0 0.0
  %5958 = vmatmul.mubr.f32.gmra.mrb[0].mxu0 %v5889
  %v5959 = vpop.f32.mrb[0].mxu0
  %v5960 = vadd.f32 0.0, %v5959
  %v5961 = vpop.f32.mrb[0].mxu0
  %5962 = vdwg.mxu0
  %v5963 = vmul.f32 %v5414, 0.25
  %v5964 = vmul.f32 %v5492, 0.25
  %v5965 = vmul.f32 %v5570, 0.25
  %v5966 = vmul.f32 %v5648, 0.25
  %v5967 = vmul.f32 %v5726, 0.25
  %v5968 = vmul.f32 %v5804, 0.25
  %v5969 = vmul.f32 %v5882, 0.25
  %v5970 = vmul.f32 %v5960, 0.25
  %v5971 = vadd.f32 %v5963, %v997
  %v5972 = vadd.f32 %v5964, %v1001
  %v5973 = vadd.f32 %v5965, %v1005
  %v5974 = vadd.f32 %v5966, %v1009
  %v5975 = vadd.f32 %v5967, %v1013
  %v5976 = vadd.f32 %v5968, %v1017
  %v5977 = vadd.f32 %v5969, %v1021
  %v5978 = vadd.f32 %v5970, %v1025
  %v5979 = vsel %vm1042, %v5971, -inf
  %5980 = vmax.xlane.f32.xlu0 %v5979
  %v5981 = vpop.xlane.xlu0 %5980
  %v5982 = vsel %vm1042, %v5972, -inf
  %5983 = vmax.xlane.f32.xlu0 %v5982
  %v5984 = vpop.xlane.xlu0 %5983
  %v5985 = vsel %vm1042, %v5973, -inf
  %5986 = vmax.xlane.f32.xlu0 %v5985
  %v5987 = vpop.xlane.xlu0 %5986
  %v5988 = vsel %vm1042, %v5974, -inf
  %5989 = vmax.xlane.f32.xlu0 %v5988
  %v5990 = vpop.xlane.xlu0 %5989
  %v5991 = vsel %vm1042, %v5975, -inf
  %5992 = vmax.xlane.f32.xlu0 %v5991
  %v5993 = vpop.xlane.xlu0 %5992
  %v5994 = vsel %vm1042, %v5976, -inf
  %5995 = vmax.xlane.f32.xlu0 %v5994
  %v5996 = vpop.xlane.xlu0 %5995
  %v5997 = vsel %vm1042, %v5977, -inf
  %5998 = vmax.xlane.f32.xlu0 %v5997
  %v5999 = vpop.xlane.xlu0 %5998
  %v6000 = vsel %vm1042, %v5978, -inf
  %6001 = vmax.xlane.f32.xlu0 %v6000
  %v6002 = vpop.xlane.xlu0 %6001
  %v6003 = vsub.f32 %v5971, %v5981
  %v6004 = vsub.f32 %v5972, %v5984
  %v6005 = vsub.f32 %v5973, %v5987
  %v6006 = vsub.f32 %v5974, %v5990
  %v6007 = vsub.f32 %v5975, %v5993
  %v6008 = vsub.f32 %v5976, %v5996
  %v6009 = vsub.f32 %v5977, %v5999
  %v6010 = vsub.f32 %v5978, %v6002
  %v6011 = vmul.f32 %v6003, 1.442695
  %v6012 = vpow.pop %v6011
  %v6013 = vmul.f32 %v6004, 1.442695
  %v6014 = vpow.pop %v6013
  %v6015 = vmul.f32 %v6005, 1.442695
  %v6016 = vpow.pop %v6015
  %v6017 = vmul.f32 %v6006, 1.442695
  %v6018 = vpow.pop %v6017
  %v6019 = vmul.f32 %v6007, 1.442695
  %v6020 = vpow.pop %v6019
  %v6021 = vmul.f32 %v6008, 1.442695
  %v6022 = vpow.pop %v6021
  %v6023 = vmul.f32 %v6009, 1.442695
  %v6024 = vpow.pop %v6023
  %v6025 = vmul.f32 %v6010, 1.442695
  %v6026 = vpow.pop %v6025
  %v6027 = vsel %vm1042, %v6012, 0.0
  %6028 = vadd.xlane.f32.xlu0 %v6027
  %v6029 = vpop.xlane.xlu0 %6028
  %v6030 = vsel %vm1042, %v6014, 0.0
  %6031 = vadd.xlane.f32.xlu0 %v6030
  %v6032 = vpop.xlane.xlu0 %6031
  %v6033 = vsel %vm1042, %v6016, 0.0
  %6034 = vadd.xlane.f32.xlu0 %v6033
  %v6035 = vpop.xlane.xlu0 %6034
  %v6036 = vsel %vm1042, %v6018, 0.0
  %6037 = vadd.xlane.f32.xlu0 %v6036
  %v6038 = vpop.xlane.xlu0 %6037
  %v6039 = vsel %vm1042, %v6020, 0.0
  %6040 = vadd.xlane.f32.xlu0 %v6039
  %v6041 = vpop.xlane.xlu0 %6040
  %v6042 = vsel %vm1042, %v6022, 0.0
  %6043 = vadd.xlane.f32.xlu0 %v6042
  %v6044 = vpop.xlane.xlu0 %6043
  %v6045 = vsel %vm1042, %v6024, 0.0
  %6046 = vadd.xlane.f32.xlu0 %v6045
  %v6047 = vpop.xlane.xlu0 %6046
  %v6048 = vsel %vm1042, %v6026, 0.0
  %6049 = vadd.xlane.f32.xlu0 %v6048
  %v6050 = vpop.xlane.xlu0 %6049
  %v6051 = vrcp.pop %v6029
  %v6052 = vrcp.pop %v6032
  %v6053 = vrcp.pop %v6035
  %v6054 = vrcp.pop %v6038
  %v6055 = vrcp.pop %v6041
  %v6056 = vrcp.pop %v6044
  %v6057 = vrcp.pop %v6047
  %v6058 = vrcp.pop %v6050
  %v6059 = vmul.f32 %v6012, %v6051
  %v6060 = vmul.f32 %v6014, %v6052
  %v6061 = vmul.f32 %v6016, %v6053
  %v6062 = vmul.f32 %v6018, %v6054
  %v6063 = vmul.f32 %v6020, %v6055
  %v6064 = vmul.f32 %v6022, %v6056
  %v6065 = vmul.f32 %v6024, %v6057
  %v6066 = vmul.f32 %v6026, %v6058
  %6067 = vrot.lane.b32.xlu0 %v3973, 48
  %v6068 = vpop.permute.xlu0 %6067
  %v6071 = vsel %vm1042, %v6059, 0
  %6073 = vmatprep.subr.mxu0 0.0
  %6074 = vmatpush1.msra.mxu0 %v6068
  %6075 = vmatprep.subr.mxu0 0.0
  %6076 = vmatpush1.msra.mxu0 0.0
  %6077 = vmatprep.subr.mxu0 0.0
  %6078 = vmatpush1.msra.mxu0 0.0
  %6079 = vmatprep.subr.mxu0 0.0
  %6080 = vmatpush1.msra.mxu0 0.0
  %6081 = vmatprep.subr.mxu0 0.0
  %6082 = vmatpush1.msra.mxu0 0.0
  %6083 = vmatprep.subr.mxu0 0.0
  %6084 = vmatpush1.msra.mxu0 0.0
  %6085 = vmatprep.subr.mxu0 0.0
  %6086 = vmatpush1.msra.mxu0 0.0
  %6087 = vmatprep.subr.mxu0 0.0
  %6088 = vmatpush1.msra.mxu0 0.0
  %6089 = vmatprep.subr.mxu0 0.0
  %6090 = vmatpush1.msra.mxu0 0.0
  %6091 = vmatprep.subr.mxu0 0.0
  %6092 = vmatpush1.msra.mxu0 0.0
  %6093 = vmatprep.subr.mxu0 0.0
  %6094 = vmatpush1.msra.mxu0 0.0
  %6095 = vmatprep.subr.mxu0 0.0
  %6096 = vmatpush1.msra.mxu0 0.0
  %6097 = vmatprep.subr.mxu0 0.0
  %6098 = vmatpush1.msra.mxu0 0.0
  %6099 = vmatprep.subr.mxu0 0.0
  %6100 = vmatpush1.msra.mxu0 0.0
  %6101 = vmatprep.subr.mxu0 0.0
  %6102 = vmatpush1.msra.mxu0 0.0
  %6103 = vmatprep.subr.mxu0 0.0
  %6104 = vmatpush1.msra.mxu0 0.0
  %6105 = vmatprep.subr.mxu0 0.0
  %6106 = vmatpush1.msra.mxu0 0.0
  %6107 = vmatprep.subr.mxu0 0.0
  %6108 = vmatpush1.msra.mxu0 0.0
  %6109 = vmatprep.subr.mxu0 0.0
  %6110 = vmatpush1.msra.mxu0 0.0
  %6111 = vmatprep.subr.mxu0 0.0
  %6112 = vmatpush1.msra.mxu0 0.0
  %6113 = vmatprep.subr.mxu0 0.0
  %6114 = vmatpush1.msra.mxu0 0.0
  %6115 = vmatprep.subr.mxu0 0.0
  %6116 = vmatpush1.msra.mxu0 0.0
  %6117 = vmatprep.subr.mxu0 0.0
  %6118 = vmatpush1.msra.mxu0 0.0
  %6119 = vmatprep.subr.mxu0 0.0
  %6120 = vmatpush1.msra.mxu0 0.0
  %6121 = vmatprep.subr.mxu0 0.0
  %6122 = vmatpush1.msra.mxu0 0.0
  %6123 = vmatprep.subr.mxu0 0.0
  %6124 = vmatpush1.msra.mxu0 0.0
  %6125 = vmatprep.subr.mxu0 0.0
  %6126 = vmatpush1.msra.mxu0 0.0
  %6127 = vmatprep.subr.mxu0 0.0
  %6128 = vmatpush1.msra.mxu0 0.0
  %6129 = vmatprep.subr.mxu0 0.0
  %6130 = vmatpush1.msra.mxu0 0.0
  %6131 = vmatprep.subr.mxu0 0.0
  %6132 = vmatpush1.msra.mxu0 0.0
  %6133 = vmatprep.subr.mxu0 0.0
  %6134 = vmatpush1.msra.mxu0 0.0
  %6135 = vmatprep.subr.mxu0 0.0
  %6136 = vmatpush1.msra.mxu0 0.0
  %6137 = vmatprep.mubr.f32.mxu0 0.0
  %6138 = vmatmul.mubr.f32.gmra.mrb[0].mxu0 %v6071
  %v6139 = vpop.f32.mrb[0].mxu0
  %v6140 = vadd.f32 0.0, %v6139
  %v6141 = vpop.f32.mrb[0].mxu0
  %6142 = vdwg.mxu0
  %6143 = vrot.lane.b32.xlu0 %v3978, 48
  %v6144 = vpop.permute.xlu0 %6143
  %v6147 = vsel %vm1042, %v6060, 0
  %6149 = vmatprep.subr.mxu0 0.0
  %6150 = vmatpush1.msra.mxu0 %v6144
  %6151 = vmatprep.subr.mxu0 0.0
  %6152 = vmatpush1.msra.mxu0 0.0
  %6153 = vmatprep.subr.mxu0 0.0
  %6154 = vmatpush1.msra.mxu0 0.0
  %6155 = vmatprep.subr.mxu0 0.0
  %6156 = vmatpush1.msra.mxu0 0.0
  %6157 = vmatprep.subr.mxu0 0.0
  %6158 = vmatpush1.msra.mxu0 0.0
  %6159 = vmatprep.subr.mxu0 0.0
  %6160 = vmatpush1.msra.mxu0 0.0
  %6161 = vmatprep.subr.mxu0 0.0
  %6162 = vmatpush1.msra.mxu0 0.0
  %6163 = vmatprep.subr.mxu0 0.0
  %6164 = vmatpush1.msra.mxu0 0.0
  %6165 = vmatprep.subr.mxu0 0.0
  %6166 = vmatpush1.msra.mxu0 0.0
  %6167 = vmatprep.subr.mxu0 0.0
  %6168 = vmatpush1.msra.mxu0 0.0
  %6169 = vmatprep.subr.mxu0 0.0
  %6170 = vmatpush1.msra.mxu0 0.0
  %6171 = vmatprep.subr.mxu0 0.0
  %6172 = vmatpush1.msra.mxu0 0.0
  %6173 = vmatprep.subr.mxu0 0.0
  %6174 = vmatpush1.msra.mxu0 0.0
  %6175 = vmatprep.subr.mxu0 0.0
  %6176 = vmatpush1.msra.mxu0 0.0
  %6177 = vmatprep.subr.mxu0 0.0
  %6178 = vmatpush1.msra.mxu0 0.0
  %6179 = vmatprep.subr.mxu0 0.0
  %6180 = vmatpush1.msra.mxu0 0.0
  %6181 = vmatprep.subr.mxu0 0.0
  %6182 = vmatpush1.msra.mxu0 0.0
  %6183 = vmatprep.subr.mxu0 0.0
  %6184 = vmatpush1.msra.mxu0 0.0
  %6185 = vmatprep.subr.mxu0 0.0
  %6186 = vmatpush1.msra.mxu0 0.0
  %6187 = vmatprep.subr.mxu0 0.0
  %6188 = vmatpush1.msra.mxu0 0.0
  %6189 = vmatprep.subr.mxu0 0.0
  %6190 = vmatpush1.msra.mxu0 0.0
  %6191 = vmatprep.subr.mxu0 0.0
  %6192 = vmatpush1.msra.mxu0 0.0
  %6193 = vmatprep.subr.mxu0 0.0
  %6194 = vmatpush1.msra.mxu0 0.0
  %6195 = vmatprep.subr.mxu0 0.0
  %6196 = vmatpush1.msra.mxu0 0.0
  %6197 = vmatprep.subr.mxu0 0.0
  %6198 = vmatpush1.msra.mxu0 0.0
  %6199 = vmatprep.subr.mxu0 0.0
  %6200 = vmatpush1.msra.mxu0 0.0
  %6201 = vmatprep.subr.mxu0 0.0
  %6202 = vmatpush1.msra.mxu0 0.0
  %6203 = vmatprep.subr.mxu0 0.0
  %6204 = vmatpush1.msra.mxu0 0.0
  %6205 = vmatprep.subr.mxu0 0.0
  %6206 = vmatpush1.msra.mxu0 0.0
  %6207 = vmatprep.subr.mxu0 0.0
  %6208 = vmatpush1.msra.mxu0 0.0
  %6209 = vmatprep.subr.mxu0 0.0
  %6210 = vmatpush1.msra.mxu0 0.0
  %6211 = vmatprep.subr.mxu0 0.0
  %6212 = vmatpush1.msra.mxu0 0.0
  %6213 = vmatprep.mubr.f32.mxu0 0.0
  %6214 = vmatmul.mubr.f32.gmra.mrb[0].mxu0 %v6147
  %v6215 = vpop.f32.mrb[0].mxu0
  %v6216 = vadd.f32 0.0, %v6215
  %v6217 = vpop.f32.mrb[0].mxu0
  %6218 = vdwg.mxu0
  %6219 = vrot.lane.b32.xlu0 %v3983, 48
  %v6220 = vpop.permute.xlu0 %6219
  %v6223 = vsel %vm1042, %v6061, 0
  %6225 = vmatprep.subr.mxu0 0.0
  %6226 = vmatpush1.msra.mxu0 %v6220
  %6227 = vmatprep.subr.mxu0 0.0
  %6228 = vmatpush1.msra.mxu0 0.0
  %6229 = vmatprep.subr.mxu0 0.0
  %6230 = vmatpush1.msra.mxu0 0.0
  %6231 = vmatprep.subr.mxu0 0.0
  %6232 = vmatpush1.msra.mxu0 0.0
  %6233 = vmatprep.subr.mxu0 0.0
  %6234 = vmatpush1.msra.mxu0 0.0
  %6235 = vmatprep.subr.mxu0 0.0
  %6236 = vmatpush1.msra.mxu0 0.0
  %6237 = vmatprep.subr.mxu0 0.0
  %6238 = vmatpush1.msra.mxu0 0.0
  %6239 = vmatprep.subr.mxu0 0.0
  %6240 = vmatpush1.msra.mxu0 0.0
  %6241 = vmatprep.subr.mxu0 0.0
  %6242 = vmatpush1.msra.mxu0 0.0
  %6243 = vmatprep.subr.mxu0 0.0
  %6244 = vmatpush1.msra.mxu0 0.0
  %6245 = vmatprep.subr.mxu0 0.0
  %6246 = vmatpush1.msra.mxu0 0.0
  %6247 = vmatprep.subr.mxu0 0.0
  %6248 = vmatpush1.msra.mxu0 0.0
  %6249 = vmatprep.subr.mxu0 0.0
  %6250 = vmatpush1.msra.mxu0 0.0
  %6251 = vmatprep.subr.mxu0 0.0
  %6252 = vmatpush1.msra.mxu0 0.0
  %6253 = vmatprep.subr.mxu0 0.0
  %6254 = vmatpush1.msra.mxu0 0.0
  %6255 = vmatprep.subr.mxu0 0.0
  %6256 = vmatpush1.msra.mxu0 0.0
  %6257 = vmatprep.subr.mxu0 0.0
  %6258 = vmatpush1.msra.mxu0 0.0
  %6259 = vmatprep.subr.mxu0 0.0
  %6260 = vmatpush1.msra.mxu0 0.0
  %6261 = vmatprep.subr.mxu0 0.0
  %6262 = vmatpush1.msra.mxu0 0.0
  %6263 = vmatprep.subr.mxu0 0.0
  %6264 = vmatpush1.msra.mxu0 0.0
  %6265 = vmatprep.subr.mxu0 0.0
  %6266 = vmatpush1.msra.mxu0 0.0
  %6267 = vmatprep.subr.mxu0 0.0
  %6268 = vmatpush1.msra.mxu0 0.0
  %6269 = vmatprep.subr.mxu0 0.0
  %6270 = vmatpush1.msra.mxu0 0.0
  %6271 = vmatprep.subr.mxu0 0.0
  %6272 = vmatpush1.msra.mxu0 0.0
  %6273 = vmatprep.subr.mxu0 0.0
  %6274 = vmatpush1.msra.mxu0 0.0
  %6275 = vmatprep.subr.mxu0 0.0
  %6276 = vmatpush1.msra.mxu0 0.0
  %6277 = vmatprep.subr.mxu0 0.0
  %6278 = vmatpush1.msra.mxu0 0.0
  %6279 = vmatprep.subr.mxu0 0.0
  %6280 = vmatpush1.msra.mxu0 0.0
  %6281 = vmatprep.subr.mxu0 0.0
  %6282 = vmatpush1.msra.mxu0 0.0
  %6283 = vmatprep.subr.mxu0 0.0
  %6284 = vmatpush1.msra.mxu0 0.0
  %6285 = vmatprep.subr.mxu0 0.0
  %6286 = vmatpush1.msra.mxu0 0.0
  %6287 = vmatprep.subr.mxu0 0.0
  %6288 = vmatpush1.msra.mxu0 0.0
  %6289 = vmatprep.mubr.f32.mxu0 0.0
  %6290 = vmatmul.mubr.f32.gmra.mrb[0].mxu0 %v6223
  %v6291 = vpop.f32.mrb[0].mxu0
  %v6292 = vadd.f32 0.0, %v6291
  %v6293 = vpop.f32.mrb[0].mxu0
  %6294 = vdwg.mxu0
  %6295 = vrot.lane.b32.xlu0 %v3988, 48
  %v6296 = vpop.permute.xlu0 %6295
  %v6299 = vsel %vm1042, %v6062, 0
  %6301 = vmatprep.subr.mxu0 0.0
  %6302 = vmatpush1.msra.mxu0 %v6296
  %6303 = vmatprep.subr.mxu0 0.0
  %6304 = vmatpush1.msra.mxu0 0.0
  %6305 = vmatprep.subr.mxu0 0.0
  %6306 = vmatpush1.msra.mxu0 0.0
  %6307 = vmatprep.subr.mxu0 0.0
  %6308 = vmatpush1.msra.mxu0 0.0
  %6309 = vmatprep.subr.mxu0 0.0
  %6310 = vmatpush1.msra.mxu0 0.0
  %6311 = vmatprep.subr.mxu0 0.0
  %6312 = vmatpush1.msra.mxu0 0.0
  %6313 = vmatprep.subr.mxu0 0.0
  %6314 = vmatpush1.msra.mxu0 0.0
  %6315 = vmatprep.subr.mxu0 0.0
  %6316 = vmatpush1.msra.mxu0 0.0
  %6317 = vmatprep.subr.mxu0 0.0
  %6318 = vmatpush1.msra.mxu0 0.0
  %6319 = vmatprep.subr.mxu0 0.0
  %6320 = vmatpush1.msra.mxu0 0.0
  %6321 = vmatprep.subr.mxu0 0.0
  %6322 = vmatpush1.msra.mxu0 0.0
  %6323 = vmatprep.subr.mxu0 0.0
  %6324 = vmatpush1.msra.mxu0 0.0
  %6325 = vmatprep.subr.mxu0 0.0
  %6326 = vmatpush1.msra.mxu0 0.0
  %6327 = vmatprep.subr.mxu0 0.0
  %6328 = vmatpush1.msra.mxu0 0.0
  %6329 = vmatprep.subr.mxu0 0.0
  %6330 = vmatpush1.msra.mxu0 0.0
  %6331 = vmatprep.subr.mxu0 0.0
  %6332 = vmatpush1.msra.mxu0 0.0
  %6333 = vmatprep.subr.mxu0 0.0
  %6334 = vmatpush1.msra.mxu0 0.0
  %6335 = vmatprep.subr.mxu0 0.0
  %6336 = vmatpush1.msra.mxu0 0.0
  %6337 = vmatprep.subr.mxu0 0.0
  %6338 = vmatpush1.msra.mxu0 0.0
  %6339 = vmatprep.subr.mxu0 0.0
  %6340 = vmatpush1.msra.mxu0 0.0
  %6341 = vmatprep.subr.mxu0 0.0
  %6342 = vmatpush1.msra.mxu0 0.0
  %6343 = vmatprep.subr.mxu0 0.0
  %6344 = vmatpush1.msra.mxu0 0.0
  %6345 = vmatprep.subr.mxu0 0.0
  %6346 = vmatpush1.msra.mxu0 0.0
  %6347 = vmatprep.subr.mxu0 0.0
  %6348 = vmatpush1.msra.mxu0 0.0
  %6349 = vmatprep.subr.mxu0 0.0
  %6350 = vmatpush1.msra.mxu0 0.0
  %6351 = vmatprep.subr.mxu0 0.0
  %6352 = vmatpush1.msra.mxu0 0.0
  %6353 = vmatprep.subr.mxu0 0.0
  %6354 = vmatpush1.msra.mxu0 0.0
  %6355 = vmatprep.subr.mxu0 0.0
  %6356 = vmatpush1.msra.mxu0 0.0
  %6357 = vmatprep.subr.mxu0 0.0
  %6358 = vmatpush1.msra.mxu0 0.0
  %6359 = vmatprep.subr.mxu0 0.0
  %6360 = vmatpush1.msra.mxu0 0.0
  %6361 = vmatprep.subr.mxu0 0.0
  %6362 = vmatpush1.msra.mxu0 0.0
  %6363 = vmatprep.subr.mxu0 0.0
  %6364 = vmatpush1.msra.mxu0 0.0
  %6365 = vmatprep.mubr.f32.mxu0 0.0
  %6366 = vmatmul.mubr.f32.gmra.mrb[0].mxu0 %v6299
  %v6367 = vpop.f32.mrb[0].mxu0
  %v6368 = vadd.f32 0.0, %v6367
  %v6369 = vpop.f32.mrb[0].mxu0
  %6370 = vdwg.mxu0
  %6371 = vrot.lane.b32.xlu0 %v3993, 48
  %v6372 = vpop.permute.xlu0 %6371
  %v6375 = vsel %vm1042, %v6063, 0
  %6377 = vmatprep.subr.mxu0 0.0
  %6378 = vmatpush1.msra.mxu0 %v6372
  %6379 = vmatprep.subr.mxu0 0.0
  %6380 = vmatpush1.msra.mxu0 0.0
  %6381 = vmatprep.subr.mxu0 0.0
  %6382 = vmatpush1.msra.mxu0 0.0
  %6383 = vmatprep.subr.mxu0 0.0
  %6384 = vmatpush1.msra.mxu0 0.0
  %6385 = vmatprep.subr.mxu0 0.0
  %6386 = vmatpush1.msra.mxu0 0.0
  %6387 = vmatprep.subr.mxu0 0.0
  %6388 = vmatpush1.msra.mxu0 0.0
  %6389 = vmatprep.subr.mxu0 0.0
  %6390 = vmatpush1.msra.mxu0 0.0
  %6391 = vmatprep.subr.mxu0 0.0
  %6392 = vmatpush1.msra.mxu0 0.0
  %6393 = vmatprep.subr.mxu0 0.0
  %6394 = vmatpush1.msra.mxu0 0.0
  %6395 = vmatprep.subr.mxu0 0.0
  %6396 = vmatpush1.msra.mxu0 0.0
  %6397 = vmatprep.subr.mxu0 0.0
  %6398 = vmatpush1.msra.mxu0 0.0
  %6399 = vmatprep.subr.mxu0 0.0
  %6400 = vmatpush1.msra.mxu0 0.0
  %6401 = vmatprep.subr.mxu0 0.0
  %6402 = vmatpush1.msra.mxu0 0.0
  %6403 = vmatprep.subr.mxu0 0.0
  %6404 = vmatpush1.msra.mxu0 0.0
  %6405 = vmatprep.subr.mxu0 0.0
  %6406 = vmatpush1.msra.mxu0 0.0
  %6407 = vmatprep.subr.mxu0 0.0
  %6408 = vmatpush1.msra.mxu0 0.0
  %6409 = vmatprep.subr.mxu0 0.0
  %6410 = vmatpush1.msra.mxu0 0.0
  %6411 = vmatprep.subr.mxu0 0.0
  %6412 = vmatpush1.msra.mxu0 0.0
  %6413 = vmatprep.subr.mxu0 0.0
  %6414 = vmatpush1.msra.mxu0 0.0
  %6415 = vmatprep.subr.mxu0 0.0
  %6416 = vmatpush1.msra.mxu0 0.0
  %6417 = vmatprep.subr.mxu0 0.0
  %6418 = vmatpush1.msra.mxu0 0.0
  %6419 = vmatprep.subr.mxu0 0.0
  %6420 = vmatpush1.msra.mxu0 0.0
  %6421 = vmatprep.subr.mxu0 0.0
  %6422 = vmatpush1.msra.mxu0 0.0
  %6423 = vmatprep.subr.mxu0 0.0
  %6424 = vmatpush1.msra.mxu0 0.0
  %6425 = vmatprep.subr.mxu0 0.0
  %6426 = vmatpush1.msra.mxu0 0.0
  %6427 = vmatprep.subr.mxu0 0.0
  %6428 = vmatpush1.msra.mxu0 0.0
  %6429 = vmatprep.subr.mxu0 0.0
  %6430 = vmatpush1.msra.mxu0 0.0
  %6431 = vmatprep.subr.mxu0 0.0
  %6432 = vmatpush1.msra.mxu0 0.0
  %6433 = vmatprep.subr.mxu0 0.0
  %6434 = vmatpush1.msra.mxu0 0.0
  %6435 = vmatprep.subr.mxu0 0.0
  %6436 = vmatpush1.msra.mxu0 0.0
  %6437 = vmatprep.subr.mxu0 0.0
  %6438 = vmatpush1.msra.mxu0 0.0
  %6439 = vmatprep.subr.mxu0 0.0
  %6440 = vmatpush1.msra.mxu0 0.0
  %6441 = vmatprep.mubr.f32.mxu0 0.0
  %6442 = vmatmul.mubr.f32.gmra.mrb[0].mxu0 %v6375
  %v6443 = vpop.f32.mrb[0].mxu0
  %v6444 = vadd.f32 0.0, %v6443
  %v6445 = vpop.f32.mrb[0].mxu0
  %6446 = vdwg.mxu0
  %6447 = vrot.lane.b32.xlu0 %v3998, 48
  %v6448 = vpop.permute.xlu0 %6447
  %v6451 = vsel %vm1042, %v6064, 0
  %6453 = vmatprep.subr.mxu0 0.0
  %6454 = vmatpush1.msra.mxu0 %v6448
  %6455 = vmatprep.subr.mxu0 0.0
  %6456 = vmatpush1.msra.mxu0 0.0
  %6457 = vmatprep.subr.mxu0 0.0
  %6458 = vmatpush1.msra.mxu0 0.0
  %6459 = vmatprep.subr.mxu0 0.0
  %6460 = vmatpush1.msra.mxu0 0.0
  %6461 = vmatprep.subr.mxu0 0.0
  %6462 = vmatpush1.msra.mxu0 0.0
  %6463 = vmatprep.subr.mxu0 0.0
  %6464 = vmatpush1.msra.mxu0 0.0
  %6465 = vmatprep.subr.mxu0 0.0
  %6466 = vmatpush1.msra.mxu0 0.0
  %6467 = vmatprep.subr.mxu0 0.0
  %6468 = vmatpush1.msra.mxu0 0.0
  %6469 = vmatprep.subr.mxu0 0.0
  %6470 = vmatpush1.msra.mxu0 0.0
  %6471 = vmatprep.subr.mxu0 0.0
  %6472 = vmatpush1.msra.mxu0 0.0
  %6473 = vmatprep.subr.mxu0 0.0
  %6474 = vmatpush1.msra.mxu0 0.0
  %6475 = vmatprep.subr.mxu0 0.0
  %6476 = vmatpush1.msra.mxu0 0.0
  %6477 = vmatprep.subr.mxu0 0.0
  %6478 = vmatpush1.msra.mxu0 0.0
  %6479 = vmatprep.subr.mxu0 0.0
  %6480 = vmatpush1.msra.mxu0 0.0
  %6481 = vmatprep.subr.mxu0 0.0
  %6482 = vmatpush1.msra.mxu0 0.0
  %6483 = vmatprep.subr.mxu0 0.0
  %6484 = vmatpush1.msra.mxu0 0.0
  %6485 = vmatprep.subr.mxu0 0.0
  %6486 = vmatpush1.msra.mxu0 0.0
  %6487 = vmatprep.subr.mxu0 0.0
  %6488 = vmatpush1.msra.mxu0 0.0
  %6489 = vmatprep.subr.mxu0 0.0
  %6490 = vmatpush1.msra.mxu0 0.0
  %6491 = vmatprep.subr.mxu0 0.0
  %6492 = vmatpush1.msra.mxu0 0.0
  %6493 = vmatprep.subr.mxu0 0.0
  %6494 = vmatpush1.msra.mxu0 0.0
  %6495 = vmatprep.subr.mxu0 0.0
  %6496 = vmatpush1.msra.mxu0 0.0
  %6497 = vmatprep.subr.mxu0 0.0
  %6498 = vmatpush1.msra.mxu0 0.0
  %6499 = vmatprep.subr.mxu0 0.0
  %6500 = vmatpush1.msra.mxu0 0.0
  %6501 = vmatprep.subr.mxu0 0.0
  %6502 = vmatpush1.msra.mxu0 0.0
  %6503 = vmatprep.subr.mxu0 0.0
  %6504 = vmatpush1.msra.mxu0 0.0
  %6505 = vmatprep.subr.mxu0 0.0
  %6506 = vmatpush1.msra.mxu0 0.0
  %6507 = vmatprep.subr.mxu0 0.0
  %6508 = vmatpush1.msra.mxu0 0.0
  %6509 = vmatprep.subr.mxu0 0.0
  %6510 = vmatpush1.msra.mxu0 0.0
  %6511 = vmatprep.subr.mxu0 0.0
  %6512 = vmatpush1.msra.mxu0 0.0
  %6513 = vmatprep.subr.mxu0 0.0
  %6514 = vmatpush1.msra.mxu0 0.0
  %6515 = vmatprep.subr.mxu0 0.0
  %6516 = vmatpush1.msra.mxu0 0.0
  %6517 = vmatprep.mubr.f32.mxu0 0.0
  %6518 = vmatmul.mubr.f32.gmra.mrb[0].mxu0 %v6451
  %v6519 = vpop.f32.mrb[0].mxu0
  %v6520 = vadd.f32 0.0, %v6519
  %v6521 = vpop.f32.mrb[0].mxu0
  %6522 = vdwg.mxu0
  %6523 = vrot.lane.b32.xlu0 %v4003, 48
  %v6524 = vpop.permute.xlu0 %6523
  %v6527 = vsel %vm1042, %v6065, 0
  %6529 = vmatprep.subr.mxu0 0.0
  %6530 = vmatpush1.msra.mxu0 %v6524
  %6531 = vmatprep.subr.mxu0 0.0
  %6532 = vmatpush1.msra.mxu0 0.0
  %6533 = vmatprep.subr.mxu0 0.0
  %6534 = vmatpush1.msra.mxu0 0.0
  %6535 = vmatprep.subr.mxu0 0.0
  %6536 = vmatpush1.msra.mxu0 0.0
  %6537 = vmatprep.subr.mxu0 0.0
  %6538 = vmatpush1.msra.mxu0 0.0
  %6539 = vmatprep.subr.mxu0 0.0
  %6540 = vmatpush1.msra.mxu0 0.0
  %6541 = vmatprep.subr.mxu0 0.0
  %6542 = vmatpush1.msra.mxu0 0.0
  %6543 = vmatprep.subr.mxu0 0.0
  %6544 = vmatpush1.msra.mxu0 0.0
  %6545 = vmatprep.subr.mxu0 0.0
  %6546 = vmatpush1.msra.mxu0 0.0
  %6547 = vmatprep.subr.mxu0 0.0
  %6548 = vmatpush1.msra.mxu0 0.0
  %6549 = vmatprep.subr.mxu0 0.0
  %6550 = vmatpush1.msra.mxu0 0.0
  %6551 = vmatprep.subr.mxu0 0.0
  %6552 = vmatpush1.msra.mxu0 0.0
  %6553 = vmatprep.subr.mxu0 0.0
  %6554 = vmatpush1.msra.mxu0 0.0
  %6555 = vmatprep.subr.mxu0 0.0
  %6556 = vmatpush1.msra.mxu0 0.0
  %6557 = vmatprep.subr.mxu0 0.0
  %6558 = vmatpush1.msra.mxu0 0.0
  %6559 = vmatprep.subr.mxu0 0.0
  %6560 = vmatpush1.msra.mxu0 0.0
  %6561 = vmatprep.subr.mxu0 0.0
  %6562 = vmatpush1.msra.mxu0 0.0
  %6563 = vmatprep.subr.mxu0 0.0
  %6564 = vmatpush1.msra.mxu0 0.0
  %6565 = vmatprep.subr.mxu0 0.0
  %6566 = vmatpush1.msra.mxu0 0.0
  %6567 = vmatprep.subr.mxu0 0.0
  %6568 = vmatpush1.msra.mxu0 0.0
  %6569 = vmatprep.subr.mxu0 0.0
  %6570 = vmatpush1.msra.mxu0 0.0
  %6571 = vmatprep.subr.mxu0 0.0
  %6572 = vmatpush1.msra.mxu0 0.0
  %6573 = vmatprep.subr.mxu0 0.0
  %6574 = vmatpush1.msra.mxu0 0.0
  %6575 = vmatprep.subr.mxu0 0.0
  %6576 = vmatpush1.msra.mxu0 0.0
  %6577 = vmatprep.subr.mxu0 0.0
  %6578 = vmatpush1.msra.mxu0 0.0
  %6579 = vmatprep.subr.mxu0 0.0
  %6580 = vmatpush1.msra.mxu0 0.0
  %6581 = vmatprep.subr.mxu0 0.0
  %6582 = vmatpush1.msra.mxu0 0.0
  %6583 = vmatprep.subr.mxu0 0.0
  %6584 = vmatpush1.msra.mxu0 0.0
  %6585 = vmatprep.subr.mxu0 0.0
  %6586 = vmatpush1.msra.mxu0 0.0
  %6587 = vmatprep.subr.mxu0 0.0
  %6588 = vmatpush1.msra.mxu0 0.0
  %6589 = vmatprep.subr.mxu0 0.0
  %6590 = vmatpush1.msra.mxu0 0.0
  %6591 = vmatprep.subr.mxu0 0.0
  %6592 = vmatpush1.msra.mxu0 0.0
  %6593 = vmatprep.mubr.f32.mxu0 0.0
  %6594 = vmatmul.mubr.f32.gmra.mrb[0].mxu0 %v6527
  %v6595 = vpop.f32.mrb[0].mxu0
  %v6596 = vadd.f32 0.0, %v6595
  %v6597 = vpop.f32.mrb[0].mxu0
  %6598 = vdwg.mxu0
  %6599 = vrot.lane.b32.xlu0 %v4008, 48
  %v6600 = vpop.permute.xlu0 %6599
  %v6603 = vsel %vm1042, %v6066, 0
  %6605 = vmatprep.subr.mxu0 0.0
  %6606 = vmatpush1.msra.mxu0 %v6600
  %6607 = vmatprep.subr.mxu0 0.0
  %6608 = vmatpush1.msra.mxu0 0.0
  %6609 = vmatprep.subr.mxu0 0.0
  %6610 = vmatpush1.msra.mxu0 0.0
  %6611 = vmatprep.subr.mxu0 0.0
  %6612 = vmatpush1.msra.mxu0 0.0
  %6613 = vmatprep.subr.mxu0 0.0
  %6614 = vmatpush1.msra.mxu0 0.0
  %6615 = vmatprep.subr.mxu0 0.0
  %6616 = vmatpush1.msra.mxu0 0.0
  %6617 = vmatprep.subr.mxu0 0.0
  %6618 = vmatpush1.msra.mxu0 0.0
  %6619 = vmatprep.subr.mxu0 0.0
  %6620 = vmatpush1.msra.mxu0 0.0
  %6621 = vmatprep.subr.mxu0 0.0
  %6622 = vmatpush1.msra.mxu0 0.0
  %6623 = vmatprep.subr.mxu0 0.0
  %6624 = vmatpush1.msra.mxu0 0.0
  %6625 = vmatprep.subr.mxu0 0.0
  %6626 = vmatpush1.msra.mxu0 0.0
  %6627 = vmatprep.subr.mxu0 0.0
  %6628 = vmatpush1.msra.mxu0 0.0
  %6629 = vmatprep.subr.mxu0 0.0
  %6630 = vmatpush1.msra.mxu0 0.0
  %6631 = vmatprep.subr.mxu0 0.0
  %6632 = vmatpush1.msra.mxu0 0.0
  %6633 = vmatprep.subr.mxu0 0.0
  %6634 = vmatpush1.msra.mxu0 0.0
  %6635 = vmatprep.subr.mxu0 0.0
  %6636 = vmatpush1.msra.mxu0 0.0
  %6637 = vmatprep.subr.mxu0 0.0
  %6638 = vmatpush1.msra.mxu0 0.0
  %6639 = vmatprep.subr.mxu0 0.0
  %6640 = vmatpush1.msra.mxu0 0.0
  %6641 = vmatprep.subr.mxu0 0.0
  %6642 = vmatpush1.msra.mxu0 0.0
  %6643 = vmatprep.subr.mxu0 0.0
  %6644 = vmatpush1.msra.mxu0 0.0
  %6645 = vmatprep.subr.mxu0 0.0
  %6646 = vmatpush1.msra.mxu0 0.0
  %6647 = vmatprep.subr.mxu0 0.0
  %6648 = vmatpush1.msra.mxu0 0.0
  %6649 = vmatprep.subr.mxu0 0.0
  %6650 = vmatpush1.msra.mxu0 0.0
  %6651 = vmatprep.subr.mxu0 0.0
  %6652 = vmatpush1.msra.mxu0 0.0
  %6653 = vmatprep.subr.mxu0 0.0
  %6654 = vmatpush1.msra.mxu0 0.0
  %6655 = vmatprep.subr.mxu0 0.0
  %6656 = vmatpush1.msra.mxu0 0.0
  %6657 = vmatprep.subr.mxu0 0.0
  %6658 = vmatpush1.msra.mxu0 0.0
  %6659 = vmatprep.subr.mxu0 0.0
  %6660 = vmatpush1.msra.mxu0 0.0
  %6661 = vmatprep.subr.mxu0 0.0
  %6662 = vmatpush1.msra.mxu0 0.0
  %6663 = vmatprep.subr.mxu0 0.0
  %6664 = vmatpush1.msra.mxu0 0.0
  %6665 = vmatprep.subr.mxu0 0.0
  %6666 = vmatpush1.msra.mxu0 0.0
  %6667 = vmatprep.subr.mxu0 0.0
  %6668 = vmatpush1.msra.mxu0 0.0
  %6669 = vmatprep.mubr.f32.mxu0 0.0
  %6670 = vmatmul.mubr.f32.gmra.mrb[0].mxu0 %v6603
  %v6671 = vpop.f32.mrb[0].mxu0
  %v6672 = vadd.f32 0.0, %v6671
  %v6673 = vpop.f32.mrb[0].mxu0
  %6674 = vdwg.mxu0
  %6683 = vrot.lane.b32.xlu0 %v6140, 16
  %v6684 = vpop.permute.xlu0 %6683
  %6685 = vrot.lane.b32.xlu0 %v6216, 16
  %v6686 = vpop.permute.xlu0 %6685
  %6687 = vrot.lane.b32.xlu0 %v6292, 16
  %v6688 = vpop.permute.xlu0 %6687
  %6689 = vrot.lane.b32.xlu0 %v6368, 16
  %v6690 = vpop.permute.xlu0 %6689
  %6691 = vrot.lane.b32.xlu0 %v6444, 16
  %v6692 = vpop.permute.xlu0 %6691
  %6693 = vrot.lane.b32.xlu0 %v6520, 16
  %v6694 = vpop.permute.xlu0 %6693
  %6695 = vrot.lane.b32.xlu0 %v6596, 16
  %v6696 = vpop.permute.xlu0 %6695
  %6697 = vrot.lane.b32.xlu0 %v6672, 16
  %v6698 = vpop.permute.xlu0 %6697
  %v6707 = vsel %vm364, %v4804, %v6684
  %v6708 = vsel %vm364, %v4880, %v6686
  %v6709 = vsel %vm364, %v4956, %v6688
  %v6710 = vsel %vm364, %v5032, %v6690
  %v6711 = vsel %vm364, %v5108, %v6692
  %v6712 = vsel %vm364, %v5184, %v6694
  %v6713 = vsel %vm364, %v5260, %v6696
  %v6714 = vsel %vm364, %v5336, %v6698
  %s6715 = scalar_lea.vmem %s5, 32
  %v6716 = vld [vmem:[%s6715] sm:$0xff]
  %v6717 = vld [vmem:[%s6715 + $0x8] sm:$0xff]
  %v6718 = vld [vmem:[%s6715 + $0x10] sm:$0xff]
  %v6719 = vld [vmem:[%s6715 + $0x18] sm:$0xff]
  %s6720 = scalar_lea.vmem %s6, 1
  %v6721 = vld [vmem:[%s6720] sm:$0x1]
  %v6723 = vlaneseq
  %v6724 = vshrl.u32 %v6723, 7
  %v6725 = vsub.s32 0, %v6724
  %v6726 = vrot.slane %v6721, %v6725
  %v6729 = vsel %vm67, %v6707, 0
  %v6732 = vsel %vm67, %v6708, 0
  %v6735 = vsel %vm67, %v6709, 0
  %v6738 = vsel %vm67, %v6710, 0
  %v6741 = vsel %vm67, %v6711, 0
  %v6744 = vsel %vm67, %v6712, 0
  %v6747 = vsel %vm67, %v6713, 0
  %v6750 = vsel %vm67, %v6714, 0
  %6752 = vmatprep.subr.mxu0 0.0
  %6753 = vmatpush1.msra.mxu0 %v6716
  %6754 = vmatprep.subr.mxu0 0.0
  %6755 = vmatpush1.msra.mxu0 %v6717
  %6756 = vmatprep.subr.mxu0 0.0
  %6757 = vmatpush1.msra.mxu0 %v6718
  %6758 = vmatprep.subr.mxu0 0.0
  %6759 = vmatpush1.msra.mxu0 %v6719
  %6760 = vmatprep.subr.mxu0 0.0
  %6761 = vmatpush1.msra.mxu0 0.0
  %6762 = vmatprep.subr.mxu0 0.0
  %6763 = vmatpush1.msra.mxu0 0.0
  %6764 = vmatprep.subr.mxu0 0.0
  %6765 = vmatpush1.msra.mxu0 0.0
  %6766 = vmatprep.subr.mxu0 0.0
  %6767 = vmatpush1.msra.mxu0 0.0
  %6768 = vmatprep.subr.mxu0 0.0
  %6769 = vmatpush1.msra.mxu0 0.0
  %6770 = vmatprep.subr.mxu0 0.0
  %6771 = vmatpush1.msra.mxu0 0.0
  %6772 = vmatprep.subr.mxu0 0.0
  %6773 = vmatpush1.msra.mxu0 0.0
  %6774 = vmatprep.subr.mxu0 0.0
  %6775 = vmatpush1.msra.mxu0 0.0
  %6776 = vmatprep.subr.mxu0 0.0
  %6777 = vmatpush1.msra.mxu0 0.0
  %6778 = vmatprep.subr.mxu0 0.0
  %6779 = vmatpush1.msra.mxu0 0.0
  %6780 = vmatprep.subr.mxu0 0.0
  %6781 = vmatpush1.msra.mxu0 0.0
  %6782 = vmatprep.subr.mxu0 0.0
  %6783 = vmatpush1.msra.mxu0 0.0
  %6784 = vmatprep.subr.mxu0 0.0
  %6785 = vmatpush1.msra.mxu0 0.0
  %6786 = vmatprep.subr.mxu0 0.0
  %6787 = vmatpush1.msra.mxu0 0.0
  %6788 = vmatprep.subr.mxu0 0.0
  %6789 = vmatpush1.msra.mxu0 0.0
  %6790 = vmatprep.subr.mxu0 0.0
  %6791 = vmatpush1.msra.mxu0 0.0
  %6792 = vmatprep.subr.mxu0 0.0
  %6793 = vmatpush1.msra.mxu0 0.0
  %6794 = vmatprep.subr.mxu0 0.0
  %6795 = vmatpush1.msra.mxu0 0.0
  %6796 = vmatprep.subr.mxu0 0.0
  %6797 = vmatpush1.msra.mxu0 0.0
  %6798 = vmatprep.subr.mxu0 0.0
  %6799 = vmatpush1.msra.mxu0 0.0
  %6800 = vmatprep.subr.mxu0 0.0
  %6801 = vmatpush1.msra.mxu0 0.0
  %6802 = vmatprep.subr.mxu0 0.0
  %6803 = vmatpush1.msra.mxu0 0.0
  %6804 = vmatprep.subr.mxu0 0.0
  %6805 = vmatpush1.msra.mxu0 0.0
  %6806 = vmatprep.subr.mxu0 0.0
  %6807 = vmatpush1.msra.mxu0 0.0
  %6808 = vmatprep.subr.mxu0 0.0
  %6809 = vmatpush1.msra.mxu0 0.0
  %6810 = vmatprep.subr.mxu0 0.0
  %6811 = vmatpush1.msra.mxu0 0.0
  %6812 = vmatprep.subr.mxu0 0.0
  %6813 = vmatpush1.msra.mxu0 0.0
  %6814 = vmatprep.subr.mxu0 0.0
  %6815 = vmatpush1.msra.mxu0 0.0
  %6816 = vmatprep.mubr.f32.mxu0 0.0
  %6817 = vmatmul.mubr.f32.gmra.mrb[0].mxu0 %v6729
  %v6818 = vpop.f32.mrb[0].mxu0
  %v6819 = vadd.f32 %v6726, %v6818
  %v6820 = vpop.f32.mrb[0].mxu0
  %6821 = vmatprep.mubr.f32.mxu0 0.0
  %6822 = vmatmul.mubr.f32.gmra.mrb[0].mxu0 %v6732
  %v6823 = vpop.f32.mrb[0].mxu0
  %v6824 = vadd.f32 %v6726, %v6823
  %v6825 = vpop.f32.mrb[0].mxu0
  %6826 = vmatprep.mubr.f32.mxu0 0.0
  %6827 = vmatmul.mubr.f32.gmra.mrb[0].mxu0 %v6735
  %v6828 = vpop.f32.mrb[0].mxu0
  %v6829 = vadd.f32 %v6726, %v6828
  %v6830 = vpop.f32.mrb[0].mxu0
  %6831 = vmatprep.mubr.f32.mxu0 0.0
  %6832 = vmatmul.mubr.f32.gmra.mrb[0].mxu0 %v6738
  %v6833 = vpop.f32.mrb[0].mxu0
  %v6834 = vadd.f32 %v6726, %v6833
  %v6835 = vpop.f32.mrb[0].mxu0
  %6836 = vmatprep.mubr.f32.mxu0 0.0
  %6837 = vmatmul.mubr.f32.gmra.mrb[0].mxu0 %v6741
  %v6838 = vpop.f32.mrb[0].mxu0
  %v6839 = vadd.f32 %v6726, %v6838
  %v6840 = vpop.f32.mrb[0].mxu0
  %6841 = vmatprep.mubr.f32.mxu0 0.0
  %6842 = vmatmul.mubr.f32.gmra.mrb[0].mxu0 %v6744
  %v6843 = vpop.f32.mrb[0].mxu0
  %v6844 = vadd.f32 %v6726, %v6843
  %v6845 = vpop.f32.mrb[0].mxu0
  %6846 = vmatprep.mubr.f32.mxu0 0.0
  %6847 = vmatmul.mubr.f32.gmra.mrb[0].mxu0 %v6747
  %v6848 = vpop.f32.mrb[0].mxu0
  %v6849 = vadd.f32 %v6726, %v6848
  %v6850 = vpop.f32.mrb[0].mxu0
  %6851 = vmatprep.mubr.f32.mxu0 0.0
  %6852 = vmatmul.mubr.f32.gmra.mrb[0].mxu0 %v6750
  %v6853 = vpop.f32.mrb[0].mxu0
  %v6854 = vadd.f32 %v6726, %v6853
  %v6855 = vpop.f32.mrb[0].mxu0
  %6856 = vdwg.mxu0
  %s6857 = scalar_lea.vmem %s7, 2
  %v6858 = vld [vmem:[%s6857] sm:$0x3]
  %v6859 = vadd.f32 %v3861, %v6819
  %v6860 = vadd.f32 %v3862, %v6824
  %v6861 = vadd.f32 %v3863, %v6829
  %v6862 = vadd.f32 %v3864, %v6834
  %v6863 = vadd.f32 %v3865, %v6839
  %v6864 = vadd.f32 %v3866, %v6844
  %v6865 = vadd.f32 %v3867, %v6849
  %v6866 = vadd.f32 %v3868, %v6854
  %v6867 = vsel %vm67, %v6859, 0.0
  %6868 = vadd.xlane.f32.xlu0 %v6867
  %v6869 = vpop.xlane.xlu0 %6868
  %v6870 = vsel %vm67, %v6860, 0.0
  %6871 = vadd.xlane.f32.xlu0 %v6870
  %v6872 = vpop.xlane.xlu0 %6871
  %v6873 = vsel %vm67, %v6861, 0.0
  %6874 = vadd.xlane.f32.xlu0 %v6873
  %v6875 = vpop.xlane.xlu0 %6874
  %v6876 = vsel %vm67, %v6862, 0.0
  %6877 = vadd.xlane.f32.xlu0 %v6876
  %v6878 = vpop.xlane.xlu0 %6877
  %v6879 = vsel %vm67, %v6863, 0.0
  %6880 = vadd.xlane.f32.xlu0 %v6879
  %v6881 = vpop.xlane.xlu0 %6880
  %v6882 = vsel %vm67, %v6864, 0.0
  %6883 = vadd.xlane.f32.xlu0 %v6882
  %v6884 = vpop.xlane.xlu0 %6883
  %v6885 = vsel %vm67, %v6865, 0.0
  %6886 = vadd.xlane.f32.xlu0 %v6885
  %v6887 = vpop.xlane.xlu0 %6886
  %v6888 = vsel %vm67, %v6866, 0.0
  %6889 = vadd.xlane.f32.xlu0 %v6888
  %v6890 = vpop.xlane.xlu0 %6889
  %v6891 = vmul.f32 %v6869, %v92
  %v6892 = vmul.f32 %v6872, %v92
  %v6893 = vmul.f32 %v6875, %v92
  %v6894 = vmul.f32 %v6878, %v92
  %v6895 = vmul.f32 %v6881, %v92
  %v6896 = vmul.f32 %v6884, %v92
  %v6897 = vmul.f32 %v6887, %v92
  %v6898 = vmul.f32 %v6890, %v92
  %v6899 = vsub.f32 %v6859, %v6891
  %v6900 = vsub.f32 %v6860, %v6892
  %v6901 = vsub.f32 %v6861, %v6893
  %v6902 = vsub.f32 %v6862, %v6894
  %v6903 = vsub.f32 %v6863, %v6895
  %v6904 = vsub.f32 %v6864, %v6896
  %v6905 = vsub.f32 %v6865, %v6897
  %v6906 = vsub.f32 %v6866, %v6898
  %v6907 = vmul.f32 %v6899, %v6899
  %v6908 = vmul.f32 %v6900, %v6900
  %v6909 = vmul.f32 %v6901, %v6901
  %v6910 = vmul.f32 %v6902, %v6902
  %v6911 = vmul.f32 %v6903, %v6903
  %v6912 = vmul.f32 %v6904, %v6904
  %v6913 = vmul.f32 %v6905, %v6905
  %v6914 = vmul.f32 %v6906, %v6906
  %v6915 = vsel %vm67, %v6907, 0.0
  %6916 = vadd.xlane.f32.xlu0 %v6915
  %v6917 = vpop.xlane.xlu0 %6916
  %v6918 = vsel %vm67, %v6908, 0.0
  %6919 = vadd.xlane.f32.xlu0 %v6918
  %v6920 = vpop.xlane.xlu0 %6919
  %v6921 = vsel %vm67, %v6909, 0.0
  %6922 = vadd.xlane.f32.xlu0 %v6921
  %v6923 = vpop.xlane.xlu0 %6922
  %v6924 = vsel %vm67, %v6910, 0.0
  %6925 = vadd.xlane.f32.xlu0 %v6924
  %v6926 = vpop.xlane.xlu0 %6925
  %v6927 = vsel %vm67, %v6911, 0.0
  %6928 = vadd.xlane.f32.xlu0 %v6927
  %v6929 = vpop.xlane.xlu0 %6928
  %v6930 = vsel %vm67, %v6912, 0.0
  %6931 = vadd.xlane.f32.xlu0 %v6930
  %v6932 = vpop.xlane.xlu0 %6931
  %v6933 = vsel %vm67, %v6913, 0.0
  %6934 = vadd.xlane.f32.xlu0 %v6933
  %v6935 = vpop.xlane.xlu0 %6934
  %v6936 = vsel %vm67, %v6914, 0.0
  %6937 = vadd.xlane.f32.xlu0 %v6936
  %v6938 = vpop.xlane.xlu0 %6937
  %v6939 = vmul.f32 %v6917, %v92
  %v6940 = vmul.f32 %v6920, %v92
  %v6941 = vmul.f32 %v6923, %v92
  %v6942 = vmul.f32 %v6926, %v92
  %v6943 = vmul.f32 %v6929, %v92
  %v6944 = vmul.f32 %v6932, %v92
  %v6945 = vmul.f32 %v6935, %v92
  %v6946 = vmul.f32 %v6938, %v92
  %v6947 = vadd.f32 %v6939, 1e-05
  %v6948 = vadd.f32 %v6940, 1e-05
  %v6949 = vadd.f32 %v6941, 1e-05
  %v6950 = vadd.f32 %v6942, 1e-05
  %v6951 = vadd.f32 %v6943, 1e-05
  %v6952 = vadd.f32 %v6944, 1e-05
  %v6953 = vadd.f32 %v6945, 1e-05
  %v6954 = vadd.f32 %v6946, 1e-05
  %v6955 = vrsqrt.pop %v6947
  %v6956 = vrsqrt.pop %v6948
  %v6957 = vrsqrt.pop %v6949
  %v6958 = vrsqrt.pop %v6950
  %v6959 = vrsqrt.pop %v6951
  %v6960 = vrsqrt.pop %v6952
  %v6961 = vrsqrt.pop %v6953
  %v6962 = vrsqrt.pop %v6954
  %v6963 = vmul.f32 %v6899, %v6955
  %v6964 = vmul.f32 %v6900, %v6956
  %v6965 = vmul.f32 %v6901, %v6957
  %v6966 = vmul.f32 %v6902, %v6958
  %v6967 = vmul.f32 %v6903, %v6959
  %v6968 = vmul.f32 %v6904, %v6960
  %v6969 = vmul.f32 %v6905, %v6961
  %v6970 = vmul.f32 %v6906, %v6962
  %v6971 = vlaneseq
  %v6972 = vshrl.u32 %v6971, 7
  %v6973 = vsub.s32 0, %v6972
  %v6974 = vrot.slane %v6858, %v6973
  %v6975 = vmul.f32 %v6963, %v6974
  %v6976 = vmul.f32 %v6964, %v6974
  %v6977 = vmul.f32 %v6965, %v6974
  %v6978 = vmul.f32 %v6966, %v6974
  %v6979 = vmul.f32 %v6967, %v6974
  %v6980 = vmul.f32 %v6968, %v6974
  %v6981 = vmul.f32 %v6969, %v6974
  %v6982 = vmul.f32 %v6970, %v6974
  %v6983 = vlaneseq
  %v6984 = vshrl.u32 %v6983, 7
  %v6985 = vsub.s32 1, %v6984
  %v6986 = vrot.slane %v6858, %v6985
  %v6987 = vadd.f32 %v6975, %v6986
  %v6988 = vadd.f32 %v6976, %v6986
  %v6989 = vadd.f32 %v6977, %v6986
  %v6990 = vadd.f32 %v6978, %v6986
  %v6991 = vadd.f32 %v6979, %v6986
  %v6992 = vadd.f32 %v6980, %v6986
  %v6993 = vadd.f32 %v6981, %v6986
  %v6994 = vadd.f32 %v6982, %v6986
  %s6995 = scalar_lea.vmem %s8, 32
  %v6996 = vld [vmem:[%s6995] sm:$0xff]
  %v6997 = vld [vmem:[%s6995 + $0x8] sm:$0xff]
  %v6998 = vld [vmem:[%s6995 + $0x10] sm:$0xff]
  %v6999 = vld [vmem:[%s6995 + $0x18] sm:$0xff]
  %s7000 = scalar_lea.vmem %s9, 1
  %v7001 = vld [vmem:[%s7000] sm:$0x1]
  %v7003 = vlaneseq
  %v7004 = vshrl.u32 %v7003, 7
  %v7005 = vsub.s32 0, %v7004
  %v7006 = vrot.slane %v7001, %v7005
  %v7009 = vsel %vm67, %v6987, 0
  %v7012 = vsel %vm67, %v6988, 0
  %v7015 = vsel %vm67, %v6989, 0
  %v7018 = vsel %vm67, %v6990, 0
  %v7021 = vsel %vm67, %v6991, 0
  %v7024 = vsel %vm67, %v6992, 0
  %v7027 = vsel %vm67, %v6993, 0
  %v7030 = vsel %vm67, %v6994, 0
  %7032 = vmatprep.subr.mxu0 0.0
  %7033 = vmatpush1.msra.mxu0 %v6996
  %7034 = vmatprep.subr.mxu0 0.0
  %7035 = vmatpush1.msra.mxu0 %v6997
  %7036 = vmatprep.subr.mxu0 0.0
  %7037 = vmatpush1.msra.mxu0 %v6998
  %7038 = vmatprep.subr.mxu0 0.0
  %7039 = vmatpush1.msra.mxu0 %v6999
  %7040 = vmatprep.subr.mxu0 0.0
  %7041 = vmatpush1.msra.mxu0 0.0
  %7042 = vmatprep.subr.mxu0 0.0
  %7043 = vmatpush1.msra.mxu0 0.0
  %7044 = vmatprep.subr.mxu0 0.0
  %7045 = vmatpush1.msra.mxu0 0.0
  %7046 = vmatprep.subr.mxu0 0.0
  %7047 = vmatpush1.msra.mxu0 0.0
  %7048 = vmatprep.subr.mxu0 0.0
  %7049 = vmatpush1.msra.mxu0 0.0
  %7050 = vmatprep.subr.mxu0 0.0
  %7051 = vmatpush1.msra.mxu0 0.0
  %7052 = vmatprep.subr.mxu0 0.0
  %7053 = vmatpush1.msra.mxu0 0.0
  %7054 = vmatprep.subr.mxu0 0.0
  %7055 = vmatpush1.msra.mxu0 0.0
  %7056 = vmatprep.subr.mxu0 0.0
  %7057 = vmatpush1.msra.mxu0 0.0
  %7058 = vmatprep.subr.mxu0 0.0
  %7059 = vmatpush1.msra.mxu0 0.0
  %7060 = vmatprep.subr.mxu0 0.0
  %7061 = vmatpush1.msra.mxu0 0.0
  %7062 = vmatprep.subr.mxu0 0.0
  %7063 = vmatpush1.msra.mxu0 0.0
  %7064 = vmatprep.subr.mxu0 0.0
  %7065 = vmatpush1.msra.mxu0 0.0
  %7066 = vmatprep.subr.mxu0 0.0
  %7067 = vmatpush1.msra.mxu0 0.0
  %7068 = vmatprep.subr.mxu0 0.0
  %7069 = vmatpush1.msra.mxu0 0.0
  %7070 = vmatprep.subr.mxu0 0.0
  %7071 = vmatpush1.msra.mxu0 0.0
  %7072 = vmatprep.subr.mxu0 0.0
  %7073 = vmatpush1.msra.mxu0 0.0
  %7074 = vmatprep.subr.mxu0 0.0
  %7075 = vmatpush1.msra.mxu0 0.0
  %7076 = vmatprep.subr.mxu0 0.0
  %7077 = vmatpush1.msra.mxu0 0.0
  %7078 = vmatprep.subr.mxu0 0.0
  %7079 = vmatpush1.msra.mxu0 0.0
  %7080 = vmatprep.subr.mxu0 0.0
  %7081 = vmatpush1.msra.mxu0 0.0
  %7082 = vmatprep.subr.mxu0 0.0
  %7083 = vmatpush1.msra.mxu0 0.0
  %7084 = vmatprep.subr.mxu0 0.0
  %7085 = vmatpush1.msra.mxu0 0.0
  %7086 = vmatprep.subr.mxu0 0.0
  %7087 = vmatpush1.msra.mxu0 0.0
  %7088 = vmatprep.subr.mxu0 0.0
  %7089 = vmatpush1.msra.mxu0 0.0
  %7090 = vmatprep.subr.mxu0 0.0
  %7091 = vmatpush1.msra.mxu0 0.0
  %7092 = vmatprep.subr.mxu0 0.0
  %7093 = vmatpush1.msra.mxu0 0.0
  %7094 = vmatprep.subr.mxu0 0.0
  %7095 = vmatpush1.msra.mxu0 0.0
  %7096 = vmatprep.mubr.f32.mxu0 0.0
  %7097 = vmatmul.mubr.f32.gmra.mrb[0].mxu0 %v7009
  %v7098 = vpop.f32.mrb[0].mxu0
  %v7099 = vadd.f32 %v7006, %v7098
  %v7100 = vpop.f32.mrb[0].mxu0
  %7101 = vmatprep.mubr.f32.mxu0 0.0
  %7102 = vmatmul.mubr.f32.gmra.mrb[0].mxu0 %v7012
  %v7103 = vpop.f32.mrb[0].mxu0
  %v7104 = vadd.f32 %v7006, %v7103
  %v7105 = vpop.f32.mrb[0].mxu0
  %7106 = vmatprep.mubr.f32.mxu0 0.0
  %7107 = vmatmul.mubr.f32.gmra.mrb[0].mxu0 %v7015
  %v7108 = vpop.f32.mrb[0].mxu0
  %v7109 = vadd.f32 %v7006, %v7108
  %v7110 = vpop.f32.mrb[0].mxu0
  %7111 = vmatprep.mubr.f32.mxu0 0.0
  %7112 = vmatmul.mubr.f32.gmra.mrb[0].mxu0 %v7018
  %v7113 = vpop.f32.mrb[0].mxu0
  %v7114 = vadd.f32 %v7006, %v7113
  %v7115 = vpop.f32.mrb[0].mxu0
  %7116 = vmatprep.mubr.f32.mxu0 0.0
  %7117 = vmatmul.mubr.f32.gmra.mrb[0].mxu0 %v7021
  %v7118 = vpop.f32.mrb[0].mxu0
  %v7119 = vadd.f32 %v7006, %v7118
  %v7120 = vpop.f32.mrb[0].mxu0
  %7121 = vmatprep.mubr.f32.mxu0 0.0
  %7122 = vmatmul.mubr.f32.gmra.mrb[0].mxu0 %v7024
  %v7123 = vpop.f32.mrb[0].mxu0
  %v7124 = vadd.f32 %v7006, %v7123
  %v7125 = vpop.f32.mrb[0].mxu0
  %7126 = vmatprep.mubr.f32.mxu0 0.0
  %7127 = vmatmul.mubr.f32.gmra.mrb[0].mxu0 %v7027
  %v7128 = vpop.f32.mrb[0].mxu0
  %v7129 = vadd.f32 %v7006, %v7128
  %v7130 = vpop.f32.mrb[0].mxu0
  %7131 = vmatprep.mubr.f32.mxu0 0.0
  %7132 = vmatmul.mubr.f32.gmra.mrb[0].mxu0 %v7030
  %v7133 = vpop.f32.mrb[0].mxu0
  %v7134 = vadd.f32 %v7006, %v7133
  %v7135 = vpop.f32.mrb[0].mxu0
  %7136 = vdwg.mxu0
  %v7137 = vmul.f32 %v7099, %v7099
  %v7138 = vmul.f32 %v7104, %v7104
  %v7139 = vmul.f32 %v7109, %v7109
  %v7140 = vmul.f32 %v7114, %v7114
  %v7141 = vmul.f32 %v7119, %v7119
  %v7142 = vmul.f32 %v7124, %v7124
  %v7143 = vmul.f32 %v7129, %v7129
  %v7144 = vmul.f32 %v7134, %v7134
  %v7145 = vmul.f32 %v7099, %v7137
  %v7146 = vmul.f32 %v7104, %v7138
  %v7147 = vmul.f32 %v7109, %v7139
  %v7148 = vmul.f32 %v7114, %v7140
  %v7149 = vmul.f32 %v7119, %v7141
  %v7150 = vmul.f32 %v7124, %v7142
  %v7151 = vmul.f32 %v7129, %v7143
  %v7152 = vmul.f32 %v7134, %v7144
  %v7153 = vmul.f32 %v7145, 0.044715
  %v7154 = vmul.f32 %v7146, 0.044715
  %v7155 = vmul.f32 %v7147, 0.044715
  %v7156 = vmul.f32 %v7148, 0.044715
  %v7157 = vmul.f32 %v7149, 0.044715
  %v7158 = vmul.f32 %v7150, 0.044715
  %v7159 = vmul.f32 %v7151, 0.044715
  %v7160 = vmul.f32 %v7152, 0.044715
  %v7161 = vadd.f32 %v7099, %v7153
  %v7162 = vadd.f32 %v7104, %v7154
  %v7163 = vadd.f32 %v7109, %v7155
  %v7164 = vadd.f32 %v7114, %v7156
  %v7165 = vadd.f32 %v7119, %v7157
  %v7166 = vadd.f32 %v7124, %v7158
  %v7167 = vadd.f32 %v7129, %v7159
  %v7168 = vadd.f32 %v7134, %v7160
  %v7169 = vmul.f32 %v7161, 0.7978846
  %v7170 = vmul.f32 %v7162, 0.7978846
  %v7171 = vmul.f32 %v7163, 0.7978846
  %v7172 = vmul.f32 %v7164, 0.7978846
  %v7173 = vmul.f32 %v7165, 0.7978846
  %v7174 = vmul.f32 %v7166, 0.7978846
  %v7175 = vmul.f32 %v7167, 0.7978846
  %v7176 = vmul.f32 %v7168, 0.7978846
  %v7177 = vtanh.pop %v7169
  %v7178 = vtanh.pop %v7170
  %v7179 = vtanh.pop %v7171
  %v7180 = vtanh.pop %v7172
  %v7181 = vtanh.pop %v7173
  %v7182 = vtanh.pop %v7174
  %v7183 = vtanh.pop %v7175
  %v7184 = vtanh.pop %v7176
  %v7185 = vadd.f32 %v7177, 1.0
  %v7186 = vadd.f32 %v7178, 1.0
  %v7187 = vadd.f32 %v7179, 1.0
  %v7188 = vadd.f32 %v7180, 1.0
  %v7189 = vadd.f32 %v7181, 1.0
  %v7190 = vadd.f32 %v7182, 1.0
  %v7191 = vadd.f32 %v7183, 1.0
  %v7192 = vadd.f32 %v7184, 1.0
  %v7193 = vmul.f32 %v7185, 0.5
  %v7194 = vmul.f32 %v7186, 0.5
  %v7195 = vmul.f32 %v7187, 0.5
  %v7196 = vmul.f32 %v7188, 0.5
  %v7197 = vmul.f32 %v7189, 0.5
  %v7198 = vmul.f32 %v7190, 0.5
  %v7199 = vmul.f32 %v7191, 0.5
  %v7200 = vmul.f32 %v7192, 0.5
  %v7201 = vmul.f32 %v7099, %v7193
  %v7202 = vmul.f32 %v7104, %v7194
  %v7203 = vmul.f32 %v7109, %v7195
  %v7204 = vmul.f32 %v7114, %v7196
  %v7205 = vmul.f32 %v7119, %v7197
  %v7206 = vmul.f32 %v7124, %v7198
  %v7207 = vmul.f32 %v7129, %v7199
  %v7208 = vmul.f32 %v7134, %v7200
  %s7209 = scalar_lea.vmem %s10, 128
  %v7210 = vld [vmem:[%s7209] sm:$0xff]
  %v7211 = vld [vmem:[%s7209 + $0x8] sm:$0xff]
  %v7212 = vld [vmem:[%s7209 + $0x10] sm:$0xff]
  %v7213 = vld [vmem:[%s7209 + $0x18] sm:$0xff]
  %v7214 = vld [vmem:[%s7209 + $0x20] sm:$0xff]
  %v7215 = vld [vmem:[%s7209 + $0x28] sm:$0xff]
  %v7216 = vld [vmem:[%s7209 + $0x30] sm:$0xff]
  %v7217 = vld [vmem:[%s7209 + $0x38] sm:$0xff]
  %v7218 = vld [vmem:[%s7209 + $0x40] sm:$0xff]
  %v7219 = vld [vmem:[%s7209 + $0x48] sm:$0xff]
  %v7220 = vld [vmem:[%s7209 + $0x50] sm:$0xff]
  %v7221 = vld [vmem:[%s7209 + $0x58] sm:$0xff]
  %v7222 = vld [vmem:[%s7209 + $0x60] sm:$0xff]
  %v7223 = vld [vmem:[%s7209 + $0x68] sm:$0xff]
  %v7224 = vld [vmem:[%s7209 + $0x70] sm:$0xff]
  %v7225 = vld [vmem:[%s7209 + $0x78] sm:$0xff]
  %s7226 = scalar_lea.vmem %s11, 1
  %v7227 = vld [vmem:[%s7226] sm:$0x1]
  %v7229 = vlaneseq
  %v7230 = vshrl.u32 %v7229, 7
  %v7231 = vsub.s32 0, %v7230
  %v7232 = vrot.slane %v7227, %v7231
  %7234 = vmatprep.subr.mxu0 0.0
  %7235 = vmatpush1.msra.mxu0 %v7210
  %7236 = vmatprep.subr.mxu0 0.0
  %7237 = vmatpush1.msra.mxu0 %v7211
  %7238 = vmatprep.subr.mxu0 0.0
  %7239 = vmatpush1.msra.mxu0 %v7212
  %7240 = vmatprep.subr.mxu0 0.0
  %7241 = vmatpush1.msra.mxu0 %v7213
  %7242 = vmatprep.subr.mxu0 0.0
  %7243 = vmatpush1.msra.mxu0 %v7214
  %7244 = vmatprep.subr.mxu0 0.0
  %7245 = vmatpush1.msra.mxu0 %v7215
  %7246 = vmatprep.subr.mxu0 0.0
  %7247 = vmatpush1.msra.mxu0 %v7216
  %7248 = vmatprep.subr.mxu0 0.0
  %7249 = vmatpush1.msra.mxu0 %v7217
  %7250 = vmatprep.subr.mxu0 0.0
  %7251 = vmatpush1.msra.mxu0 %v7218
  %7252 = vmatprep.subr.mxu0 0.0
  %7253 = vmatpush1.msra.mxu0 %v7219
  %7254 = vmatprep.subr.mxu0 0.0
  %7255 = vmatpush1.msra.mxu0 %v7220
  %7256 = vmatprep.subr.mxu0 0.0
  %7257 = vmatpush1.msra.mxu0 %v7221
  %7258 = vmatprep.subr.mxu0 0.0
  %7259 = vmatpush1.msra.mxu0 %v7222
  %7260 = vmatprep.subr.mxu0 0.0
  %7261 = vmatpush1.msra.mxu0 %v7223
  %7262 = vmatprep.subr.mxu0 0.0
  %7263 = vmatpush1.msra.mxu0 %v7224
  %7264 = vmatprep.subr.mxu0 0.0
  %7265 = vmatpush1.msra.mxu0 %v7225
  %7266 = vmatprep.subr.mxu0 0.0
  %7267 = vmatpush1.msra.mxu0 0.0
  %7268 = vmatprep.subr.mxu0 0.0
  %7269 = vmatpush1.msra.mxu0 0.0
  %7270 = vmatprep.subr.mxu0 0.0
  %7271 = vmatpush1.msra.mxu0 0.0
  %7272 = vmatprep.subr.mxu0 0.0
  %7273 = vmatpush1.msra.mxu0 0.0
  %7274 = vmatprep.subr.mxu0 0.0
  %7275 = vmatpush1.msra.mxu0 0.0
  %7276 = vmatprep.subr.mxu0 0.0
  %7277 = vmatpush1.msra.mxu0 0.0
  %7278 = vmatprep.subr.mxu0 0.0
  %7279 = vmatpush1.msra.mxu0 0.0
  %7280 = vmatprep.subr.mxu0 0.0
  %7281 = vmatpush1.msra.mxu0 0.0
  %7282 = vmatprep.subr.mxu0 0.0
  %7283 = vmatpush1.msra.mxu0 0.0
  %7284 = vmatprep.subr.mxu0 0.0
  %7285 = vmatpush1.msra.mxu0 0.0
  %7286 = vmatprep.subr.mxu0 0.0
  %7287 = vmatpush1.msra.mxu0 0.0
  %7288 = vmatprep.subr.mxu0 0.0
  %7289 = vmatpush1.msra.mxu0 0.0
  %7290 = vmatprep.subr.mxu0 0.0
  %7291 = vmatpush1.msra.mxu0 0.0
  %7292 = vmatprep.subr.mxu0 0.0
  %7293 = vmatpush1.msra.mxu0 0.0
  %7294 = vmatprep.subr.mxu0 0.0
  %7295 = vmatpush1.msra.mxu0 0.0
  %7296 = vmatprep.subr.mxu0 0.0
  %7297 = vmatpush1.msra.mxu0 0.0
  %7298 = vmatprep.mubr.f32.mxu0 0.0
  %7299 = vmatmul.mubr.f32.gmra.mrb[0].mxu0 %v7201
  %v7300 = vpop.f32.mrb[0].mxu0
  %v7301 = vadd.f32 %v7232, %v7300
  %v7302 = vpop.f32.mrb[0].mxu0
  %7303 = vmatprep.mubr.f32.mxu0 0.0
  %7304 = vmatmul.mubr.f32.gmra.mrb[0].mxu0 %v7202
  %v7305 = vpop.f32.mrb[0].mxu0
  %v7306 = vadd.f32 %v7232, %v7305
  %v7307 = vpop.f32.mrb[0].mxu0
  %7308 = vmatprep.mubr.f32.mxu0 0.0
  %7309 = vmatmul.mubr.f32.gmra.mrb[0].mxu0 %v7203
  %v7310 = vpop.f32.mrb[0].mxu0
  %v7311 = vadd.f32 %v7232, %v7310
  %v7312 = vpop.f32.mrb[0].mxu0
  %7313 = vmatprep.mubr.f32.mxu0 0.0
  %7314 = vmatmul.mubr.f32.gmra.mrb[0].mxu0 %v7204
  %v7315 = vpop.f32.mrb[0].mxu0
  %v7316 = vadd.f32 %v7232, %v7315
  %v7317 = vpop.f32.mrb[0].mxu0
  %7318 = vmatprep.mubr.f32.mxu0 0.0
  %7319 = vmatmul.mubr.f32.gmra.mrb[0].mxu0 %v7205
  %v7320 = vpop.f32.mrb[0].mxu0
  %v7321 = vadd.f32 %v7232, %v7320
  %v7322 = vpop.f32.mrb[0].mxu0
  %7323 = vmatprep.mubr.f32.mxu0 0.0
  %7324 = vmatmul.mubr.f32.gmra.mrb[0].mxu0 %v7206
  %v7325 = vpop.f32.mrb[0].mxu0
  %v7326 = vadd.f32 %v7232, %v7325
  %v7327 = vpop.f32.mrb[0].mxu0
  %7328 = vmatprep.mubr.f32.mxu0 0.0
  %7329 = vmatmul.mubr.f32.gmra.mrb[0].mxu0 %v7207
  %v7330 = vpop.f32.mrb[0].mxu0
  %v7331 = vadd.f32 %v7232, %v7330
  %v7332 = vpop.f32.mrb[0].mxu0
  %7333 = vmatprep.mubr.f32.mxu0 0.0
  %7334 = vmatmul.mubr.f32.gmra.mrb[0].mxu0 %v7208
  %v7335 = vpop.f32.mrb[0].mxu0
  %v7336 = vadd.f32 %v7232, %v7335
  %v7337 = vpop.f32.mrb[0].mxu0
  %7338 = vdwg.mxu0
  %s7339 = scalar_lea.vmem %s12, 2
  %v7340 = vld [vmem:[%s7339] sm:$0x3]
  %v7341 = vadd.f32 %v6987, %v7301
  %v7342 = vadd.f32 %v6988, %v7306
  %v7343 = vadd.f32 %v6989, %v7311
  %v7344 = vadd.f32 %v6990, %v7316
  %v7345 = vadd.f32 %v6991, %v7321
  %v7346 = vadd.f32 %v6992, %v7326
  %v7347 = vadd.f32 %v6993, %v7331
  %v7348 = vadd.f32 %v6994, %v7336
  %v7349 = vsel %vm67, %v7341, 0.0
  %7350 = vadd.xlane.f32.xlu0 %v7349
  %v7351 = vpop.xlane.xlu0 %7350
  %v7352 = vsel %vm67, %v7342, 0.0
  %7353 = vadd.xlane.f32.xlu0 %v7352
  %v7354 = vpop.xlane.xlu0 %7353
  %v7355 = vsel %vm67, %v7343, 0.0
  %7356 = vadd.xlane.f32.xlu0 %v7355
  %v7357 = vpop.xlane.xlu0 %7356
  %v7358 = vsel %vm67, %v7344, 0.0
  %7359 = vadd.xlane.f32.xlu0 %v7358
  %v7360 = vpop.xlane.xlu0 %7359
  %v7361 = vsel %vm67, %v7345, 0.0
  %7362 = vadd.xlane.f32.xlu0 %v7361
  %v7363 = vpop.xlane.xlu0 %7362
  %v7364 = vsel %vm67, %v7346, 0.0
  %7365 = vadd.xlane.f32.xlu0 %v7364
  %v7366 = vpop.xlane.xlu0 %7365
  %v7367 = vsel %vm67, %v7347, 0.0
  %7368 = vadd.xlane.f32.xlu0 %v7367
  %v7369 = vpop.xlane.xlu0 %7368
  %v7370 = vsel %vm67, %v7348, 0.0
  %7371 = vadd.xlane.f32.xlu0 %v7370
  %v7372 = vpop.xlane.xlu0 %7371
  %v7373 = vmul.f32 %v7351, %v92
  %v7374 = vmul.f32 %v7354, %v92
  %v7375 = vmul.f32 %v7357, %v92
  %v7376 = vmul.f32 %v7360, %v92
  %v7377 = vmul.f32 %v7363, %v92
  %v7378 = vmul.f32 %v7366, %v92
  %v7379 = vmul.f32 %v7369, %v92
  %v7380 = vmul.f32 %v7372, %v92
  %v7381 = vsub.f32 %v7341, %v7373
  %v7382 = vsub.f32 %v7342, %v7374
  %v7383 = vsub.f32 %v7343, %v7375
  %v7384 = vsub.f32 %v7344, %v7376
  %v7385 = vsub.f32 %v7345, %v7377
  %v7386 = vsub.f32 %v7346, %v7378
  %v7387 = vsub.f32 %v7347, %v7379
  %v7388 = vsub.f32 %v7348, %v7380
  %v7389 = vmul.f32 %v7381, %v7381
  %v7390 = vmul.f32 %v7382, %v7382
  %v7391 = vmul.f32 %v7383, %v7383
  %v7392 = vmul.f32 %v7384, %v7384
  %v7393 = vmul.f32 %v7385, %v7385
  %v7394 = vmul.f32 %v7386, %v7386
  %v7395 = vmul.f32 %v7387, %v7387
  %v7396 = vmul.f32 %v7388, %v7388
  %v7397 = vsel %vm67, %v7389, 0.0
  %7398 = vadd.xlane.f32.xlu0 %v7397
  %v7399 = vpop.xlane.xlu0 %7398
  %v7400 = vsel %vm67, %v7390, 0.0
  %7401 = vadd.xlane.f32.xlu0 %v7400
  %v7402 = vpop.xlane.xlu0 %7401
  %v7403 = vsel %vm67, %v7391, 0.0
  %7404 = vadd.xlane.f32.xlu0 %v7403
  %v7405 = vpop.xlane.xlu0 %7404
  %v7406 = vsel %vm67, %v7392, 0.0
  %7407 = vadd.xlane.f32.xlu0 %v7406
  %v7408 = vpop.xlane.xlu0 %7407
  %v7409 = vsel %vm67, %v7393, 0.0
  %7410 = vadd.xlane.f32.xlu0 %v7409
  %v7411 = vpop.xlane.xlu0 %7410
  %v7412 = vsel %vm67, %v7394, 0.0
  %7413 = vadd.xlane.f32.xlu0 %v7412
  %v7414 = vpop.xlane.xlu0 %7413
  %v7415 = vsel %vm67, %v7395, 0.0
  %7416 = vadd.xlane.f32.xlu0 %v7415
  %v7417 = vpop.xlane.xlu0 %7416
  %v7418 = vsel %vm67, %v7396, 0.0
  %7419 = vadd.xlane.f32.xlu0 %v7418
  %v7420 = vpop.xlane.xlu0 %7419
  %v7421 = vmul.f32 %v7399, %v92
  %v7422 = vmul.f32 %v7402, %v92
  %v7423 = vmul.f32 %v7405, %v92
  %v7424 = vmul.f32 %v7408, %v92
  %v7425 = vmul.f32 %v7411, %v92
  %v7426 = vmul.f32 %v7414, %v92
  %v7427 = vmul.f32 %v7417, %v92
  %v7428 = vmul.f32 %v7420, %v92
  %v7429 = vadd.f32 %v7421, 1e-05
  %v7430 = vadd.f32 %v7422, 1e-05
  %v7431 = vadd.f32 %v7423, 1e-05
  %v7432 = vadd.f32 %v7424, 1e-05
  %v7433 = vadd.f32 %v7425, 1e-05
  %v7434 = vadd.f32 %v7426, 1e-05
  %v7435 = vadd.f32 %v7427, 1e-05
  %v7436 = vadd.f32 %v7428, 1e-05
  %v7437 = vrsqrt.pop %v7429
  %v7438 = vrsqrt.pop %v7430
  %v7439 = vrsqrt.pop %v7431
  %v7440 = vrsqrt.pop %v7432
  %v7441 = vrsqrt.pop %v7433
  %v7442 = vrsqrt.pop %v7434
  %v7443 = vrsqrt.pop %v7435
  %v7444 = vrsqrt.pop %v7436
  %v7445 = vmul.f32 %v7381, %v7437
  %v7446 = vmul.f32 %v7382, %v7438
  %v7447 = vmul.f32 %v7383, %v7439
  %v7448 = vmul.f32 %v7384, %v7440
  %v7449 = vmul.f32 %v7385, %v7441
  %v7450 = vmul.f32 %v7386, %v7442
  %v7451 = vmul.f32 %v7387, %v7443
  %v7452 = vmul.f32 %v7388, %v7444
  %v7453 = vlaneseq
  %v7454 = vshrl.u32 %v7453, 7
  %v7455 = vsub.s32 0, %v7454
  %v7456 = vrot.slane %v7340, %v7455
  %v7457 = vmul.f32 %v7445, %v7456
  %v7458 = vmul.f32 %v7446, %v7456
  %v7459 = vmul.f32 %v7447, %v7456
  %v7460 = vmul.f32 %v7448, %v7456
  %v7461 = vmul.f32 %v7449, %v7456
  %v7462 = vmul.f32 %v7450, %v7456
  %v7463 = vmul.f32 %v7451, %v7456
  %v7464 = vmul.f32 %v7452, %v7456
  %v7465 = vlaneseq
  %v7466 = vshrl.u32 %v7465, 7
  %v7467 = vsub.s32 1, %v7466
  %v7468 = vrot.slane %v7340, %v7467
  %v7469 = vadd.f32 %v7457, %v7468
  %v7470 = vadd.f32 %v7458, %v7468
  %v7471 = vadd.f32 %v7459, %v7468
  %v7472 = vadd.f32 %v7460, %v7468
  %v7473 = vadd.f32 %v7461, %v7468
  %v7474 = vadd.f32 %v7462, %v7468
  %v7475 = vadd.f32 %v7463, %v7468
  %v7476 = vadd.f32 %v7464, %v7468
  %v7477 = vld [vmem:[%s13] sm:$0xff]
  %v7478 = vld [vmem:[%s13 + $0x8] sm:$0xff]
  %v7479 = vld [vmem:[%s13 + $0x10] sm:$0xff]
  %v7480 = vld [vmem:[%s13 + $0x18] sm:$0xff]
  %v7481 = vld [vmem:[%s14] sm:$0x1]
  %v7483 = vlaneseq
  %v7484 = vshrl.u32 %v7483, 7
  %v7485 = vsub.s32 0, %v7484
  %v7486 = vrot.slane %v7481, %v7485
  %v7496 = vrot.slane %v7470, 7
  %vm7497 = vcmask 1041409
  %v7498 = vsel %vm7497, %v7496, %v7469
  %v7499 = vrot.slane %v7471, 6
  %vm7500 = vcmask 1042434
  %v7501 = vsel %vm7500, %v7499, %v7498
  %v7502 = vrot.slane %v7472, 5
  %vm7503 = vcmask 1043459
  %v7504 = vsel %vm7503, %v7502, %v7501
  %v7505 = vrot.slane %v7473, 4
  %vm7506 = vcmask 1044484
  %v7507 = vsel %vm7506, %v7505, %v7504
  %v7508 = vrot.slane %v7474, 3
  %vm7509 = vcmask 1045509
  %v7510 = vsel %vm7509, %v7508, %v7507
  %v7511 = vrot.slane %v7475, 2
  %vm7512 = vcmask 1046534
  %v7513 = vsel %vm7512, %v7511, %v7510
  %v7514 = vrot.slane %v7476, 1
  %vm7515 = vcmask 1047559
  %v7516 = vsel %vm7515, %v7514, %v7513
  %v7517 = vsel %vm67, %v7516, 0
  %7519 = vmatprep.subr.mxu0 0.0
  %7520 = vmatpush1.msra.mxu0 %v7477
  %7521 = vmatprep.subr.mxu0 0.0
  %7522 = vmatpush1.msra.mxu0 %v7478
  %7523 = vmatprep.subr.mxu0 0.0
  %7524 = vmatpush1.msra.mxu0 %v7479
  %7525 = vmatprep.subr.mxu0 0.0
  %7526 = vmatpush1.msra.mxu0 %v7480
  %7527 = vmatprep.subr.mxu0 0.0
  %7528 = vmatpush1.msra.mxu0 0.0
  %7529 = vmatprep.subr.mxu0 0.0
  %7530 = vmatpush1.msra.mxu0 0.0
  %7531 = vmatprep.subr.mxu0 0.0
  %7532 = vmatpush1.msra.mxu0 0.0
  %7533 = vmatprep.subr.mxu0 0.0
  %7534 = vmatpush1.msra.mxu0 0.0
  %7535 = vmatprep.subr.mxu0 0.0
  %7536 = vmatpush1.msra.mxu0 0.0
  %7537 = vmatprep.subr.mxu0 0.0
  %7538 = vmatpush1.msra.mxu0 0.0
  %7539 = vmatprep.subr.mxu0 0.0
  %7540 = vmatpush1.msra.mxu0 0.0
  %7541 = vmatprep.subr.mxu0 0.0
  %7542 = vmatpush1.msra.mxu0 0.0
  %7543 = vmatprep.subr.mxu0 0.0
  %7544 = vmatpush1.msra.mxu0 0.0
  %7545 = vmatprep.subr.mxu0 0.0
  %7546 = vmatpush1.msra.mxu0 0.0
  %7547 = vmatprep.subr.mxu0 0.0
  %7548 = vmatpush1.msra.mxu0 0.0
  %7549 = vmatprep.subr.mxu0 0.0
  %7550 = vmatpush1.msra.mxu0 0.0
  %7551 = vmatprep.subr.mxu0 0.0
  %7552 = vmatpush1.msra.mxu0 0.0
  %7553 = vmatprep.subr.mxu0 0.0
  %7554 = vmatpush1.msra.mxu0 0.0
  %7555 = vmatprep.subr.mxu0 0.0
  %7556 = vmatpush1.msra.mxu0 0.0
  %7557 = vmatprep.subr.mxu0 0.0
  %7558 = vmatpush1.msra.mxu0 0.0
  %7559 = vmatprep.subr.mxu0 0.0
  %7560 = vmatpush1.msra.mxu0 0.0
  %7561 = vmatprep.subr.mxu0 0.0
  %7562 = vmatpush1.msra.mxu0 0.0
  %7563 = vmatprep.subr.mxu0 0.0
  %7564 = vmatpush1.msra.mxu0 0.0
  %7565 = vmatprep.subr.mxu0 0.0
  %7566 = vmatpush1.msra.mxu0 0.0
  %7567 = vmatprep.subr.mxu0 0.0
  %7568 = vmatpush1.msra.mxu0 0.0
  %7569 = vmatprep.subr.mxu0 0.0
  %7570 = vmatpush1.msra.mxu0 0.0
  %7571 = vmatprep.subr.mxu0 0.0
  %7572 = vmatpush1.msra.mxu0 0.0
  %7573 = vmatprep.subr.mxu0 0.0
  %7574 = vmatpush1.msra.mxu0 0.0
  %7575 = vmatprep.subr.mxu0 0.0
  %7576 = vmatpush1.msra.mxu0 0.0
  %7577 = vmatprep.subr.mxu0 0.0
  %7578 = vmatpush1.msra.mxu0 0.0
  %7579 = vmatprep.subr.mxu0 0.0
  %7580 = vmatpush1.msra.mxu0 0.0
  %7581 = vmatprep.subr.mxu0 0.0
  %7582 = vmatpush1.msra.mxu0 0.0
  %7583 = vmatprep.mubr.f32.mxu0 0.0
  %7584 = vmatmul.mubr.f32.gmra.mrb[0].mxu0 %v7517
  %v7585 = vpop.f32.mrb[0].mxu0
  %v7586 = vadd.f32 %v7486, %v7585
  %v7587 = vpop.f32.mrb[0].mxu0
  %7588 = vdwg.mxu0
  %v7589 = vtanh.pop %v7586
  %v7590 = vld [vmem:[%s15] sm:$0xff]
  %v7591 = vld [vmem:[%s15 + $0x8] sm:$0xff]
  %v7592 = vld [vmem:[%s15 + $0x10] sm:$0xff]
  %v7593 = vld [vmem:[%s15 + $0x18] sm:$0xff]
  %v7594 = vld [vmem:[#allocation2] sm:$0x1]
  %v7596 = vlaneseq
  %v7597 = vshrl.u32 %v7596, 7
  %v7598 = vsub.s32 0, %v7597
  %v7599 = vrot.slane %v7594, %v7598
  %v7602 = vsel %vm67, %v7589, 0
  %7604 = vmatprep.subr.mxu0 0.0
  %7605 = vmatpush1.msra.mxu0 %v7590
  %7606 = vmatprep.subr.mxu0 0.0
  %7607 = vmatpush1.msra.mxu0 %v7591
  %7608 = vmatprep.subr.mxu0 0.0
  %7609 = vmatpush1.msra.mxu0 %v7592
  %7610 = vmatprep.subr.mxu0 0.0
  %7611 = vmatpush1.msra.mxu0 %v7593
  %7612 = vmatprep.subr.mxu0 0.0
  %7613 = vmatpush1.msra.mxu0 0.0
  %7614 = vmatprep.subr.mxu0 0.0
  %7615 = vmatpush1.msra.mxu0 0.0
  %7616 = vmatprep.subr.mxu0 0.0
  %7617 = vmatpush1.msra.mxu0 0.0
  %7618 = vmatprep.subr.mxu0 0.0
  %7619 = vmatpush1.msra.mxu0 0.0
  %7620 = vmatprep.subr.mxu0 0.0
  %7621 = vmatpush1.msra.mxu0 0.0
  %7622 = vmatprep.subr.mxu0 0.0
  %7623 = vmatpush1.msra.mxu0 0.0
  %7624 = vmatprep.subr.mxu0 0.0
  %7625 = vmatpush1.msra.mxu0 0.0
  %7626 = vmatprep.subr.mxu0 0.0
  %7627 = vmatpush1.msra.mxu0 0.0
  %7628 = vmatprep.subr.mxu0 0.0
  %7629 = vmatpush1.msra.mxu0 0.0
  %7630 = vmatprep.subr.mxu0 0.0
  %7631 = vmatpush1.msra.mxu0 0.0
  %7632 = vmatprep.subr.mxu0 0.0
  %7633 = vmatpush1.msra.mxu0 0.0
  %7634 = vmatprep.subr.mxu0 0.0
  %7635 = vmatpush1.msra.mxu0 0.0
  %7636 = vmatprep.subr.mxu0 0.0
  %7637 = vmatpush1.msra.mxu0 0.0
  %7638 = vmatprep.subr.mxu0 0.0
  %7639 = vmatpush1.msra.mxu0 0.0
  %7640 = vmatprep.subr.mxu0 0.0
  %7641 = vmatpush1.msra.mxu0 0.0
  %7642 = vmatprep.subr.mxu0 0.0
  %7643 = vmatpush1.msra.mxu0 0.0
  %7644 = vmatprep.subr.mxu0 0.0
  %7645 = vmatpush1.msra.mxu0 0.0
  %7646 = vmatprep.subr.mxu0 0.0
  %7647 = vmatpush1.msra.mxu0 0.0
  %7648 = vmatprep.subr.mxu0 0.0
  %7649 = vmatpush1.msra.mxu0 0.0
  %7650 = vmatprep.subr.mxu0 0.0
  %7651 = vmatpush1.msra.mxu0 0.0
  %7652 = vmatprep.subr.mxu0 0.0
  %7653 = vmatpush1.msra.mxu0 0.0
  %7654 = vmatprep.subr.mxu0 0.0
  %7655 = vmatpush1.msra.mxu0 0.0
  %7656 = vmatprep.subr.mxu0 0.0
  %7657 = vmatpush1.msra.mxu0 0.0
  %7658 = vmatprep.subr.mxu0 0.0
  %7659 = vmatpush1.msra.mxu0 0.0
  %7660 = vmatprep.subr.mxu0 0.0
  %7661 = vmatpush1.msra.mxu0 0.0
  %7662 = vmatprep.subr.mxu0 0.0
  %7663 = vmatpush1.msra.mxu0 0.0
  %7664 = vmatprep.subr.mxu0 0.0
  %7665 = vmatpush1.msra.mxu0 0.0
  %7666 = vmatprep.subr.mxu0 0.0
  %7667 = vmatpush1.msra.mxu0 0.0
  %7668 = vmatprep.mubr.f32.mxu0 0.0
  %7669 = vmatmul.mubr.f32.gmra.mrb[0].mxu0 %v7602
  %v7670 = vpop.f32.mrb[0].mxu0
  %v7671 = vadd.f32 %v7599, %v7670
  %v7672 = vpop.f32.mrb[0].mxu0
  %7673 = vdwg.mxu0
  %vm7674 = vcmask 7168
  %7675 = vst.msk [vmem:[%s17] sm:$0xff] %vm7674, %v7671
  // Predicated region
  $region70: #{tpu_custom_call.1} parent=0 // pred_check
    _
  $region71: #{tpu_custom_call.1} parent=0 // pred_check_branch
    %7677 = sbr.rel (0) target = $region73
  $region72: #{tpu_custom_call.1} parent=0 // pred_region
    _
  $region73: #{tpu_custom_call.1} parent=0 // pred_fallthru
    _
  // Predicated region
  $region74: #{tpu_custom_call.1} parent=0 // pred_check
    _
  $region75: #{tpu_custom_call.1} parent=0 // pred_check_branch
    %7679 = sbr.rel (0) target = $region77
  $region76: #{tpu_custom_call.1} parent=0 // pred_region
    _
  $region77: #{tpu_custom_call.1} parent=0 // pred_fallthru
    _

</llo_original>
